<compile_context>
chip_gen: v7x
topology: tpu7x:2x2x1
jax: 0.10.0
libtpu: 0.0.40
codegen_flags: <defaults>
</compile_context>

<pallas_src>
import jax
import jax.numpy as jnp
import numpy as np
from jax.experimental import pallas as pl
from jax.experimental.pallas import tpu as pltpu

# ---- scaled-down hyperparameters (module: b=64, d=64, nz=100, nc=1, L0=16,
#      kernel 25, stride 4; structure preserved, sizes shrunk) ----
B  = 2      # batch
D  = 4      # width multiplier
NZ = 16     # latent dim
NC = 1      # output channels
L0 = 4      # initial sequence length after Reshape
K  = 5      # conv-transpose kernel size
S  = 4      # stride

CH = [16 * D, 8 * D, 4 * D, 2 * D, D, NC]          # [64, 32, 16, 8, 4, 1]

# valid sequence lengths per activation: 4 -> 17 -> 69 -> 277 -> 1109 -> 4437
LV = [L0]
for _ in range(5):
    LV.append((LV[-1] - 1) * S + K)

# lane-dense packing: GA[n] positions per row, lane = pos_in_block*CH[n] + channel.
GA = [1, 4, 16, 64, 256, 1024]
LW = [GA[n] * CH[n] for n in range(6)]             # [64, 128, 256, 512, 1024, 1024]
RPB = 8                                            # rows per batch (valid rows <= 5)

assert all(GA[n + 1] == S * GA[n] for n in range(5))
assert all((LV[n] + GA[n] - 1) // GA[n] <= RPB for n in range(6))


# ------------------------------ fused kernel ------------------------------

def _generator_kernel(z_ref, lw_ref, lb_ref,
                      wp0, wp1, wp2, wp3, wp4,
                      bt0, bt1, bt2, bt3, bt4,
                      m1, m2, m3, m4,
                      out_ref,
                      h0, h1, h2, h3, h4, sp):
    f32 = jnp.float32
    c0 = CH[0]

    # ---- Linear(nz, C0*L0) + ReLU for this batch element -> h0 packed (RPB, C0).
    # z_ref row 0 holds the latent; rows 1..7 are zero padding (ignored).
    a0 = jnp.dot(z_ref[...], lw_ref[...], preferred_element_type=f32) + lb_ref[...]
    a0 = jnp.maximum(a0, 0.0)                                  # (RPB, L0*C0), pos-major cols
    for l in range(L0):
        h0[l:l + 1, :] = a0[0:1, l * c0:(l + 1) * c0]
    h0[L0:RPB, :] = jnp.zeros((RPB - L0, c0), f32)             # zero pad rows once

    h_refs = [h0, h1, h2, h3, h4]
    wps = [wp0, wp1, wp2, wp3, wp4]
    bts = [bt0, bt1, bt2, bt3, bt4]
    msk = [None, m1, m2, m3, m4]

    # ---- 5x ConvTranspose1d, each = one lane-dense MXU matmul + spill fold.
    for i in range(5):
        cout = CH[i + 1]
        lw_out = GA[i + 1] * cout
        x = h_refs[i][...]                                     # (RPB, LW[i]) raw
        if i > 0:
            # bias + ReLU of conv i-1 applied at consume time; mask zeroes pad
            # positions so they cannot leak into valid outputs.
            x = jnp.maximum(x + bts[i - 1][...], 0.0) * msk[i][...]
        # block-diagonal tap-replicated weight: overlap-add happens inside the dot.
        y = jnp.dot(x, wps[i][...], preferred_element_type=f32)  # (RPB, lw_out + cout)
        main = y[:, :lw_out]
        spill = y[:, lw_out:lw_out + cout]     # tap-4 of each row's last position

        if i < 4:
            dst = h_refs[i + 1]
            dst[...] = main                                    # full-width unmasked store
            # spill of row r lands at row r+1, lanes 0..cout-1 (tiny RMW).
            cur = dst[1:RPB, 0:cout]
            dst[1:RPB, 0:cout] = cur + spill[0:RPB - 1, :]
        else:
            # final conv (cout == 1): fold spill in registers via a tiny scratch
            # column shift, then bias + tanh and a single full-width store.
            sp[0:1, 0:1] = jnp.zeros((1, 1), f32)
            sp[1:RPB, 0:1] = spill[0:RPB - 1, :]
            lane = jax.lax.broadcasted_iota(jnp.int32, (RPB, lw_out), 1)
            full = main + jnp.where(lane == 0, sp[:, 0:1], 0.0)
            out_ref[...] = jnp.tanh(full + bts[4][...])


def _rep_spec(shape):
    nd = len(shape)
    return pl.BlockSpec(shape, lambda b, nd=nd: (0,) * nd)


def generator_forward(kparams, z):
    # one z row per batch block of RPB rows (keeps everything static in-kernel).
    z_pad = jnp.zeros((B * RPB, NZ), jnp.float32).at[::RPB, :].set(z)

    inputs = [z_pad, kparams["lin_w"], kparams["lin_b"]]
    in_specs = [pl.BlockSpec((RPB, NZ), lambda b: (b, 0)),
                _rep_spec(kparams["lin_w"].shape),
                _rep_spec(kparams["lin_b"].shape)]
    for i in range(5):
        inputs.append(kparams[f"wp{i}"])
        in_specs.append(_rep_spec(kparams[f"wp{i}"].shape))
    for i in range(5):
        inputs.append(kparams[f"bt{i}"])
        in_specs.append(_rep_spec(kparams[f"bt{i}"].shape))
    for i in range(1, 5):
        inputs.append(kparams[f"m{i}"])
        in_specs.append(_rep_spec(kparams[f"m{i}"].shape))

    res = pl.pallas_call(
        _generator_kernel,
        out_shape=jax.ShapeDtypeStruct((B * RPB, LW[5]), jnp.float32),
        grid=(B,),
        in_specs=in_specs,
        out_specs=pl.BlockSpec((RPB, LW[5]), lambda b: (b, 0)),
        scratch_shapes=[pltpu.VMEM((RPB, LW[i]), jnp.float32) for i in range(5)]
                      + [pltpu.VMEM((RPB, 128), jnp.float32)],
        compiler_params=pltpu.CompilerParams(
            dimension_semantics=("parallel",),
            vmem_limit_bytes=32 * 1024 * 1024),
    )(*inputs)

    # (B*RPB, 1024) rows are already per-batch waveform order -> free reshape+slice.
    out = res.reshape(B, RPB * LW[5])[:, :LV[5]]
    return out.reshape(B, NC, LV[5])


# --------------------------- parameters & prep ---------------------------

def init_params(key):
    """PyTorch-layout parameters (Linear weight as (in,out) with out index
    c*L0 + l; ConvTranspose1d weights as (Cin, Cout, K))."""
    keys = jax.random.split(key, 12)
    params = {
        "lin_w": 0.25 * jax.random.normal(keys[0], (NZ, CH[0] * L0), jnp.float32),
        "lin_b": 0.1 * jax.random.normal(keys[1], (CH[0] * L0,), jnp.float32),
        "convs": [],
    }
    for li in range(5):
        cin, cout = CH[li], CH[li + 1]
        scale = 0.7 / np.sqrt(cin)
        w = scale * jax.random.normal(keys[2 + 2 * li], (cin, cout, K), jnp.float32)
        bb = 0.1 * jax.random.normal(keys[3 + 2 * li], (cout,), jnp.float32)
        params["convs"].append((w, bb))
    return params


def prepare_kernel_params(params):
    """One-time host-side re-layout: linear columns become position-major; conv
    weights become block-diagonal tap-replicated (G*Cin, (4G+1)*Cout); biases are
    tiled to the packed lane width; 0/1 valid-position masks per activation."""
    c0 = CH[0]
    kp = {
        "lin_w": jnp.asarray(np.asarray(params["lin_w"]).reshape(NZ, c0, L0)
                             .transpose(0, 2, 1).reshape(NZ, L0 * c0)),
        "lin_b": jnp.asarray(np.asarray(params["lin_b"]).reshape(c0, L0)
                             .T.reshape(1, L0 * c0)),
    }
    for i, (w, bb) in enumerate(params["convs"]):
        cin, cout = CH[i], CH[i + 1]
        g_in = GA[i]
        wnp = np.asarray(w, np.float32)
        wp = np.zeros((g_in * cin, (4 * g_in + 1) * cout), np.float32)
        for g in range(g_in):
            for k in range(K):
                col = (4 * g + k) * cout
                wp[g * cin:(g + 1) * cin, col:col + cout] = wnp[:, :, k]
        kp[f"wp{i}"] = jnp.asarray(wp)
        kp[f"bt{i}"] = jnp.asarray(np.tile(np.asarray(bb, np.float32), GA[i + 1])
                                   .reshape(1, GA[i + 1] * cout))
    for i in range(1, 5):
        g, c, lv = GA[i], CH[i], LV[i]
        m = np.zeros((RPB, g * c), np.float32)
        for r in range(RPB):
            nvalid = min(max(lv - r * g, 0), g)
            if nvalid > 0:
                m[r, :nvalid * c] = 1.0
        kp[f"m{i}"] = jnp.asarray(m)
    return kp


# --------------------------- pure-JAX reference ---------------------------

def reference_forward(params, z):
    hi = jax.lax.Precision.HIGHEST
    h = jnp.maximum(jnp.dot(z, params["lin_w"], precision=hi) + params["lin_b"], 0.0)
    h = h.reshape(B, CH[0], L0)                                    # NCL
    for li, (w, bb) in enumerate(params["convs"]):
        Bn, Cin, L = h.shape
        Cout = w.shape[1]
        Lout = (L - 1) * S + K
        y = jnp.einsum("bci,cok->boik", h, w, precision=hi)        # (B,Cout,L,K)
        out = jnp.zeros((Bn, Cout, Lout), jnp.float32)
        for k in range(K):
            out = out.at[:, :, k:k + (L - 1) * S + 1:S].add(y[:, :, :, k])
        out = out + bb.reshape(1, Cout, 1)
        h = jnp.tanh(out) if li == 4 else jnp.maximum(out, 0.0)
    return h                                                       # (B, NC, 4437)


if __name__ == "__main__":
    key = jax.random.PRNGKey(0)
    pkey, zkey = jax.random.split(key)
    params = init_params(pkey)
    kparams = prepare_kernel_params(params)
    z = jax.random.normal(zkey, (B, NZ), jnp.float32)

    out = jax.jit(generator_forward)(kparams, z)
    out = jax.block_until_ready(out)

    assert out.shape == (B, NC, LV[5]), out.shape
    assert bool(jnp.all(jnp.isfinite(out)))
    assert bool(jnp.all(jnp.abs(out) <= 1.0))        # tanh output range

    ref = reference_forward(params, z)
    err = float(jnp.max(jnp.abs(out - ref)))
    assert err < 2e-3, f"max abs err vs reference: {err}"

    print("KERNEL_OK")
</pallas_src>

<mosaic_0001>
module attributes {stable_mosaic.version = 11 : i64} {
  func.func @_generator_kernel(%arg0: i32, %arg1: memref<8x16xf32, #tpu.memory_space<vmem>>, %arg2: memref<16x256xf32, #tpu.memory_space<vmem>>, %arg3: memref<1x256xf32, #tpu.memory_space<vmem>>, %arg4: memref<64x160xf32, #tpu.memory_space<vmem>>, %arg5: memref<128x272xf32, #tpu.memory_space<vmem>>, %arg6: memref<256x520xf32, #tpu.memory_space<vmem>>, %arg7: memref<512x1028xf32, #tpu.memory_space<vmem>>, %arg8: memref<1024x1025xf32, #tpu.memory_space<vmem>>, %arg9: memref<1x128xf32, #tpu.memory_space<vmem>>, %arg10: memref<1x256xf32, #tpu.memory_space<vmem>>, %arg11: memref<1x512xf32, #tpu.memory_space<vmem>>, %arg12: memref<1x1024xf32, #tpu.memory_space<vmem>>, %arg13: memref<1x1024xf32, #tpu.memory_space<vmem>>, %arg14: memref<8x128xf32, #tpu.memory_space<vmem>>, %arg15: memref<8x256xf32, #tpu.memory_space<vmem>>, %arg16: memref<8x512xf32, #tpu.memory_space<vmem>>, %arg17: memref<8x1024xf32, #tpu.memory_space<vmem>>, %arg18: memref<8x1024xf32, #tpu.memory_space<vmem>>, %arg19: memref<8x64xf32, #tpu.memory_space<vmem>>, %arg20: memref<8x128xf32, #tpu.memory_space<vmem>>, %arg21: memref<8x256xf32, #tpu.memory_space<vmem>>, %arg22: memref<8x512xf32, #tpu.memory_space<vmem>>, %arg23: memref<8x1024xf32, #tpu.memory_space<vmem>>, %arg24: memref<8x128xf32, #tpu.memory_space<vmem>>) attributes {dimension_semantics = [#tpu.dimension_semantics<parallel>], iteration_bounds = array<i64: 2>, scalar_prefetch = 0 : i64, scratch_operands = 6 : i64, tpu.core_type = #tpu.core_type<tc>, window_params = [{transform_indices = @transform_0, window_bounds = array<i64: 8, 16>}, {pipeline_mode = #tpu.pipeline_mode<synchronous>, transform_indices = @transform_1, window_bounds = array<i64: 16, 256>}, {pipeline_mode = #tpu.pipeline_mode<synchronous>, transform_indices = @transform_2, window_bounds = array<i64: 1, 256>}, {pipeline_mode = #tpu.pipeline_mode<synchronous>, transform_indices = @transform_3, window_bounds = array<i64: 64, 160>}, {pipeline_mode = #tpu.pipeline_mode<synchronous>, transform_indices = @transform_4, window_bounds = array<i64: 128, 272>}, {pipeline_mode = #tpu.pipeline_mode<synchronous>, transform_indices = @transform_5, window_bounds = array<i64: 256, 520>}, {pipeline_mode = #tpu.pipeline_mode<synchronous>, transform_indices = @transform_6, window_bounds = array<i64: 512, 1028>}, {pipeline_mode = #tpu.pipeline_mode<synchronous>, transform_indices = @transform_7, window_bounds = array<i64: 1024, 1025>}, {pipeline_mode = #tpu.pipeline_mode<synchronous>, transform_indices = @transform_8, window_bounds = array<i64: 1, 128>}, {pipeline_mode = #tpu.pipeline_mode<synchronous>, transform_indices = @transform_9, window_bounds = array<i64: 1, 256>}, {pipeline_mode = #tpu.pipeline_mode<synchronous>, transform_indices = @transform_10, window_bounds = array<i64: 1, 512>}, {pipeline_mode = #tpu.pipeline_mode<synchronous>, transform_indices = @transform_11, window_bounds = array<i64: 1, 1024>}, {pipeline_mode = #tpu.pipeline_mode<synchronous>, transform_indices = @transform_12, window_bounds = array<i64: 1, 1024>}, {pipeline_mode = #tpu.pipeline_mode<synchronous>, transform_indices = @transform_13, window_bounds = array<i64: 8, 128>}, {pipeline_mode = #tpu.pipeline_mode<synchronous>, transform_indices = @transform_14, window_bounds = array<i64: 8, 256>}, {pipeline_mode = #tpu.pipeline_mode<synchronous>, transform_indices = @transform_15, window_bounds = array<i64: 8, 512>}, {pipeline_mode = #tpu.pipeline_mode<synchronous>, transform_indices = @transform_16, window_bounds = array<i64: 8, 1024>}, {transform_indices = @transform_17, window_bounds = array<i64: 8, 1024>}]} {
    %c0 = arith.constant 0 : index
    %c0_0 = arith.constant 0 : index
    %0 = vector.load %arg1[%c0, %c0_0] : memref<8x16xf32, #tpu.memory_space<vmem>>, vector<8x16xf32>
    %c0_1 = arith.constant 0 : index
    %c0_2 = arith.constant 0 : index
    %1 = vector.load %arg2[%c0_1, %c0_2] : memref<16x256xf32, #tpu.memory_space<vmem>>, vector<16x256xf32>
    %cst = arith.constant dense<0.000000e+00> : vector<8x256xf32>
    %2 = tpu.matmul %0, %1, %cst {dimension_numbers = #tpu.dot_dimension_numbers<[1], [0], [0], [1], [0, 0, 1, 1], [], []>} : vector<8x16xf32>, vector<16x256xf32>, vector<8x256xf32> -> vector<8x256xf32>
    %c0_3 = arith.constant 0 : index
    %c0_4 = arith.constant 0 : index
    %3 = vector.load %arg3[%c0_3, %c0_4] : memref<1x256xf32, #tpu.memory_space<vmem>>, vector<1x256xf32>
    %4 = vector.broadcast %3 : vector<1x256xf32> to vector<8x256xf32>
    %5 = arith.addf %2, %4 : vector<8x256xf32>
    %cst_5 = arith.constant 0.000000e+00 : f32
    %6 = vector.broadcast %cst_5 : f32 to vector<8x256xf32>
    %7 = arith.maximumf %5, %6 : vector<8x256xf32>
    %8 = vector.extract_strided_slice %7 {offsets = [0, 0], sizes = [1, 64], strides = [1, 1]} : vector<8x256xf32> to vector<1x64xf32>
    %c0_6 = arith.constant 0 : index
    %c0_7 = arith.constant 0 : index
    %9 = vector.load %arg19[%c0_6, %c0_7] : memref<8x64xf32, #tpu.memory_space<vmem>>, vector<1x64xf32>
    tpu.vector_store %arg19[%c0_6, %c0_7], %8 {strides = array<i32>} : memref<8x64xf32, #tpu.memory_space<vmem>>, vector<1x64xf32>,
    %10 = vector.extract_strided_slice %7 {offsets = [0, 64], sizes = [1, 64], strides = [1, 1]} : vector<8x256xf32> to vector<1x64xf32>
    %c1 = arith.constant 1 : index
    %c0_8 = arith.constant 0 : index
    %11 = vector.load %arg19[%c1, %c0_8] : memref<8x64xf32, #tpu.memory_space<vmem>>, vector<1x64xf32>
    tpu.vector_store %arg19[%c1, %c0_8], %10 {strides = array<i32>} : memref<8x64xf32, #tpu.memory_space<vmem>>, vector<1x64xf32>,
    %12 = vector.extract_strided_slice %7 {offsets = [0, 128], sizes = [1, 64], strides = [1, 1]} : vector<8x256xf32> to vector<1x64xf32>
    %c2 = arith.constant 2 : index
    %c0_9 = arith.constant 0 : index
    %13 = vector.load %arg19[%c2, %c0_9] : memref<8x64xf32, #tpu.memory_space<vmem>>, vector<1x64xf32>
    tpu.vector_store %arg19[%c2, %c0_9], %12 {strides = array<i32>} : memref<8x64xf32, #tpu.memory_space<vmem>>, vector<1x64xf32>,
    %14 = vector.extract_strided_slice %7 {offsets = [0, 192], sizes = [1, 64], strides = [1, 1]} : vector<8x256xf32> to vector<1x64xf32>
    %c3 = arith.constant 3 : index
    %c0_10 = arith.constant 0 : index
    %15 = vector.load %arg19[%c3, %c0_10] : memref<8x64xf32, #tpu.memory_space<vmem>>, vector<1x64xf32>
    tpu.vector_store %arg19[%c3, %c0_10], %14 {strides = array<i32>} : memref<8x64xf32, #tpu.memory_space<vmem>>, vector<1x64xf32>,
    %cst_11 = arith.constant 0.000000e+00 : f32
    %16 = vector.broadcast %cst_11 : f32 to vector<4x64xf32>
    %c4 = arith.constant 4 : index
    %c0_12 = arith.constant 0 : index
    %17 = vector.load %arg19[%c4, %c0_12] : memref<8x64xf32, #tpu.memory_space<vmem>>, vector<4x64xf32>
    tpu.vector_store %arg19[%c4, %c0_12], %16 {strides = array<i32>} : memref<8x64xf32, #tpu.memory_space<vmem>>, vector<4x64xf32>,
    %c0_13 = arith.constant 0 : index
    %c0_14 = arith.constant 0 : index
    %18 = vector.load %arg19[%c0_13, %c0_14] : memref<8x64xf32, #tpu.memory_space<vmem>>, vector<8x64xf32>
    %c0_15 = arith.constant 0 : index
    %c0_16 = arith.constant 0 : index
    %19 = vector.load %arg4[%c0_15, %c0_16] : memref<64x160xf32, #tpu.memory_space<vmem>>, vector<64x160xf32>
    %cst_17 = arith.constant dense<0.000000e+00> : vector<8x160xf32>
    %20 = tpu.matmul %18, %19, %cst_17 {dimension_numbers = #tpu.dot_dimension_numbers<[1], [0], [0], [1], [0, 0, 1, 1], [], []>} : vector<8x64xf32>, vector<64x160xf32>, vector<8x160xf32> -> vector<8x160xf32>
    %21 = vector.extract_strided_slice %20 {offsets = [0, 0], sizes = [8, 128], strides = [1, 1]} : vector<8x160xf32> to vector<8x128xf32>
    %22 = vector.extract_strided_slice %20 {offsets = [0, 128], sizes = [8, 32], strides = [1, 1]} : vector<8x160xf32> to vector<8x32xf32>
    %c0_18 = arith.constant 0 : index
    %c0_19 = arith.constant 0 : index
    %23 = vector.load %arg20[%c0_18, %c0_19] : memref<8x128xf32, #tpu.memory_space<vmem>>, vector<8x128xf32>
    tpu.vector_store %arg20[%c0_18, %c0_19], %21 {strides = array<i32>} : memref<8x128xf32, #tpu.memory_space<vmem>>, vector<8x128xf32>,
    %c1_20 = arith.constant 1 : index
    %c0_21 = arith.constant 0 : index
    %24 = vector.load %arg20[%c1_20, %c0_21] : memref<8x128xf32, #tpu.memory_space<vmem>>, vector<7x32xf32>
    %25 = vector.extract_strided_slice %22 {offsets = [0, 0], sizes = [7, 32], strides = [1, 1]} : vector<8x32xf32> to vector<7x32xf32>
    %26 = arith.addf %24, %25 : vector<7x32xf32>
    %c1_22 = arith.constant 1 : index
    %c0_23 = arith.constant 0 : index
    %27 = vector.load %arg20[%c1_22, %c0_23] : memref<8x128xf32, #tpu.memory_space<vmem>>, vector<7x32xf32>
    tpu.vector_store %arg20[%c1_22, %c0_23], %26 {strides = array<i32>} : memref<8x128xf32, #tpu.memory_space<vmem>>, vector<7x32xf32>,
    %c0_24 = arith.constant 0 : index
    %c0_25 = arith.constant 0 : index
    %28 = vector.load %arg20[%c0_24, %c0_25] : memref<8x128xf32, #tpu.memory_space<vmem>>, vector<8x128xf32>
    %c0_26 = arith.constant 0 : index
    %c0_27 = arith.constant 0 : index
    %29 = vector.load %arg9[%c0_26, %c0_27] : memref<1x128xf32, #tpu.memory_space<vmem>>, vector<1x128xf32>
    %30 = vector.broadcast %29 : vector<1x128xf32> to vector<8x128xf32>
    %31 = arith.addf %28, %30 : vector<8x128xf32>
    %cst_28 = arith.constant 0.000000e+00 : f32
    %32 = vector.broadcast %cst_28 : f32 to vector<8x128xf32>
    %33 = arith.maximumf %31, %32 : vector<8x128xf32>
    %c0_29 = arith.constant 0 : index
    %c0_30 = arith.constant 0 : index
    %34 = vector.load %arg14[%c0_29, %c0_30] : memref<8x128xf32, #tpu.memory_space<vmem>>, vector<8x128xf32>
    %35 = arith.mulf %33, %34 : vector<8x128xf32>
    %c0_31 = arith.constant 0 : index
    %c0_32 = arith.constant 0 : index
    %36 = vector.load %arg5[%c0_31, %c0_32] : memref<128x272xf32, #tpu.memory_space<vmem>>, vector<128x272xf32>
    %cst_33 = arith.constant dense<0.000000e+00> : vector<8x272xf32>
    %37 = tpu.matmul %35, %36, %cst_33 {dimension_numbers = #tpu.dot_dimension_numbers<[1], [0], [0], [1], [0, 0, 1, 1], [], []>} : vector<8x128xf32>, vector<128x272xf32>, vector<8x272xf32> -> vector<8x272xf32>
    %38 = vector.extract_strided_slice %37 {offsets = [0, 0], sizes = [8, 256], strides = [1, 1]} : vector<8x272xf32> to vector<8x256xf32>
    %39 = vector.extract_strided_slice %37 {offsets = [0, 256], sizes = [8, 16], strides = [1, 1]} : vector<8x272xf32> to vector<8x16xf32>
    %c0_34 = arith.constant 0 : index
    %c0_35 = arith.constant 0 : index
    %40 = vector.load %arg21[%c0_34, %c0_35] : memref<8x256xf32, #tpu.memory_space<vmem>>, vector<8x256xf32>
    tpu.vector_store %arg21[%c0_34, %c0_35], %38 {strides = array<i32>} : memref<8x256xf32, #tpu.memory_space<vmem>>, vector<8x256xf32>,
    %c1_36 = arith.constant 1 : index
    %c0_37 = arith.constant 0 : index
    %41 = vector.load %arg21[%c1_36, %c0_37] : memref<8x256xf32, #tpu.memory_space<vmem>>, vector<7x16xf32>
    %42 = vector.extract_strided_slice %39 {offsets = [0, 0], sizes = [7, 16], strides = [1, 1]} : vector<8x16xf32> to vector<7x16xf32>
    %43 = arith.addf %41, %42 : vector<7x16xf32>
    %c1_38 = arith.constant 1 : index
    %c0_39 = arith.constant 0 : index
    %44 = vector.load %arg21[%c1_38, %c0_39] : memref<8x256xf32, #tpu.memory_space<vmem>>, vector<7x16xf32>
    tpu.vector_store %arg21[%c1_38, %c0_39], %43 {strides = array<i32>} : memref<8x256xf32, #tpu.memory_space<vmem>>, vector<7x16xf32>,
    %c0_40 = arith.constant 0 : index
    %c0_41 = arith.constant 0 : index
    %45 = vector.load %arg21[%c0_40, %c0_41] : memref<8x256xf32, #tpu.memory_space<vmem>>, vector<8x256xf32>
    %c0_42 = arith.constant 0 : index
    %c0_43 = arith.constant 0 : index
    %46 = vector.load %arg10[%c0_42, %c0_43] : memref<1x256xf32, #tpu.memory_space<vmem>>, vector<1x256xf32>
    %47 = vector.broadcast %46 : vector<1x256xf32> to vector<8x256xf32>
    %48 = arith.addf %45, %47 : vector<8x256xf32>
    %cst_44 = arith.constant 0.000000e+00 : f32
    %49 = vector.broadcast %cst_44 : f32 to vector<8x256xf32>
    %50 = arith.maximumf %48, %49 : vector<8x256xf32>
    %c0_45 = arith.constant 0 : index
    %c0_46 = arith.constant 0 : index
    %51 = vector.load %arg15[%c0_45, %c0_46] : memref<8x256xf32, #tpu.memory_space<vmem>>, vector<8x256xf32>
    %52 = arith.mulf %50, %51 : vector<8x256xf32>
    %c0_47 = arith.constant 0 : index
    %c0_48 = arith.constant 0 : index
    %53 = vector.load %arg6[%c0_47, %c0_48] : memref<256x520xf32, #tpu.memory_space<vmem>>, vector<256x520xf32>
    %cst_49 = arith.constant dense<0.000000e+00> : vector<8x520xf32>
    %54 = tpu.matmul %52, %53, %cst_49 {dimension_numbers = #tpu.dot_dimension_numbers<[1], [0], [0], [1], [0, 0, 1, 1], [], []>} : vector<8x256xf32>, vector<256x520xf32>, vector<8x520xf32> -> vector<8x520xf32>
    %55 = vector.extract_strided_slice %54 {offsets = [0, 0], sizes = [8, 512], strides = [1, 1]} : vector<8x520xf32> to vector<8x512xf32>
    %56 = vector.extract_strided_slice %54 {offsets = [0, 512], sizes = [8, 8], strides = [1, 1]} : vector<8x520xf32> to vector<8x8xf32>
    %c0_50 = arith.constant 0 : index
    %c0_51 = arith.constant 0 : index
    %57 = vector.load %arg22[%c0_50, %c0_51] : memref<8x512xf32, #tpu.memory_space<vmem>>, vector<8x512xf32>
    tpu.vector_store %arg22[%c0_50, %c0_51], %55 {strides = array<i32>} : memref<8x512xf32, #tpu.memory_space<vmem>>, vector<8x512xf32>,
    %c1_52 = arith.constant 1 : index
    %c0_53 = arith.constant 0 : index
    %58 = vector.load %arg22[%c1_52, %c0_53] : memref<8x512xf32, #tpu.memory_space<vmem>>, vector<7x8xf32>
    %59 = vector.extract_strided_slice %56 {offsets = [0, 0], sizes = [7, 8], strides = [1, 1]} : vector<8x8xf32> to vector<7x8xf32>
    %60 = arith.addf %58, %59 : vector<7x8xf32>
    %c1_54 = arith.constant 1 : index
    %c0_55 = arith.constant 0 : index
    %61 = vector.load %arg22[%c1_54, %c0_55] : memref<8x512xf32, #tpu.memory_space<vmem>>, vector<7x8xf32>
    tpu.vector_store %arg22[%c1_54, %c0_55], %60 {strides = array<i32>} : memref<8x512xf32, #tpu.memory_space<vmem>>, vector<7x8xf32>,
    %c0_56 = arith.constant 0 : index
    %c0_57 = arith.constant 0 : index
    %62 = vector.load %arg22[%c0_56, %c0_57] : memref<8x512xf32, #tpu.memory_space<vmem>>, vector<8x512xf32>
    %c0_58 = arith.constant 0 : index
    %c0_59 = arith.constant 0 : index
    %63 = vector.load %arg11[%c0_58, %c0_59] : memref<1x512xf32, #tpu.memory_space<vmem>>, vector<1x512xf32>
    %64 = vector.broadcast %63 : vector<1x512xf32> to vector<8x512xf32>
    %65 = arith.addf %62, %64 : vector<8x512xf32>
    %cst_60 = arith.constant 0.000000e+00 : f32
    %66 = vector.broadcast %cst_60 : f32 to vector<8x512xf32>
    %67 = arith.maximumf %65, %66 : vector<8x512xf32>
    %c0_61 = arith.constant 0 : index
    %c0_62 = arith.constant 0 : index
    %68 = vector.load %arg16[%c0_61, %c0_62] : memref<8x512xf32, #tpu.memory_space<vmem>>, vector<8x512xf32>
    %69 = arith.mulf %67, %68 : vector<8x512xf32>
    %c0_63 = arith.constant 0 : index
    %c0_64 = arith.constant 0 : index
    %70 = vector.load %arg7[%c0_63, %c0_64] : memref<512x1028xf32, #tpu.memory_space<vmem>>, vector<512x1028xf32>
    %cst_65 = arith.constant dense<0.000000e+00> : vector<8x1028xf32>
    %71 = tpu.matmul %69, %70, %cst_65 {dimension_numbers = #tpu.dot_dimension_numbers<[1], [0], [0], [1], [0, 0, 1, 1], [], []>} : vector<8x512xf32>, vector<512x1028xf32>, vector<8x1028xf32> -> vector<8x1028xf32>
    %72 = vector.extract_strided_slice %71 {offsets = [0, 0], sizes = [8, 1024], strides = [1, 1]} : vector<8x1028xf32> to vector<8x1024xf32>
    %73 = vector.extract_strided_slice %71 {offsets = [0, 1024], sizes = [8, 4], strides = [1, 1]} : vector<8x1028xf32> to vector<8x4xf32>
    %c0_66 = arith.constant 0 : index
    %c0_67 = arith.constant 0 : index
    %74 = vector.load %arg23[%c0_66, %c0_67] : memref<8x1024xf32, #tpu.memory_space<vmem>>, vector<8x1024xf32>
    tpu.vector_store %arg23[%c0_66, %c0_67], %72 {strides = array<i32>} : memref<8x1024xf32, #tpu.memory_space<vmem>>, vector<8x1024xf32>,
    %c1_68 = arith.constant 1 : index
    %c0_69 = arith.constant 0 : index
    %75 = vector.load %arg23[%c1_68, %c0_69] : memref<8x1024xf32, #tpu.memory_space<vmem>>, vector<7x4xf32>
    %76 = vector.extract_strided_slice %73 {offsets = [0, 0], sizes = [7, 4], strides = [1, 1]} : vector<8x4xf32> to vector<7x4xf32>
    %77 = arith.addf %75, %76 : vector<7x4xf32>
    %c1_70 = arith.constant 1 : index
    %c0_71 = arith.constant 0 : index
    %78 = vector.load %arg23[%c1_70, %c0_71] : memref<8x1024xf32, #tpu.memory_space<vmem>>, vector<7x4xf32>
    tpu.vector_store %arg23[%c1_70, %c0_71], %77 {strides = array<i32>} : memref<8x1024xf32, #tpu.memory_space<vmem>>, vector<7x4xf32>,
    %c0_72 = arith.constant 0 : index
    %c0_73 = arith.constant 0 : index
    %79 = vector.load %arg23[%c0_72, %c0_73] : memref<8x1024xf32, #tpu.memory_space<vmem>>, vector<8x1024xf32>
    %c0_74 = arith.constant 0 : index
    %c0_75 = arith.constant 0 : index
    %80 = vector.load %arg12[%c0_74, %c0_75] : memref<1x1024xf32, #tpu.memory_space<vmem>>, vector<1x1024xf32>
    %81 = vector.broadcast %80 : vector<1x1024xf32> to vector<8x1024xf32>
    %82 = arith.addf %79, %81 : vector<8x1024xf32>
    %cst_76 = arith.constant 0.000000e+00 : f32
    %83 = vector.broadcast %cst_76 : f32 to vector<8x1024xf32>
    %84 = arith.maximumf %82, %83 : vector<8x1024xf32>
    %c0_77 = arith.constant 0 : index
    %c0_78 = arith.constant 0 : index
    %85 = vector.load %arg17[%c0_77, %c0_78] : memref<8x1024xf32, #tpu.memory_space<vmem>>, vector<8x1024xf32>
    %86 = arith.mulf %84, %85 : vector<8x1024xf32>
    %c0_79 = arith.constant 0 : index
    %c0_80 = arith.constant 0 : index
    %87 = vector.load %arg8[%c0_79, %c0_80] : memref<1024x1025xf32, #tpu.memory_space<vmem>>, vector<1024x1025xf32>
    %cst_81 = arith.constant dense<0.000000e+00> : vector<8x1025xf32>
    %88 = tpu.matmul %86, %87, %cst_81 {dimension_numbers = #tpu.dot_dimension_numbers<[1], [0], [0], [1], [0, 0, 1, 1], [], []>} : vector<8x1024xf32>, vector<1024x1025xf32>, vector<8x1025xf32> -> vector<8x1025xf32>
    %89 = vector.extract_strided_slice %88 {offsets = [0, 0], sizes = [8, 1024], strides = [1, 1]} : vector<8x1025xf32> to vector<8x1024xf32>
    %90 = vector.extract_strided_slice %88 {offsets = [0, 1024], sizes = [8, 1], strides = [1, 1]} : vector<8x1025xf32> to vector<8x1xf32>
    %cst_82 = arith.constant 0.000000e+00 : f32
    %91 = vector.broadcast %cst_82 : f32 to vector<1x1xf32>
    %c0_83 = arith.constant 0 : index
    %c0_84 = arith.constant 0 : index
    %92 = vector.load %arg24[%c0_83, %c0_84] : memref<8x128xf32, #tpu.memory_space<vmem>>, vector<1x1xf32>
    tpu.vector_store %arg24[%c0_83, %c0_84], %91 {strides = array<i32>} : memref<8x128xf32, #tpu.memory_space<vmem>>, vector<1x1xf32>,
    %93 = vector.extract_strided_slice %90 {offsets = [0, 0], sizes = [7, 1], strides = [1, 1]} : vector<8x1xf32> to vector<7x1xf32>
    %c1_85 = arith.constant 1 : index
    %c0_86 = arith.constant 0 : index
    %94 = vector.load %arg24[%c1_85, %c0_86] : memref<8x128xf32, #tpu.memory_space<vmem>>, vector<7x1xf32>
    tpu.vector_store %arg24[%c1_85, %c0_86], %93 {strides = array<i32>} : memref<8x128xf32, #tpu.memory_space<vmem>>, vector<7x1xf32>,
    %95 = tpu.iota {dimensions = array<i32: 1>} : vector<8x1024xi32>
    %c0_i32 = arith.constant 0 : i32
    %96 = vector.broadcast %c0_i32 : i32 to vector<8x1024xi32>
    %97 = arith.cmpi eq, %95, %96 : vector<8x1024xi32>
    %c0_87 = arith.constant 0 : index
    %c0_88 = arith.constant 0 : index
    %98 = vector.load %arg24[%c0_87, %c0_88] : memref<8x128xf32, #tpu.memory_space<vmem>>, vector<8x1xf32>
    %cst_89 = arith.constant 0.000000e+00 : f32
    %99 = vector.shape_cast %98 : vector<8x1xf32> to vector<8x1xf32>
    %100 = vector.broadcast %99 : vector<8x1xf32> to vector<8x1024xf32>
    %101 = vector.broadcast %cst_89 : f32 to vector<8x1024xf32>
    %102 = arith.select %97, %100, %101 : vector<8x1024xi1>, vector<8x1024xf32>
    %103 = arith.addf %89, %102 : vector<8x1024xf32>
    %c0_90 = arith.constant 0 : index
    %c0_91 = arith.constant 0 : index
    %104 = vector.load %arg13[%c0_90, %c0_91] : memref<1x1024xf32, #tpu.memory_space<vmem>>, vector<1x1024xf32>
    %105 = vector.broadcast %104 : vector<1x1024xf32> to vector<8x1024xf32>
    %106 = arith.addf %103, %105 : vector<8x1024xf32>
    %107 = math.tanh %106 : vector<8x1024xf32>
    %c0_92 = arith.constant 0 : index
    %c0_93 = arith.constant 0 : index
    %108 = vector.load %arg18[%c0_92, %c0_93] : memref<8x1024xf32, #tpu.memory_space<vmem>>, vector<8x1024xf32>
    tpu.vector_store %arg18[%c0_92, %c0_93], %107 {strides = array<i32>} : memref<8x1024xf32, #tpu.memory_space<vmem>>, vector<8x1024xf32>,
    return
  }
  func.func @transform_0(%arg0: i32) -> (i32, i32) {
    %c0_i32 = arith.constant 0 : i32
    %c0_i32_0 = arith.constant 0 : i32
    return %arg0, %c0_i32 : i32, i32
  }
  func.func @transform_1(%arg0: i32) -> (i32, i32) {
    %c0_i32 = arith.constant 0 : i32
    %c0_i32_0 = arith.constant 0 : i32
    %c0_i32_1 = arith.constant 0 : i32
    return %c0_i32, %c0_i32_0 : i32, i32
  }
  func.func @transform_2(%arg0: i32) -> (i32, i32) {
    %c0_i32 = arith.constant 0 : i32
    %c0_i32_0 = arith.constant 0 : i32
    %c0_i32_1 = arith.constant 0 : i32
    return %c0_i32, %c0_i32_0 : i32, i32
  }
  func.func @transform_3(%arg0: i32) -> (i32, i32) {
    %c0_i32 = arith.constant 0 : i32
    %c0_i32_0 = arith.constant 0 : i32
    %c0_i32_1 = arith.constant 0 : i32
    return %c0_i32, %c0_i32_0 : i32, i32
  }
  func.func @transform_4(%arg0: i32) -> (i32, i32) {
    %c0_i32 = arith.constant 0 : i32
    %c0_i32_0 = arith.constant 0 : i32
    %c0_i32_1 = arith.constant 0 : i32
    return %c0_i32, %c0_i32_0 : i32, i32
  }
  func.func @transform_5(%arg0: i32) -> (i32, i32) {
    %c0_i32 = arith.constant 0 : i32
    %c0_i32_0 = arith.constant 0 : i32
    %c0_i32_1 = arith.constant 0 : i32
    return %c0_i32, %c0_i32_0 : i32, i32
  }
  func.func @transform_6(%arg0: i32) -> (i32, i32) {
    %c0_i32 = arith.constant 0 : i32
    %c0_i32_0 = arith.constant 0 : i32
    %c0_i32_1 = arith.constant 0 : i32
    return %c0_i32, %c0_i32_0 : i32, i32
  }
  func.func @transform_7(%arg0: i32) -> (i32, i32) {
    %c0_i32 = arith.constant 0 : i32
    %c0_i32_0 = arith.constant 0 : i32
    %c0_i32_1 = arith.constant 0 : i32
    return %c0_i32, %c0_i32_0 : i32, i32
  }
  func.func @transform_8(%arg0: i32) -> (i32, i32) {
    %c0_i32 = arith.constant 0 : i32
    %c0_i32_0 = arith.constant 0 : i32
    %c0_i32_1 = arith.constant 0 : i32
    return %c0_i32, %c0_i32_0 : i32, i32
  }
  func.func @transform_9(%arg0: i32) -> (i32, i32) {
    %c0_i32 = arith.constant 0 : i32
    %c0_i32_0 = arith.constant 0 : i32
    %c0_i32_1 = arith.constant 0 : i32
    return %c0_i32, %c0_i32_0 : i32, i32
  }
  func.func @transform_10(%arg0: i32) -> (i32, i32) {
    %c0_i32 = arith.constant 0 : i32
    %c0_i32_0 = arith.constant 0 : i32
    %c0_i32_1 = arith.constant 0 : i32
    return %c0_i32, %c0_i32_0 : i32, i32
  }
  func.func @transform_11(%arg0: i32) -> (i32, i32) {
    %c0_i32 = arith.constant 0 : i32
    %c0_i32_0 = arith.constant 0 : i32
    %c0_i32_1 = arith.constant 0 : i32
    return %c0_i32, %c0_i32_0 : i32, i32
  }
  func.func @transform_12(%arg0: i32) -> (i32, i32) {
    %c0_i32 = arith.constant 0 : i32
    %c0_i32_0 = arith.constant 0 : i32
    %c0_i32_1 = arith.constant 0 : i32
    return %c0_i32, %c0_i32_0 : i32, i32
  }
  func.func @transform_13(%arg0: i32) -> (i32, i32) {
    %c0_i32 = arith.constant 0 : i32
    %c0_i32_0 = arith.constant 0 : i32
    %c0_i32_1 = arith.constant 0 : i32
    return %c0_i32, %c0_i32_0 : i32, i32
  }
  func.func @transform_14(%arg0: i32) -> (i32, i32) {
    %c0_i32 = arith.constant 0 : i32
    %c0_i32_0 = arith.constant 0 : i32
    %c0_i32_1 = arith.constant 0 : i32
    return %c0_i32, %c0_i32_0 : i32, i32
  }
  func.func @transform_15(%arg0: i32) -> (i32, i32) {
    %c0_i32 = arith.constant 0 : i32
    %c0_i32_0 = arith.constant 0 : i32
    %c0_i32_1 = arith.constant 0 : i32
    return %c0_i32, %c0_i32_0 : i32, i32
  }
  func.func @transform_16(%arg0: i32) -> (i32, i32) {
    %c0_i32 = arith.constant 0 : i32
    %c0_i32_0 = arith.constant 0 : i32
    %c0_i32_1 = arith.constant 0 : i32
    return %c0_i32, %c0_i32_0 : i32, i32
  }
  func.func @transform_17(%arg0: i32) -> (i32, i32) {
    %c0_i32 = arith.constant 0 : i32
    %c0_i32_0 = arith.constant 0 : i32
    return %arg0, %c0_i32 : i32, i32
  }
}

</mosaic_0001>

<llo_original>
// kernel: generator_forward.1
$region0: #{generator_forward.1}
  #allocation0 [shape = 'u32[]', space=smem, size = 0x4, offset = 0x4, fixed_abs, tag = 'smem constant byte address 0x4 - core index']
  #allocation1 [shape = 'u32[144,128]{1,0:T(1,128)}', space=vmem, size = 0x12000, scoped, tag = 'internal scratch']
  #allocation2 [shape = 'f32[8,64]{1,0:T(8,128)}', space=vmem, size = 0x1000, scoped, tag = 'scratch operand']
  #allocation3 [shape = 'f32[8,128]{1,0:T(8,128)}', space=vmem, size = 0x1000, scoped, tag = 'scratch operand']
  #allocation4 [shape = 'f32[8,256]{1,0:T(8,128)}', space=vmem, size = 0x2000, scoped, tag = 'scratch operand']
  #allocation5 [shape = 'f32[8,512]{1,0:T(8,128)}', space=vmem, size = 0x4000, scoped, tag = 'scratch operand']
  #allocation6 [shape = 'f32[8,1024]{1,0:T(8,128)}', space=vmem, size = 0x8000, scoped, tag = 'scratch operand']
  #allocation7 [shape = 'f32[8,128]{1,0:T(8,128)}', space=vmem, size = 0x1000, scoped, tag = 'scratch operand']
  %s0 = inlined_call_operand.vmem [shape: f32[16,16], index: 0, kind: input, shape index: {}]
  %s1 = inlined_call_operand.vmem [shape: f32[16,256], index: 1, kind: input, shape index: {}]
  %s2 = inlined_call_operand.vmem [shape: f32[1,256], index: 2, kind: input, shape index: {}]
  %s3 = inlined_call_operand.vmem [shape: f32[64,160], index: 3, kind: input, shape index: {}]
  %s4 = inlined_call_operand.vmem [shape: f32[128,272], index: 4, kind: input, shape index: {}]
  %s5 = inlined_call_operand.vmem [shape: f32[256,520], index: 5, kind: input, shape index: {}]
  %s6 = inlined_call_operand.vmem [shape: f32[512,1028], index: 6, kind: input, shape index: {}]
  %s7 = inlined_call_operand.vmem [shape: f32[1024,1025], index: 7, kind: input, shape index: {}]
  %s8 = inlined_call_operand.vmem [shape: f32[1,128], index: 8, kind: input, shape index: {}]
  %s9 = inlined_call_operand.vmem [shape: f32[1,256], index: 9, kind: input, shape index: {}]
  %s10 = inlined_call_operand.vmem [shape: f32[1,512], index: 10, kind: input, shape index: {}]
  %s11 = inlined_call_operand.vmem [shape: f32[1,1024], index: 11, kind: input, shape index: {}]
  %s12 = inlined_call_operand.vmem [shape: f32[1,1024], index: 12, kind: input, shape index: {}]
  %s13 = inlined_call_operand.vmem [shape: f32[8,128], index: 13, kind: input, shape index: {}]
  %s14 = inlined_call_operand.vmem [shape: f32[8,256], index: 14, kind: input, shape index: {}]
  %s15 = inlined_call_operand.vmem [shape: f32[8,512], index: 15, kind: input, shape index: {}]
  %s16 = inlined_call_operand.vmem [shape: f32[8,1024], index: 16, kind: input, shape index: {}]
  %s17 = inlined_call_operand.vmem [shape: f32[16,1024], index: 17, kind: output, shape index: {}]
  %s18 = sld [smem:[#allocation0]]
  $region101: #{generator_forward.1} parent=0
    _
  %s20 = ssub.s32 1, %s18
  %s21 = scalar_select 0, %s20, %s18
  loop: start=0, step=1, limit=4
  $region2: #{generator_forward.1} parent=0 // loop_pre_header
    _
  $region3: #{generator_forward.1} parent=0 // loop_header
    %s23 = sphi 0, %s27
    %p24 = scmp.ge.s32.totalorder %s23, 4
    %s33 = sphi 0, %s35
    %s36 = sphi 0, %s33
    %s37 = sphi 0, %s36
    %s53 = sphi 0, %s37
    %s57 = sphi 0, %s57
    %s59 = sphi 0, %s57
    %s60 = sphi 0, %s59
    %s74 = sphi 0, %s60
    %s78 = sphi 0, %s78
    %s80 = sphi 0, %s78
    %s81 = sphi 0, %s80
    %s95 = sphi 0, %s81
    %s99 = sphi 0, %s99
    %s101 = sphi 0, %s99
    %s102 = sphi 0, %s101
    %s116 = sphi 0, %s102
    %s120 = sphi 0, %s120
    %s122 = sphi 0, %s120
    %s123 = sphi 0, %s122
    %s137 = sphi 0, %s123
    %s141 = sphi 0, %s141
    %s143 = sphi 0, %s141
    %s144 = sphi 0, %s143
    %s158 = sphi 0, %s144
    %s162 = sphi 0, %s162
    %s164 = sphi 0, %s162
    %s165 = sphi 0, %s164
    %s179 = sphi 0, %s165
    %s183 = sphi 0, %s183
    %s185 = sphi 0, %s183
    %s186 = sphi 0, %s185
    %s200 = sphi 0, %s186
    %s204 = sphi 0, %s204
    %s206 = sphi 0, %s204
    %s207 = sphi 0, %s206
    %s221 = sphi 0, %s207
    %s225 = sphi 0, %s225
    %s227 = sphi 0, %s225
    %s228 = sphi 0, %s227
    %s242 = sphi 0, %s228
    %s246 = sphi 0, %s246
    %s248 = sphi 0, %s246
    %s249 = sphi 0, %s248
    %s263 = sphi 0, %s249
    %s267 = sphi 0, %s267
    %s269 = sphi 0, %s267
    %s270 = sphi 0, %s269
    %s284 = sphi 0, %s270
    %s288 = sphi 0, %s288
    %s290 = sphi 0, %s288
    %s291 = sphi 0, %s290
    %s305 = sphi 0, %s291
    %s309 = sphi 0, %s309
    %s311 = sphi 0, %s309
    %s312 = sphi 0, %s311
    %s326 = sphi 0, %s312
    %s330 = sphi 0, %s330
    %s332 = sphi 0, %s330
    %s333 = sphi 0, %s332
    %s347 = sphi 0, %s333
    %s351 = sphi 0, %s351
    %s353 = sphi 0, %s351
    %s354 = sphi 0, %s353
    %s368 = sphi 0, %s354
    %s372 = sphi 0, %s372
    %s374 = sphi 0, %s372
    %s375 = sphi 0, %s374
    %s389 = sphi 0, %s375
    %s395 = sphi 0, %s397
    %s398 = sphi 0, %s395
    %s399 = sphi 0, %s398
    %s415 = sphi 0, %s399
  $region4: #{generator_forward.1} parent=0 // loop_header_branch
    %26 = sbr.rel (%p24) target = $region8
  $region5: #{generator_forward.1} parent=0 // loop_body
    %s28 = ssub.s32 %s23, 1
    %s29 = ssub.s32 %s23, 2
    %s30 = sadd.s32 %s23, 1
    %s31 = ssub.s32 %s23, %s30
    %p32 = scmp.eq.s32.totalorder %s31, 0
    %s34 = sadd.s32 %s33, 1
    %s35 = scalar_select %p32, %s33, %s34
    %p38 = pneg %p32
    %p39 = scmp.eq.s32.totalorder %s23, 1
    %p40 = por %p38, %p39
    %p41 = scmp.ne.s32.totalorder %s33, %s36
    %p42 = scmp.eq.s32.totalorder %s23, 0
    %p43 = por %p41, %p42
    %p44 = scmp.ne.s32.totalorder %s33, %s36
    %p45 = scmp.eq.s32.totalorder %s28, 1
    %p46 = por %p44, %p45
    %p47 = scmp.ne.s32.totalorder %s36, %s37
    %p48 = scmp.eq.s32.totalorder %s28, 0
    %p49 = por %p47, %p48
    %p50 = scmp.ne.s32.totalorder %s36, %s37
    %p51 = scmp.eq.s32.totalorder %s29, 1
    %p52 = por %p50, %p51
    %p54 = scmp.ne.s32.totalorder %s37, %s53
    %p55 = scmp.eq.s32.totalorder %s29, 0
    %p56 = por %p54, %p55
    %s58 = sadd.s32 %s57, 1
    %p61 = scmp.eq.s32.totalorder %s23, 1
    %p62 = scmp.ne.s32.totalorder %s57, %s59
    %p63 = scmp.eq.s32.totalorder %s23, 0
    %p64 = por %p62, %p63
    %p65 = scmp.ne.s32.totalorder %s57, %s59
    %p66 = scmp.eq.s32.totalorder %s28, 1
    %p67 = por %p65, %p66
    %p68 = scmp.ne.s32.totalorder %s59, %s60
    %p69 = scmp.eq.s32.totalorder %s28, 0
    %p70 = por %p68, %p69
    %p71 = scmp.ne.s32.totalorder %s59, %s60
    %p72 = scmp.eq.s32.totalorder %s29, 1
    %p73 = por %p71, %p72
    %p75 = scmp.ne.s32.totalorder %s60, %s74
    %p76 = scmp.eq.s32.totalorder %s29, 0
    %p77 = por %p75, %p76
    %s79 = sadd.s32 %s78, 1
    %p82 = scmp.eq.s32.totalorder %s23, 1
    %p83 = scmp.ne.s32.totalorder %s78, %s80
    %p84 = scmp.eq.s32.totalorder %s23, 0
    %p85 = por %p83, %p84
    %p86 = scmp.ne.s32.totalorder %s78, %s80
    %p87 = scmp.eq.s32.totalorder %s28, 1
    %p88 = por %p86, %p87
    %p89 = scmp.ne.s32.totalorder %s80, %s81
    %p90 = scmp.eq.s32.totalorder %s28, 0
    %p91 = por %p89, %p90
    %p92 = scmp.ne.s32.totalorder %s80, %s81
    %p93 = scmp.eq.s32.totalorder %s29, 1
    %p94 = por %p92, %p93
    %p96 = scmp.ne.s32.totalorder %s81, %s95
    %p97 = scmp.eq.s32.totalorder %s29, 0
    %p98 = por %p96, %p97
    %s100 = sadd.s32 %s99, 1
    %p103 = scmp.eq.s32.totalorder %s23, 1
    %p104 = scmp.ne.s32.totalorder %s99, %s101
    %p105 = scmp.eq.s32.totalorder %s23, 0
    %p106 = por %p104, %p105
    %p107 = scmp.ne.s32.totalorder %s99, %s101
    %p108 = scmp.eq.s32.totalorder %s28, 1
    %p109 = por %p107, %p108
    %p110 = scmp.ne.s32.totalorder %s101, %s102
    %p111 = scmp.eq.s32.totalorder %s28, 0
    %p112 = por %p110, %p111
    %p113 = scmp.ne.s32.totalorder %s101, %s102
    %p114 = scmp.eq.s32.totalorder %s29, 1
    %p115 = por %p113, %p114
    %p117 = scmp.ne.s32.totalorder %s102, %s116
    %p118 = scmp.eq.s32.totalorder %s29, 0
    %p119 = por %p117, %p118
    %s121 = sadd.s32 %s120, 1
    %p124 = scmp.eq.s32.totalorder %s23, 1
    %p125 = scmp.ne.s32.totalorder %s120, %s122
    %p126 = scmp.eq.s32.totalorder %s23, 0
    %p127 = por %p125, %p126
    %p128 = scmp.ne.s32.totalorder %s120, %s122
    %p129 = scmp.eq.s32.totalorder %s28, 1
    %p130 = por %p128, %p129
    %p131 = scmp.ne.s32.totalorder %s122, %s123
    %p132 = scmp.eq.s32.totalorder %s28, 0
    %p133 = por %p131, %p132
    %p134 = scmp.ne.s32.totalorder %s122, %s123
    %p135 = scmp.eq.s32.totalorder %s29, 1
    %p136 = por %p134, %p135
    %p138 = scmp.ne.s32.totalorder %s123, %s137
    %p139 = scmp.eq.s32.totalorder %s29, 0
    %p140 = por %p138, %p139
    %s142 = sadd.s32 %s141, 1
    %p145 = scmp.eq.s32.totalorder %s23, 1
    %p146 = scmp.ne.s32.totalorder %s141, %s143
    %p147 = scmp.eq.s32.totalorder %s23, 0
    %p148 = por %p146, %p147
    %p149 = scmp.ne.s32.totalorder %s141, %s143
    %p150 = scmp.eq.s32.totalorder %s28, 1
    %p151 = por %p149, %p150
    %p152 = scmp.ne.s32.totalorder %s143, %s144
    %p153 = scmp.eq.s32.totalorder %s28, 0
    %p154 = por %p152, %p153
    %p155 = scmp.ne.s32.totalorder %s143, %s144
    %p156 = scmp.eq.s32.totalorder %s29, 1
    %p157 = por %p155, %p156
    %p159 = scmp.ne.s32.totalorder %s144, %s158
    %p160 = scmp.eq.s32.totalorder %s29, 0
    %p161 = por %p159, %p160
    %s163 = sadd.s32 %s162, 1
    %p166 = scmp.eq.s32.totalorder %s23, 1
    %p167 = scmp.ne.s32.totalorder %s162, %s164
    %p168 = scmp.eq.s32.totalorder %s23, 0
    %p169 = por %p167, %p168
    %p170 = scmp.ne.s32.totalorder %s162, %s164
    %p171 = scmp.eq.s32.totalorder %s28, 1
    %p172 = por %p170, %p171
    %p173 = scmp.ne.s32.totalorder %s164, %s165
    %p174 = scmp.eq.s32.totalorder %s28, 0
    %p175 = por %p173, %p174
    %p176 = scmp.ne.s32.totalorder %s164, %s165
    %p177 = scmp.eq.s32.totalorder %s29, 1
    %p178 = por %p176, %p177
    %p180 = scmp.ne.s32.totalorder %s165, %s179
    %p181 = scmp.eq.s32.totalorder %s29, 0
    %p182 = por %p180, %p181
    %s184 = sadd.s32 %s183, 1
    %p187 = scmp.eq.s32.totalorder %s23, 1
    %p188 = scmp.ne.s32.totalorder %s183, %s185
    %p189 = scmp.eq.s32.totalorder %s23, 0
    %p190 = por %p188, %p189
    %p191 = scmp.ne.s32.totalorder %s183, %s185
    %p192 = scmp.eq.s32.totalorder %s28, 1
    %p193 = por %p191, %p192
    %p194 = scmp.ne.s32.totalorder %s185, %s186
    %p195 = scmp.eq.s32.totalorder %s28, 0
    %p196 = por %p194, %p195
    %p197 = scmp.ne.s32.totalorder %s185, %s186
    %p198 = scmp.eq.s32.totalorder %s29, 1
    %p199 = por %p197, %p198
    %p201 = scmp.ne.s32.totalorder %s186, %s200
    %p202 = scmp.eq.s32.totalorder %s29, 0
    %p203 = por %p201, %p202
    %s205 = sadd.s32 %s204, 1
    %p208 = scmp.eq.s32.totalorder %s23, 1
    %p209 = scmp.ne.s32.totalorder %s204, %s206
    %p210 = scmp.eq.s32.totalorder %s23, 0
    %p211 = por %p209, %p210
    %p212 = scmp.ne.s32.totalorder %s204, %s206
    %p213 = scmp.eq.s32.totalorder %s28, 1
    %p214 = por %p212, %p213
    %p215 = scmp.ne.s32.totalorder %s206, %s207
    %p216 = scmp.eq.s32.totalorder %s28, 0
    %p217 = por %p215, %p216
    %p218 = scmp.ne.s32.totalorder %s206, %s207
    %p219 = scmp.eq.s32.totalorder %s29, 1
    %p220 = por %p218, %p219
    %p222 = scmp.ne.s32.totalorder %s207, %s221
    %p223 = scmp.eq.s32.totalorder %s29, 0
    %p224 = por %p222, %p223
    %s226 = sadd.s32 %s225, 1
    %p229 = scmp.eq.s32.totalorder %s23, 1
    %p230 = scmp.ne.s32.totalorder %s225, %s227
    %p231 = scmp.eq.s32.totalorder %s23, 0
    %p232 = por %p230, %p231
    %p233 = scmp.ne.s32.totalorder %s225, %s227
    %p234 = scmp.eq.s32.totalorder %s28, 1
    %p235 = por %p233, %p234
    %p236 = scmp.ne.s32.totalorder %s227, %s228
    %p237 = scmp.eq.s32.totalorder %s28, 0
    %p238 = por %p236, %p237
    %p239 = scmp.ne.s32.totalorder %s227, %s228
    %p240 = scmp.eq.s32.totalorder %s29, 1
    %p241 = por %p239, %p240
    %p243 = scmp.ne.s32.totalorder %s228, %s242
    %p244 = scmp.eq.s32.totalorder %s29, 0
    %p245 = por %p243, %p244
    %s247 = sadd.s32 %s246, 1
    %p250 = scmp.eq.s32.totalorder %s23, 1
    %p251 = scmp.ne.s32.totalorder %s246, %s248
    %p252 = scmp.eq.s32.totalorder %s23, 0
    %p253 = por %p251, %p252
    %p254 = scmp.ne.s32.totalorder %s246, %s248
    %p255 = scmp.eq.s32.totalorder %s28, 1
    %p256 = por %p254, %p255
    %p257 = scmp.ne.s32.totalorder %s248, %s249
    %p258 = scmp.eq.s32.totalorder %s28, 0
    %p259 = por %p257, %p258
    %p260 = scmp.ne.s32.totalorder %s248, %s249
    %p261 = scmp.eq.s32.totalorder %s29, 1
    %p262 = por %p260, %p261
    %p264 = scmp.ne.s32.totalorder %s249, %s263
    %p265 = scmp.eq.s32.totalorder %s29, 0
    %p266 = por %p264, %p265
    %s268 = sadd.s32 %s267, 1
    %p271 = scmp.eq.s32.totalorder %s23, 1
    %p272 = scmp.ne.s32.totalorder %s267, %s269
    %p273 = scmp.eq.s32.totalorder %s23, 0
    %p274 = por %p272, %p273
    %p275 = scmp.ne.s32.totalorder %s267, %s269
    %p276 = scmp.eq.s32.totalorder %s28, 1
    %p277 = por %p275, %p276
    %p278 = scmp.ne.s32.totalorder %s269, %s270
    %p279 = scmp.eq.s32.totalorder %s28, 0
    %p280 = por %p278, %p279
    %p281 = scmp.ne.s32.totalorder %s269, %s270
    %p282 = scmp.eq.s32.totalorder %s29, 1
    %p283 = por %p281, %p282
    %p285 = scmp.ne.s32.totalorder %s270, %s284
    %p286 = scmp.eq.s32.totalorder %s29, 0
    %p287 = por %p285, %p286
    %s289 = sadd.s32 %s288, 1
    %p292 = scmp.eq.s32.totalorder %s23, 1
    %p293 = scmp.ne.s32.totalorder %s288, %s290
    %p294 = scmp.eq.s32.totalorder %s23, 0
    %p295 = por %p293, %p294
    %p296 = scmp.ne.s32.totalorder %s288, %s290
    %p297 = scmp.eq.s32.totalorder %s28, 1
    %p298 = por %p296, %p297
    %p299 = scmp.ne.s32.totalorder %s290, %s291
    %p300 = scmp.eq.s32.totalorder %s28, 0
    %p301 = por %p299, %p300
    %p302 = scmp.ne.s32.totalorder %s290, %s291
    %p303 = scmp.eq.s32.totalorder %s29, 1
    %p304 = por %p302, %p303
    %p306 = scmp.ne.s32.totalorder %s291, %s305
    %p307 = scmp.eq.s32.totalorder %s29, 0
    %p308 = por %p306, %p307
    %s310 = sadd.s32 %s309, 1
    %p313 = scmp.eq.s32.totalorder %s23, 1
    %p314 = scmp.ne.s32.totalorder %s309, %s311
    %p315 = scmp.eq.s32.totalorder %s23, 0
    %p316 = por %p314, %p315
    %p317 = scmp.ne.s32.totalorder %s309, %s311
    %p318 = scmp.eq.s32.totalorder %s28, 1
    %p319 = por %p317, %p318
    %p320 = scmp.ne.s32.totalorder %s311, %s312
    %p321 = scmp.eq.s32.totalorder %s28, 0
    %p322 = por %p320, %p321
    %p323 = scmp.ne.s32.totalorder %s311, %s312
    %p324 = scmp.eq.s32.totalorder %s29, 1
    %p325 = por %p323, %p324
    %p327 = scmp.ne.s32.totalorder %s312, %s326
    %p328 = scmp.eq.s32.totalorder %s29, 0
    %p329 = por %p327, %p328
    %s331 = sadd.s32 %s330, 1
    %p334 = scmp.eq.s32.totalorder %s23, 1
    %p335 = scmp.ne.s32.totalorder %s330, %s332
    %p336 = scmp.eq.s32.totalorder %s23, 0
    %p337 = por %p335, %p336
    %p338 = scmp.ne.s32.totalorder %s330, %s332
    %p339 = scmp.eq.s32.totalorder %s28, 1
    %p340 = por %p338, %p339
    %p341 = scmp.ne.s32.totalorder %s332, %s333
    %p342 = scmp.eq.s32.totalorder %s28, 0
    %p343 = por %p341, %p342
    %p344 = scmp.ne.s32.totalorder %s332, %s333
    %p345 = scmp.eq.s32.totalorder %s29, 1
    %p346 = por %p344, %p345
    %p348 = scmp.ne.s32.totalorder %s333, %s347
    %p349 = scmp.eq.s32.totalorder %s29, 0
    %p350 = por %p348, %p349
    %s352 = sadd.s32 %s351, 1
    %p355 = scmp.eq.s32.totalorder %s23, 1
    %p356 = scmp.ne.s32.totalorder %s351, %s353
    %p357 = scmp.eq.s32.totalorder %s23, 0
    %p358 = por %p356, %p357
    %p359 = scmp.ne.s32.totalorder %s351, %s353
    %p360 = scmp.eq.s32.totalorder %s28, 1
    %p361 = por %p359, %p360
    %p362 = scmp.ne.s32.totalorder %s353, %s354
    %p363 = scmp.eq.s32.totalorder %s28, 0
    %p364 = por %p362, %p363
    %p365 = scmp.ne.s32.totalorder %s353, %s354
    %p366 = scmp.eq.s32.totalorder %s29, 1
    %p367 = por %p365, %p366
    %p369 = scmp.ne.s32.totalorder %s354, %s368
    %p370 = scmp.eq.s32.totalorder %s29, 0
    %p371 = por %p369, %p370
    %s373 = sadd.s32 %s372, 1
    %p376 = scmp.eq.s32.totalorder %s23, 1
    %p377 = scmp.ne.s32.totalorder %s372, %s374
    %p378 = scmp.eq.s32.totalorder %s23, 0
    %p379 = por %p377, %p378
    %p380 = scmp.ne.s32.totalorder %s372, %s374
    %p381 = scmp.eq.s32.totalorder %s28, 1
    %p382 = por %p380, %p381
    %p383 = scmp.ne.s32.totalorder %s374, %s375
    %p384 = scmp.eq.s32.totalorder %s28, 0
    %p385 = por %p383, %p384
    %p386 = scmp.ne.s32.totalorder %s374, %s375
    %p387 = scmp.eq.s32.totalorder %s29, 1
    %p388 = por %p386, %p387
    %p390 = scmp.ne.s32.totalorder %s375, %s389
    %p391 = scmp.eq.s32.totalorder %s29, 0
    %p392 = por %p390, %p391
    %s393 = ssub.s32 %s23, %s30
    %p394 = scmp.eq.s32.totalorder %s393, 0
    %s396 = sadd.s32 %s395, 1
    %s397 = scalar_select %p394, %s395, %s396
    %p400 = pneg %p394
    %p401 = scmp.eq.s32.totalorder %s23, 1
    %p402 = por %p400, %p401
    %p403 = scmp.ne.s32.totalorder %s395, %s398
    %p404 = scmp.eq.s32.totalorder %s23, 0
    %p405 = por %p403, %p404
    %p406 = scmp.ne.s32.totalorder %s395, %s398
    %p407 = scmp.eq.s32.totalorder %s28, 1
    %p408 = por %p406, %p407
    %p409 = scmp.ne.s32.totalorder %s398, %s399
    %p410 = scmp.eq.s32.totalorder %s28, 0
    %p411 = por %p409, %p410
    %p412 = scmp.ne.s32.totalorder %s398, %s399
    %p413 = scmp.eq.s32.totalorder %s29, 1
    %p414 = por %p412, %p413
    %p416 = scmp.ne.s32.totalorder %s399, %s415
    %p417 = scmp.eq.s32.totalorder %s29, 0
    %p418 = por %p416, %p417
    %p419 = scmp.le.s32.totalorder 1, %s23
    %p420 = scmp.lt.s32.totalorder %s23, 3
    %p421 = pnand %p419, %p420
    %p422 = pneg %p421
    // Predicated region
    $region9: #{generator_forward.1} parent=5 // pred_check
      _
    $region10: #{generator_forward.1} parent=5 // pred_check_branch
      %424 = sbr.rel (%p421) target = $region12
    $region11: #{generator_forward.1} parent=5 // pred_region
      %s425 = ssub.s32 %s23, 1
      // Predicated region
      $region13: #{generator_forward.1} parent=11 // pred_check
        %p426 = pneg %p70
      $region14: #{generator_forward.1} parent=11 // pred_check_branch
        %428 = sbr.rel (%p426) target = $region16
      $region15: #{generator_forward.1} parent=11 // pred_region
        _
      $region16: #{generator_forward.1} parent=11 // pred_fallthru
        _
      // Predicated region
      $region17: #{generator_forward.1} parent=11 // pred_check
        %p429 = pneg %p91
      $region18: #{generator_forward.1} parent=11 // pred_check_branch
        %431 = sbr.rel (%p429) target = $region20
      $region19: #{generator_forward.1} parent=11 // pred_region
        _
      $region20: #{generator_forward.1} parent=11 // pred_fallthru
        _
      // Predicated region
      $region21: #{generator_forward.1} parent=11 // pred_check
        %p432 = pneg %p112
      $region22: #{generator_forward.1} parent=11 // pred_check_branch
        %434 = sbr.rel (%p432) target = $region24
      $region23: #{generator_forward.1} parent=11 // pred_region
        _
      $region24: #{generator_forward.1} parent=11 // pred_fallthru
        _
      // Predicated region
      $region25: #{generator_forward.1} parent=11 // pred_check
        %p435 = pneg %p133
      $region26: #{generator_forward.1} parent=11 // pred_check_branch
        %437 = sbr.rel (%p435) target = $region28
      $region27: #{generator_forward.1} parent=11 // pred_region
        _
      $region28: #{generator_forward.1} parent=11 // pred_fallthru
        _
      // Predicated region
      $region29: #{generator_forward.1} parent=11 // pred_check
        %p438 = pneg %p154
      $region30: #{generator_forward.1} parent=11 // pred_check_branch
        %440 = sbr.rel (%p438) target = $region32
      $region31: #{generator_forward.1} parent=11 // pred_region
        _
      $region32: #{generator_forward.1} parent=11 // pred_fallthru
        _
      // Predicated region
      $region33: #{generator_forward.1} parent=11 // pred_check
        %p441 = pneg %p175
      $region34: #{generator_forward.1} parent=11 // pred_check_branch
        %443 = sbr.rel (%p441) target = $region36
      $region35: #{generator_forward.1} parent=11 // pred_region
        _
      $region36: #{generator_forward.1} parent=11 // pred_fallthru
        _
      // Predicated region
      $region37: #{generator_forward.1} parent=11 // pred_check
        %p444 = pneg %p196
      $region38: #{generator_forward.1} parent=11 // pred_check_branch
        %446 = sbr.rel (%p444) target = $region40
      $region39: #{generator_forward.1} parent=11 // pred_region
        _
      $region40: #{generator_forward.1} parent=11 // pred_fallthru
        _
      // Predicated region
      $region41: #{generator_forward.1} parent=11 // pred_check
        %p447 = pneg %p217
      $region42: #{generator_forward.1} parent=11 // pred_check_branch
        %449 = sbr.rel (%p447) target = $region44
      $region43: #{generator_forward.1} parent=11 // pred_region
        _
      $region44: #{generator_forward.1} parent=11 // pred_fallthru
        _
      // Predicated region
      $region45: #{generator_forward.1} parent=11 // pred_check
        %p450 = pneg %p238
      $region46: #{generator_forward.1} parent=11 // pred_check_branch
        %452 = sbr.rel (%p450) target = $region48
      $region47: #{generator_forward.1} parent=11 // pred_region
        _
      $region48: #{generator_forward.1} parent=11 // pred_fallthru
        _
      // Predicated region
      $region49: #{generator_forward.1} parent=11 // pred_check
        %p453 = pneg %p259
      $region50: #{generator_forward.1} parent=11 // pred_check_branch
        %455 = sbr.rel (%p453) target = $region52
      $region51: #{generator_forward.1} parent=11 // pred_region
        _
      $region52: #{generator_forward.1} parent=11 // pred_fallthru
        _
      // Predicated region
      $region53: #{generator_forward.1} parent=11 // pred_check
        %p456 = pneg %p280
      $region54: #{generator_forward.1} parent=11 // pred_check_branch
        %458 = sbr.rel (%p456) target = $region56
      $region55: #{generator_forward.1} parent=11 // pred_region
        _
      $region56: #{generator_forward.1} parent=11 // pred_fallthru
        _
      // Predicated region
      $region57: #{generator_forward.1} parent=11 // pred_check
        %p459 = pneg %p301
      $region58: #{generator_forward.1} parent=11 // pred_check_branch
        %461 = sbr.rel (%p459) target = $region60
      $region59: #{generator_forward.1} parent=11 // pred_region
        _
      $region60: #{generator_forward.1} parent=11 // pred_fallthru
        _
      // Predicated region
      $region61: #{generator_forward.1} parent=11 // pred_check
        %p462 = pneg %p322
      $region62: #{generator_forward.1} parent=11 // pred_check_branch
        %464 = sbr.rel (%p462) target = $region64
      $region63: #{generator_forward.1} parent=11 // pred_region
        _
      $region64: #{generator_forward.1} parent=11 // pred_fallthru
        _
      // Predicated region
      $region65: #{generator_forward.1} parent=11 // pred_check
        %p465 = pneg %p343
      $region66: #{generator_forward.1} parent=11 // pred_check_branch
        %467 = sbr.rel (%p465) target = $region68
      $region67: #{generator_forward.1} parent=11 // pred_region
        _
      $region68: #{generator_forward.1} parent=11 // pred_fallthru
        _
      // Predicated region
      $region69: #{generator_forward.1} parent=11 // pred_check
        %p468 = pneg %p364
      $region70: #{generator_forward.1} parent=11 // pred_check_branch
        %470 = sbr.rel (%p468) target = $region72
      $region71: #{generator_forward.1} parent=11 // pred_region
        _
      $region72: #{generator_forward.1} parent=11 // pred_fallthru
        _
      // Predicated region
      $region73: #{generator_forward.1} parent=11 // pred_check
        %p471 = pneg %p385
      $region74: #{generator_forward.1} parent=11 // pred_check_branch
        %473 = sbr.rel (%p471) target = $region76
      $region75: #{generator_forward.1} parent=11 // pred_region
        _
      $region76: #{generator_forward.1} parent=11 // pred_fallthru
        _
    $region12: #{generator_forward.1} parent=5 // pred_fallthru
      _
    %p474 = scmp.lt.s32.totalorder %s23, 2
    // Predicated region
    $region77: #{generator_forward.1} parent=5 // pred_check
      %p475 = pneg %p474
    $region78: #{generator_forward.1} parent=5 // pred_check_branch
      %477 = sbr.rel (%p475) target = $region80
    $region79: #{generator_forward.1} parent=5 // pred_region
      // Predicated region
      $region81: #{generator_forward.1} parent=79 // pred_check
        %p478 = pneg %p43
      $region82: #{generator_forward.1} parent=79 // pred_check_branch
        %480 = sbr.rel (%p478) target = $region84
      $region83: #{generator_forward.1} parent=79 // pred_region
        %p481 = scmp.lt.s32.totalorder %s23, 1
        %s482 = scalar_select %p481, %s23, 1
        %s483 = smul.addr %s482, 8
        %s484 = scalar_lea.vmem %s0, %s483
      $region84: #{generator_forward.1} parent=79 // pred_fallthru
        _
    $region80: #{generator_forward.1} parent=5 // pred_fallthru
      _
    %p485 = scmp.le.s32.totalorder 1, %s23
    %p486 = scmp.lt.s32.totalorder %s23, 3
    %p487 = pnand %p485, %p486
    %p488 = pneg %p487
    // Predicated region
    $region85: #{generator_forward.1} parent=5 // pred_check
      _
    $region86: #{generator_forward.1} parent=5 // pred_check_branch
      %490 = sbr.rel (%p487) target = $region88
    $region87: #{generator_forward.1} parent=5 // pred_region
      %s491 = ssub.s32 %s23, 1
      %p492 = scmp.lt.s32.totalorder %s28, 1
      %s493 = scalar_select %p492, %s28, 1
      %s494 = smul.addr %s493, 8
      %s495 = scalar_lea.vmem %s0, %s494
      %p496 = pneg %p49
      %p497 = pneg %p46
      %p498 = pneg %p70
      %p499 = pneg %p67
      %p500 = pneg %p91
      %p501 = pneg %p88
      %p502 = pneg %p112
      %p503 = pneg %p109
      %p504 = pneg %p133
      %p505 = pneg %p130
      %p506 = pneg %p154
      %p507 = pneg %p151
      %p508 = pneg %p175
      %p509 = pneg %p172
      %p510 = pneg %p196
      %p511 = pneg %p193
      %p512 = pneg %p217
      %p513 = pneg %p214
      %p514 = pneg %p238
      %p515 = pneg %p235
      %p516 = pneg %p259
      %p517 = pneg %p256
      %p518 = pneg %p280
      %p519 = pneg %p277
      %p520 = pneg %p301
      %p521 = pneg %p298
      %p522 = pneg %p322
      %p523 = pneg %p319
      %p524 = pneg %p343
      %p525 = pneg %p340
      %p526 = pneg %p364
      %p527 = pneg %p361
      %p528 = pneg %p385
      %p529 = pneg %p382
      %p530 = pneg %p411
      %p531 = pneg %p408
      %p532 = scmp.lt.s32.totalorder %s28, 1
      %s533 = scalar_select %p532, %s28, 1
      %s534 = smul.addr %s533, 8
      %s535 = smul.addr %s534, 8
      %s536 = scalar_lea.vmem %s17, %s535
      %p537 = scmp.lt.s32.totalorder %s28, 1
      %s538 = scalar_select %p537, %s28, 1
      %s539 = smul.addr %s538, 8
      %s540 = scalar_lea.vmem %s0, %s539
      %p541 = scmp.lt.s32.totalorder %s28, 1
      %s542 = scalar_select %p541, %s28, 1
      %s543 = smul.addr %s542, 8
      %s544 = smul.addr %s543, 8
      %s545 = scalar_lea.vmem %s17, %s544
      %v546 = vld [vmem:[%s540] sm:$0xff]
      %v547 = vld [vmem:[%s1] sm:$0xff]
      %v548 = vld [vmem:[%s1 + $0x8] sm:$0xff]
      %v549 = vld [vmem:[%s1 + $0x10] sm:$0xff]
      %v550 = vld [vmem:[%s1 + $0x18] sm:$0xff]
      %v551 = vld [vmem:[%s2] sm:$0x3]
      %v553 = vlaneseq
      %v554 = vshrl.u32 %v553, 7
      %v555 = vsub.s32 0, %v554
      %v556 = vrot.slane %v551, %v555
      %v557 = vlaneseq
      %v558 = vshrl.u32 %v557, 7
      %v559 = vsub.s32 1, %v558
      %v560 = vrot.slane %v551, %v559
      %vm563 = vcmask 130048
      %v565 = vsel %vm563, %v546, 0
      %567 = vmatprep.subr.mxu0 %v548
      %568 = vmatpush1.msra.mxu0 %v547
      %569 = vmatprep.subr.mxu0 %v550
      %570 = vmatpush1.msra.mxu0 %v549
      %571 = vmatprep.subr.mxu0 0.0
      %572 = vmatpush1.msra.mxu0 0.0
      %573 = vmatprep.subr.mxu0 0.0
      %574 = vmatpush1.msra.mxu0 0.0
      %575 = vmatprep.subr.mxu0 0.0
      %576 = vmatpush1.msra.mxu0 0.0
      %577 = vmatprep.subr.mxu0 0.0
      %578 = vmatpush1.msra.mxu0 0.0
      %579 = vmatprep.subr.mxu0 0.0
      %580 = vmatpush1.msra.mxu0 0.0
      %581 = vmatprep.subr.mxu0 0.0
      %582 = vmatpush1.msra.mxu0 0.0
      %583 = vmatprep.subr.mxu0 0.0
      %584 = vmatpush1.msra.mxu0 0.0
      %585 = vmatprep.subr.mxu0 0.0
      %586 = vmatpush1.msra.mxu0 0.0
      %587 = vmatprep.subr.mxu0 0.0
      %588 = vmatpush1.msra.mxu0 0.0
      %589 = vmatprep.subr.mxu0 0.0
      %590 = vmatpush1.msra.mxu0 0.0
      %591 = vmatprep.subr.mxu0 0.0
      %592 = vmatpush1.msra.mxu0 0.0
      %593 = vmatprep.subr.mxu0 0.0
      %594 = vmatpush1.msra.mxu0 0.0
      %595 = vmatprep.subr.mxu0 0.0
      %596 = vmatpush1.msra.mxu0 0.0
      %597 = vmatprep.subr.mxu0 0.0
      %598 = vmatpush1.msra.mxu0 0.0
      %599 = vmatprep.subr.mxu0 0.0
      %600 = vmatpush1.msra.mxu0 0.0
      %601 = vmatprep.subr.mxu0 0.0
      %602 = vmatpush1.msra.mxu0 0.0
      %603 = vmatprep.subr.mxu0 0.0
      %604 = vmatpush1.msra.mxu0 0.0
      %605 = vmatprep.subr.mxu0 0.0
      %606 = vmatpush1.msra.mxu0 0.0
      %607 = vmatprep.subr.mxu0 0.0
      %608 = vmatpush1.msra.mxu0 0.0
      %609 = vmatprep.subr.mxu0 0.0
      %610 = vmatpush1.msra.mxu0 0.0
      %611 = vmatprep.subr.mxu0 0.0
      %612 = vmatpush1.msra.mxu0 0.0
      %613 = vmatprep.subr.mxu0 0.0
      %614 = vmatpush1.msra.mxu0 0.0
      %615 = vmatprep.subr.mxu0 0.0
      %616 = vmatpush1.msra.mxu0 0.0
      %617 = vmatprep.subr.mxu0 0.0
      %618 = vmatpush1.msra.mxu0 0.0
      %619 = vmatprep.subr.mxu0 0.0
      %620 = vmatpush1.msra.mxu0 0.0
      %621 = vmatprep.subr.mxu0 0.0
      %622 = vmatpush1.msra.mxu0 0.0
      %623 = vmatprep.subr.mxu0 0.0
      %624 = vmatpush1.msra.mxu0 0.0
      %625 = vmatprep.subr.mxu0 0.0
      %626 = vmatpush1.msra.mxu0 0.0
      %627 = vmatprep.subr.mxu0 0.0
      %628 = vmatpush1.msra.mxu0 0.0
      %629 = vmatprep.subr.mxu0 0.0
      %630 = vmatpush1.msra.mxu0 0.0
      %631 = vmatprep.mubr.f32.mxu0 0.0
      %632 = vmatmul.mubr.f32.gmra.mrb[0].mxu0 %v565
      %v633 = vpop.f32.mrb[0].mxu0
      %v634 = vadd.f32 %v556, %v633
      %v635 = vpop.f32.mrb[0].mxu0
      %v636 = vadd.f32 %v560, %v635
      %637 = vdwg.mxu0
      %v638 = vmax.f32 %v634, 0.0
      %v639 = vmax.f32 %v636, 0.0
      %vm640 = vcmask 516096
      %641 = vst.msk [vmem:[#allocation2] sm:$0x1] %vm640, %v638
      %643 = vrot.lane.b32.xlu0 %v638, 64
      %v644 = vpop.permute.xlu0 %643
      %646 = vst.msk [vmem:[#allocation2 + $0x1] sm:$0x1] %vm640, %v644
      %647 = vst.msk [vmem:[#allocation2 + $0x2] sm:$0x1] %vm640, %v639
      %649 = vrot.lane.b32.xlu0 %v639, 64
      %v650 = vpop.permute.xlu0 %649
      %652 = vst.msk [vmem:[#allocation2 + $0x3] sm:$0x1] %vm640, %v650
      %vm653 = vcmask 519168
      %654 = vst.msk [vmem:[#allocation2 + $0x4] sm:$0xf] %vm653, 0.0
      %v655 = vld [vmem:[#allocation2] sm:$0xff]
      %v656 = vld [vmem:[%s3] sm:$0xff]
      %v657 = vld [vmem:[%s3 + $0x8] sm:$0xff]
      %v658 = vld [vmem:[%s3 + $0x10] sm:$0xff]
      %v659 = vld [vmem:[%s3 + $0x18] sm:$0xff]
      %v660 = vld [vmem:[%s3 + $0x20] sm:$0xff]
      %v661 = vld [vmem:[%s3 + $0x28] sm:$0xff]
      %v662 = vld [vmem:[%s3 + $0x30] sm:$0xff]
      %v663 = vld [vmem:[%s3 + $0x38] sm:$0xff]
      %v664 = vld [vmem:[%s3 + $0x40] sm:$0xff]
      %v665 = vld [vmem:[%s3 + $0x48] sm:$0xff]
      %v666 = vld [vmem:[%s3 + $0x50] sm:$0xff]
      %v667 = vld [vmem:[%s3 + $0x58] sm:$0xff]
      %v668 = vld [vmem:[%s3 + $0x60] sm:$0xff]
      %v669 = vld [vmem:[%s3 + $0x68] sm:$0xff]
      %v670 = vld [vmem:[%s3 + $0x70] sm:$0xff]
      %v671 = vld [vmem:[%s3 + $0x78] sm:$0xff]
      %vm672 = vcmask 523264
      %v674 = vsel %vm672, %v655, 0
      %676 = vmatprep.subr.mxu0 %v657
      %677 = vmatpush1.msra.mxu0 %v656
      %678 = vmatprep.subr.mxu0 %v659
      %679 = vmatpush1.msra.mxu0 %v658
      %680 = vmatprep.subr.mxu0 %v661
      %681 = vmatpush1.msra.mxu0 %v660
      %682 = vmatprep.subr.mxu0 %v663
      %683 = vmatpush1.msra.mxu0 %v662
      %684 = vmatprep.subr.mxu0 %v665
      %685 = vmatpush1.msra.mxu0 %v664
      %686 = vmatprep.subr.mxu0 %v667
      %687 = vmatpush1.msra.mxu0 %v666
      %688 = vmatprep.subr.mxu0 %v669
      %689 = vmatpush1.msra.mxu0 %v668
      %690 = vmatprep.subr.mxu0 %v671
      %691 = vmatpush1.msra.mxu0 %v670
      %692 = vmatprep.subr.mxu0 0.0
      %693 = vmatpush1.msra.mxu0 0.0
      %694 = vmatprep.subr.mxu0 0.0
      %695 = vmatpush1.msra.mxu0 0.0
      %696 = vmatprep.subr.mxu0 0.0
      %697 = vmatpush1.msra.mxu0 0.0
      %698 = vmatprep.subr.mxu0 0.0
      %699 = vmatpush1.msra.mxu0 0.0
      %700 = vmatprep.subr.mxu0 0.0
      %701 = vmatpush1.msra.mxu0 0.0
      %702 = vmatprep.subr.mxu0 0.0
      %703 = vmatpush1.msra.mxu0 0.0
      %704 = vmatprep.subr.mxu0 0.0
      %705 = vmatpush1.msra.mxu0 0.0
      %706 = vmatprep.subr.mxu0 0.0
      %707 = vmatpush1.msra.mxu0 0.0
      %708 = vmatprep.subr.mxu0 0.0
      %709 = vmatpush1.msra.mxu0 0.0
      %710 = vmatprep.subr.mxu0 0.0
      %711 = vmatpush1.msra.mxu0 0.0
      %712 = vmatprep.subr.mxu0 0.0
      %713 = vmatpush1.msra.mxu0 0.0
      %714 = vmatprep.subr.mxu0 0.0
      %715 = vmatpush1.msra.mxu0 0.0
      %716 = vmatprep.subr.mxu0 0.0
      %717 = vmatpush1.msra.mxu0 0.0
      %718 = vmatprep.subr.mxu0 0.0
      %719 = vmatpush1.msra.mxu0 0.0
      %720 = vmatprep.subr.mxu0 0.0
      %721 = vmatpush1.msra.mxu0 0.0
      %722 = vmatprep.subr.mxu0 0.0
      %723 = vmatpush1.msra.mxu0 0.0
      %724 = vmatprep.subr.mxu0 0.0
      %725 = vmatpush1.msra.mxu0 0.0
      %726 = vmatprep.subr.mxu0 0.0
      %727 = vmatpush1.msra.mxu0 0.0
      %728 = vmatprep.subr.mxu0 0.0
      %729 = vmatpush1.msra.mxu0 0.0
      %730 = vmatprep.subr.mxu0 0.0
      %731 = vmatpush1.msra.mxu0 0.0
      %732 = vmatprep.subr.mxu0 0.0
      %733 = vmatpush1.msra.mxu0 0.0
      %734 = vmatprep.subr.mxu0 0.0
      %735 = vmatpush1.msra.mxu0 0.0
      %736 = vmatprep.subr.mxu0 0.0
      %737 = vmatpush1.msra.mxu0 0.0
      %738 = vmatprep.subr.mxu0 0.0
      %739 = vmatpush1.msra.mxu0 0.0
      %740 = vmatprep.mubr.f32.mxu0 0.0
      %741 = vmatmul.mubr.f32.gmra.mrb[0].mxu0 %v674
      %v742 = vpop.f32.mrb[0].mxu0
      %v743 = vadd.f32 0.0, %v742
      %v744 = vpop.f32.mrb[0].mxu0
      %v745 = vadd.f32 0.0, %v744
      %746 = vdwg.mxu0
      %747 = vst [vmem:[#allocation3] sm:$0xff] %v743
      %v748 = vld [vmem:[#allocation3 + $0x1] sm:$0x7f]
      %v749 = vadd.f32 %v748, %v745
      %vm750 = vcmask 260096
      %751 = vst.msk [vmem:[#allocation3 + $0x1] sm:$0x7f] %vm750, %v749
      %v752 = vld [vmem:[#allocation3] sm:$0xff]
      %v753 = vld [vmem:[%s8] sm:$0x1]
      %v755 = vlaneseq
      %v756 = vshrl.u32 %v755, 7
      %v757 = vsub.s32 0, %v756
      %v758 = vrot.slane %v753, %v757
      %v760 = vadd.f32 %v752, %v758
      %v761 = vmax.f32 %v760, 0.0
      %v762 = vld [vmem:[%s13] sm:$0xff]
      %v763 = vmul.f32 %v761, %v762
      %v764 = vld [vmem:[%s4] sm:$0xff]
      %v765 = vld [vmem:[%s4 + $0x8] sm:$0xff]
      %v766 = vld [vmem:[%s4 + $0x10] sm:$0xff]
      %v767 = vld [vmem:[%s4 + $0x18] sm:$0xff]
      %v768 = vld [vmem:[%s4 + $0x20] sm:$0xff]
      %v769 = vld [vmem:[%s4 + $0x28] sm:$0xff]
      %v770 = vld [vmem:[%s4 + $0x30] sm:$0xff]
      %v771 = vld [vmem:[%s4 + $0x38] sm:$0xff]
      %v772 = vld [vmem:[%s4 + $0x40] sm:$0xff]
      %v773 = vld [vmem:[%s4 + $0x48] sm:$0xff]
      %v774 = vld [vmem:[%s4 + $0x50] sm:$0xff]
      %v775 = vld [vmem:[%s4 + $0x58] sm:$0xff]
      %v776 = vld [vmem:[%s4 + $0x60] sm:$0xff]
      %v777 = vld [vmem:[%s4 + $0x68] sm:$0xff]
      %v778 = vld [vmem:[%s4 + $0x70] sm:$0xff]
      %v779 = vld [vmem:[%s4 + $0x78] sm:$0xff]
      %v780 = vld [vmem:[%s4 + $0x80] sm:$0xff]
      %v781 = vld [vmem:[%s4 + $0x88] sm:$0xff]
      %v782 = vld [vmem:[%s4 + $0x90] sm:$0xff]
      %v783 = vld [vmem:[%s4 + $0x98] sm:$0xff]
      %v784 = vld [vmem:[%s4 + $0xa0] sm:$0xff]
      %v785 = vld [vmem:[%s4 + $0xa8] sm:$0xff]
      %v786 = vld [vmem:[%s4 + $0xb0] sm:$0xff]
      %v787 = vld [vmem:[%s4 + $0xb8] sm:$0xff]
      %v788 = vld [vmem:[%s4 + $0xc0] sm:$0xff]
      %v789 = vld [vmem:[%s4 + $0xc8] sm:$0xff]
      %v790 = vld [vmem:[%s4 + $0xd0] sm:$0xff]
      %v791 = vld [vmem:[%s4 + $0xd8] sm:$0xff]
      %v792 = vld [vmem:[%s4 + $0xe0] sm:$0xff]
      %v793 = vld [vmem:[%s4 + $0xe8] sm:$0xff]
      %v794 = vld [vmem:[%s4 + $0xf0] sm:$0xff]
      %v795 = vld [vmem:[%s4 + $0xf8] sm:$0xff]
      %v796 = vld [vmem:[%s4 + $0x100] sm:$0xff]
      %v797 = vld [vmem:[%s4 + $0x108] sm:$0xff]
      %v798 = vld [vmem:[%s4 + $0x110] sm:$0xff]
      %v799 = vld [vmem:[%s4 + $0x118] sm:$0xff]
      %v800 = vld [vmem:[%s4 + $0x120] sm:$0xff]
      %v801 = vld [vmem:[%s4 + $0x128] sm:$0xff]
      %v802 = vld [vmem:[%s4 + $0x130] sm:$0xff]
      %v803 = vld [vmem:[%s4 + $0x138] sm:$0xff]
      %v804 = vld [vmem:[%s4 + $0x140] sm:$0xff]
      %v805 = vld [vmem:[%s4 + $0x148] sm:$0xff]
      %v806 = vld [vmem:[%s4 + $0x150] sm:$0xff]
      %v807 = vld [vmem:[%s4 + $0x158] sm:$0xff]
      %v808 = vld [vmem:[%s4 + $0x160] sm:$0xff]
      %v809 = vld [vmem:[%s4 + $0x168] sm:$0xff]
      %v810 = vld [vmem:[%s4 + $0x170] sm:$0xff]
      %v811 = vld [vmem:[%s4 + $0x178] sm:$0xff]
      %812 = vmatprep.subr.mxu0 %v765
      %813 = vmatpush1.msra.mxu0 %v764
      %814 = vmatprep.subr.mxu0 %v768
      %815 = vmatpush1.msra.mxu0 %v767
      %816 = vmatprep.subr.mxu0 %v771
      %817 = vmatpush1.msra.mxu0 %v770
      %818 = vmatprep.subr.mxu0 %v774
      %819 = vmatpush1.msra.mxu0 %v773
      %820 = vmatprep.subr.mxu0 %v777
      %821 = vmatpush1.msra.mxu0 %v776
      %822 = vmatprep.subr.mxu0 %v780
      %823 = vmatpush1.msra.mxu0 %v779
      %824 = vmatprep.subr.mxu0 %v783
      %825 = vmatpush1.msra.mxu0 %v782
      %826 = vmatprep.subr.mxu0 %v786
      %827 = vmatpush1.msra.mxu0 %v785
      %828 = vmatprep.subr.mxu0 %v789
      %829 = vmatpush1.msra.mxu0 %v788
      %830 = vmatprep.subr.mxu0 %v792
      %831 = vmatpush1.msra.mxu0 %v791
      %832 = vmatprep.subr.mxu0 %v795
      %833 = vmatpush1.msra.mxu0 %v794
      %834 = vmatprep.subr.mxu0 %v798
      %835 = vmatpush1.msra.mxu0 %v797
      %836 = vmatprep.subr.mxu0 %v801
      %837 = vmatpush1.msra.mxu0 %v800
      %838 = vmatprep.subr.mxu0 %v804
      %839 = vmatpush1.msra.mxu0 %v803
      %840 = vmatprep.subr.mxu0 %v807
      %841 = vmatpush1.msra.mxu0 %v806
      %842 = vmatprep.subr.mxu0 %v810
      %843 = vmatpush1.msra.mxu0 %v809
      %844 = vmatprep.subr.mxu0 0.0
      %845 = vmatpush1.msra.mxu0 0.0
      %846 = vmatprep.subr.mxu0 0.0
      %847 = vmatpush1.msra.mxu0 0.0
      %848 = vmatprep.subr.mxu0 0.0
      %849 = vmatpush1.msra.mxu0 0.0
      %850 = vmatprep.subr.mxu0 0.0
      %851 = vmatpush1.msra.mxu0 0.0
      %852 = vmatprep.subr.mxu0 0.0
      %853 = vmatpush1.msra.mxu0 0.0
      %854 = vmatprep.subr.mxu0 0.0
      %855 = vmatpush1.msra.mxu0 0.0
      %856 = vmatprep.subr.mxu0 0.0
      %857 = vmatpush1.msra.mxu0 0.0
      %858 = vmatprep.subr.mxu0 0.0
      %859 = vmatpush1.msra.mxu0 0.0
      %860 = vmatprep.subr.mxu0 0.0
      %861 = vmatpush1.msra.mxu0 0.0
      %862 = vmatprep.subr.mxu0 0.0
      %863 = vmatpush1.msra.mxu0 0.0
      %864 = vmatprep.subr.mxu0 0.0
      %865 = vmatpush1.msra.mxu0 0.0
      %866 = vmatprep.subr.mxu0 0.0
      %867 = vmatpush1.msra.mxu0 0.0
      %868 = vmatprep.subr.mxu0 0.0
      %869 = vmatpush1.msra.mxu0 0.0
      %870 = vmatprep.subr.mxu0 0.0
      %871 = vmatpush1.msra.mxu0 0.0
      %872 = vmatprep.subr.mxu0 0.0
      %873 = vmatpush1.msra.mxu0 0.0
      %874 = vmatprep.subr.mxu0 0.0
      %875 = vmatpush1.msra.mxu0 0.0
      %876 = vmatprep.mubr.f32.mxu0 0.0
      %877 = vmatmul.mubr.f32.gmra.mrb[0].mxu0 %v763
      %v878 = vpop.f32.mrb[0].mxu0
      %v879 = vadd.f32 0.0, %v878
      %v880 = vpop.f32.mrb[0].mxu0
      %v881 = vadd.f32 0.0, %v880
      %882 = vdwg.mxu0
      %883 = vmatprep.subr.mxu0 0.0
      %884 = vmatpush1.msra.mxu0 %v766
      %885 = vmatprep.subr.mxu0 0.0
      %886 = vmatpush1.msra.mxu0 %v769
      %887 = vmatprep.subr.mxu0 0.0
      %888 = vmatpush1.msra.mxu0 %v772
      %889 = vmatprep.subr.mxu0 0.0
      %890 = vmatpush1.msra.mxu0 %v775
      %891 = vmatprep.subr.mxu0 0.0
      %892 = vmatpush1.msra.mxu0 %v778
      %893 = vmatprep.subr.mxu0 0.0
      %894 = vmatpush1.msra.mxu0 %v781
      %895 = vmatprep.subr.mxu0 0.0
      %896 = vmatpush1.msra.mxu0 %v784
      %897 = vmatprep.subr.mxu0 0.0
      %898 = vmatpush1.msra.mxu0 %v787
      %899 = vmatprep.subr.mxu0 0.0
      %900 = vmatpush1.msra.mxu0 %v790
      %901 = vmatprep.subr.mxu0 0.0
      %902 = vmatpush1.msra.mxu0 %v793
      %903 = vmatprep.subr.mxu0 0.0
      %904 = vmatpush1.msra.mxu0 %v796
      %905 = vmatprep.subr.mxu0 0.0
      %906 = vmatpush1.msra.mxu0 %v799
      %907 = vmatprep.subr.mxu0 0.0
      %908 = vmatpush1.msra.mxu0 %v802
      %909 = vmatprep.subr.mxu0 0.0
      %910 = vmatpush1.msra.mxu0 %v805
      %911 = vmatprep.subr.mxu0 0.0
      %912 = vmatpush1.msra.mxu0 %v808
      %913 = vmatprep.subr.mxu0 0.0
      %914 = vmatpush1.msra.mxu0 %v811
      %915 = vmatprep.subr.mxu0 0.0
      %916 = vmatpush1.msra.mxu0 0.0
      %917 = vmatprep.subr.mxu0 0.0
      %918 = vmatpush1.msra.mxu0 0.0
      %919 = vmatprep.subr.mxu0 0.0
      %920 = vmatpush1.msra.mxu0 0.0
      %921 = vmatprep.subr.mxu0 0.0
      %922 = vmatpush1.msra.mxu0 0.0
      %923 = vmatprep.subr.mxu0 0.0
      %924 = vmatpush1.msra.mxu0 0.0
      %925 = vmatprep.subr.mxu0 0.0
      %926 = vmatpush1.msra.mxu0 0.0
      %927 = vmatprep.subr.mxu0 0.0
      %928 = vmatpush1.msra.mxu0 0.0
      %929 = vmatprep.subr.mxu0 0.0
      %930 = vmatpush1.msra.mxu0 0.0
      %931 = vmatprep.subr.mxu0 0.0
      %932 = vmatpush1.msra.mxu0 0.0
      %933 = vmatprep.subr.mxu0 0.0
      %934 = vmatpush1.msra.mxu0 0.0
      %935 = vmatprep.subr.mxu0 0.0
      %936 = vmatpush1.msra.mxu0 0.0
      %937 = vmatprep.subr.mxu0 0.0
      %938 = vmatpush1.msra.mxu0 0.0
      %939 = vmatprep.subr.mxu0 0.0
      %940 = vmatpush1.msra.mxu0 0.0
      %941 = vmatprep.subr.mxu0 0.0
      %942 = vmatpush1.msra.mxu0 0.0
      %943 = vmatprep.subr.mxu0 0.0
      %944 = vmatpush1.msra.mxu0 0.0
      %945 = vmatprep.subr.mxu0 0.0
      %946 = vmatpush1.msra.mxu0 0.0
      %947 = vmatprep.mubr.f32.mxu0 0.0
      %948 = vmatmul.mubr.f32.gmra.mrb[0].mxu0 %v763
      %v949 = vpop.f32.mrb[0].mxu0
      %v950 = vadd.f32 0.0, %v949
      %v951 = vpop.f32.mrb[0].mxu0
      %952 = vdwg.mxu0
      %953 = vst [vmem:[#allocation4] sm:$0xff] %v879
      %954 = vst [vmem:[#allocation4 + $0x8] sm:$0xff] %v881
      %v955 = vld [vmem:[#allocation4] sm:$0xfe]
      %v957 = vrot.slane %v950, 7
      %v959 = vadd.f32 %v955, %v957
      %vm960 = vcmask 130049
      %961 = vst.msk [vmem:[#allocation4] sm:$0xfe] %vm960, %v959
      %v962 = vld [vmem:[#allocation4] sm:$0xff]
      %v963 = vld [vmem:[#allocation4 + $0x8] sm:$0xff]
      %v964 = vld [vmem:[%s9] sm:$0x3]
      %v966 = vlaneseq
      %v967 = vshrl.u32 %v966, 7
      %v968 = vsub.s32 0, %v967
      %v969 = vrot.slane %v964, %v968
      %v970 = vlaneseq
      %v971 = vshrl.u32 %v970, 7
      %v972 = vsub.s32 1, %v971
      %v973 = vrot.slane %v964, %v972
      %v976 = vadd.f32 %v962, %v969
      %v977 = vadd.f32 %v963, %v973
      %v978 = vmax.f32 %v976, 0.0
      %v979 = vmax.f32 %v977, 0.0
      %v980 = vld [vmem:[%s14] sm:$0xff]
      %v981 = vld [vmem:[%s14 + $0x8] sm:$0xff]
      %v982 = vmul.f32 %v978, %v980
      %v983 = vmul.f32 %v979, %v981
      %v984 = vld [vmem:[%s5] sm:$0xff]
      %v985 = vld [vmem:[%s5 + $0x8] sm:$0xff]
      %v986 = vld [vmem:[%s5 + $0x10] sm:$0xff]
      %v987 = vld [vmem:[%s5 + $0x18] sm:$0xff]
      %v988 = vld [vmem:[%s5 + $0x20] sm:$0xff]
      %v989 = vld [vmem:[%s5 + $0x28] sm:$0xff]
      %v990 = vld [vmem:[%s5 + $0x30] sm:$0xff]
      %v991 = vld [vmem:[%s5 + $0x38] sm:$0xff]
      %v992 = vld [vmem:[%s5 + $0x40] sm:$0xff]
      %v993 = vld [vmem:[%s5 + $0x48] sm:$0xff]
      %v994 = vld [vmem:[%s5 + $0x50] sm:$0xff]
      %v995 = vld [vmem:[%s5 + $0x58] sm:$0xff]
      %v996 = vld [vmem:[%s5 + $0x60] sm:$0xff]
      %v997 = vld [vmem:[%s5 + $0x68] sm:$0xff]
      %v998 = vld [vmem:[%s5 + $0x70] sm:$0xff]
      %v999 = vld [vmem:[%s5 + $0x78] sm:$0xff]
      %v1000 = vld [vmem:[%s5 + $0x80] sm:$0xff]
      %v1001 = vld [vmem:[%s5 + $0x88] sm:$0xff]
      %v1002 = vld [vmem:[%s5 + $0x90] sm:$0xff]
      %v1003 = vld [vmem:[%s5 + $0x98] sm:$0xff]
      %v1004 = vld [vmem:[%s5 + $0xa0] sm:$0xff]
      %v1005 = vld [vmem:[%s5 + $0xa8] sm:$0xff]
      %v1006 = vld [vmem:[%s5 + $0xb0] sm:$0xff]
      %v1007 = vld [vmem:[%s5 + $0xb8] sm:$0xff]
      %v1008 = vld [vmem:[%s5 + $0xc0] sm:$0xff]
      %v1009 = vld [vmem:[%s5 + $0xc8] sm:$0xff]
      %v1010 = vld [vmem:[%s5 + $0xd0] sm:$0xff]
      %v1011 = vld [vmem:[%s5 + $0xd8] sm:$0xff]
      %v1012 = vld [vmem:[%s5 + $0xe0] sm:$0xff]
      %v1013 = vld [vmem:[%s5 + $0xe8] sm:$0xff]
      %v1014 = vld [vmem:[%s5 + $0xf0] sm:$0xff]
      %v1015 = vld [vmem:[%s5 + $0xf8] sm:$0xff]
      %v1016 = vld [vmem:[%s5 + $0x100] sm:$0xff]
      %v1017 = vld [vmem:[%s5 + $0x108] sm:$0xff]
      %v1018 = vld [vmem:[%s5 + $0x110] sm:$0xff]
      %v1019 = vld [vmem:[%s5 + $0x118] sm:$0xff]
      %v1020 = vld [vmem:[%s5 + $0x120] sm:$0xff]
      %v1021 = vld [vmem:[%s5 + $0x128] sm:$0xff]
      %v1022 = vld [vmem:[%s5 + $0x130] sm:$0xff]
      %v1023 = vld [vmem:[%s5 + $0x138] sm:$0xff]
      %v1024 = vld [vmem:[%s5 + $0x140] sm:$0xff]
      %v1025 = vld [vmem:[%s5 + $0x148] sm:$0xff]
      %v1026 = vld [vmem:[%s5 + $0x150] sm:$0xff]
      %v1027 = vld [vmem:[%s5 + $0x158] sm:$0xff]
      %v1028 = vld [vmem:[%s5 + $0x160] sm:$0xff]
      %v1029 = vld [vmem:[%s5 + $0x168] sm:$0xff]
      %v1030 = vld [vmem:[%s5 + $0x170] sm:$0xff]
      %v1031 = vld [vmem:[%s5 + $0x178] sm:$0xff]
      %v1032 = vld [vmem:[%s5 + $0x180] sm:$0xff]
      %v1033 = vld [vmem:[%s5 + $0x188] sm:$0xff]
      %v1034 = vld [vmem:[%s5 + $0x190] sm:$0xff]
      %v1035 = vld [vmem:[%s5 + $0x198] sm:$0xff]
      %v1036 = vld [vmem:[%s5 + $0x1a0] sm:$0xff]
      %v1037 = vld [vmem:[%s5 + $0x1a8] sm:$0xff]
      %v1038 = vld [vmem:[%s5 + $0x1b0] sm:$0xff]
      %v1039 = vld [vmem:[%s5 + $0x1b8] sm:$0xff]
      %v1040 = vld [vmem:[%s5 + $0x1c0] sm:$0xff]
      %v1041 = vld [vmem:[%s5 + $0x1c8] sm:$0xff]
      %v1042 = vld [vmem:[%s5 + $0x1d0] sm:$0xff]
      %v1043 = vld [vmem:[%s5 + $0x1d8] sm:$0xff]
      %v1044 = vld [vmem:[%s5 + $0x1e0] sm:$0xff]
      %v1045 = vld [vmem:[%s5 + $0x1e8] sm:$0xff]
      %v1046 = vld [vmem:[%s5 + $0x1f0] sm:$0xff]
      %v1047 = vld [vmem:[%s5 + $0x1f8] sm:$0xff]
      %v1048 = vld [vmem:[%s5 + $0x200] sm:$0xff]
      %v1049 = vld [vmem:[%s5 + $0x208] sm:$0xff]
      %v1050 = vld [vmem:[%s5 + $0x210] sm:$0xff]
      %v1051 = vld [vmem:[%s5 + $0x218] sm:$0xff]
      %v1052 = vld [vmem:[%s5 + $0x220] sm:$0xff]
      %v1053 = vld [vmem:[%s5 + $0x228] sm:$0xff]
      %v1054 = vld [vmem:[%s5 + $0x230] sm:$0xff]
      %v1055 = vld [vmem:[%s5 + $0x238] sm:$0xff]
      %v1056 = vld [vmem:[%s5 + $0x240] sm:$0xff]
      %v1057 = vld [vmem:[%s5 + $0x248] sm:$0xff]
      %v1058 = vld [vmem:[%s5 + $0x250] sm:$0xff]
      %v1059 = vld [vmem:[%s5 + $0x258] sm:$0xff]
      %v1060 = vld [vmem:[%s5 + $0x260] sm:$0xff]
      %v1061 = vld [vmem:[%s5 + $0x268] sm:$0xff]
      %v1062 = vld [vmem:[%s5 + $0x270] sm:$0xff]
      %v1063 = vld [vmem:[%s5 + $0x278] sm:$0xff]
      %v1064 = vld [vmem:[%s5 + $0x280] sm:$0xff]
      %v1065 = vld [vmem:[%s5 + $0x288] sm:$0xff]
      %v1066 = vld [vmem:[%s5 + $0x290] sm:$0xff]
      %v1067 = vld [vmem:[%s5 + $0x298] sm:$0xff]
      %v1068 = vld [vmem:[%s5 + $0x2a0] sm:$0xff]
      %v1069 = vld [vmem:[%s5 + $0x2a8] sm:$0xff]
      %v1070 = vld [vmem:[%s5 + $0x2b0] sm:$0xff]
      %v1071 = vld [vmem:[%s5 + $0x2b8] sm:$0xff]
      %v1072 = vld [vmem:[%s5 + $0x2c0] sm:$0xff]
      %v1073 = vld [vmem:[%s5 + $0x2c8] sm:$0xff]
      %v1074 = vld [vmem:[%s5 + $0x2d0] sm:$0xff]
      %v1075 = vld [vmem:[%s5 + $0x2d8] sm:$0xff]
      %v1076 = vld [vmem:[%s5 + $0x2e0] sm:$0xff]
      %v1077 = vld [vmem:[%s5 + $0x2e8] sm:$0xff]
      %v1078 = vld [vmem:[%s5 + $0x2f0] sm:$0xff]
      %v1079 = vld [vmem:[%s5 + $0x2f8] sm:$0xff]
      %v1080 = vld [vmem:[%s5 + $0x300] sm:$0xff]
      %v1081 = vld [vmem:[%s5 + $0x308] sm:$0xff]
      %v1082 = vld [vmem:[%s5 + $0x310] sm:$0xff]
      %v1083 = vld [vmem:[%s5 + $0x318] sm:$0xff]
      %v1084 = vld [vmem:[%s5 + $0x320] sm:$0xff]
      %v1085 = vld [vmem:[%s5 + $0x328] sm:$0xff]
      %v1086 = vld [vmem:[%s5 + $0x330] sm:$0xff]
      %v1087 = vld [vmem:[%s5 + $0x338] sm:$0xff]
      %v1088 = vld [vmem:[%s5 + $0x340] sm:$0xff]
      %v1089 = vld [vmem:[%s5 + $0x348] sm:$0xff]
      %v1090 = vld [vmem:[%s5 + $0x350] sm:$0xff]
      %v1091 = vld [vmem:[%s5 + $0x358] sm:$0xff]
      %v1092 = vld [vmem:[%s5 + $0x360] sm:$0xff]
      %v1093 = vld [vmem:[%s5 + $0x368] sm:$0xff]
      %v1094 = vld [vmem:[%s5 + $0x370] sm:$0xff]
      %v1095 = vld [vmem:[%s5 + $0x378] sm:$0xff]
      %v1096 = vld [vmem:[%s5 + $0x380] sm:$0xff]
      %v1097 = vld [vmem:[%s5 + $0x388] sm:$0xff]
      %v1098 = vld [vmem:[%s5 + $0x390] sm:$0xff]
      %v1099 = vld [vmem:[%s5 + $0x398] sm:$0xff]
      %v1100 = vld [vmem:[%s5 + $0x3a0] sm:$0xff]
      %v1101 = vld [vmem:[%s5 + $0x3a8] sm:$0xff]
      %v1102 = vld [vmem:[%s5 + $0x3b0] sm:$0xff]
      %v1103 = vld [vmem:[%s5 + $0x3b8] sm:$0xff]
      %v1104 = vld [vmem:[%s5 + $0x3c0] sm:$0xff]
      %v1105 = vld [vmem:[%s5 + $0x3c8] sm:$0xff]
      %v1106 = vld [vmem:[%s5 + $0x3d0] sm:$0xff]
      %v1107 = vld [vmem:[%s5 + $0x3d8] sm:$0xff]
      %v1108 = vld [vmem:[%s5 + $0x3e0] sm:$0xff]
      %v1109 = vld [vmem:[%s5 + $0x3e8] sm:$0xff]
      %v1110 = vld [vmem:[%s5 + $0x3f0] sm:$0xff]
      %v1111 = vld [vmem:[%s5 + $0x3f8] sm:$0xff]
      %v1112 = vld [vmem:[%s5 + $0x400] sm:$0xff]
      %v1113 = vld [vmem:[%s5 + $0x408] sm:$0xff]
      %v1114 = vld [vmem:[%s5 + $0x410] sm:$0xff]
      %v1115 = vld [vmem:[%s5 + $0x418] sm:$0xff]
      %v1116 = vld [vmem:[%s5 + $0x420] sm:$0xff]
      %v1117 = vld [vmem:[%s5 + $0x428] sm:$0xff]
      %v1118 = vld [vmem:[%s5 + $0x430] sm:$0xff]
      %v1119 = vld [vmem:[%s5 + $0x438] sm:$0xff]
      %v1120 = vld [vmem:[%s5 + $0x440] sm:$0xff]
      %v1121 = vld [vmem:[%s5 + $0x448] sm:$0xff]
      %v1122 = vld [vmem:[%s5 + $0x450] sm:$0xff]
      %v1123 = vld [vmem:[%s5 + $0x458] sm:$0xff]
      %v1124 = vld [vmem:[%s5 + $0x460] sm:$0xff]
      %v1125 = vld [vmem:[%s5 + $0x468] sm:$0xff]
      %v1126 = vld [vmem:[%s5 + $0x470] sm:$0xff]
      %v1127 = vld [vmem:[%s5 + $0x478] sm:$0xff]
      %v1128 = vld [vmem:[%s5 + $0x480] sm:$0xff]
      %v1129 = vld [vmem:[%s5 + $0x488] sm:$0xff]
      %v1130 = vld [vmem:[%s5 + $0x490] sm:$0xff]
      %v1131 = vld [vmem:[%s5 + $0x498] sm:$0xff]
      %v1132 = vld [vmem:[%s5 + $0x4a0] sm:$0xff]
      %v1133 = vld [vmem:[%s5 + $0x4a8] sm:$0xff]
      %v1134 = vld [vmem:[%s5 + $0x4b0] sm:$0xff]
      %v1135 = vld [vmem:[%s5 + $0x4b8] sm:$0xff]
      %v1136 = vld [vmem:[%s5 + $0x4c0] sm:$0xff]
      %v1137 = vld [vmem:[%s5 + $0x4c8] sm:$0xff]
      %v1138 = vld [vmem:[%s5 + $0x4d0] sm:$0xff]
      %v1139 = vld [vmem:[%s5 + $0x4d8] sm:$0xff]
      %v1140 = vld [vmem:[%s5 + $0x4e0] sm:$0xff]
      %v1141 = vld [vmem:[%s5 + $0x4e8] sm:$0xff]
      %v1142 = vld [vmem:[%s5 + $0x4f0] sm:$0xff]
      %v1143 = vld [vmem:[%s5 + $0x4f8] sm:$0xff]
      %1144 = vmatprep.subr.mxu0 %v985
      %1145 = vmatpush1.msra.mxu0 %v984
      %1146 = vmatprep.subr.mxu0 %v990
      %1147 = vmatpush1.msra.mxu0 %v989
      %1148 = vmatprep.subr.mxu0 %v995
      %1149 = vmatpush1.msra.mxu0 %v994
      %1150 = vmatprep.subr.mxu0 %v1000
      %1151 = vmatpush1.msra.mxu0 %v999
      %1152 = vmatprep.subr.mxu0 %v1005
      %1153 = vmatpush1.msra.mxu0 %v1004
      %1154 = vmatprep.subr.mxu0 %v1010
      %1155 = vmatpush1.msra.mxu0 %v1009
      %1156 = vmatprep.subr.mxu0 %v1015
      %1157 = vmatpush1.msra.mxu0 %v1014
      %1158 = vmatprep.subr.mxu0 %v1020
      %1159 = vmatpush1.msra.mxu0 %v1019
      %1160 = vmatprep.subr.mxu0 %v1025
      %1161 = vmatpush1.msra.mxu0 %v1024
      %1162 = vmatprep.subr.mxu0 %v1030
      %1163 = vmatpush1.msra.mxu0 %v1029
      %1164 = vmatprep.subr.mxu0 %v1035
      %1165 = vmatpush1.msra.mxu0 %v1034
      %1166 = vmatprep.subr.mxu0 %v1040
      %1167 = vmatpush1.msra.mxu0 %v1039
      %1168 = vmatprep.subr.mxu0 %v1045
      %1169 = vmatpush1.msra.mxu0 %v1044
      %1170 = vmatprep.subr.mxu0 %v1050
      %1171 = vmatpush1.msra.mxu0 %v1049
      %1172 = vmatprep.subr.mxu0 %v1055
      %1173 = vmatpush1.msra.mxu0 %v1054
      %1174 = vmatprep.subr.mxu0 %v1060
      %1175 = vmatpush1.msra.mxu0 %v1059
      %1176 = vmatprep.subr.mxu0 %v1065
      %1177 = vmatpush1.msra.mxu0 %v1064
      %1178 = vmatprep.subr.mxu0 %v1070
      %1179 = vmatpush1.msra.mxu0 %v1069
      %1180 = vmatprep.subr.mxu0 %v1075
      %1181 = vmatpush1.msra.mxu0 %v1074
      %1182 = vmatprep.subr.mxu0 %v1080
      %1183 = vmatpush1.msra.mxu0 %v1079
      %1184 = vmatprep.subr.mxu0 %v1085
      %1185 = vmatpush1.msra.mxu0 %v1084
      %1186 = vmatprep.subr.mxu0 %v1090
      %1187 = vmatpush1.msra.mxu0 %v1089
      %1188 = vmatprep.subr.mxu0 %v1095
      %1189 = vmatpush1.msra.mxu0 %v1094
      %1190 = vmatprep.subr.mxu0 %v1100
      %1191 = vmatpush1.msra.mxu0 %v1099
      %1192 = vmatprep.subr.mxu0 %v1105
      %1193 = vmatpush1.msra.mxu0 %v1104
      %1194 = vmatprep.subr.mxu0 %v1110
      %1195 = vmatpush1.msra.mxu0 %v1109
      %1196 = vmatprep.subr.mxu0 %v1115
      %1197 = vmatpush1.msra.mxu0 %v1114
      %1198 = vmatprep.subr.mxu0 %v1120
      %1199 = vmatpush1.msra.mxu0 %v1119
      %1200 = vmatprep.subr.mxu0 %v1125
      %1201 = vmatpush1.msra.mxu0 %v1124
      %1202 = vmatprep.subr.mxu0 %v1130
      %1203 = vmatpush1.msra.mxu0 %v1129
      %1204 = vmatprep.subr.mxu0 %v1135
      %1205 = vmatpush1.msra.mxu0 %v1134
      %1206 = vmatprep.subr.mxu0 %v1140
      %1207 = vmatpush1.msra.mxu0 %v1139
      %1208 = vmatprep.mubr.f32.mxu0 %v983
      %1209 = vmatmul.mubr.f32.gmra.mrb[0].mxu0 %v982
      %v1210 = vpop.f32.mrb[0].mxu0
      %v1211 = vadd.f32 0.0, %v1210
      %v1212 = vpop.f32.mrb[0].mxu0
      %v1213 = vadd.f32 0.0, %v1212
      %1214 = vdwg.mxu0
      %1215 = vmatprep.subr.mxu0 %v987
      %1216 = vmatpush1.msra.mxu0 %v986
      %1217 = vmatprep.subr.mxu0 %v992
      %1218 = vmatpush1.msra.mxu0 %v991
      %1219 = vmatprep.subr.mxu0 %v997
      %1220 = vmatpush1.msra.mxu0 %v996
      %1221 = vmatprep.subr.mxu0 %v1002
      %1222 = vmatpush1.msra.mxu0 %v1001
      %1223 = vmatprep.subr.mxu0 %v1007
      %1224 = vmatpush1.msra.mxu0 %v1006
      %1225 = vmatprep.subr.mxu0 %v1012
      %1226 = vmatpush1.msra.mxu0 %v1011
      %1227 = vmatprep.subr.mxu0 %v1017
      %1228 = vmatpush1.msra.mxu0 %v1016
      %1229 = vmatprep.subr.mxu0 %v1022
      %1230 = vmatpush1.msra.mxu0 %v1021
      %1231 = vmatprep.subr.mxu0 %v1027
      %1232 = vmatpush1.msra.mxu0 %v1026
      %1233 = vmatprep.subr.mxu0 %v1032
      %1234 = vmatpush1.msra.mxu0 %v1031
      %1235 = vmatprep.subr.mxu0 %v1037
      %1236 = vmatpush1.msra.mxu0 %v1036
      %1237 = vmatprep.subr.mxu0 %v1042
      %1238 = vmatpush1.msra.mxu0 %v1041
      %1239 = vmatprep.subr.mxu0 %v1047
      %1240 = vmatpush1.msra.mxu0 %v1046
      %1241 = vmatprep.subr.mxu0 %v1052
      %1242 = vmatpush1.msra.mxu0 %v1051
      %1243 = vmatprep.subr.mxu0 %v1057
      %1244 = vmatpush1.msra.mxu0 %v1056
      %1245 = vmatprep.subr.mxu0 %v1062
      %1246 = vmatpush1.msra.mxu0 %v1061
      %1247 = vmatprep.subr.mxu0 %v1067
      %1248 = vmatpush1.msra.mxu0 %v1066
      %1249 = vmatprep.subr.mxu0 %v1072
      %1250 = vmatpush1.msra.mxu0 %v1071
      %1251 = vmatprep.subr.mxu0 %v1077
      %1252 = vmatpush1.msra.mxu0 %v1076
      %1253 = vmatprep.subr.mxu0 %v1082
      %1254 = vmatpush1.msra.mxu0 %v1081
      %1255 = vmatprep.subr.mxu0 %v1087
      %1256 = vmatpush1.msra.mxu0 %v1086
      %1257 = vmatprep.subr.mxu0 %v1092
      %1258 = vmatpush1.msra.mxu0 %v1091
      %1259 = vmatprep.subr.mxu0 %v1097
      %1260 = vmatpush1.msra.mxu0 %v1096
      %1261 = vmatprep.subr.mxu0 %v1102
      %1262 = vmatpush1.msra.mxu0 %v1101
      %1263 = vmatprep.subr.mxu0 %v1107
      %1264 = vmatpush1.msra.mxu0 %v1106
      %1265 = vmatprep.subr.mxu0 %v1112
      %1266 = vmatpush1.msra.mxu0 %v1111
      %1267 = vmatprep.subr.mxu0 %v1117
      %1268 = vmatpush1.msra.mxu0 %v1116
      %1269 = vmatprep.subr.mxu0 %v1122
      %1270 = vmatpush1.msra.mxu0 %v1121
      %1271 = vmatprep.subr.mxu0 %v1127
      %1272 = vmatpush1.msra.mxu0 %v1126
      %1273 = vmatprep.subr.mxu0 %v1132
      %1274 = vmatpush1.msra.mxu0 %v1131
      %1275 = vmatprep.subr.mxu0 %v1137
      %1276 = vmatpush1.msra.mxu0 %v1136
      %1277 = vmatprep.subr.mxu0 %v1142
      %1278 = vmatpush1.msra.mxu0 %v1141
      %1279 = vmatprep.mubr.f32.mxu0 %v983
      %1280 = vmatmul.mubr.f32.gmra.mrb[0].mxu0 %v982
      %v1281 = vpop.f32.mrb[0].mxu0
      %v1282 = vadd.f32 0.0, %v1281
      %v1283 = vpop.f32.mrb[0].mxu0
      %v1284 = vadd.f32 0.0, %v1283
      %1285 = vdwg.mxu0
      %1286 = vmatprep.subr.mxu0 0.0
      %1287 = vmatpush1.msra.mxu0 %v988
      %1288 = vmatprep.subr.mxu0 0.0
      %1289 = vmatpush1.msra.mxu0 %v993
      %1290 = vmatprep.subr.mxu0 0.0
      %1291 = vmatpush1.msra.mxu0 %v998
      %1292 = vmatprep.subr.mxu0 0.0
      %1293 = vmatpush1.msra.mxu0 %v1003
      %1294 = vmatprep.subr.mxu0 0.0
      %1295 = vmatpush1.msra.mxu0 %v1008
      %1296 = vmatprep.subr.mxu0 0.0
      %1297 = vmatpush1.msra.mxu0 %v1013
      %1298 = vmatprep.subr.mxu0 0.0
      %1299 = vmatpush1.msra.mxu0 %v1018
      %1300 = vmatprep.subr.mxu0 0.0
      %1301 = vmatpush1.msra.mxu0 %v1023
      %1302 = vmatprep.subr.mxu0 0.0
      %1303 = vmatpush1.msra.mxu0 %v1028
      %1304 = vmatprep.subr.mxu0 0.0
      %1305 = vmatpush1.msra.mxu0 %v1033
      %1306 = vmatprep.subr.mxu0 0.0
      %1307 = vmatpush1.msra.mxu0 %v1038
      %1308 = vmatprep.subr.mxu0 0.0
      %1309 = vmatpush1.msra.mxu0 %v1043
      %1310 = vmatprep.subr.mxu0 0.0
      %1311 = vmatpush1.msra.mxu0 %v1048
      %1312 = vmatprep.subr.mxu0 0.0
      %1313 = vmatpush1.msra.mxu0 %v1053
      %1314 = vmatprep.subr.mxu0 0.0
      %1315 = vmatpush1.msra.mxu0 %v1058
      %1316 = vmatprep.subr.mxu0 0.0
      %1317 = vmatpush1.msra.mxu0 %v1063
      %1318 = vmatprep.subr.mxu0 0.0
      %1319 = vmatpush1.msra.mxu0 %v1068
      %1320 = vmatprep.subr.mxu0 0.0
      %1321 = vmatpush1.msra.mxu0 %v1073
      %1322 = vmatprep.subr.mxu0 0.0
      %1323 = vmatpush1.msra.mxu0 %v1078
      %1324 = vmatprep.subr.mxu0 0.0
      %1325 = vmatpush1.msra.mxu0 %v1083
      %1326 = vmatprep.subr.mxu0 0.0
      %1327 = vmatpush1.msra.mxu0 %v1088
      %1328 = vmatprep.subr.mxu0 0.0
      %1329 = vmatpush1.msra.mxu0 %v1093
      %1330 = vmatprep.subr.mxu0 0.0
      %1331 = vmatpush1.msra.mxu0 %v1098
      %1332 = vmatprep.subr.mxu0 0.0
      %1333 = vmatpush1.msra.mxu0 %v1103
      %1334 = vmatprep.subr.mxu0 0.0
      %1335 = vmatpush1.msra.mxu0 %v1108
      %1336 = vmatprep.subr.mxu0 0.0
      %1337 = vmatpush1.msra.mxu0 %v1113
      %1338 = vmatprep.subr.mxu0 0.0
      %1339 = vmatpush1.msra.mxu0 %v1118
      %1340 = vmatprep.subr.mxu0 0.0
      %1341 = vmatpush1.msra.mxu0 %v1123
      %1342 = vmatprep.subr.mxu0 0.0
      %1343 = vmatpush1.msra.mxu0 %v1128
      %1344 = vmatprep.subr.mxu0 0.0
      %1345 = vmatpush1.msra.mxu0 %v1133
      %1346 = vmatprep.subr.mxu0 0.0
      %1347 = vmatpush1.msra.mxu0 %v1138
      %1348 = vmatprep.subr.mxu0 0.0
      %1349 = vmatpush1.msra.mxu0 %v1143
      %1350 = vmatprep.mubr.f32.mxu0 %v983
      %1351 = vmatmul.mubr.f32.gmra.mrb[0].mxu0 %v982
      %v1352 = vpop.f32.mrb[0].mxu0
      %v1353 = vadd.f32 0.0, %v1352
      %v1354 = vpop.f32.mrb[0].mxu0
      %1355 = vdwg.mxu0
      %1356 = vst [vmem:[#allocation5] sm:$0xff] %v1211
      %1357 = vst [vmem:[#allocation5 + $0x8] sm:$0xff] %v1213
      %1358 = vst [vmem:[#allocation5 + $0x10] sm:$0xff] %v1282
      %1359 = vst [vmem:[#allocation5 + $0x18] sm:$0xff] %v1284
      %v1360 = vld [vmem:[#allocation5] sm:$0xfe]
      %v1362 = vrot.slane %v1353, 7
      %v1364 = vadd.f32 %v1360, %v1362
      %vm1365 = vcmask 64513
      %1366 = vst.msk [vmem:[#allocation5] sm:$0xfe] %vm1365, %v1364
      %v1367 = vld [vmem:[#allocation5] sm:$0xff]
      %v1368 = vld [vmem:[#allocation5 + $0x8] sm:$0xff]
      %v1369 = vld [vmem:[#allocation5 + $0x10] sm:$0xff]
      %v1370 = vld [vmem:[#allocation5 + $0x18] sm:$0xff]
      %v1371 = vld [vmem:[%s10] sm:$0xf]
      %v1373 = vlaneseq
      %v1374 = vshrl.u32 %v1373, 7
      %v1375 = vsub.s32 0, %v1374
      %v1376 = vrot.slane %v1371, %v1375
      %v1377 = vlaneseq
      %v1378 = vshrl.u32 %v1377, 7
      %v1379 = vsub.s32 1, %v1378
      %v1380 = vrot.slane %v1371, %v1379
      %v1381 = vlaneseq
      %v1382 = vshrl.u32 %v1381, 7
      %v1383 = vsub.s32 2, %v1382
      %v1384 = vrot.slane %v1371, %v1383
      %v1385 = vlaneseq
      %v1386 = vshrl.u32 %v1385, 7
      %v1387 = vsub.s32 3, %v1386
      %v1388 = vrot.slane %v1371, %v1387
      %v1393 = vadd.f32 %v1367, %v1376
      %v1394 = vadd.f32 %v1368, %v1380
      %v1395 = vadd.f32 %v1369, %v1384
      %v1396 = vadd.f32 %v1370, %v1388
      %v1397 = vmax.f32 %v1393, 0.0
      %v1398 = vmax.f32 %v1394, 0.0
      %v1399 = vmax.f32 %v1395, 0.0
      %v1400 = vmax.f32 %v1396, 0.0
      %v1401 = vld [vmem:[%s15] sm:$0xff]
      %v1402 = vld [vmem:[%s15 + $0x8] sm:$0xff]
      %v1403 = vld [vmem:[%s15 + $0x10] sm:$0xff]
      %v1404 = vld [vmem:[%s15 + $0x18] sm:$0xff]
      %v1405 = vmul.f32 %v1397, %v1401
      %v1406 = vmul.f32 %v1398, %v1402
      %v1407 = vmul.f32 %v1399, %v1403
      %v1408 = vmul.f32 %v1400, %v1404
      %v1409 = vld [vmem:[%s6] sm:$0xff]
      %v1410 = vld [vmem:[%s6 + $0x8] sm:$0xff]
      %v1411 = vld [vmem:[%s6 + $0x10] sm:$0xff]
      %v1412 = vld [vmem:[%s6 + $0x18] sm:$0xff]
      %v1413 = vld [vmem:[%s6 + $0x20] sm:$0xff]
      %v1414 = vld [vmem:[%s6 + $0x28] sm:$0xff]
      %v1415 = vld [vmem:[%s6 + $0x30] sm:$0xff]
      %v1416 = vld [vmem:[%s6 + $0x38] sm:$0xff]
      %v1417 = vld [vmem:[%s6 + $0x40] sm:$0xff]
      %v1418 = vld [vmem:[%s6 + $0x48] sm:$0xff]
      %v1419 = vld [vmem:[%s6 + $0x50] sm:$0xff]
      %v1420 = vld [vmem:[%s6 + $0x58] sm:$0xff]
      %v1421 = vld [vmem:[%s6 + $0x60] sm:$0xff]
      %v1422 = vld [vmem:[%s6 + $0x68] sm:$0xff]
      %v1423 = vld [vmem:[%s6 + $0x70] sm:$0xff]
      %v1424 = vld [vmem:[%s6 + $0x78] sm:$0xff]
      %v1425 = vld [vmem:[%s6 + $0x80] sm:$0xff]
      %v1426 = vld [vmem:[%s6 + $0x88] sm:$0xff]
      %v1427 = vld [vmem:[%s6 + $0x90] sm:$0xff]
      %v1428 = vld [vmem:[%s6 + $0x98] sm:$0xff]
      %v1429 = vld [vmem:[%s6 + $0xa0] sm:$0xff]
      %v1430 = vld [vmem:[%s6 + $0xa8] sm:$0xff]
      %v1431 = vld [vmem:[%s6 + $0xb0] sm:$0xff]
      %v1432 = vld [vmem:[%s6 + $0xb8] sm:$0xff]
      %v1433 = vld [vmem:[%s6 + $0xc0] sm:$0xff]
      %v1434 = vld [vmem:[%s6 + $0xc8] sm:$0xff]
      %v1435 = vld [vmem:[%s6 + $0xd0] sm:$0xff]
      %v1436 = vld [vmem:[%s6 + $0xd8] sm:$0xff]
      %v1437 = vld [vmem:[%s6 + $0xe0] sm:$0xff]
      %v1438 = vld [vmem:[%s6 + $0xe8] sm:$0xff]
      %v1439 = vld [vmem:[%s6 + $0xf0] sm:$0xff]
      %v1440 = vld [vmem:[%s6 + $0xf8] sm:$0xff]
      %v1441 = vld [vmem:[%s6 + $0x100] sm:$0xff]
      %v1442 = vld [vmem:[%s6 + $0x108] sm:$0xff]
      %v1443 = vld [vmem:[%s6 + $0x110] sm:$0xff]
      %v1444 = vld [vmem:[%s6 + $0x118] sm:$0xff]
      %v1445 = vld [vmem:[%s6 + $0x120] sm:$0xff]
      %v1446 = vld [vmem:[%s6 + $0x128] sm:$0xff]
      %v1447 = vld [vmem:[%s6 + $0x130] sm:$0xff]
      %v1448 = vld [vmem:[%s6 + $0x138] sm:$0xff]
      %v1449 = vld [vmem:[%s6 + $0x140] sm:$0xff]
      %v1450 = vld [vmem:[%s6 + $0x148] sm:$0xff]
      %v1451 = vld [vmem:[%s6 + $0x150] sm:$0xff]
      %v1452 = vld [vmem:[%s6 + $0x158] sm:$0xff]
      %v1453 = vld [vmem:[%s6 + $0x160] sm:$0xff]
      %v1454 = vld [vmem:[%s6 + $0x168] sm:$0xff]
      %v1455 = vld [vmem:[%s6 + $0x170] sm:$0xff]
      %v1456 = vld [vmem:[%s6 + $0x178] sm:$0xff]
      %v1457 = vld [vmem:[%s6 + $0x180] sm:$0xff]
      %v1458 = vld [vmem:[%s6 + $0x188] sm:$0xff]
      %v1459 = vld [vmem:[%s6 + $0x190] sm:$0xff]
      %v1460 = vld [vmem:[%s6 + $0x198] sm:$0xff]
      %v1461 = vld [vmem:[%s6 + $0x1a0] sm:$0xff]
      %v1462 = vld [vmem:[%s6 + $0x1a8] sm:$0xff]
      %v1463 = vld [vmem:[%s6 + $0x1b0] sm:$0xff]
      %v1464 = vld [vmem:[%s6 + $0x1b8] sm:$0xff]
      %v1465 = vld [vmem:[%s6 + $0x1c0] sm:$0xff]
      %v1466 = vld [vmem:[%s6 + $0x1c8] sm:$0xff]
      %v1467 = vld [vmem:[%s6 + $0x1d0] sm:$0xff]
      %v1468 = vld [vmem:[%s6 + $0x1d8] sm:$0xff]
      %v1469 = vld [vmem:[%s6 + $0x1e0] sm:$0xff]
      %v1470 = vld [vmem:[%s6 + $0x1e8] sm:$0xff]
      %v1471 = vld [vmem:[%s6 + $0x1f0] sm:$0xff]
      %v1472 = vld [vmem:[%s6 + $0x1f8] sm:$0xff]
      %v1473 = vld [vmem:[%s6 + $0x200] sm:$0xff]
      %v1474 = vld [vmem:[%s6 + $0x208] sm:$0xff]
      %v1475 = vld [vmem:[%s6 + $0x210] sm:$0xff]
      %v1476 = vld [vmem:[%s6 + $0x218] sm:$0xff]
      %v1477 = vld [vmem:[%s6 + $0x220] sm:$0xff]
      %v1478 = vld [vmem:[%s6 + $0x228] sm:$0xff]
      %v1479 = vld [vmem:[%s6 + $0x230] sm:$0xff]
      %v1480 = vld [vmem:[%s6 + $0x238] sm:$0xff]
      %v1481 = vld [vmem:[%s6 + $0x240] sm:$0xff]
      %v1482 = vld [vmem:[%s6 + $0x248] sm:$0xff]
      %v1483 = vld [vmem:[%s6 + $0x250] sm:$0xff]
      %v1484 = vld [vmem:[%s6 + $0x258] sm:$0xff]
      %v1485 = vld [vmem:[%s6 + $0x260] sm:$0xff]
      %v1486 = vld [vmem:[%s6 + $0x268] sm:$0xff]
      %v1487 = vld [vmem:[%s6 + $0x270] sm:$0xff]
      %v1488 = vld [vmem:[%s6 + $0x278] sm:$0xff]
      %v1489 = vld [vmem:[%s6 + $0x280] sm:$0xff]
      %v1490 = vld [vmem:[%s6 + $0x288] sm:$0xff]
      %v1491 = vld [vmem:[%s6 + $0x290] sm:$0xff]
      %v1492 = vld [vmem:[%s6 + $0x298] sm:$0xff]
      %v1493 = vld [vmem:[%s6 + $0x2a0] sm:$0xff]
      %v1494 = vld [vmem:[%s6 + $0x2a8] sm:$0xff]
      %v1495 = vld [vmem:[%s6 + $0x2b0] sm:$0xff]
      %v1496 = vld [vmem:[%s6 + $0x2b8] sm:$0xff]
      %v1497 = vld [vmem:[%s6 + $0x2c0] sm:$0xff]
      %v1498 = vld [vmem:[%s6 + $0x2c8] sm:$0xff]
      %v1499 = vld [vmem:[%s6 + $0x2d0] sm:$0xff]
      %v1500 = vld [vmem:[%s6 + $0x2d8] sm:$0xff]
      %v1501 = vld [vmem:[%s6 + $0x2e0] sm:$0xff]
      %v1502 = vld [vmem:[%s6 + $0x2e8] sm:$0xff]
      %v1503 = vld [vmem:[%s6 + $0x2f0] sm:$0xff]
      %v1504 = vld [vmem:[%s6 + $0x2f8] sm:$0xff]
      %v1505 = vld [vmem:[%s6 + $0x300] sm:$0xff]
      %v1506 = vld [vmem:[%s6 + $0x308] sm:$0xff]
      %v1507 = vld [vmem:[%s6 + $0x310] sm:$0xff]
      %v1508 = vld [vmem:[%s6 + $0x318] sm:$0xff]
      %v1509 = vld [vmem:[%s6 + $0x320] sm:$0xff]
      %v1510 = vld [vmem:[%s6 + $0x328] sm:$0xff]
      %v1511 = vld [vmem:[%s6 + $0x330] sm:$0xff]
      %v1512 = vld [vmem:[%s6 + $0x338] sm:$0xff]
      %v1513 = vld [vmem:[%s6 + $0x340] sm:$0xff]
      %v1514 = vld [vmem:[%s6 + $0x348] sm:$0xff]
      %v1515 = vld [vmem:[%s6 + $0x350] sm:$0xff]
      %v1516 = vld [vmem:[%s6 + $0x358] sm:$0xff]
      %v1517 = vld [vmem:[%s6 + $0x360] sm:$0xff]
      %v1518 = vld [vmem:[%s6 + $0x368] sm:$0xff]
      %v1519 = vld [vmem:[%s6 + $0x370] sm:$0xff]
      %v1520 = vld [vmem:[%s6 + $0x378] sm:$0xff]
      %v1521 = vld [vmem:[%s6 + $0x380] sm:$0xff]
      %v1522 = vld [vmem:[%s6 + $0x388] sm:$0xff]
      %v1523 = vld [vmem:[%s6 + $0x390] sm:$0xff]
      %v1524 = vld [vmem:[%s6 + $0x398] sm:$0xff]
      %v1525 = vld [vmem:[%s6 + $0x3a0] sm:$0xff]
      %v1526 = vld [vmem:[%s6 + $0x3a8] sm:$0xff]
      %v1527 = vld [vmem:[%s6 + $0x3b0] sm:$0xff]
      %v1528 = vld [vmem:[%s6 + $0x3b8] sm:$0xff]
      %v1529 = vld [vmem:[%s6 + $0x3c0] sm:$0xff]
      %v1530 = vld [vmem:[%s6 + $0x3c8] sm:$0xff]
      %v1531 = vld [vmem:[%s6 + $0x3d0] sm:$0xff]
      %v1532 = vld [vmem:[%s6 + $0x3d8] sm:$0xff]
      %v1533 = vld [vmem:[%s6 + $0x3e0] sm:$0xff]
      %v1534 = vld [vmem:[%s6 + $0x3e8] sm:$0xff]
      %v1535 = vld [vmem:[%s6 + $0x3f0] sm:$0xff]
      %v1536 = vld [vmem:[%s6 + $0x3f8] sm:$0xff]
      %v1537 = vld [vmem:[%s6 + $0x400] sm:$0xff]
      %v1538 = vld [vmem:[%s6 + $0x408] sm:$0xff]
      %v1539 = vld [vmem:[%s6 + $0x410] sm:$0xff]
      %v1540 = vld [vmem:[%s6 + $0x418] sm:$0xff]
      %v1541 = vld [vmem:[%s6 + $0x420] sm:$0xff]
      %v1542 = vld [vmem:[%s6 + $0x428] sm:$0xff]
      %v1543 = vld [vmem:[%s6 + $0x430] sm:$0xff]
      %v1544 = vld [vmem:[%s6 + $0x438] sm:$0xff]
      %v1545 = vld [vmem:[%s6 + $0x440] sm:$0xff]
      %v1546 = vld [vmem:[%s6 + $0x448] sm:$0xff]
      %v1547 = vld [vmem:[%s6 + $0x450] sm:$0xff]
      %v1548 = vld [vmem:[%s6 + $0x458] sm:$0xff]
      %v1549 = vld [vmem:[%s6 + $0x460] sm:$0xff]
      %v1550 = vld [vmem:[%s6 + $0x468] sm:$0xff]
      %v1551 = vld [vmem:[%s6 + $0x470] sm:$0xff]
      %v1552 = vld [vmem:[%s6 + $0x478] sm:$0xff]
      %v1553 = vld [vmem:[%s6 + $0x480] sm:$0xff]
      %v1554 = vld [vmem:[%s6 + $0x488] sm:$0xff]
      %v1555 = vld [vmem:[%s6 + $0x490] sm:$0xff]
      %v1556 = vld [vmem:[%s6 + $0x498] sm:$0xff]
      %v1557 = vld [vmem:[%s6 + $0x4a0] sm:$0xff]
      %v1558 = vld [vmem:[%s6 + $0x4a8] sm:$0xff]
      %v1559 = vld [vmem:[%s6 + $0x4b0] sm:$0xff]
      %v1560 = vld [vmem:[%s6 + $0x4b8] sm:$0xff]
      %v1561 = vld [vmem:[%s6 + $0x4c0] sm:$0xff]
      %v1562 = vld [vmem:[%s6 + $0x4c8] sm:$0xff]
      %v1563 = vld [vmem:[%s6 + $0x4d0] sm:$0xff]
      %v1564 = vld [vmem:[%s6 + $0x4d8] sm:$0xff]
      %v1565 = vld [vmem:[%s6 + $0x4e0] sm:$0xff]
      %v1566 = vld [vmem:[%s6 + $0x4e8] sm:$0xff]
      %v1567 = vld [vmem:[%s6 + $0x4f0] sm:$0xff]
      %v1568 = vld [vmem:[%s6 + $0x4f8] sm:$0xff]
      %v1569 = vld [vmem:[%s6 + $0x500] sm:$0xff]
      %v1570 = vld [vmem:[%s6 + $0x508] sm:$0xff]
      %v1571 = vld [vmem:[%s6 + $0x510] sm:$0xff]
      %v1572 = vld [vmem:[%s6 + $0x518] sm:$0xff]
      %v1573 = vld [vmem:[%s6 + $0x520] sm:$0xff]
      %v1574 = vld [vmem:[%s6 + $0x528] sm:$0xff]
      %v1575 = vld [vmem:[%s6 + $0x530] sm:$0xff]
      %v1576 = vld [vmem:[%s6 + $0x538] sm:$0xff]
      %v1577 = vld [vmem:[%s6 + $0x540] sm:$0xff]
      %v1578 = vld [vmem:[%s6 + $0x548] sm:$0xff]
      %v1579 = vld [vmem:[%s6 + $0x550] sm:$0xff]
      %v1580 = vld [vmem:[%s6 + $0x558] sm:$0xff]
      %v1581 = vld [vmem:[%s6 + $0x560] sm:$0xff]
      %v1582 = vld [vmem:[%s6 + $0x568] sm:$0xff]
      %v1583 = vld [vmem:[%s6 + $0x570] sm:$0xff]
      %v1584 = vld [vmem:[%s6 + $0x578] sm:$0xff]
      %v1585 = vld [vmem:[%s6 + $0x580] sm:$0xff]
      %v1586 = vld [vmem:[%s6 + $0x588] sm:$0xff]
      %v1587 = vld [vmem:[%s6 + $0x590] sm:$0xff]
      %v1588 = vld [vmem:[%s6 + $0x598] sm:$0xff]
      %v1589 = vld [vmem:[%s6 + $0x5a0] sm:$0xff]
      %v1590 = vld [vmem:[%s6 + $0x5a8] sm:$0xff]
      %v1591 = vld [vmem:[%s6 + $0x5b0] sm:$0xff]
      %v1592 = vld [vmem:[%s6 + $0x5b8] sm:$0xff]
      %v1593 = vld [vmem:[%s6 + $0x5c0] sm:$0xff]
      %v1594 = vld [vmem:[%s6 + $0x5c8] sm:$0xff]
      %v1595 = vld [vmem:[%s6 + $0x5d0] sm:$0xff]
      %v1596 = vld [vmem:[%s6 + $0x5d8] sm:$0xff]
      %v1597 = vld [vmem:[%s6 + $0x5e0] sm:$0xff]
      %v1598 = vld [vmem:[%s6 + $0x5e8] sm:$0xff]
      %v1599 = vld [vmem:[%s6 + $0x5f0] sm:$0xff]
      %v1600 = vld [vmem:[%s6 + $0x5f8] sm:$0xff]
      %v1601 = vld [vmem:[%s6 + $0x600] sm:$0xff]
      %v1602 = vld [vmem:[%s6 + $0x608] sm:$0xff]
      %v1603 = vld [vmem:[%s6 + $0x610] sm:$0xff]
      %v1604 = vld [vmem:[%s6 + $0x618] sm:$0xff]
      %v1605 = vld [vmem:[%s6 + $0x620] sm:$0xff]
      %v1606 = vld [vmem:[%s6 + $0x628] sm:$0xff]
      %v1607 = vld [vmem:[%s6 + $0x630] sm:$0xff]
      %v1608 = vld [vmem:[%s6 + $0x638] sm:$0xff]
      %v1609 = vld [vmem:[%s6 + $0x640] sm:$0xff]
      %v1610 = vld [vmem:[%s6 + $0x648] sm:$0xff]
      %v1611 = vld [vmem:[%s6 + $0x650] sm:$0xff]
      %v1612 = vld [vmem:[%s6 + $0x658] sm:$0xff]
      %v1613 = vld [vmem:[%s6 + $0x660] sm:$0xff]
      %v1614 = vld [vmem:[%s6 + $0x668] sm:$0xff]
      %v1615 = vld [vmem:[%s6 + $0x670] sm:$0xff]
      %v1616 = vld [vmem:[%s6 + $0x678] sm:$0xff]
      %v1617 = vld [vmem:[%s6 + $0x680] sm:$0xff]
      %v1618 = vld [vmem:[%s6 + $0x688] sm:$0xff]
      %v1619 = vld [vmem:[%s6 + $0x690] sm:$0xff]
      %v1620 = vld [vmem:[%s6 + $0x698] sm:$0xff]
      %v1621 = vld [vmem:[%s6 + $0x6a0] sm:$0xff]
      %v1622 = vld [vmem:[%s6 + $0x6a8] sm:$0xff]
      %v1623 = vld [vmem:[%s6 + $0x6b0] sm:$0xff]
      %v1624 = vld [vmem:[%s6 + $0x6b8] sm:$0xff]
      %v1625 = vld [vmem:[%s6 + $0x6c0] sm:$0xff]
      %v1626 = vld [vmem:[%s6 + $0x6c8] sm:$0xff]
      %v1627 = vld [vmem:[%s6 + $0x6d0] sm:$0xff]
      %v1628 = vld [vmem:[%s6 + $0x6d8] sm:$0xff]
      %v1629 = vld [vmem:[%s6 + $0x6e0] sm:$0xff]
      %v1630 = vld [vmem:[%s6 + $0x6e8] sm:$0xff]
      %v1631 = vld [vmem:[%s6 + $0x6f0] sm:$0xff]
      %v1632 = vld [vmem:[%s6 + $0x6f8] sm:$0xff]
      %v1633 = vld [vmem:[%s6 + $0x700] sm:$0xff]
      %v1634 = vld [vmem:[%s6 + $0x708] sm:$0xff]
      %v1635 = vld [vmem:[%s6 + $0x710] sm:$0xff]
      %v1636 = vld [vmem:[%s6 + $0x718] sm:$0xff]
      %v1637 = vld [vmem:[%s6 + $0x720] sm:$0xff]
      %v1638 = vld [vmem:[%s6 + $0x728] sm:$0xff]
      %v1639 = vld [vmem:[%s6 + $0x730] sm:$0xff]
      %v1640 = vld [vmem:[%s6 + $0x738] sm:$0xff]
      %v1641 = vld [vmem:[%s6 + $0x740] sm:$0xff]
      %v1642 = vld [vmem:[%s6 + $0x748] sm:$0xff]
      %v1643 = vld [vmem:[%s6 + $0x750] sm:$0xff]
      %v1644 = vld [vmem:[%s6 + $0x758] sm:$0xff]
      %v1645 = vld [vmem:[%s6 + $0x760] sm:$0xff]
      %v1646 = vld [vmem:[%s6 + $0x768] sm:$0xff]
      %v1647 = vld [vmem:[%s6 + $0x770] sm:$0xff]
      %v1648 = vld [vmem:[%s6 + $0x778] sm:$0xff]
      %v1649 = vld [vmem:[%s6 + $0x780] sm:$0xff]
      %v1650 = vld [vmem:[%s6 + $0x788] sm:$0xff]
      %v1651 = vld [vmem:[%s6 + $0x790] sm:$0xff]
      %v1652 = vld [vmem:[%s6 + $0x798] sm:$0xff]
      %v1653 = vld [vmem:[%s6 + $0x7a0] sm:$0xff]
      %v1654 = vld [vmem:[%s6 + $0x7a8] sm:$0xff]
      %v1655 = vld [vmem:[%s6 + $0x7b0] sm:$0xff]
      %v1656 = vld [vmem:[%s6 + $0x7b8] sm:$0xff]
      %v1657 = vld [vmem:[%s6 + $0x7c0] sm:$0xff]
      %v1658 = vld [vmem:[%s6 + $0x7c8] sm:$0xff]
      %v1659 = vld [vmem:[%s6 + $0x7d0] sm:$0xff]
      %v1660 = vld [vmem:[%s6 + $0x7d8] sm:$0xff]
      %v1661 = vld [vmem:[%s6 + $0x7e0] sm:$0xff]
      %v1662 = vld [vmem:[%s6 + $0x7e8] sm:$0xff]
      %v1663 = vld [vmem:[%s6 + $0x7f0] sm:$0xff]
      %v1664 = vld [vmem:[%s6 + $0x7f8] sm:$0xff]
      %v1665 = vld [vmem:[%s6 + $0x800] sm:$0xff]
      %v1666 = vld [vmem:[%s6 + $0x808] sm:$0xff]
      %v1667 = vld [vmem:[%s6 + $0x810] sm:$0xff]
      %v1668 = vld [vmem:[%s6 + $0x818] sm:$0xff]
      %v1669 = vld [vmem:[%s6 + $0x820] sm:$0xff]
      %v1670 = vld [vmem:[%s6 + $0x828] sm:$0xff]
      %v1671 = vld [vmem:[%s6 + $0x830] sm:$0xff]
      %v1672 = vld [vmem:[%s6 + $0x838] sm:$0xff]
      %v1673 = vld [vmem:[%s6 + $0x840] sm:$0xff]
      %v1674 = vld [vmem:[%s6 + $0x848] sm:$0xff]
      %v1675 = vld [vmem:[%s6 + $0x850] sm:$0xff]
      %v1676 = vld [vmem:[%s6 + $0x858] sm:$0xff]
      %v1677 = vld [vmem:[%s6 + $0x860] sm:$0xff]
      %v1678 = vld [vmem:[%s6 + $0x868] sm:$0xff]
      %v1679 = vld [vmem:[%s6 + $0x870] sm:$0xff]
      %v1680 = vld [vmem:[%s6 + $0x878] sm:$0xff]
      %v1681 = vld [vmem:[%s6 + $0x880] sm:$0xff]
      %v1682 = vld [vmem:[%s6 + $0x888] sm:$0xff]
      %v1683 = vld [vmem:[%s6 + $0x890] sm:$0xff]
      %v1684 = vld [vmem:[%s6 + $0x898] sm:$0xff]
      %v1685 = vld [vmem:[%s6 + $0x8a0] sm:$0xff]
      %v1686 = vld [vmem:[%s6 + $0x8a8] sm:$0xff]
      %v1687 = vld [vmem:[%s6 + $0x8b0] sm:$0xff]
      %v1688 = vld [vmem:[%s6 + $0x8b8] sm:$0xff]
      %v1689 = vld [vmem:[%s6 + $0x8c0] sm:$0xff]
      %v1690 = vld [vmem:[%s6 + $0x8c8] sm:$0xff]
      %v1691 = vld [vmem:[%s6 + $0x8d0] sm:$0xff]
      %v1692 = vld [vmem:[%s6 + $0x8d8] sm:$0xff]
      %v1693 = vld [vmem:[%s6 + $0x8e0] sm:$0xff]
      %v1694 = vld [vmem:[%s6 + $0x8e8] sm:$0xff]
      %v1695 = vld [vmem:[%s6 + $0x8f0] sm:$0xff]
      %v1696 = vld [vmem:[%s6 + $0x8f8] sm:$0xff]
      %v1697 = vld [vmem:[%s6 + $0x900] sm:$0xff]
      %v1698 = vld [vmem:[%s6 + $0x908] sm:$0xff]
      %v1699 = vld [vmem:[%s6 + $0x910] sm:$0xff]
      %v1700 = vld [vmem:[%s6 + $0x918] sm:$0xff]
      %v1701 = vld [vmem:[%s6 + $0x920] sm:$0xff]
      %v1702 = vld [vmem:[%s6 + $0x928] sm:$0xff]
      %v1703 = vld [vmem:[%s6 + $0x930] sm:$0xff]
      %v1704 = vld [vmem:[%s6 + $0x938] sm:$0xff]
      %v1705 = vld [vmem:[%s6 + $0x940] sm:$0xff]
      %v1706 = vld [vmem:[%s6 + $0x948] sm:$0xff]
      %v1707 = vld [vmem:[%s6 + $0x950] sm:$0xff]
      %v1708 = vld [vmem:[%s6 + $0x958] sm:$0xff]
      %v1709 = vld [vmem:[%s6 + $0x960] sm:$0xff]
      %v1710 = vld [vmem:[%s6 + $0x968] sm:$0xff]
      %v1711 = vld [vmem:[%s6 + $0x970] sm:$0xff]
      %v1712 = vld [vmem:[%s6 + $0x978] sm:$0xff]
      %v1713 = vld [vmem:[%s6 + $0x980] sm:$0xff]
      %v1714 = vld [vmem:[%s6 + $0x988] sm:$0xff]
      %v1715 = vld [vmem:[%s6 + $0x990] sm:$0xff]
      %v1716 = vld [vmem:[%s6 + $0x998] sm:$0xff]
      %v1717 = vld [vmem:[%s6 + $0x9a0] sm:$0xff]
      %v1718 = vld [vmem:[%s6 + $0x9a8] sm:$0xff]
      %v1719 = vld [vmem:[%s6 + $0x9b0] sm:$0xff]
      %v1720 = vld [vmem:[%s6 + $0x9b8] sm:$0xff]
      %v1721 = vld [vmem:[%s6 + $0x9c0] sm:$0xff]
      %v1722 = vld [vmem:[%s6 + $0x9c8] sm:$0xff]
      %v1723 = vld [vmem:[%s6 + $0x9d0] sm:$0xff]
      %v1724 = vld [vmem:[%s6 + $0x9d8] sm:$0xff]
      %v1725 = vld [vmem:[%s6 + $0x9e0] sm:$0xff]
      %v1726 = vld [vmem:[%s6 + $0x9e8] sm:$0xff]
      %v1727 = vld [vmem:[%s6 + $0x9f0] sm:$0xff]
      %v1728 = vld [vmem:[%s6 + $0x9f8] sm:$0xff]
      %v1729 = vld [vmem:[%s6 + $0xa00] sm:$0xff]
      %v1730 = vld [vmem:[%s6 + $0xa08] sm:$0xff]
      %v1731 = vld [vmem:[%s6 + $0xa10] sm:$0xff]
      %v1732 = vld [vmem:[%s6 + $0xa18] sm:$0xff]
      %v1733 = vld [vmem:[%s6 + $0xa20] sm:$0xff]
      %v1734 = vld [vmem:[%s6 + $0xa28] sm:$0xff]
      %v1735 = vld [vmem:[%s6 + $0xa30] sm:$0xff]
      %v1736 = vld [vmem:[%s6 + $0xa38] sm:$0xff]
      %v1737 = vld [vmem:[%s6 + $0xa40] sm:$0xff]
      %v1738 = vld [vmem:[%s6 + $0xa48] sm:$0xff]
      %v1739 = vld [vmem:[%s6 + $0xa50] sm:$0xff]
      %v1740 = vld [vmem:[%s6 + $0xa58] sm:$0xff]
      %v1741 = vld [vmem:[%s6 + $0xa60] sm:$0xff]
      %v1742 = vld [vmem:[%s6 + $0xa68] sm:$0xff]
      %v1743 = vld [vmem:[%s6 + $0xa70] sm:$0xff]
      %v1744 = vld [vmem:[%s6 + $0xa78] sm:$0xff]
      %v1745 = vld [vmem:[%s6 + $0xa80] sm:$0xff]
      %v1746 = vld [vmem:[%s6 + $0xa88] sm:$0xff]
      %v1747 = vld [vmem:[%s6 + $0xa90] sm:$0xff]
      %v1748 = vld [vmem:[%s6 + $0xa98] sm:$0xff]
      %v1749 = vld [vmem:[%s6 + $0xaa0] sm:$0xff]
      %v1750 = vld [vmem:[%s6 + $0xaa8] sm:$0xff]
      %v1751 = vld [vmem:[%s6 + $0xab0] sm:$0xff]
      %v1752 = vld [vmem:[%s6 + $0xab8] sm:$0xff]
      %v1753 = vld [vmem:[%s6 + $0xac0] sm:$0xff]
      %v1754 = vld [vmem:[%s6 + $0xac8] sm:$0xff]
      %v1755 = vld [vmem:[%s6 + $0xad0] sm:$0xff]
      %v1756 = vld [vmem:[%s6 + $0xad8] sm:$0xff]
      %v1757 = vld [vmem:[%s6 + $0xae0] sm:$0xff]
      %v1758 = vld [vmem:[%s6 + $0xae8] sm:$0xff]
      %v1759 = vld [vmem:[%s6 + $0xaf0] sm:$0xff]
      %v1760 = vld [vmem:[%s6 + $0xaf8] sm:$0xff]
      %v1761 = vld [vmem:[%s6 + $0xb00] sm:$0xff]
      %v1762 = vld [vmem:[%s6 + $0xb08] sm:$0xff]
      %v1763 = vld [vmem:[%s6 + $0xb10] sm:$0xff]
      %v1764 = vld [vmem:[%s6 + $0xb18] sm:$0xff]
      %v1765 = vld [vmem:[%s6 + $0xb20] sm:$0xff]
      %v1766 = vld [vmem:[%s6 + $0xb28] sm:$0xff]
      %v1767 = vld [vmem:[%s6 + $0xb30] sm:$0xff]
      %v1768 = vld [vmem:[%s6 + $0xb38] sm:$0xff]
      %v1769 = vld [vmem:[%s6 + $0xb40] sm:$0xff]
      %v1770 = vld [vmem:[%s6 + $0xb48] sm:$0xff]
      %v1771 = vld [vmem:[%s6 + $0xb50] sm:$0xff]
      %v1772 = vld [vmem:[%s6 + $0xb58] sm:$0xff]
      %v1773 = vld [vmem:[%s6 + $0xb60] sm:$0xff]
      %v1774 = vld [vmem:[%s6 + $0xb68] sm:$0xff]
      %v1775 = vld [vmem:[%s6 + $0xb70] sm:$0xff]
      %v1776 = vld [vmem:[%s6 + $0xb78] sm:$0xff]
      %v1777 = vld [vmem:[%s6 + $0xb80] sm:$0xff]
      %v1778 = vld [vmem:[%s6 + $0xb88] sm:$0xff]
      %v1779 = vld [vmem:[%s6 + $0xb90] sm:$0xff]
      %v1780 = vld [vmem:[%s6 + $0xb98] sm:$0xff]
      %v1781 = vld [vmem:[%s6 + $0xba0] sm:$0xff]
      %v1782 = vld [vmem:[%s6 + $0xba8] sm:$0xff]
      %v1783 = vld [vmem:[%s6 + $0xbb0] sm:$0xff]
      %v1784 = vld [vmem:[%s6 + $0xbb8] sm:$0xff]
      %v1785 = vld [vmem:[%s6 + $0xbc0] sm:$0xff]
      %v1786 = vld [vmem:[%s6 + $0xbc8] sm:$0xff]
      %v1787 = vld [vmem:[%s6 + $0xbd0] sm:$0xff]
      %v1788 = vld [vmem:[%s6 + $0xbd8] sm:$0xff]
      %v1789 = vld [vmem:[%s6 + $0xbe0] sm:$0xff]
      %v1790 = vld [vmem:[%s6 + $0xbe8] sm:$0xff]
      %v1791 = vld [vmem:[%s6 + $0xbf0] sm:$0xff]
      %v1792 = vld [vmem:[%s6 + $0xbf8] sm:$0xff]
      %v1793 = vld [vmem:[%s6 + $0xc00] sm:$0xff]
      %v1794 = vld [vmem:[%s6 + $0xc08] sm:$0xff]
      %v1795 = vld [vmem:[%s6 + $0xc10] sm:$0xff]
      %v1796 = vld [vmem:[%s6 + $0xc18] sm:$0xff]
      %v1797 = vld [vmem:[%s6 + $0xc20] sm:$0xff]
      %v1798 = vld [vmem:[%s6 + $0xc28] sm:$0xff]
      %v1799 = vld [vmem:[%s6 + $0xc30] sm:$0xff]
      %v1800 = vld [vmem:[%s6 + $0xc38] sm:$0xff]
      %v1801 = vld [vmem:[%s6 + $0xc40] sm:$0xff]
      %v1802 = vld [vmem:[%s6 + $0xc48] sm:$0xff]
      %v1803 = vld [vmem:[%s6 + $0xc50] sm:$0xff]
      %v1804 = vld [vmem:[%s6 + $0xc58] sm:$0xff]
      %v1805 = vld [vmem:[%s6 + $0xc60] sm:$0xff]
      %v1806 = vld [vmem:[%s6 + $0xc68] sm:$0xff]
      %v1807 = vld [vmem:[%s6 + $0xc70] sm:$0xff]
      %v1808 = vld [vmem:[%s6 + $0xc78] sm:$0xff]
      %v1809 = vld [vmem:[%s6 + $0xc80] sm:$0xff]
      %v1810 = vld [vmem:[%s6 + $0xc88] sm:$0xff]
      %v1811 = vld [vmem:[%s6 + $0xc90] sm:$0xff]
      %v1812 = vld [vmem:[%s6 + $0xc98] sm:$0xff]
      %v1813 = vld [vmem:[%s6 + $0xca0] sm:$0xff]
      %v1814 = vld [vmem:[%s6 + $0xca8] sm:$0xff]
      %v1815 = vld [vmem:[%s6 + $0xcb0] sm:$0xff]
      %v1816 = vld [vmem:[%s6 + $0xcb8] sm:$0xff]
      %v1817 = vld [vmem:[%s6 + $0xcc0] sm:$0xff]
      %v1818 = vld [vmem:[%s6 + $0xcc8] sm:$0xff]
      %v1819 = vld [vmem:[%s6 + $0xcd0] sm:$0xff]
      %v1820 = vld [vmem:[%s6 + $0xcd8] sm:$0xff]
      %v1821 = vld [vmem:[%s6 + $0xce0] sm:$0xff]
      %v1822 = vld [vmem:[%s6 + $0xce8] sm:$0xff]
      %v1823 = vld [vmem:[%s6 + $0xcf0] sm:$0xff]
      %v1824 = vld [vmem:[%s6 + $0xcf8] sm:$0xff]
      %v1825 = vld [vmem:[%s6 + $0xd00] sm:$0xff]
      %v1826 = vld [vmem:[%s6 + $0xd08] sm:$0xff]
      %v1827 = vld [vmem:[%s6 + $0xd10] sm:$0xff]
      %v1828 = vld [vmem:[%s6 + $0xd18] sm:$0xff]
      %v1829 = vld [vmem:[%s6 + $0xd20] sm:$0xff]
      %v1830 = vld [vmem:[%s6 + $0xd28] sm:$0xff]
      %v1831 = vld [vmem:[%s6 + $0xd30] sm:$0xff]
      %v1832 = vld [vmem:[%s6 + $0xd38] sm:$0xff]
      %v1833 = vld [vmem:[%s6 + $0xd40] sm:$0xff]
      %v1834 = vld [vmem:[%s6 + $0xd48] sm:$0xff]
      %v1835 = vld [vmem:[%s6 + $0xd50] sm:$0xff]
      %v1836 = vld [vmem:[%s6 + $0xd58] sm:$0xff]
      %v1837 = vld [vmem:[%s6 + $0xd60] sm:$0xff]
      %v1838 = vld [vmem:[%s6 + $0xd68] sm:$0xff]
      %v1839 = vld [vmem:[%s6 + $0xd70] sm:$0xff]
      %v1840 = vld [vmem:[%s6 + $0xd78] sm:$0xff]
      %v1841 = vld [vmem:[%s6 + $0xd80] sm:$0xff]
      %v1842 = vld [vmem:[%s6 + $0xd88] sm:$0xff]
      %v1843 = vld [vmem:[%s6 + $0xd90] sm:$0xff]
      %v1844 = vld [vmem:[%s6 + $0xd98] sm:$0xff]
      %v1845 = vld [vmem:[%s6 + $0xda0] sm:$0xff]
      %v1846 = vld [vmem:[%s6 + $0xda8] sm:$0xff]
      %v1847 = vld [vmem:[%s6 + $0xdb0] sm:$0xff]
      %v1848 = vld [vmem:[%s6 + $0xdb8] sm:$0xff]
      %v1849 = vld [vmem:[%s6 + $0xdc0] sm:$0xff]
      %v1850 = vld [vmem:[%s6 + $0xdc8] sm:$0xff]
      %v1851 = vld [vmem:[%s6 + $0xdd0] sm:$0xff]
      %v1852 = vld [vmem:[%s6 + $0xdd8] sm:$0xff]
      %v1853 = vld [vmem:[%s6 + $0xde0] sm:$0xff]
      %v1854 = vld [vmem:[%s6 + $0xde8] sm:$0xff]
      %v1855 = vld [vmem:[%s6 + $0xdf0] sm:$0xff]
      %v1856 = vld [vmem:[%s6 + $0xdf8] sm:$0xff]
      %v1857 = vld [vmem:[%s6 + $0xe00] sm:$0xff]
      %v1858 = vld [vmem:[%s6 + $0xe08] sm:$0xff]
      %v1859 = vld [vmem:[%s6 + $0xe10] sm:$0xff]
      %v1860 = vld [vmem:[%s6 + $0xe18] sm:$0xff]
      %v1861 = vld [vmem:[%s6 + $0xe20] sm:$0xff]
      %v1862 = vld [vmem:[%s6 + $0xe28] sm:$0xff]
      %v1863 = vld [vmem:[%s6 + $0xe30] sm:$0xff]
      %v1864 = vld [vmem:[%s6 + $0xe38] sm:$0xff]
      %v1865 = vld [vmem:[%s6 + $0xe40] sm:$0xff]
      %v1866 = vld [vmem:[%s6 + $0xe48] sm:$0xff]
      %v1867 = vld [vmem:[%s6 + $0xe50] sm:$0xff]
      %v1868 = vld [vmem:[%s6 + $0xe58] sm:$0xff]
      %v1869 = vld [vmem:[%s6 + $0xe60] sm:$0xff]
      %v1870 = vld [vmem:[%s6 + $0xe68] sm:$0xff]
      %v1871 = vld [vmem:[%s6 + $0xe70] sm:$0xff]
      %v1872 = vld [vmem:[%s6 + $0xe78] sm:$0xff]
      %v1873 = vld [vmem:[%s6 + $0xe80] sm:$0xff]
      %v1874 = vld [vmem:[%s6 + $0xe88] sm:$0xff]
      %v1875 = vld [vmem:[%s6 + $0xe90] sm:$0xff]
      %v1876 = vld [vmem:[%s6 + $0xe98] sm:$0xff]
      %v1877 = vld [vmem:[%s6 + $0xea0] sm:$0xff]
      %v1878 = vld [vmem:[%s6 + $0xea8] sm:$0xff]
      %v1879 = vld [vmem:[%s6 + $0xeb0] sm:$0xff]
      %v1880 = vld [vmem:[%s6 + $0xeb8] sm:$0xff]
      %v1881 = vld [vmem:[%s6 + $0xec0] sm:$0xff]
      %v1882 = vld [vmem:[%s6 + $0xec8] sm:$0xff]
      %v1883 = vld [vmem:[%s6 + $0xed0] sm:$0xff]
      %v1884 = vld [vmem:[%s6 + $0xed8] sm:$0xff]
      %v1885 = vld [vmem:[%s6 + $0xee0] sm:$0xff]
      %v1886 = vld [vmem:[%s6 + $0xee8] sm:$0xff]
      %v1887 = vld [vmem:[%s6 + $0xef0] sm:$0xff]
      %v1888 = vld [vmem:[%s6 + $0xef8] sm:$0xff]
      %v1889 = vld [vmem:[%s6 + $0xf00] sm:$0xff]
      %v1890 = vld [vmem:[%s6 + $0xf08] sm:$0xff]
      %v1891 = vld [vmem:[%s6 + $0xf10] sm:$0xff]
      %v1892 = vld [vmem:[%s6 + $0xf18] sm:$0xff]
      %v1893 = vld [vmem:[%s6 + $0xf20] sm:$0xff]
      %v1894 = vld [vmem:[%s6 + $0xf28] sm:$0xff]
      %v1895 = vld [vmem:[%s6 + $0xf30] sm:$0xff]
      %v1896 = vld [vmem:[%s6 + $0xf38] sm:$0xff]
      %v1897 = vld [vmem:[%s6 + $0xf40] sm:$0xff]
      %v1898 = vld [vmem:[%s6 + $0xf48] sm:$0xff]
      %v1899 = vld [vmem:[%s6 + $0xf50] sm:$0xff]
      %v1900 = vld [vmem:[%s6 + $0xf58] sm:$0xff]
      %v1901 = vld [vmem:[%s6 + $0xf60] sm:$0xff]
      %v1902 = vld [vmem:[%s6 + $0xf68] sm:$0xff]
      %v1903 = vld [vmem:[%s6 + $0xf70] sm:$0xff]
      %v1904 = vld [vmem:[%s6 + $0xf78] sm:$0xff]
      %v1905 = vld [vmem:[%s6 + $0xf80] sm:$0xff]
      %v1906 = vld [vmem:[%s6 + $0xf88] sm:$0xff]
      %v1907 = vld [vmem:[%s6 + $0xf90] sm:$0xff]
      %v1908 = vld [vmem:[%s6 + $0xf98] sm:$0xff]
      %v1909 = vld [vmem:[%s6 + $0xfa0] sm:$0xff]
      %v1910 = vld [vmem:[%s6 + $0xfa8] sm:$0xff]
      %v1911 = vld [vmem:[%s6 + $0xfb0] sm:$0xff]
      %v1912 = vld [vmem:[%s6 + $0xfb8] sm:$0xff]
      %v1913 = vld [vmem:[%s6 + $0xfc0] sm:$0xff]
      %v1914 = vld [vmem:[%s6 + $0xfc8] sm:$0xff]
      %v1915 = vld [vmem:[%s6 + $0xfd0] sm:$0xff]
      %v1916 = vld [vmem:[%s6 + $0xfd8] sm:$0xff]
      %v1917 = vld [vmem:[%s6 + $0xfe0] sm:$0xff]
      %v1918 = vld [vmem:[%s6 + $0xfe8] sm:$0xff]
      %v1919 = vld [vmem:[%s6 + $0xff0] sm:$0xff]
      %v1920 = vld [vmem:[%s6 + $0xff8] sm:$0xff]
      %v1921 = vld [vmem:[%s6 + $0x1000] sm:$0xff]
      %v1922 = vld [vmem:[%s6 + $0x1008] sm:$0xff]
      %v1923 = vld [vmem:[%s6 + $0x1010] sm:$0xff]
      %v1924 = vld [vmem:[%s6 + $0x1018] sm:$0xff]
      %v1925 = vld [vmem:[%s6 + $0x1020] sm:$0xff]
      %v1926 = vld [vmem:[%s6 + $0x1028] sm:$0xff]
      %v1927 = vld [vmem:[%s6 + $0x1030] sm:$0xff]
      %v1928 = vld [vmem:[%s6 + $0x1038] sm:$0xff]
      %v1929 = vld [vmem:[%s6 + $0x1040] sm:$0xff]
      %v1930 = vld [vmem:[%s6 + $0x1048] sm:$0xff]
      %v1931 = vld [vmem:[%s6 + $0x1050] sm:$0xff]
      %v1932 = vld [vmem:[%s6 + $0x1058] sm:$0xff]
      %v1933 = vld [vmem:[%s6 + $0x1060] sm:$0xff]
      %v1934 = vld [vmem:[%s6 + $0x1068] sm:$0xff]
      %v1935 = vld [vmem:[%s6 + $0x1070] sm:$0xff]
      %v1936 = vld [vmem:[%s6 + $0x1078] sm:$0xff]
      %v1937 = vld [vmem:[%s6 + $0x1080] sm:$0xff]
      %v1938 = vld [vmem:[%s6 + $0x1088] sm:$0xff]
      %v1939 = vld [vmem:[%s6 + $0x1090] sm:$0xff]
      %v1940 = vld [vmem:[%s6 + $0x1098] sm:$0xff]
      %v1941 = vld [vmem:[%s6 + $0x10a0] sm:$0xff]
      %v1942 = vld [vmem:[%s6 + $0x10a8] sm:$0xff]
      %v1943 = vld [vmem:[%s6 + $0x10b0] sm:$0xff]
      %v1944 = vld [vmem:[%s6 + $0x10b8] sm:$0xff]
      %v1945 = vld [vmem:[%s6 + $0x10c0] sm:$0xff]
      %v1946 = vld [vmem:[%s6 + $0x10c8] sm:$0xff]
      %v1947 = vld [vmem:[%s6 + $0x10d0] sm:$0xff]
      %v1948 = vld [vmem:[%s6 + $0x10d8] sm:$0xff]
      %v1949 = vld [vmem:[%s6 + $0x10e0] sm:$0xff]
      %v1950 = vld [vmem:[%s6 + $0x10e8] sm:$0xff]
      %v1951 = vld [vmem:[%s6 + $0x10f0] sm:$0xff]
      %v1952 = vld [vmem:[%s6 + $0x10f8] sm:$0xff]
      %v1953 = vld [vmem:[%s6 + $0x1100] sm:$0xff]
      %v1954 = vld [vmem:[%s6 + $0x1108] sm:$0xff]
      %v1955 = vld [vmem:[%s6 + $0x1110] sm:$0xff]
      %v1956 = vld [vmem:[%s6 + $0x1118] sm:$0xff]
      %v1957 = vld [vmem:[%s6 + $0x1120] sm:$0xff]
      %v1958 = vld [vmem:[%s6 + $0x1128] sm:$0xff]
      %v1959 = vld [vmem:[%s6 + $0x1130] sm:$0xff]
      %v1960 = vld [vmem:[%s6 + $0x1138] sm:$0xff]
      %v1961 = vld [vmem:[%s6 + $0x1140] sm:$0xff]
      %v1962 = vld [vmem:[%s6 + $0x1148] sm:$0xff]
      %v1963 = vld [vmem:[%s6 + $0x1150] sm:$0xff]
      %v1964 = vld [vmem:[%s6 + $0x1158] sm:$0xff]
      %v1965 = vld [vmem:[%s6 + $0x1160] sm:$0xff]
      %v1966 = vld [vmem:[%s6 + $0x1168] sm:$0xff]
      %v1967 = vld [vmem:[%s6 + $0x1170] sm:$0xff]
      %v1968 = vld [vmem:[%s6 + $0x1178] sm:$0xff]
      %v1969 = vld [vmem:[%s6 + $0x1180] sm:$0xff]
      %v1970 = vld [vmem:[%s6 + $0x1188] sm:$0xff]
      %v1971 = vld [vmem:[%s6 + $0x1190] sm:$0xff]
      %v1972 = vld [vmem:[%s6 + $0x1198] sm:$0xff]
      %v1973 = vld [vmem:[%s6 + $0x11a0] sm:$0xff]
      %v1974 = vld [vmem:[%s6 + $0x11a8] sm:$0xff]
      %v1975 = vld [vmem:[%s6 + $0x11b0] sm:$0xff]
      %v1976 = vld [vmem:[%s6 + $0x11b8] sm:$0xff]
      %v1977 = vld [vmem:[%s6 + $0x11c0] sm:$0xff]
      %v1978 = vld [vmem:[%s6 + $0x11c8] sm:$0xff]
      %v1979 = vld [vmem:[%s6 + $0x11d0] sm:$0xff]
      %v1980 = vld [vmem:[%s6 + $0x11d8] sm:$0xff]
      %v1981 = vld [vmem:[%s6 + $0x11e0] sm:$0xff]
      %v1982 = vld [vmem:[%s6 + $0x11e8] sm:$0xff]
      %v1983 = vld [vmem:[%s6 + $0x11f0] sm:$0xff]
      %v1984 = vld [vmem:[%s6 + $0x11f8] sm:$0xff]
      %1985 = vmatprep.subr.mxu0 %v1410
      %1986 = vmatpush1.msra.mxu0 %v1409
      %1987 = vmatprep.subr.mxu0 %v1419
      %1988 = vmatpush1.msra.mxu0 %v1418
      %1989 = vmatprep.subr.mxu0 %v1428
      %1990 = vmatpush1.msra.mxu0 %v1427
      %1991 = vmatprep.subr.mxu0 %v1437
      %1992 = vmatpush1.msra.mxu0 %v1436
      %1993 = vmatprep.subr.mxu0 %v1446
      %1994 = vmatpush1.msra.mxu0 %v1445
      %1995 = vmatprep.subr.mxu0 %v1455
      %1996 = vmatpush1.msra.mxu0 %v1454
      %1997 = vmatprep.subr.mxu0 %v1464
      %1998 = vmatpush1.msra.mxu0 %v1463
      %1999 = vmatprep.subr.mxu0 %v1473
      %2000 = vmatpush1.msra.mxu0 %v1472
      %2001 = vmatprep.subr.mxu0 %v1482
      %2002 = vmatpush1.msra.mxu0 %v1481
      %2003 = vmatprep.subr.mxu0 %v1491
      %2004 = vmatpush1.msra.mxu0 %v1490
      %2005 = vmatprep.subr.mxu0 %v1500
      %2006 = vmatpush1.msra.mxu0 %v1499
      %2007 = vmatprep.subr.mxu0 %v1509
      %2008 = vmatpush1.msra.mxu0 %v1508
      %2009 = vmatprep.subr.mxu0 %v1518
      %2010 = vmatpush1.msra.mxu0 %v1517
      %2011 = vmatprep.subr.mxu0 %v1527
      %2012 = vmatpush1.msra.mxu0 %v1526
      %2013 = vmatprep.subr.mxu0 %v1536
      %2014 = vmatpush1.msra.mxu0 %v1535
      %2015 = vmatprep.subr.mxu0 %v1545
      %2016 = vmatpush1.msra.mxu0 %v1544
      %2017 = vmatprep.subr.mxu0 %v1554
      %2018 = vmatpush1.msra.mxu0 %v1553
      %2019 = vmatprep.subr.mxu0 %v1563
      %2020 = vmatpush1.msra.mxu0 %v1562
      %2021 = vmatprep.subr.mxu0 %v1572
      %2022 = vmatpush1.msra.mxu0 %v1571
      %2023 = vmatprep.subr.mxu0 %v1581
      %2024 = vmatpush1.msra.mxu0 %v1580
      %2025 = vmatprep.subr.mxu0 %v1590
      %2026 = vmatpush1.msra.mxu0 %v1589
      %2027 = vmatprep.subr.mxu0 %v1599
      %2028 = vmatpush1.msra.mxu0 %v1598
      %2029 = vmatprep.subr.mxu0 %v1608
      %2030 = vmatpush1.msra.mxu0 %v1607
      %2031 = vmatprep.subr.mxu0 %v1617
      %2032 = vmatpush1.msra.mxu0 %v1616
      %2033 = vmatprep.subr.mxu0 %v1626
      %2034 = vmatpush1.msra.mxu0 %v1625
      %2035 = vmatprep.subr.mxu0 %v1635
      %2036 = vmatpush1.msra.mxu0 %v1634
      %2037 = vmatprep.subr.mxu0 %v1644
      %2038 = vmatpush1.msra.mxu0 %v1643
      %2039 = vmatprep.subr.mxu0 %v1653
      %2040 = vmatpush1.msra.mxu0 %v1652
      %2041 = vmatprep.subr.mxu0 %v1662
      %2042 = vmatpush1.msra.mxu0 %v1661
      %2043 = vmatprep.subr.mxu0 %v1671
      %2044 = vmatpush1.msra.mxu0 %v1670
      %2045 = vmatprep.subr.mxu0 %v1680
      %2046 = vmatpush1.msra.mxu0 %v1679
      %2047 = vmatprep.subr.mxu0 %v1689
      %2048 = vmatpush1.msra.mxu0 %v1688
      %2049 = vmatprep.mubr.f32.mxu0 %v1406
      %2050 = vmatmul.mubr.f32.gmra.mrb[0].mxu0 %v1405
      %v2051 = vpop.f32.mrb[0].mxu0
      %v2052 = vadd.f32 0.0, %v2051
      %v2053 = vpop.f32.mrb[0].mxu0
      %v2054 = vadd.f32 0.0, %v2053
      %2055 = vdwg.mxu0
      %2056 = vmatprep.subr.mxu0 %v1698
      %2057 = vmatpush1.msra.mxu0 %v1697
      %2058 = vmatprep.subr.mxu0 %v1707
      %2059 = vmatpush1.msra.mxu0 %v1706
      %2060 = vmatprep.subr.mxu0 %v1716
      %2061 = vmatpush1.msra.mxu0 %v1715
      %2062 = vmatprep.subr.mxu0 %v1725
      %2063 = vmatpush1.msra.mxu0 %v1724
      %2064 = vmatprep.subr.mxu0 %v1734
      %2065 = vmatpush1.msra.mxu0 %v1733
      %2066 = vmatprep.subr.mxu0 %v1743
      %2067 = vmatpush1.msra.mxu0 %v1742
      %2068 = vmatprep.subr.mxu0 %v1752
      %2069 = vmatpush1.msra.mxu0 %v1751
      %2070 = vmatprep.subr.mxu0 %v1761
      %2071 = vmatpush1.msra.mxu0 %v1760
      %2072 = vmatprep.subr.mxu0 %v1770
      %2073 = vmatpush1.msra.mxu0 %v1769
      %2074 = vmatprep.subr.mxu0 %v1779
      %2075 = vmatpush1.msra.mxu0 %v1778
      %2076 = vmatprep.subr.mxu0 %v1788
      %2077 = vmatpush1.msra.mxu0 %v1787
      %2078 = vmatprep.subr.mxu0 %v1797
      %2079 = vmatpush1.msra.mxu0 %v1796
      %2080 = vmatprep.subr.mxu0 %v1806
      %2081 = vmatpush1.msra.mxu0 %v1805
      %2082 = vmatprep.subr.mxu0 %v1815
      %2083 = vmatpush1.msra.mxu0 %v1814
      %2084 = vmatprep.subr.mxu0 %v1824
      %2085 = vmatpush1.msra.mxu0 %v1823
      %2086 = vmatprep.subr.mxu0 %v1833
      %2087 = vmatpush1.msra.mxu0 %v1832
      %2088 = vmatprep.subr.mxu0 %v1842
      %2089 = vmatpush1.msra.mxu0 %v1841
      %2090 = vmatprep.subr.mxu0 %v1851
      %2091 = vmatpush1.msra.mxu0 %v1850
      %2092 = vmatprep.subr.mxu0 %v1860
      %2093 = vmatpush1.msra.mxu0 %v1859
      %2094 = vmatprep.subr.mxu0 %v1869
      %2095 = vmatpush1.msra.mxu0 %v1868
      %2096 = vmatprep.subr.mxu0 %v1878
      %2097 = vmatpush1.msra.mxu0 %v1877
      %2098 = vmatprep.subr.mxu0 %v1887
      %2099 = vmatpush1.msra.mxu0 %v1886
      %2100 = vmatprep.subr.mxu0 %v1896
      %2101 = vmatpush1.msra.mxu0 %v1895
      %2102 = vmatprep.subr.mxu0 %v1905
      %2103 = vmatpush1.msra.mxu0 %v1904
      %2104 = vmatprep.subr.mxu0 %v1914
      %2105 = vmatpush1.msra.mxu0 %v1913
      %2106 = vmatprep.subr.mxu0 %v1923
      %2107 = vmatpush1.msra.mxu0 %v1922
      %2108 = vmatprep.subr.mxu0 %v1932
      %2109 = vmatpush1.msra.mxu0 %v1931
      %2110 = vmatprep.subr.mxu0 %v1941
      %2111 = vmatpush1.msra.mxu0 %v1940
      %2112 = vmatprep.subr.mxu0 %v1950
      %2113 = vmatpush1.msra.mxu0 %v1949
      %2114 = vmatprep.subr.mxu0 %v1959
      %2115 = vmatpush1.msra.mxu0 %v1958
      %2116 = vmatprep.subr.mxu0 %v1968
      %2117 = vmatpush1.msra.mxu0 %v1967
      %2118 = vmatprep.subr.mxu0 %v1977
      %2119 = vmatpush1.msra.mxu0 %v1976
      %2120 = vmatprep.mubr.f32.mxu0 %v1408
      %2121 = vmatmul.mubr.f32.gmra.mrb[0].mxu0 %v1407
      %v2122 = vpop.f32.mrb[0].mxu0
      %v2123 = vadd.f32 %v2052, %v2122
      %v2124 = vpop.f32.mrb[0].mxu0
      %v2125 = vadd.f32 %v2054, %v2124
      %2126 = vdwg.mxu0
      %2127 = vmatprep.subr.mxu0 %v1412
      %2128 = vmatpush1.msra.mxu0 %v1411
      %2129 = vmatprep.subr.mxu0 %v1421
      %2130 = vmatpush1.msra.mxu0 %v1420
      %2131 = vmatprep.subr.mxu0 %v1430
      %2132 = vmatpush1.msra.mxu0 %v1429
      %2133 = vmatprep.subr.mxu0 %v1439
      %2134 = vmatpush1.msra.mxu0 %v1438
      %2135 = vmatprep.subr.mxu0 %v1448
      %2136 = vmatpush1.msra.mxu0 %v1447
      %2137 = vmatprep.subr.mxu0 %v1457
      %2138 = vmatpush1.msra.mxu0 %v1456
      %2139 = vmatprep.subr.mxu0 %v1466
      %2140 = vmatpush1.msra.mxu0 %v1465
      %2141 = vmatprep.subr.mxu0 %v1475
      %2142 = vmatpush1.msra.mxu0 %v1474
      %2143 = vmatprep.subr.mxu0 %v1484
      %2144 = vmatpush1.msra.mxu0 %v1483
      %2145 = vmatprep.subr.mxu0 %v1493
      %2146 = vmatpush1.msra.mxu0 %v1492
      %2147 = vmatprep.subr.mxu0 %v1502
      %2148 = vmatpush1.msra.mxu0 %v1501
      %2149 = vmatprep.subr.mxu0 %v1511
      %2150 = vmatpush1.msra.mxu0 %v1510
      %2151 = vmatprep.subr.mxu0 %v1520
      %2152 = vmatpush1.msra.mxu0 %v1519
      %2153 = vmatprep.subr.mxu0 %v1529
      %2154 = vmatpush1.msra.mxu0 %v1528
      %2155 = vmatprep.subr.mxu0 %v1538
      %2156 = vmatpush1.msra.mxu0 %v1537
      %2157 = vmatprep.subr.mxu0 %v1547
      %2158 = vmatpush1.msra.mxu0 %v1546
      %2159 = vmatprep.subr.mxu0 %v1556
      %2160 = vmatpush1.msra.mxu0 %v1555
      %2161 = vmatprep.subr.mxu0 %v1565
      %2162 = vmatpush1.msra.mxu0 %v1564
      %2163 = vmatprep.subr.mxu0 %v1574
      %2164 = vmatpush1.msra.mxu0 %v1573
      %2165 = vmatprep.subr.mxu0 %v1583
      %2166 = vmatpush1.msra.mxu0 %v1582
      %2167 = vmatprep.subr.mxu0 %v1592
      %2168 = vmatpush1.msra.mxu0 %v1591
      %2169 = vmatprep.subr.mxu0 %v1601
      %2170 = vmatpush1.msra.mxu0 %v1600
      %2171 = vmatprep.subr.mxu0 %v1610
      %2172 = vmatpush1.msra.mxu0 %v1609
      %2173 = vmatprep.subr.mxu0 %v1619
      %2174 = vmatpush1.msra.mxu0 %v1618
      %2175 = vmatprep.subr.mxu0 %v1628
      %2176 = vmatpush1.msra.mxu0 %v1627
      %2177 = vmatprep.subr.mxu0 %v1637
      %2178 = vmatpush1.msra.mxu0 %v1636
      %2179 = vmatprep.subr.mxu0 %v1646
      %2180 = vmatpush1.msra.mxu0 %v1645
      %2181 = vmatprep.subr.mxu0 %v1655
      %2182 = vmatpush1.msra.mxu0 %v1654
      %2183 = vmatprep.subr.mxu0 %v1664
      %2184 = vmatpush1.msra.mxu0 %v1663
      %2185 = vmatprep.subr.mxu0 %v1673
      %2186 = vmatpush1.msra.mxu0 %v1672
      %2187 = vmatprep.subr.mxu0 %v1682
      %2188 = vmatpush1.msra.mxu0 %v1681
      %2189 = vmatprep.subr.mxu0 %v1691
      %2190 = vmatpush1.msra.mxu0 %v1690
      %2191 = vmatprep.mubr.f32.mxu0 %v1406
      %2192 = vmatmul.mubr.f32.gmra.mrb[0].mxu0 %v1405
      %v2193 = vpop.f32.mrb[0].mxu0
      %v2194 = vadd.f32 0.0, %v2193
      %v2195 = vpop.f32.mrb[0].mxu0
      %v2196 = vadd.f32 0.0, %v2195
      %2197 = vdwg.mxu0
      %2198 = vmatprep.subr.mxu0 %v1700
      %2199 = vmatpush1.msra.mxu0 %v1699
      %2200 = vmatprep.subr.mxu0 %v1709
      %2201 = vmatpush1.msra.mxu0 %v1708
      %2202 = vmatprep.subr.mxu0 %v1718
      %2203 = vmatpush1.msra.mxu0 %v1717
      %2204 = vmatprep.subr.mxu0 %v1727
      %2205 = vmatpush1.msra.mxu0 %v1726
      %2206 = vmatprep.subr.mxu0 %v1736
      %2207 = vmatpush1.msra.mxu0 %v1735
      %2208 = vmatprep.subr.mxu0 %v1745
      %2209 = vmatpush1.msra.mxu0 %v1744
      %2210 = vmatprep.subr.mxu0 %v1754
      %2211 = vmatpush1.msra.mxu0 %v1753
      %2212 = vmatprep.subr.mxu0 %v1763
      %2213 = vmatpush1.msra.mxu0 %v1762
      %2214 = vmatprep.subr.mxu0 %v1772
      %2215 = vmatpush1.msra.mxu0 %v1771
      %2216 = vmatprep.subr.mxu0 %v1781
      %2217 = vmatpush1.msra.mxu0 %v1780
      %2218 = vmatprep.subr.mxu0 %v1790
      %2219 = vmatpush1.msra.mxu0 %v1789
      %2220 = vmatprep.subr.mxu0 %v1799
      %2221 = vmatpush1.msra.mxu0 %v1798
      %2222 = vmatprep.subr.mxu0 %v1808
      %2223 = vmatpush1.msra.mxu0 %v1807
      %2224 = vmatprep.subr.mxu0 %v1817
      %2225 = vmatpush1.msra.mxu0 %v1816
      %2226 = vmatprep.subr.mxu0 %v1826
      %2227 = vmatpush1.msra.mxu0 %v1825
      %2228 = vmatprep.subr.mxu0 %v1835
      %2229 = vmatpush1.msra.mxu0 %v1834
      %2230 = vmatprep.subr.mxu0 %v1844
      %2231 = vmatpush1.msra.mxu0 %v1843
      %2232 = vmatprep.subr.mxu0 %v1853
      %2233 = vmatpush1.msra.mxu0 %v1852
      %2234 = vmatprep.subr.mxu0 %v1862
      %2235 = vmatpush1.msra.mxu0 %v1861
      %2236 = vmatprep.subr.mxu0 %v1871
      %2237 = vmatpush1.msra.mxu0 %v1870
      %2238 = vmatprep.subr.mxu0 %v1880
      %2239 = vmatpush1.msra.mxu0 %v1879
      %2240 = vmatprep.subr.mxu0 %v1889
      %2241 = vmatpush1.msra.mxu0 %v1888
      %2242 = vmatprep.subr.mxu0 %v1898
      %2243 = vmatpush1.msra.mxu0 %v1897
      %2244 = vmatprep.subr.mxu0 %v1907
      %2245 = vmatpush1.msra.mxu0 %v1906
      %2246 = vmatprep.subr.mxu0 %v1916
      %2247 = vmatpush1.msra.mxu0 %v1915
      %2248 = vmatprep.subr.mxu0 %v1925
      %2249 = vmatpush1.msra.mxu0 %v1924
      %2250 = vmatprep.subr.mxu0 %v1934
      %2251 = vmatpush1.msra.mxu0 %v1933
      %2252 = vmatprep.subr.mxu0 %v1943
      %2253 = vmatpush1.msra.mxu0 %v1942
      %2254 = vmatprep.subr.mxu0 %v1952
      %2255 = vmatpush1.msra.mxu0 %v1951
      %2256 = vmatprep.subr.mxu0 %v1961
      %2257 = vmatpush1.msra.mxu0 %v1960
      %2258 = vmatprep.subr.mxu0 %v1970
      %2259 = vmatpush1.msra.mxu0 %v1969
      %2260 = vmatprep.subr.mxu0 %v1979
      %2261 = vmatpush1.msra.mxu0 %v1978
      %2262 = vmatprep.mubr.f32.mxu0 %v1408
      %2263 = vmatmul.mubr.f32.gmra.mrb[0].mxu0 %v1407
      %v2264 = vpop.f32.mrb[0].mxu0
      %v2265 = vadd.f32 %v2194, %v2264
      %v2266 = vpop.f32.mrb[0].mxu0
      %v2267 = vadd.f32 %v2196, %v2266
      %2268 = vdwg.mxu0
      %2269 = vmatprep.subr.mxu0 %v1414
      %2270 = vmatpush1.msra.mxu0 %v1413
      %2271 = vmatprep.subr.mxu0 %v1423
      %2272 = vmatpush1.msra.mxu0 %v1422
      %2273 = vmatprep.subr.mxu0 %v1432
      %2274 = vmatpush1.msra.mxu0 %v1431
      %2275 = vmatprep.subr.mxu0 %v1441
      %2276 = vmatpush1.msra.mxu0 %v1440
      %2277 = vmatprep.subr.mxu0 %v1450
      %2278 = vmatpush1.msra.mxu0 %v1449
      %2279 = vmatprep.subr.mxu0 %v1459
      %2280 = vmatpush1.msra.mxu0 %v1458
      %2281 = vmatprep.subr.mxu0 %v1468
      %2282 = vmatpush1.msra.mxu0 %v1467
      %2283 = vmatprep.subr.mxu0 %v1477
      %2284 = vmatpush1.msra.mxu0 %v1476
      %2285 = vmatprep.subr.mxu0 %v1486
      %2286 = vmatpush1.msra.mxu0 %v1485
      %2287 = vmatprep.subr.mxu0 %v1495
      %2288 = vmatpush1.msra.mxu0 %v1494
      %2289 = vmatprep.subr.mxu0 %v1504
      %2290 = vmatpush1.msra.mxu0 %v1503
      %2291 = vmatprep.subr.mxu0 %v1513
      %2292 = vmatpush1.msra.mxu0 %v1512
      %2293 = vmatprep.subr.mxu0 %v1522
      %2294 = vmatpush1.msra.mxu0 %v1521
      %2295 = vmatprep.subr.mxu0 %v1531
      %2296 = vmatpush1.msra.mxu0 %v1530
      %2297 = vmatprep.subr.mxu0 %v1540
      %2298 = vmatpush1.msra.mxu0 %v1539
      %2299 = vmatprep.subr.mxu0 %v1549
      %2300 = vmatpush1.msra.mxu0 %v1548
      %2301 = vmatprep.subr.mxu0 %v1558
      %2302 = vmatpush1.msra.mxu0 %v1557
      %2303 = vmatprep.subr.mxu0 %v1567
      %2304 = vmatpush1.msra.mxu0 %v1566
      %2305 = vmatprep.subr.mxu0 %v1576
      %2306 = vmatpush1.msra.mxu0 %v1575
      %2307 = vmatprep.subr.mxu0 %v1585
      %2308 = vmatpush1.msra.mxu0 %v1584
      %2309 = vmatprep.subr.mxu0 %v1594
      %2310 = vmatpush1.msra.mxu0 %v1593
      %2311 = vmatprep.subr.mxu0 %v1603
      %2312 = vmatpush1.msra.mxu0 %v1602
      %2313 = vmatprep.subr.mxu0 %v1612
      %2314 = vmatpush1.msra.mxu0 %v1611
      %2315 = vmatprep.subr.mxu0 %v1621
      %2316 = vmatpush1.msra.mxu0 %v1620
      %2317 = vmatprep.subr.mxu0 %v1630
      %2318 = vmatpush1.msra.mxu0 %v1629
      %2319 = vmatprep.subr.mxu0 %v1639
      %2320 = vmatpush1.msra.mxu0 %v1638
      %2321 = vmatprep.subr.mxu0 %v1648
      %2322 = vmatpush1.msra.mxu0 %v1647
      %2323 = vmatprep.subr.mxu0 %v1657
      %2324 = vmatpush1.msra.mxu0 %v1656
      %2325 = vmatprep.subr.mxu0 %v1666
      %2326 = vmatpush1.msra.mxu0 %v1665
      %2327 = vmatprep.subr.mxu0 %v1675
      %2328 = vmatpush1.msra.mxu0 %v1674
      %2329 = vmatprep.subr.mxu0 %v1684
      %2330 = vmatpush1.msra.mxu0 %v1683
      %2331 = vmatprep.subr.mxu0 %v1693
      %2332 = vmatpush1.msra.mxu0 %v1692
      %2333 = vmatprep.mubr.f32.mxu0 %v1406
      %2334 = vmatmul.mubr.f32.gmra.mrb[0].mxu0 %v1405
      %v2335 = vpop.f32.mrb[0].mxu0
      %v2336 = vadd.f32 0.0, %v2335
      %v2337 = vpop.f32.mrb[0].mxu0
      %v2338 = vadd.f32 0.0, %v2337
      %2339 = vdwg.mxu0
      %2340 = vmatprep.subr.mxu0 %v1702
      %2341 = vmatpush1.msra.mxu0 %v1701
      %2342 = vmatprep.subr.mxu0 %v1711
      %2343 = vmatpush1.msra.mxu0 %v1710
      %2344 = vmatprep.subr.mxu0 %v1720
      %2345 = vmatpush1.msra.mxu0 %v1719
      %2346 = vmatprep.subr.mxu0 %v1729
      %2347 = vmatpush1.msra.mxu0 %v1728
      %2348 = vmatprep.subr.mxu0 %v1738
      %2349 = vmatpush1.msra.mxu0 %v1737
      %2350 = vmatprep.subr.mxu0 %v1747
      %2351 = vmatpush1.msra.mxu0 %v1746
      %2352 = vmatprep.subr.mxu0 %v1756
      %2353 = vmatpush1.msra.mxu0 %v1755
      %2354 = vmatprep.subr.mxu0 %v1765
      %2355 = vmatpush1.msra.mxu0 %v1764
      %2356 = vmatprep.subr.mxu0 %v1774
      %2357 = vmatpush1.msra.mxu0 %v1773
      %2358 = vmatprep.subr.mxu0 %v1783
      %2359 = vmatpush1.msra.mxu0 %v1782
      %2360 = vmatprep.subr.mxu0 %v1792
      %2361 = vmatpush1.msra.mxu0 %v1791
      %2362 = vmatprep.subr.mxu0 %v1801
      %2363 = vmatpush1.msra.mxu0 %v1800
      %2364 = vmatprep.subr.mxu0 %v1810
      %2365 = vmatpush1.msra.mxu0 %v1809
      %2366 = vmatprep.subr.mxu0 %v1819
      %2367 = vmatpush1.msra.mxu0 %v1818
      %2368 = vmatprep.subr.mxu0 %v1828
      %2369 = vmatpush1.msra.mxu0 %v1827
      %2370 = vmatprep.subr.mxu0 %v1837
      %2371 = vmatpush1.msra.mxu0 %v1836
      %2372 = vmatprep.subr.mxu0 %v1846
      %2373 = vmatpush1.msra.mxu0 %v1845
      %2374 = vmatprep.subr.mxu0 %v1855
      %2375 = vmatpush1.msra.mxu0 %v1854
      %2376 = vmatprep.subr.mxu0 %v1864
      %2377 = vmatpush1.msra.mxu0 %v1863
      %2378 = vmatprep.subr.mxu0 %v1873
      %2379 = vmatpush1.msra.mxu0 %v1872
      %2380 = vmatprep.subr.mxu0 %v1882
      %2381 = vmatpush1.msra.mxu0 %v1881
      %2382 = vmatprep.subr.mxu0 %v1891
      %2383 = vmatpush1.msra.mxu0 %v1890
      %2384 = vmatprep.subr.mxu0 %v1900
      %2385 = vmatpush1.msra.mxu0 %v1899
      %2386 = vmatprep.subr.mxu0 %v1909
      %2387 = vmatpush1.msra.mxu0 %v1908
      %2388 = vmatprep.subr.mxu0 %v1918
      %2389 = vmatpush1.msra.mxu0 %v1917
      %2390 = vmatprep.subr.mxu0 %v1927
      %2391 = vmatpush1.msra.mxu0 %v1926
      %2392 = vmatprep.subr.mxu0 %v1936
      %2393 = vmatpush1.msra.mxu0 %v1935
      %2394 = vmatprep.subr.mxu0 %v1945
      %2395 = vmatpush1.msra.mxu0 %v1944
      %2396 = vmatprep.subr.mxu0 %v1954
      %2397 = vmatpush1.msra.mxu0 %v1953
      %2398 = vmatprep.subr.mxu0 %v1963
      %2399 = vmatpush1.msra.mxu0 %v1962
      %2400 = vmatprep.subr.mxu0 %v1972
      %2401 = vmatpush1.msra.mxu0 %v1971
      %2402 = vmatprep.subr.mxu0 %v1981
      %2403 = vmatpush1.msra.mxu0 %v1980
      %2404 = vmatprep.mubr.f32.mxu0 %v1408
      %2405 = vmatmul.mubr.f32.gmra.mrb[0].mxu0 %v1407
      %v2406 = vpop.f32.mrb[0].mxu0
      %v2407 = vadd.f32 %v2336, %v2406
      %v2408 = vpop.f32.mrb[0].mxu0
      %v2409 = vadd.f32 %v2338, %v2408
      %2410 = vdwg.mxu0
      %2411 = vmatprep.subr.mxu0 %v1416
      %2412 = vmatpush1.msra.mxu0 %v1415
      %2413 = vmatprep.subr.mxu0 %v1425
      %2414 = vmatpush1.msra.mxu0 %v1424
      %2415 = vmatprep.subr.mxu0 %v1434
      %2416 = vmatpush1.msra.mxu0 %v1433
      %2417 = vmatprep.subr.mxu0 %v1443
      %2418 = vmatpush1.msra.mxu0 %v1442
      %2419 = vmatprep.subr.mxu0 %v1452
      %2420 = vmatpush1.msra.mxu0 %v1451
      %2421 = vmatprep.subr.mxu0 %v1461
      %2422 = vmatpush1.msra.mxu0 %v1460
      %2423 = vmatprep.subr.mxu0 %v1470
      %2424 = vmatpush1.msra.mxu0 %v1469
      %2425 = vmatprep.subr.mxu0 %v1479
      %2426 = vmatpush1.msra.mxu0 %v1478
      %2427 = vmatprep.subr.mxu0 %v1488
      %2428 = vmatpush1.msra.mxu0 %v1487
      %2429 = vmatprep.subr.mxu0 %v1497
      %2430 = vmatpush1.msra.mxu0 %v1496
      %2431 = vmatprep.subr.mxu0 %v1506
      %2432 = vmatpush1.msra.mxu0 %v1505
      %2433 = vmatprep.subr.mxu0 %v1515
      %2434 = vmatpush1.msra.mxu0 %v1514
      %2435 = vmatprep.subr.mxu0 %v1524
      %2436 = vmatpush1.msra.mxu0 %v1523
      %2437 = vmatprep.subr.mxu0 %v1533
      %2438 = vmatpush1.msra.mxu0 %v1532
      %2439 = vmatprep.subr.mxu0 %v1542
      %2440 = vmatpush1.msra.mxu0 %v1541
      %2441 = vmatprep.subr.mxu0 %v1551
      %2442 = vmatpush1.msra.mxu0 %v1550
      %2443 = vmatprep.subr.mxu0 %v1560
      %2444 = vmatpush1.msra.mxu0 %v1559
      %2445 = vmatprep.subr.mxu0 %v1569
      %2446 = vmatpush1.msra.mxu0 %v1568
      %2447 = vmatprep.subr.mxu0 %v1578
      %2448 = vmatpush1.msra.mxu0 %v1577
      %2449 = vmatprep.subr.mxu0 %v1587
      %2450 = vmatpush1.msra.mxu0 %v1586
      %2451 = vmatprep.subr.mxu0 %v1596
      %2452 = vmatpush1.msra.mxu0 %v1595
      %2453 = vmatprep.subr.mxu0 %v1605
      %2454 = vmatpush1.msra.mxu0 %v1604
      %2455 = vmatprep.subr.mxu0 %v1614
      %2456 = vmatpush1.msra.mxu0 %v1613
      %2457 = vmatprep.subr.mxu0 %v1623
      %2458 = vmatpush1.msra.mxu0 %v1622
      %2459 = vmatprep.subr.mxu0 %v1632
      %2460 = vmatpush1.msra.mxu0 %v1631
      %2461 = vmatprep.subr.mxu0 %v1641
      %2462 = vmatpush1.msra.mxu0 %v1640
      %2463 = vmatprep.subr.mxu0 %v1650
      %2464 = vmatpush1.msra.mxu0 %v1649
      %2465 = vmatprep.subr.mxu0 %v1659
      %2466 = vmatpush1.msra.mxu0 %v1658
      %2467 = vmatprep.subr.mxu0 %v1668
      %2468 = vmatpush1.msra.mxu0 %v1667
      %2469 = vmatprep.subr.mxu0 %v1677
      %2470 = vmatpush1.msra.mxu0 %v1676
      %2471 = vmatprep.subr.mxu0 %v1686
      %2472 = vmatpush1.msra.mxu0 %v1685
      %2473 = vmatprep.subr.mxu0 %v1695
      %2474 = vmatpush1.msra.mxu0 %v1694
      %2475 = vmatprep.mubr.f32.mxu0 %v1406
      %2476 = vmatmul.mubr.f32.gmra.mrb[0].mxu0 %v1405
      %v2477 = vpop.f32.mrb[0].mxu0
      %v2478 = vadd.f32 0.0, %v2477
      %v2479 = vpop.f32.mrb[0].mxu0
      %v2480 = vadd.f32 0.0, %v2479
      %2481 = vdwg.mxu0
      %2482 = vmatprep.subr.mxu0 %v1704
      %2483 = vmatpush1.msra.mxu0 %v1703
      %2484 = vmatprep.subr.mxu0 %v1713
      %2485 = vmatpush1.msra.mxu0 %v1712
      %2486 = vmatprep.subr.mxu0 %v1722
      %2487 = vmatpush1.msra.mxu0 %v1721
      %2488 = vmatprep.subr.mxu0 %v1731
      %2489 = vmatpush1.msra.mxu0 %v1730
      %2490 = vmatprep.subr.mxu0 %v1740
      %2491 = vmatpush1.msra.mxu0 %v1739
      %2492 = vmatprep.subr.mxu0 %v1749
      %2493 = vmatpush1.msra.mxu0 %v1748
      %2494 = vmatprep.subr.mxu0 %v1758
      %2495 = vmatpush1.msra.mxu0 %v1757
      %2496 = vmatprep.subr.mxu0 %v1767
      %2497 = vmatpush1.msra.mxu0 %v1766
      %2498 = vmatprep.subr.mxu0 %v1776
      %2499 = vmatpush1.msra.mxu0 %v1775
      %2500 = vmatprep.subr.mxu0 %v1785
      %2501 = vmatpush1.msra.mxu0 %v1784
      %2502 = vmatprep.subr.mxu0 %v1794
      %2503 = vmatpush1.msra.mxu0 %v1793
      %2504 = vmatprep.subr.mxu0 %v1803
      %2505 = vmatpush1.msra.mxu0 %v1802
      %2506 = vmatprep.subr.mxu0 %v1812
      %2507 = vmatpush1.msra.mxu0 %v1811
      %2508 = vmatprep.subr.mxu0 %v1821
      %2509 = vmatpush1.msra.mxu0 %v1820
      %2510 = vmatprep.subr.mxu0 %v1830
      %2511 = vmatpush1.msra.mxu0 %v1829
      %2512 = vmatprep.subr.mxu0 %v1839
      %2513 = vmatpush1.msra.mxu0 %v1838
      %2514 = vmatprep.subr.mxu0 %v1848
      %2515 = vmatpush1.msra.mxu0 %v1847
      %2516 = vmatprep.subr.mxu0 %v1857
      %2517 = vmatpush1.msra.mxu0 %v1856
      %2518 = vmatprep.subr.mxu0 %v1866
      %2519 = vmatpush1.msra.mxu0 %v1865
      %2520 = vmatprep.subr.mxu0 %v1875
      %2521 = vmatpush1.msra.mxu0 %v1874
      %2522 = vmatprep.subr.mxu0 %v1884
      %2523 = vmatpush1.msra.mxu0 %v1883
      %2524 = vmatprep.subr.mxu0 %v1893
      %2525 = vmatpush1.msra.mxu0 %v1892
      %2526 = vmatprep.subr.mxu0 %v1902
      %2527 = vmatpush1.msra.mxu0 %v1901
      %2528 = vmatprep.subr.mxu0 %v1911
      %2529 = vmatpush1.msra.mxu0 %v1910
      %2530 = vmatprep.subr.mxu0 %v1920
      %2531 = vmatpush1.msra.mxu0 %v1919
      %2532 = vmatprep.subr.mxu0 %v1929
      %2533 = vmatpush1.msra.mxu0 %v1928
      %2534 = vmatprep.subr.mxu0 %v1938
      %2535 = vmatpush1.msra.mxu0 %v1937
      %2536 = vmatprep.subr.mxu0 %v1947
      %2537 = vmatpush1.msra.mxu0 %v1946
      %2538 = vmatprep.subr.mxu0 %v1956
      %2539 = vmatpush1.msra.mxu0 %v1955
      %2540 = vmatprep.subr.mxu0 %v1965
      %2541 = vmatpush1.msra.mxu0 %v1964
      %2542 = vmatprep.subr.mxu0 %v1974
      %2543 = vmatpush1.msra.mxu0 %v1973
      %2544 = vmatprep.subr.mxu0 %v1983
      %2545 = vmatpush1.msra.mxu0 %v1982
      %2546 = vmatprep.mubr.f32.mxu0 %v1408
      %2547 = vmatmul.mubr.f32.gmra.mrb[0].mxu0 %v1407
      %v2548 = vpop.f32.mrb[0].mxu0
      %v2549 = vadd.f32 %v2478, %v2548
      %v2550 = vpop.f32.mrb[0].mxu0
      %v2551 = vadd.f32 %v2480, %v2550
      %2552 = vdwg.mxu0
      %2553 = vmatprep.subr.mxu0 0.0
      %2554 = vmatpush1.msra.mxu0 %v1417
      %2555 = vmatprep.subr.mxu0 0.0
      %2556 = vmatpush1.msra.mxu0 %v1426
      %2557 = vmatprep.subr.mxu0 0.0
      %2558 = vmatpush1.msra.mxu0 %v1435
      %2559 = vmatprep.subr.mxu0 0.0
      %2560 = vmatpush1.msra.mxu0 %v1444
      %2561 = vmatprep.subr.mxu0 0.0
      %2562 = vmatpush1.msra.mxu0 %v1453
      %2563 = vmatprep.subr.mxu0 0.0
      %2564 = vmatpush1.msra.mxu0 %v1462
      %2565 = vmatprep.subr.mxu0 0.0
      %2566 = vmatpush1.msra.mxu0 %v1471
      %2567 = vmatprep.subr.mxu0 0.0
      %2568 = vmatpush1.msra.mxu0 %v1480
      %2569 = vmatprep.subr.mxu0 0.0
      %2570 = vmatpush1.msra.mxu0 %v1489
      %2571 = vmatprep.subr.mxu0 0.0
      %2572 = vmatpush1.msra.mxu0 %v1498
      %2573 = vmatprep.subr.mxu0 0.0
      %2574 = vmatpush1.msra.mxu0 %v1507
      %2575 = vmatprep.subr.mxu0 0.0
      %2576 = vmatpush1.msra.mxu0 %v1516
      %2577 = vmatprep.subr.mxu0 0.0
      %2578 = vmatpush1.msra.mxu0 %v1525
      %2579 = vmatprep.subr.mxu0 0.0
      %2580 = vmatpush1.msra.mxu0 %v1534
      %2581 = vmatprep.subr.mxu0 0.0
      %2582 = vmatpush1.msra.mxu0 %v1543
      %2583 = vmatprep.subr.mxu0 0.0
      %2584 = vmatpush1.msra.mxu0 %v1552
      %2585 = vmatprep.subr.mxu0 0.0
      %2586 = vmatpush1.msra.mxu0 %v1561
      %2587 = vmatprep.subr.mxu0 0.0
      %2588 = vmatpush1.msra.mxu0 %v1570
      %2589 = vmatprep.subr.mxu0 0.0
      %2590 = vmatpush1.msra.mxu0 %v1579
      %2591 = vmatprep.subr.mxu0 0.0
      %2592 = vmatpush1.msra.mxu0 %v1588
      %2593 = vmatprep.subr.mxu0 0.0
      %2594 = vmatpush1.msra.mxu0 %v1597
      %2595 = vmatprep.subr.mxu0 0.0
      %2596 = vmatpush1.msra.mxu0 %v1606
      %2597 = vmatprep.subr.mxu0 0.0
      %2598 = vmatpush1.msra.mxu0 %v1615
      %2599 = vmatprep.subr.mxu0 0.0
      %2600 = vmatpush1.msra.mxu0 %v1624
      %2601 = vmatprep.subr.mxu0 0.0
      %2602 = vmatpush1.msra.mxu0 %v1633
      %2603 = vmatprep.subr.mxu0 0.0
      %2604 = vmatpush1.msra.mxu0 %v1642
      %2605 = vmatprep.subr.mxu0 0.0
      %2606 = vmatpush1.msra.mxu0 %v1651
      %2607 = vmatprep.subr.mxu0 0.0
      %2608 = vmatpush1.msra.mxu0 %v1660
      %2609 = vmatprep.subr.mxu0 0.0
      %2610 = vmatpush1.msra.mxu0 %v1669
      %2611 = vmatprep.subr.mxu0 0.0
      %2612 = vmatpush1.msra.mxu0 %v1678
      %2613 = vmatprep.subr.mxu0 0.0
      %2614 = vmatpush1.msra.mxu0 %v1687
      %2615 = vmatprep.subr.mxu0 0.0
      %2616 = vmatpush1.msra.mxu0 %v1696
      %2617 = vmatprep.mubr.f32.mxu0 %v1406
      %2618 = vmatmul.mubr.f32.gmra.mrb[0].mxu0 %v1405
      %v2619 = vpop.f32.mrb[0].mxu0
      %v2620 = vadd.f32 0.0, %v2619
      %v2621 = vpop.f32.mrb[0].mxu0
      %2622 = vdwg.mxu0
      %2623 = vmatprep.subr.mxu0 0.0
      %2624 = vmatpush1.msra.mxu0 %v1705
      %2625 = vmatprep.subr.mxu0 0.0
      %2626 = vmatpush1.msra.mxu0 %v1714
      %2627 = vmatprep.subr.mxu0 0.0
      %2628 = vmatpush1.msra.mxu0 %v1723
      %2629 = vmatprep.subr.mxu0 0.0
      %2630 = vmatpush1.msra.mxu0 %v1732
      %2631 = vmatprep.subr.mxu0 0.0
      %2632 = vmatpush1.msra.mxu0 %v1741
      %2633 = vmatprep.subr.mxu0 0.0
      %2634 = vmatpush1.msra.mxu0 %v1750
      %2635 = vmatprep.subr.mxu0 0.0
      %2636 = vmatpush1.msra.mxu0 %v1759
      %2637 = vmatprep.subr.mxu0 0.0
      %2638 = vmatpush1.msra.mxu0 %v1768
      %2639 = vmatprep.subr.mxu0 0.0
      %2640 = vmatpush1.msra.mxu0 %v1777
      %2641 = vmatprep.subr.mxu0 0.0
      %2642 = vmatpush1.msra.mxu0 %v1786
      %2643 = vmatprep.subr.mxu0 0.0
      %2644 = vmatpush1.msra.mxu0 %v1795
      %2645 = vmatprep.subr.mxu0 0.0
      %2646 = vmatpush1.msra.mxu0 %v1804
      %2647 = vmatprep.subr.mxu0 0.0
      %2648 = vmatpush1.msra.mxu0 %v1813
      %2649 = vmatprep.subr.mxu0 0.0
      %2650 = vmatpush1.msra.mxu0 %v1822
      %2651 = vmatprep.subr.mxu0 0.0
      %2652 = vmatpush1.msra.mxu0 %v1831
      %2653 = vmatprep.subr.mxu0 0.0
      %2654 = vmatpush1.msra.mxu0 %v1840
      %2655 = vmatprep.subr.mxu0 0.0
      %2656 = vmatpush1.msra.mxu0 %v1849
      %2657 = vmatprep.subr.mxu0 0.0
      %2658 = vmatpush1.msra.mxu0 %v1858
      %2659 = vmatprep.subr.mxu0 0.0
      %2660 = vmatpush1.msra.mxu0 %v1867
      %2661 = vmatprep.subr.mxu0 0.0
      %2662 = vmatpush1.msra.mxu0 %v1876
      %2663 = vmatprep.subr.mxu0 0.0
      %2664 = vmatpush1.msra.mxu0 %v1885
      %2665 = vmatprep.subr.mxu0 0.0
      %2666 = vmatpush1.msra.mxu0 %v1894
      %2667 = vmatprep.subr.mxu0 0.0
      %2668 = vmatpush1.msra.mxu0 %v1903
      %2669 = vmatprep.subr.mxu0 0.0
      %2670 = vmatpush1.msra.mxu0 %v1912
      %2671 = vmatprep.subr.mxu0 0.0
      %2672 = vmatpush1.msra.mxu0 %v1921
      %2673 = vmatprep.subr.mxu0 0.0
      %2674 = vmatpush1.msra.mxu0 %v1930
      %2675 = vmatprep.subr.mxu0 0.0
      %2676 = vmatpush1.msra.mxu0 %v1939
      %2677 = vmatprep.subr.mxu0 0.0
      %2678 = vmatpush1.msra.mxu0 %v1948
      %2679 = vmatprep.subr.mxu0 0.0
      %2680 = vmatpush1.msra.mxu0 %v1957
      %2681 = vmatprep.subr.mxu0 0.0
      %2682 = vmatpush1.msra.mxu0 %v1966
      %2683 = vmatprep.subr.mxu0 0.0
      %2684 = vmatpush1.msra.mxu0 %v1975
      %2685 = vmatprep.subr.mxu0 0.0
      %2686 = vmatpush1.msra.mxu0 %v1984
      %2687 = vmatprep.mubr.f32.mxu0 %v1408
      %2688 = vmatmul.mubr.f32.gmra.mrb[0].mxu0 %v1407
      %v2689 = vpop.f32.mrb[0].mxu0
      %v2690 = vadd.f32 %v2620, %v2689
      %v2691 = vpop.f32.mrb[0].mxu0
      %2692 = vdwg.mxu0
      %2693 = vst [vmem:[#allocation6] sm:$0xff] %v2123
      %2694 = vst [vmem:[#allocation6 + $0x8] sm:$0xff] %v2125
      %2695 = vst [vmem:[#allocation6 + $0x10] sm:$0xff] %v2265
      %2696 = vst [vmem:[#allocation6 + $0x18] sm:$0xff] %v2267
      %2697 = vst [vmem:[#allocation6 + $0x20] sm:$0xff] %v2407
      %2698 = vst [vmem:[#allocation6 + $0x28] sm:$0xff] %v2409
      %2699 = vst [vmem:[#allocation6 + $0x30] sm:$0xff] %v2549
      %2700 = vst [vmem:[#allocation6 + $0x38] sm:$0xff] %v2551
      %v2701 = vld [vmem:[#allocation6] sm:$0xfe]
      %v2703 = vrot.slane %v2690, 7
      %v2705 = vadd.f32 %v2701, %v2703
      %vm2706 = vcmask 31745
      %2707 = vst.msk [vmem:[#allocation6] sm:$0xfe] %vm2706, %v2705
      %v2708 = vld [vmem:[#allocation6] sm:$0xff]
      %v2709 = vld [vmem:[#allocation6 + $0x8] sm:$0xff]
      %v2710 = vld [vmem:[#allocation6 + $0x10] sm:$0xff]
      %v2711 = vld [vmem:[#allocation6 + $0x18] sm:$0xff]
      %v2712 = vld [vmem:[#allocation6 + $0x20] sm:$0xff]
      %v2713 = vld [vmem:[#allocation6 + $0x28] sm:$0xff]
      %v2714 = vld [vmem:[#allocation6 + $0x30] sm:$0xff]
      %v2715 = vld [vmem:[#allocation6 + $0x38] sm:$0xff]
      %v2716 = vld [vmem:[%s11] sm:$0xff]
      %v2718 = vlaneseq
      %v2719 = vshrl.u32 %v2718, 7
      %v2720 = vsub.s32 0, %v2719
      %v2721 = vrot.slane %v2716, %v2720
      %v2722 = vlaneseq
      %v2723 = vshrl.u32 %v2722, 7
      %v2724 = vsub.s32 1, %v2723
      %v2725 = vrot.slane %v2716, %v2724
      %v2726 = vlaneseq
      %v2727 = vshrl.u32 %v2726, 7
      %v2728 = vsub.s32 2, %v2727
      %v2729 = vrot.slane %v2716, %v2728
      %v2730 = vlaneseq
      %v2731 = vshrl.u32 %v2730, 7
      %v2732 = vsub.s32 3, %v2731
      %v2733 = vrot.slane %v2716, %v2732
      %v2734 = vlaneseq
      %v2735 = vshrl.u32 %v2734, 7
      %v2736 = vsub.s32 4, %v2735
      %v2737 = vrot.slane %v2716, %v2736
      %v2738 = vlaneseq
      %v2739 = vshrl.u32 %v2738, 7
      %v2740 = vsub.s32 5, %v2739
      %v2741 = vrot.slane %v2716, %v2740
      %v2742 = vlaneseq
      %v2743 = vshrl.u32 %v2742, 7
      %v2744 = vsub.s32 6, %v2743
      %v2745 = vrot.slane %v2716, %v2744
      %v2746 = vlaneseq
      %v2747 = vshrl.u32 %v2746, 7
      %v2748 = vsub.s32 7, %v2747
      %v2749 = vrot.slane %v2716, %v2748
      %v2758 = vadd.f32 %v2708, %v2721
      %v2759 = vadd.f32 %v2709, %v2725
      %v2760 = vadd.f32 %v2710, %v2729
      %v2761 = vadd.f32 %v2711, %v2733
      %v2762 = vadd.f32 %v2712, %v2737
      %v2763 = vadd.f32 %v2713, %v2741
      %v2764 = vadd.f32 %v2714, %v2745
      %v2765 = vadd.f32 %v2715, %v2749
      %v2766 = vmax.f32 %v2758, 0.0
      %v2767 = vmax.f32 %v2759, 0.0
      %v2768 = vmax.f32 %v2760, 0.0
      %v2769 = vmax.f32 %v2761, 0.0
      %v2770 = vmax.f32 %v2762, 0.0
      %v2771 = vmax.f32 %v2763, 0.0
      %v2772 = vmax.f32 %v2764, 0.0
      %v2773 = vmax.f32 %v2765, 0.0
      %v2774 = vld [vmem:[%s16] sm:$0xff]
      %v2775 = vld [vmem:[%s16 + $0x8] sm:$0xff]
      %v2776 = vld [vmem:[%s16 + $0x10] sm:$0xff]
      %v2777 = vld [vmem:[%s16 + $0x18] sm:$0xff]
      %v2778 = vld [vmem:[%s16 + $0x20] sm:$0xff]
      %v2779 = vld [vmem:[%s16 + $0x28] sm:$0xff]
      %v2780 = vld [vmem:[%s16 + $0x30] sm:$0xff]
      %v2781 = vld [vmem:[%s16 + $0x38] sm:$0xff]
      %v2782 = vmul.f32 %v2766, %v2774
      %v2783 = vmul.f32 %v2767, %v2775
      %v2784 = vmul.f32 %v2768, %v2776
      %v2785 = vmul.f32 %v2769, %v2777
      %v2786 = vmul.f32 %v2770, %v2778
      %v2787 = vmul.f32 %v2771, %v2779
      %v2788 = vmul.f32 %v2772, %v2780
      %v2789 = vmul.f32 %v2773, %v2781
      %v2790 = vld [vmem:[%s7] sm:$0xff]
      %v2791 = vld [vmem:[%s7 + $0x8] sm:$0xff]
      %v2792 = vld [vmem:[%s7 + $0x10] sm:$0xff]
      %v2793 = vld [vmem:[%s7 + $0x18] sm:$0xff]
      %v2794 = vld [vmem:[%s7 + $0x20] sm:$0xff]
      %v2795 = vld [vmem:[%s7 + $0x28] sm:$0xff]
      %v2796 = vld [vmem:[%s7 + $0x30] sm:$0xff]
      %v2797 = vld [vmem:[%s7 + $0x38] sm:$0xff]
      %v2798 = vld [vmem:[%s7 + $0x40] sm:$0xff]
      %v2799 = vld [vmem:[%s7 + $0x48] sm:$0xff]
      %v2800 = vld [vmem:[%s7 + $0x50] sm:$0xff]
      %v2801 = vld [vmem:[%s7 + $0x58] sm:$0xff]
      %v2802 = vld [vmem:[%s7 + $0x60] sm:$0xff]
      %v2803 = vld [vmem:[%s7 + $0x68] sm:$0xff]
      %v2804 = vld [vmem:[%s7 + $0x70] sm:$0xff]
      %v2805 = vld [vmem:[%s7 + $0x78] sm:$0xff]
      %v2806 = vld [vmem:[%s7 + $0x80] sm:$0xff]
      %v2807 = vld [vmem:[%s7 + $0x88] sm:$0xff]
      %v2808 = vld [vmem:[%s7 + $0x90] sm:$0xff]
      %v2809 = vld [vmem:[%s7 + $0x98] sm:$0xff]
      %v2810 = vld [vmem:[%s7 + $0xa0] sm:$0xff]
      %v2811 = vld [vmem:[%s7 + $0xa8] sm:$0xff]
      %v2812 = vld [vmem:[%s7 + $0xb0] sm:$0xff]
      %v2813 = vld [vmem:[%s7 + $0xb8] sm:$0xff]
      %v2814 = vld [vmem:[%s7 + $0xc0] sm:$0xff]
      %v2815 = vld [vmem:[%s7 + $0xc8] sm:$0xff]
      %v2816 = vld [vmem:[%s7 + $0xd0] sm:$0xff]
      %v2817 = vld [vmem:[%s7 + $0xd8] sm:$0xff]
      %v2818 = vld [vmem:[%s7 + $0xe0] sm:$0xff]
      %v2819 = vld [vmem:[%s7 + $0xe8] sm:$0xff]
      %v2820 = vld [vmem:[%s7 + $0xf0] sm:$0xff]
      %v2821 = vld [vmem:[%s7 + $0xf8] sm:$0xff]
      %v2822 = vld [vmem:[%s7 + $0x100] sm:$0xff]
      %v2823 = vld [vmem:[%s7 + $0x108] sm:$0xff]
      %v2824 = vld [vmem:[%s7 + $0x110] sm:$0xff]
      %v2825 = vld [vmem:[%s7 + $0x118] sm:$0xff]
      %v2826 = vld [vmem:[%s7 + $0x120] sm:$0xff]
      %v2827 = vld [vmem:[%s7 + $0x128] sm:$0xff]
      %v2828 = vld [vmem:[%s7 + $0x130] sm:$0xff]
      %v2829 = vld [vmem:[%s7 + $0x138] sm:$0xff]
      %v2830 = vld [vmem:[%s7 + $0x140] sm:$0xff]
      %v2831 = vld [vmem:[%s7 + $0x148] sm:$0xff]
      %v2832 = vld [vmem:[%s7 + $0x150] sm:$0xff]
      %v2833 = vld [vmem:[%s7 + $0x158] sm:$0xff]
      %v2834 = vld [vmem:[%s7 + $0x160] sm:$0xff]
      %v2835 = vld [vmem:[%s7 + $0x168] sm:$0xff]
      %v2836 = vld [vmem:[%s7 + $0x170] sm:$0xff]
      %v2837 = vld [vmem:[%s7 + $0x178] sm:$0xff]
      %v2838 = vld [vmem:[%s7 + $0x180] sm:$0xff]
      %v2839 = vld [vmem:[%s7 + $0x188] sm:$0xff]
      %v2840 = vld [vmem:[%s7 + $0x190] sm:$0xff]
      %v2841 = vld [vmem:[%s7 + $0x198] sm:$0xff]
      %v2842 = vld [vmem:[%s7 + $0x1a0] sm:$0xff]
      %v2843 = vld [vmem:[%s7 + $0x1a8] sm:$0xff]
      %v2844 = vld [vmem:[%s7 + $0x1b0] sm:$0xff]
      %v2845 = vld [vmem:[%s7 + $0x1b8] sm:$0xff]
      %v2846 = vld [vmem:[%s7 + $0x1c0] sm:$0xff]
      %v2847 = vld [vmem:[%s7 + $0x1c8] sm:$0xff]
      %v2848 = vld [vmem:[%s7 + $0x1d0] sm:$0xff]
      %v2849 = vld [vmem:[%s7 + $0x1d8] sm:$0xff]
      %v2850 = vld [vmem:[%s7 + $0x1e0] sm:$0xff]
      %v2851 = vld [vmem:[%s7 + $0x1e8] sm:$0xff]
      %v2852 = vld [vmem:[%s7 + $0x1f0] sm:$0xff]
      %v2853 = vld [vmem:[%s7 + $0x1f8] sm:$0xff]
      %v2854 = vld [vmem:[%s7 + $0x200] sm:$0xff]
      %v2855 = vld [vmem:[%s7 + $0x208] sm:$0xff]
      %v2856 = vld [vmem:[%s7 + $0x210] sm:$0xff]
      %v2857 = vld [vmem:[%s7 + $0x218] sm:$0xff]
      %v2858 = vld [vmem:[%s7 + $0x220] sm:$0xff]
      %v2859 = vld [vmem:[%s7 + $0x228] sm:$0xff]
      %v2860 = vld [vmem:[%s7 + $0x230] sm:$0xff]
      %v2861 = vld [vmem:[%s7 + $0x238] sm:$0xff]
      %v2862 = vld [vmem:[%s7 + $0x240] sm:$0xff]
      %v2863 = vld [vmem:[%s7 + $0x248] sm:$0xff]
      %v2864 = vld [vmem:[%s7 + $0x250] sm:$0xff]
      %v2865 = vld [vmem:[%s7 + $0x258] sm:$0xff]
      %v2866 = vld [vmem:[%s7 + $0x260] sm:$0xff]
      %v2867 = vld [vmem:[%s7 + $0x268] sm:$0xff]
      %v2868 = vld [vmem:[%s7 + $0x270] sm:$0xff]
      %v2869 = vld [vmem:[%s7 + $0x278] sm:$0xff]
      %v2870 = vld [vmem:[%s7 + $0x280] sm:$0xff]
      %v2871 = vld [vmem:[%s7 + $0x288] sm:$0xff]
      %v2872 = vld [vmem:[%s7 + $0x290] sm:$0xff]
      %v2873 = vld [vmem:[%s7 + $0x298] sm:$0xff]
      %v2874 = vld [vmem:[%s7 + $0x2a0] sm:$0xff]
      %v2875 = vld [vmem:[%s7 + $0x2a8] sm:$0xff]
      %v2876 = vld [vmem:[%s7 + $0x2b0] sm:$0xff]
      %v2877 = vld [vmem:[%s7 + $0x2b8] sm:$0xff]
      %v2878 = vld [vmem:[%s7 + $0x2c0] sm:$0xff]
      %v2879 = vld [vmem:[%s7 + $0x2c8] sm:$0xff]
      %v2880 = vld [vmem:[%s7 + $0x2d0] sm:$0xff]
      %v2881 = vld [vmem:[%s7 + $0x2d8] sm:$0xff]
      %v2882 = vld [vmem:[%s7 + $0x2e0] sm:$0xff]
      %v2883 = vld [vmem:[%s7 + $0x2e8] sm:$0xff]
      %v2884 = vld [vmem:[%s7 + $0x2f0] sm:$0xff]
      %v2885 = vld [vmem:[%s7 + $0x2f8] sm:$0xff]
      %v2886 = vld [vmem:[%s7 + $0x300] sm:$0xff]
      %v2887 = vld [vmem:[%s7 + $0x308] sm:$0xff]
      %v2888 = vld [vmem:[%s7 + $0x310] sm:$0xff]
      %v2889 = vld [vmem:[%s7 + $0x318] sm:$0xff]
      %v2890 = vld [vmem:[%s7 + $0x320] sm:$0xff]
      %v2891 = vld [vmem:[%s7 + $0x328] sm:$0xff]
      %v2892 = vld [vmem:[%s7 + $0x330] sm:$0xff]
      %v2893 = vld [vmem:[%s7 + $0x338] sm:$0xff]
      %v2894 = vld [vmem:[%s7 + $0x340] sm:$0xff]
      %v2895 = vld [vmem:[%s7 + $0x348] sm:$0xff]
      %v2896 = vld [vmem:[%s7 + $0x350] sm:$0xff]
      %v2897 = vld [vmem:[%s7 + $0x358] sm:$0xff]
      %v2898 = vld [vmem:[%s7 + $0x360] sm:$0xff]
      %v2899 = vld [vmem:[%s7 + $0x368] sm:$0xff]
      %v2900 = vld [vmem:[%s7 + $0x370] sm:$0xff]
      %v2901 = vld [vmem:[%s7 + $0x378] sm:$0xff]
      %v2902 = vld [vmem:[%s7 + $0x380] sm:$0xff]
      %v2903 = vld [vmem:[%s7 + $0x388] sm:$0xff]
      %v2904 = vld [vmem:[%s7 + $0x390] sm:$0xff]
      %v2905 = vld [vmem:[%s7 + $0x398] sm:$0xff]
      %v2906 = vld [vmem:[%s7 + $0x3a0] sm:$0xff]
      %v2907 = vld [vmem:[%s7 + $0x3a8] sm:$0xff]
      %v2908 = vld [vmem:[%s7 + $0x3b0] sm:$0xff]
      %v2909 = vld [vmem:[%s7 + $0x3b8] sm:$0xff]
      %v2910 = vld [vmem:[%s7 + $0x3c0] sm:$0xff]
      %v2911 = vld [vmem:[%s7 + $0x3c8] sm:$0xff]
      %v2912 = vld [vmem:[%s7 + $0x3d0] sm:$0xff]
      %v2913 = vld [vmem:[%s7 + $0x3d8] sm:$0xff]
      %v2914 = vld [vmem:[%s7 + $0x3e0] sm:$0xff]
      %v2915 = vld [vmem:[%s7 + $0x3e8] sm:$0xff]
      %v2916 = vld [vmem:[%s7 + $0x3f0] sm:$0xff]
      %v2917 = vld [vmem:[%s7 + $0x3f8] sm:$0xff]
      %v2918 = vld [vmem:[%s7 + $0x400] sm:$0xff]
      %v2919 = vld [vmem:[%s7 + $0x408] sm:$0xff]
      %v2920 = vld [vmem:[%s7 + $0x410] sm:$0xff]
      %v2921 = vld [vmem:[%s7 + $0x418] sm:$0xff]
      %v2922 = vld [vmem:[%s7 + $0x420] sm:$0xff]
      %v2923 = vld [vmem:[%s7 + $0x428] sm:$0xff]
      %v2924 = vld [vmem:[%s7 + $0x430] sm:$0xff]
      %v2925 = vld [vmem:[%s7 + $0x438] sm:$0xff]
      %v2926 = vld [vmem:[%s7 + $0x440] sm:$0xff]
      %v2927 = vld [vmem:[%s7 + $0x448] sm:$0xff]
      %v2928 = vld [vmem:[%s7 + $0x450] sm:$0xff]
      %v2929 = vld [vmem:[%s7 + $0x458] sm:$0xff]
      %v2930 = vld [vmem:[%s7 + $0x460] sm:$0xff]
      %v2931 = vld [vmem:[%s7 + $0x468] sm:$0xff]
      %v2932 = vld [vmem:[%s7 + $0x470] sm:$0xff]
      %v2933 = vld [vmem:[%s7 + $0x478] sm:$0xff]
      %v2934 = vld [vmem:[%s7 + $0x480] sm:$0xff]
      %v2935 = vld [vmem:[%s7 + $0x488] sm:$0xff]
      %v2936 = vld [vmem:[%s7 + $0x490] sm:$0xff]
      %v2937 = vld [vmem:[%s7 + $0x498] sm:$0xff]
      %v2938 = vld [vmem:[%s7 + $0x4a0] sm:$0xff]
      %v2939 = vld [vmem:[%s7 + $0x4a8] sm:$0xff]
      %v2940 = vld [vmem:[%s7 + $0x4b0] sm:$0xff]
      %v2941 = vld [vmem:[%s7 + $0x4b8] sm:$0xff]
      %v2942 = vld [vmem:[%s7 + $0x4c0] sm:$0xff]
      %v2943 = vld [vmem:[%s7 + $0x4c8] sm:$0xff]
      %v2944 = vld [vmem:[%s7 + $0x4d0] sm:$0xff]
      %v2945 = vld [vmem:[%s7 + $0x4d8] sm:$0xff]
      %v2946 = vld [vmem:[%s7 + $0x4e0] sm:$0xff]
      %v2947 = vld [vmem:[%s7 + $0x4e8] sm:$0xff]
      %v2948 = vld [vmem:[%s7 + $0x4f0] sm:$0xff]
      %v2949 = vld [vmem:[%s7 + $0x4f8] sm:$0xff]
      %v2950 = vld [vmem:[%s7 + $0x500] sm:$0xff]
      %v2951 = vld [vmem:[%s7 + $0x508] sm:$0xff]
      %v2952 = vld [vmem:[%s7 + $0x510] sm:$0xff]
      %v2953 = vld [vmem:[%s7 + $0x518] sm:$0xff]
      %v2954 = vld [vmem:[%s7 + $0x520] sm:$0xff]
      %v2955 = vld [vmem:[%s7 + $0x528] sm:$0xff]
      %v2956 = vld [vmem:[%s7 + $0x530] sm:$0xff]
      %v2957 = vld [vmem:[%s7 + $0x538] sm:$0xff]
      %v2958 = vld [vmem:[%s7 + $0x540] sm:$0xff]
      %v2959 = vld [vmem:[%s7 + $0x548] sm:$0xff]
      %v2960 = vld [vmem:[%s7 + $0x550] sm:$0xff]
      %v2961 = vld [vmem:[%s7 + $0x558] sm:$0xff]
      %v2962 = vld [vmem:[%s7 + $0x560] sm:$0xff]
      %v2963 = vld [vmem:[%s7 + $0x568] sm:$0xff]
      %v2964 = vld [vmem:[%s7 + $0x570] sm:$0xff]
      %v2965 = vld [vmem:[%s7 + $0x578] sm:$0xff]
      %v2966 = vld [vmem:[%s7 + $0x580] sm:$0xff]
      %v2967 = vld [vmem:[%s7 + $0x588] sm:$0xff]
      %v2968 = vld [vmem:[%s7 + $0x590] sm:$0xff]
      %v2969 = vld [vmem:[%s7 + $0x598] sm:$0xff]
      %v2970 = vld [vmem:[%s7 + $0x5a0] sm:$0xff]
      %v2971 = vld [vmem:[%s7 + $0x5a8] sm:$0xff]
      %v2972 = vld [vmem:[%s7 + $0x5b0] sm:$0xff]
      %v2973 = vld [vmem:[%s7 + $0x5b8] sm:$0xff]
      %v2974 = vld [vmem:[%s7 + $0x5c0] sm:$0xff]
      %v2975 = vld [vmem:[%s7 + $0x5c8] sm:$0xff]
      %v2976 = vld [vmem:[%s7 + $0x5d0] sm:$0xff]
      %v2977 = vld [vmem:[%s7 + $0x5d8] sm:$0xff]
      %v2978 = vld [vmem:[%s7 + $0x5e0] sm:$0xff]
      %v2979 = vld [vmem:[%s7 + $0x5e8] sm:$0xff]
      %v2980 = vld [vmem:[%s7 + $0x5f0] sm:$0xff]
      %v2981 = vld [vmem:[%s7 + $0x5f8] sm:$0xff]
      %v2982 = vld [vmem:[%s7 + $0x600] sm:$0xff]
      %v2983 = vld [vmem:[%s7 + $0x608] sm:$0xff]
      %v2984 = vld [vmem:[%s7 + $0x610] sm:$0xff]
      %v2985 = vld [vmem:[%s7 + $0x618] sm:$0xff]
      %v2986 = vld [vmem:[%s7 + $0x620] sm:$0xff]
      %v2987 = vld [vmem:[%s7 + $0x628] sm:$0xff]
      %v2988 = vld [vmem:[%s7 + $0x630] sm:$0xff]
      %v2989 = vld [vmem:[%s7 + $0x638] sm:$0xff]
      %v2990 = vld [vmem:[%s7 + $0x640] sm:$0xff]
      %v2991 = vld [vmem:[%s7 + $0x648] sm:$0xff]
      %v2992 = vld [vmem:[%s7 + $0x650] sm:$0xff]
      %v2993 = vld [vmem:[%s7 + $0x658] sm:$0xff]
      %v2994 = vld [vmem:[%s7 + $0x660] sm:$0xff]
      %v2995 = vld [vmem:[%s7 + $0x668] sm:$0xff]
      %v2996 = vld [vmem:[%s7 + $0x670] sm:$0xff]
      %v2997 = vld [vmem:[%s7 + $0x678] sm:$0xff]
      %v2998 = vld [vmem:[%s7 + $0x680] sm:$0xff]
      %v2999 = vld [vmem:[%s7 + $0x688] sm:$0xff]
      %v3000 = vld [vmem:[%s7 + $0x690] sm:$0xff]
      %v3001 = vld [vmem:[%s7 + $0x698] sm:$0xff]
      %v3002 = vld [vmem:[%s7 + $0x6a0] sm:$0xff]
      %v3003 = vld [vmem:[%s7 + $0x6a8] sm:$0xff]
      %v3004 = vld [vmem:[%s7 + $0x6b0] sm:$0xff]
      %v3005 = vld [vmem:[%s7 + $0x6b8] sm:$0xff]
      %v3006 = vld [vmem:[%s7 + $0x6c0] sm:$0xff]
      %v3007 = vld [vmem:[%s7 + $0x6c8] sm:$0xff]
      %v3008 = vld [vmem:[%s7 + $0x6d0] sm:$0xff]
      %v3009 = vld [vmem:[%s7 + $0x6d8] sm:$0xff]
      %v3010 = vld [vmem:[%s7 + $0x6e0] sm:$0xff]
      %v3011 = vld [vmem:[%s7 + $0x6e8] sm:$0xff]
      %v3012 = vld [vmem:[%s7 + $0x6f0] sm:$0xff]
      %v3013 = vld [vmem:[%s7 + $0x6f8] sm:$0xff]
      %v3014 = vld [vmem:[%s7 + $0x700] sm:$0xff]
      %v3015 = vld [vmem:[%s7 + $0x708] sm:$0xff]
      %v3016 = vld [vmem:[%s7 + $0x710] sm:$0xff]
      %v3017 = vld [vmem:[%s7 + $0x718] sm:$0xff]
      %v3018 = vld [vmem:[%s7 + $0x720] sm:$0xff]
      %v3019 = vld [vmem:[%s7 + $0x728] sm:$0xff]
      %v3020 = vld [vmem:[%s7 + $0x730] sm:$0xff]
      %v3021 = vld [vmem:[%s7 + $0x738] sm:$0xff]
      %v3022 = vld [vmem:[%s7 + $0x740] sm:$0xff]
      %v3023 = vld [vmem:[%s7 + $0x748] sm:$0xff]
      %v3024 = vld [vmem:[%s7 + $0x750] sm:$0xff]
      %v3025 = vld [vmem:[%s7 + $0x758] sm:$0xff]
      %v3026 = vld [vmem:[%s7 + $0x760] sm:$0xff]
      %v3027 = vld [vmem:[%s7 + $0x768] sm:$0xff]
      %v3028 = vld [vmem:[%s7 + $0x770] sm:$0xff]
      %v3029 = vld [vmem:[%s7 + $0x778] sm:$0xff]
      %v3030 = vld [vmem:[%s7 + $0x780] sm:$0xff]
      %v3031 = vld [vmem:[%s7 + $0x788] sm:$0xff]
      %v3032 = vld [vmem:[%s7 + $0x790] sm:$0xff]
      %v3033 = vld [vmem:[%s7 + $0x798] sm:$0xff]
      %v3034 = vld [vmem:[%s7 + $0x7a0] sm:$0xff]
      %v3035 = vld [vmem:[%s7 + $0x7a8] sm:$0xff]
      %v3036 = vld [vmem:[%s7 + $0x7b0] sm:$0xff]
      %v3037 = vld [vmem:[%s7 + $0x7b8] sm:$0xff]
      %v3038 = vld [vmem:[%s7 + $0x7c0] sm:$0xff]
      %v3039 = vld [vmem:[%s7 + $0x7c8] sm:$0xff]
      %v3040 = vld [vmem:[%s7 + $0x7d0] sm:$0xff]
      %v3041 = vld [vmem:[%s7 + $0x7d8] sm:$0xff]
      %v3042 = vld [vmem:[%s7 + $0x7e0] sm:$0xff]
      %v3043 = vld [vmem:[%s7 + $0x7e8] sm:$0xff]
      %v3044 = vld [vmem:[%s7 + $0x7f0] sm:$0xff]
      %v3045 = vld [vmem:[%s7 + $0x7f8] sm:$0xff]
      %v3046 = vld [vmem:[%s7 + $0x800] sm:$0xff]
      %v3047 = vld [vmem:[%s7 + $0x808] sm:$0xff]
      %v3048 = vld [vmem:[%s7 + $0x810] sm:$0xff]
      %v3049 = vld [vmem:[%s7 + $0x818] sm:$0xff]
      %v3050 = vld [vmem:[%s7 + $0x820] sm:$0xff]
      %v3051 = vld [vmem:[%s7 + $0x828] sm:$0xff]
      %v3052 = vld [vmem:[%s7 + $0x830] sm:$0xff]
      %v3053 = vld [vmem:[%s7 + $0x838] sm:$0xff]
      %v3054 = vld [vmem:[%s7 + $0x840] sm:$0xff]
      %v3055 = vld [vmem:[%s7 + $0x848] sm:$0xff]
      %v3056 = vld [vmem:[%s7 + $0x850] sm:$0xff]
      %v3057 = vld [vmem:[%s7 + $0x858] sm:$0xff]
      %v3058 = vld [vmem:[%s7 + $0x860] sm:$0xff]
      %v3059 = vld [vmem:[%s7 + $0x868] sm:$0xff]
      %v3060 = vld [vmem:[%s7 + $0x870] sm:$0xff]
      %v3061 = vld [vmem:[%s7 + $0x878] sm:$0xff]
      %v3062 = vld [vmem:[%s7 + $0x880] sm:$0xff]
      %v3063 = vld [vmem:[%s7 + $0x888] sm:$0xff]
      %v3064 = vld [vmem:[%s7 + $0x890] sm:$0xff]
      %v3065 = vld [vmem:[%s7 + $0x898] sm:$0xff]
      %v3066 = vld [vmem:[%s7 + $0x8a0] sm:$0xff]
      %v3067 = vld [vmem:[%s7 + $0x8a8] sm:$0xff]
      %v3068 = vld [vmem:[%s7 + $0x8b0] sm:$0xff]
      %v3069 = vld [vmem:[%s7 + $0x8b8] sm:$0xff]
      %v3070 = vld [vmem:[%s7 + $0x8c0] sm:$0xff]
      %v3071 = vld [vmem:[%s7 + $0x8c8] sm:$0xff]
      %v3072 = vld [vmem:[%s7 + $0x8d0] sm:$0xff]
      %v3073 = vld [vmem:[%s7 + $0x8d8] sm:$0xff]
      %v3074 = vld [vmem:[%s7 + $0x8e0] sm:$0xff]
      %v3075 = vld [vmem:[%s7 + $0x8e8] sm:$0xff]
      %v3076 = vld [vmem:[%s7 + $0x8f0] sm:$0xff]
      %v3077 = vld [vmem:[%s7 + $0x8f8] sm:$0xff]
      %v3078 = vld [vmem:[%s7 + $0x900] sm:$0xff]
      %v3079 = vld [vmem:[%s7 + $0x908] sm:$0xff]
      %v3080 = vld [vmem:[%s7 + $0x910] sm:$0xff]
      %v3081 = vld [vmem:[%s7 + $0x918] sm:$0xff]
      %v3082 = vld [vmem:[%s7 + $0x920] sm:$0xff]
      %v3083 = vld [vmem:[%s7 + $0x928] sm:$0xff]
      %v3084 = vld [vmem:[%s7 + $0x930] sm:$0xff]
      %v3085 = vld [vmem:[%s7 + $0x938] sm:$0xff]
      %v3086 = vld [vmem:[%s7 + $0x940] sm:$0xff]
      %v3087 = vld [vmem:[%s7 + $0x948] sm:$0xff]
      %v3088 = vld [vmem:[%s7 + $0x950] sm:$0xff]
      %v3089 = vld [vmem:[%s7 + $0x958] sm:$0xff]
      %v3090 = vld [vmem:[%s7 + $0x960] sm:$0xff]
      %v3091 = vld [vmem:[%s7 + $0x968] sm:$0xff]
      %v3092 = vld [vmem:[%s7 + $0x970] sm:$0xff]
      %v3093 = vld [vmem:[%s7 + $0x978] sm:$0xff]
      %v3094 = vld [vmem:[%s7 + $0x980] sm:$0xff]
      %v3095 = vld [vmem:[%s7 + $0x988] sm:$0xff]
      %v3096 = vld [vmem:[%s7 + $0x990] sm:$0xff]
      %v3097 = vld [vmem:[%s7 + $0x998] sm:$0xff]
      %v3098 = vld [vmem:[%s7 + $0x9a0] sm:$0xff]
      %v3099 = vld [vmem:[%s7 + $0x9a8] sm:$0xff]
      %v3100 = vld [vmem:[%s7 + $0x9b0] sm:$0xff]
      %v3101 = vld [vmem:[%s7 + $0x9b8] sm:$0xff]
      %v3102 = vld [vmem:[%s7 + $0x9c0] sm:$0xff]
      %v3103 = vld [vmem:[%s7 + $0x9c8] sm:$0xff]
      %v3104 = vld [vmem:[%s7 + $0x9d0] sm:$0xff]
      %v3105 = vld [vmem:[%s7 + $0x9d8] sm:$0xff]
      %v3106 = vld [vmem:[%s7 + $0x9e0] sm:$0xff]
      %v3107 = vld [vmem:[%s7 + $0x9e8] sm:$0xff]
      %v3108 = vld [vmem:[%s7 + $0x9f0] sm:$0xff]
      %v3109 = vld [vmem:[%s7 + $0x9f8] sm:$0xff]
      %v3110 = vld [vmem:[%s7 + $0xa00] sm:$0xff]
      %v3111 = vld [vmem:[%s7 + $0xa08] sm:$0xff]
      %v3112 = vld [vmem:[%s7 + $0xa10] sm:$0xff]
      %v3113 = vld [vmem:[%s7 + $0xa18] sm:$0xff]
      %v3114 = vld [vmem:[%s7 + $0xa20] sm:$0xff]
      %v3115 = vld [vmem:[%s7 + $0xa28] sm:$0xff]
      %v3116 = vld [vmem:[%s7 + $0xa30] sm:$0xff]
      %v3117 = vld [vmem:[%s7 + $0xa38] sm:$0xff]
      %v3118 = vld [vmem:[%s7 + $0xa40] sm:$0xff]
      %v3119 = vld [vmem:[%s7 + $0xa48] sm:$0xff]
      %v3120 = vld [vmem:[%s7 + $0xa50] sm:$0xff]
      %v3121 = vld [vmem:[%s7 + $0xa58] sm:$0xff]
      %v3122 = vld [vmem:[%s7 + $0xa60] sm:$0xff]
      %v3123 = vld [vmem:[%s7 + $0xa68] sm:$0xff]
      %v3124 = vld [vmem:[%s7 + $0xa70] sm:$0xff]
      %v3125 = vld [vmem:[%s7 + $0xa78] sm:$0xff]
      %v3126 = vld [vmem:[%s7 + $0xa80] sm:$0xff]
      %v3127 = vld [vmem:[%s7 + $0xa88] sm:$0xff]
      %v3128 = vld [vmem:[%s7 + $0xa90] sm:$0xff]
      %v3129 = vld [vmem:[%s7 + $0xa98] sm:$0xff]
      %v3130 = vld [vmem:[%s7 + $0xaa0] sm:$0xff]
      %v3131 = vld [vmem:[%s7 + $0xaa8] sm:$0xff]
      %v3132 = vld [vmem:[%s7 + $0xab0] sm:$0xff]
      %v3133 = vld [vmem:[%s7 + $0xab8] sm:$0xff]
      %v3134 = vld [vmem:[%s7 + $0xac0] sm:$0xff]
      %v3135 = vld [vmem:[%s7 + $0xac8] sm:$0xff]
      %v3136 = vld [vmem:[%s7 + $0xad0] sm:$0xff]
      %v3137 = vld [vmem:[%s7 + $0xad8] sm:$0xff]
      %v3138 = vld [vmem:[%s7 + $0xae0] sm:$0xff]
      %v3139 = vld [vmem:[%s7 + $0xae8] sm:$0xff]
      %v3140 = vld [vmem:[%s7 + $0xaf0] sm:$0xff]
      %v3141 = vld [vmem:[%s7 + $0xaf8] sm:$0xff]
      %v3142 = vld [vmem:[%s7 + $0xb00] sm:$0xff]
      %v3143 = vld [vmem:[%s7 + $0xb08] sm:$0xff]
      %v3144 = vld [vmem:[%s7 + $0xb10] sm:$0xff]
      %v3145 = vld [vmem:[%s7 + $0xb18] sm:$0xff]
      %v3146 = vld [vmem:[%s7 + $0xb20] sm:$0xff]
      %v3147 = vld [vmem:[%s7 + $0xb28] sm:$0xff]
      %v3148 = vld [vmem:[%s7 + $0xb30] sm:$0xff]
      %v3149 = vld [vmem:[%s7 + $0xb38] sm:$0xff]
      %v3150 = vld [vmem:[%s7 + $0xb40] sm:$0xff]
      %v3151 = vld [vmem:[%s7 + $0xb48] sm:$0xff]
      %v3152 = vld [vmem:[%s7 + $0xb50] sm:$0xff]
      %v3153 = vld [vmem:[%s7 + $0xb58] sm:$0xff]
      %v3154 = vld [vmem:[%s7 + $0xb60] sm:$0xff]
      %v3155 = vld [vmem:[%s7 + $0xb68] sm:$0xff]
      %v3156 = vld [vmem:[%s7 + $0xb70] sm:$0xff]
      %v3157 = vld [vmem:[%s7 + $0xb78] sm:$0xff]
      %v3158 = vld [vmem:[%s7 + $0xb80] sm:$0xff]
      %v3159 = vld [vmem:[%s7 + $0xb88] sm:$0xff]
      %v3160 = vld [vmem:[%s7 + $0xb90] sm:$0xff]
      %v3161 = vld [vmem:[%s7 + $0xb98] sm:$0xff]
      %v3162 = vld [vmem:[%s7 + $0xba0] sm:$0xff]
      %v3163 = vld [vmem:[%s7 + $0xba8] sm:$0xff]
      %v3164 = vld [vmem:[%s7 + $0xbb0] sm:$0xff]
      %v3165 = vld [vmem:[%s7 + $0xbb8] sm:$0xff]
      %v3166 = vld [vmem:[%s7 + $0xbc0] sm:$0xff]
      %v3167 = vld [vmem:[%s7 + $0xbc8] sm:$0xff]
      %v3168 = vld [vmem:[%s7 + $0xbd0] sm:$0xff]
      %v3169 = vld [vmem:[%s7 + $0xbd8] sm:$0xff]
      %v3170 = vld [vmem:[%s7 + $0xbe0] sm:$0xff]
      %v3171 = vld [vmem:[%s7 + $0xbe8] sm:$0xff]
      %v3172 = vld [vmem:[%s7 + $0xbf0] sm:$0xff]
      %v3173 = vld [vmem:[%s7 + $0xbf8] sm:$0xff]
      %v3174 = vld [vmem:[%s7 + $0xc00] sm:$0xff]
      %v3175 = vld [vmem:[%s7 + $0xc08] sm:$0xff]
      %v3176 = vld [vmem:[%s7 + $0xc10] sm:$0xff]
      %v3177 = vld [vmem:[%s7 + $0xc18] sm:$0xff]
      %v3178 = vld [vmem:[%s7 + $0xc20] sm:$0xff]
      %v3179 = vld [vmem:[%s7 + $0xc28] sm:$0xff]
      %v3180 = vld [vmem:[%s7 + $0xc30] sm:$0xff]
      %v3181 = vld [vmem:[%s7 + $0xc38] sm:$0xff]
      %v3182 = vld [vmem:[%s7 + $0xc40] sm:$0xff]
      %v3183 = vld [vmem:[%s7 + $0xc48] sm:$0xff]
      %v3184 = vld [vmem:[%s7 + $0xc50] sm:$0xff]
      %v3185 = vld [vmem:[%s7 + $0xc58] sm:$0xff]
      %v3186 = vld [vmem:[%s7 + $0xc60] sm:$0xff]
      %v3187 = vld [vmem:[%s7 + $0xc68] sm:$0xff]
      %v3188 = vld [vmem:[%s7 + $0xc70] sm:$0xff]
      %v3189 = vld [vmem:[%s7 + $0xc78] sm:$0xff]
      %v3190 = vld [vmem:[%s7 + $0xc80] sm:$0xff]
      %v3191 = vld [vmem:[%s7 + $0xc88] sm:$0xff]
      %v3192 = vld [vmem:[%s7 + $0xc90] sm:$0xff]
      %v3193 = vld [vmem:[%s7 + $0xc98] sm:$0xff]
      %v3194 = vld [vmem:[%s7 + $0xca0] sm:$0xff]
      %v3195 = vld [vmem:[%s7 + $0xca8] sm:$0xff]
      %v3196 = vld [vmem:[%s7 + $0xcb0] sm:$0xff]
      %v3197 = vld [vmem:[%s7 + $0xcb8] sm:$0xff]
      %v3198 = vld [vmem:[%s7 + $0xcc0] sm:$0xff]
      %v3199 = vld [vmem:[%s7 + $0xcc8] sm:$0xff]
      %v3200 = vld [vmem:[%s7 + $0xcd0] sm:$0xff]
      %v3201 = vld [vmem:[%s7 + $0xcd8] sm:$0xff]
      %v3202 = vld [vmem:[%s7 + $0xce0] sm:$0xff]
      %v3203 = vld [vmem:[%s7 + $0xce8] sm:$0xff]
      %v3204 = vld [vmem:[%s7 + $0xcf0] sm:$0xff]
      %v3205 = vld [vmem:[%s7 + $0xcf8] sm:$0xff]
      %v3206 = vld [vmem:[%s7 + $0xd00] sm:$0xff]
      %v3207 = vld [vmem:[%s7 + $0xd08] sm:$0xff]
      %v3208 = vld [vmem:[%s7 + $0xd10] sm:$0xff]
      %v3209 = vld [vmem:[%s7 + $0xd18] sm:$0xff]
      %v3210 = vld [vmem:[%s7 + $0xd20] sm:$0xff]
      %v3211 = vld [vmem:[%s7 + $0xd28] sm:$0xff]
      %v3212 = vld [vmem:[%s7 + $0xd30] sm:$0xff]
      %v3213 = vld [vmem:[%s7 + $0xd38] sm:$0xff]
      %v3214 = vld [vmem:[%s7 + $0xd40] sm:$0xff]
      %v3215 = vld [vmem:[%s7 + $0xd48] sm:$0xff]
      %v3216 = vld [vmem:[%s7 + $0xd50] sm:$0xff]
      %v3217 = vld [vmem:[%s7 + $0xd58] sm:$0xff]
      %v3218 = vld [vmem:[%s7 + $0xd60] sm:$0xff]
      %v3219 = vld [vmem:[%s7 + $0xd68] sm:$0xff]
      %v3220 = vld [vmem:[%s7 + $0xd70] sm:$0xff]
      %v3221 = vld [vmem:[%s7 + $0xd78] sm:$0xff]
      %v3222 = vld [vmem:[%s7 + $0xd80] sm:$0xff]
      %v3223 = vld [vmem:[%s7 + $0xd88] sm:$0xff]
      %v3224 = vld [vmem:[%s7 + $0xd90] sm:$0xff]
      %v3225 = vld [vmem:[%s7 + $0xd98] sm:$0xff]
      %v3226 = vld [vmem:[%s7 + $0xda0] sm:$0xff]
      %v3227 = vld [vmem:[%s7 + $0xda8] sm:$0xff]
      %v3228 = vld [vmem:[%s7 + $0xdb0] sm:$0xff]
      %v3229 = vld [vmem:[%s7 + $0xdb8] sm:$0xff]
      %v3230 = vld [vmem:[%s7 + $0xdc0] sm:$0xff]
      %v3231 = vld [vmem:[%s7 + $0xdc8] sm:$0xff]
      %v3232 = vld [vmem:[%s7 + $0xdd0] sm:$0xff]
      %v3233 = vld [vmem:[%s7 + $0xdd8] sm:$0xff]
      %v3234 = vld [vmem:[%s7 + $0xde0] sm:$0xff]
      %v3235 = vld [vmem:[%s7 + $0xde8] sm:$0xff]
      %v3236 = vld [vmem:[%s7 + $0xdf0] sm:$0xff]
      %v3237 = vld [vmem:[%s7 + $0xdf8] sm:$0xff]
      %v3238 = vld [vmem:[%s7 + $0xe00] sm:$0xff]
      %v3239 = vld [vmem:[%s7 + $0xe08] sm:$0xff]
      %v3240 = vld [vmem:[%s7 + $0xe10] sm:$0xff]
      %v3241 = vld [vmem:[%s7 + $0xe18] sm:$0xff]
      %v3242 = vld [vmem:[%s7 + $0xe20] sm:$0xff]
      %v3243 = vld [vmem:[%s7 + $0xe28] sm:$0xff]
      %v3244 = vld [vmem:[%s7 + $0xe30] sm:$0xff]
      %v3245 = vld [vmem:[%s7 + $0xe38] sm:$0xff]
      %v3246 = vld [vmem:[%s7 + $0xe40] sm:$0xff]
      %v3247 = vld [vmem:[%s7 + $0xe48] sm:$0xff]
      %v3248 = vld [vmem:[%s7 + $0xe50] sm:$0xff]
      %v3249 = vld [vmem:[%s7 + $0xe58] sm:$0xff]
      %v3250 = vld [vmem:[%s7 + $0xe60] sm:$0xff]
      %v3251 = vld [vmem:[%s7 + $0xe68] sm:$0xff]
      %v3252 = vld [vmem:[%s7 + $0xe70] sm:$0xff]
      %v3253 = vld [vmem:[%s7 + $0xe78] sm:$0xff]
      %v3254 = vld [vmem:[%s7 + $0xe80] sm:$0xff]
      %v3255 = vld [vmem:[%s7 + $0xe88] sm:$0xff]
      %v3256 = vld [vmem:[%s7 + $0xe90] sm:$0xff]
      %v3257 = vld [vmem:[%s7 + $0xe98] sm:$0xff]
      %v3258 = vld [vmem:[%s7 + $0xea0] sm:$0xff]
      %v3259 = vld [vmem:[%s7 + $0xea8] sm:$0xff]
      %v3260 = vld [vmem:[%s7 + $0xeb0] sm:$0xff]
      %v3261 = vld [vmem:[%s7 + $0xeb8] sm:$0xff]
      %v3262 = vld [vmem:[%s7 + $0xec0] sm:$0xff]
      %v3263 = vld [vmem:[%s7 + $0xec8] sm:$0xff]
      %v3264 = vld [vmem:[%s7 + $0xed0] sm:$0xff]
      %v3265 = vld [vmem:[%s7 + $0xed8] sm:$0xff]
      %v3266 = vld [vmem:[%s7 + $0xee0] sm:$0xff]
      %v3267 = vld [vmem:[%s7 + $0xee8] sm:$0xff]
      %v3268 = vld [vmem:[%s7 + $0xef0] sm:$0xff]
      %v3269 = vld [vmem:[%s7 + $0xef8] sm:$0xff]
      %v3270 = vld [vmem:[%s7 + $0xf00] sm:$0xff]
      %v3271 = vld [vmem:[%s7 + $0xf08] sm:$0xff]
      %v3272 = vld [vmem:[%s7 + $0xf10] sm:$0xff]
      %v3273 = vld [vmem:[%s7 + $0xf18] sm:$0xff]
      %v3274 = vld [vmem:[%s7 + $0xf20] sm:$0xff]
      %v3275 = vld [vmem:[%s7 + $0xf28] sm:$0xff]
      %v3276 = vld [vmem:[%s7 + $0xf30] sm:$0xff]
      %v3277 = vld [vmem:[%s7 + $0xf38] sm:$0xff]
      %v3278 = vld [vmem:[%s7 + $0xf40] sm:$0xff]
      %v3279 = vld [vmem:[%s7 + $0xf48] sm:$0xff]
      %v3280 = vld [vmem:[%s7 + $0xf50] sm:$0xff]
      %v3281 = vld [vmem:[%s7 + $0xf58] sm:$0xff]
      %v3282 = vld [vmem:[%s7 + $0xf60] sm:$0xff]
      %v3283 = vld [vmem:[%s7 + $0xf68] sm:$0xff]
      %v3284 = vld [vmem:[%s7 + $0xf70] sm:$0xff]
      %v3285 = vld [vmem:[%s7 + $0xf78] sm:$0xff]
      %v3286 = vld [vmem:[%s7 + $0xf80] sm:$0xff]
      %v3287 = vld [vmem:[%s7 + $0xf88] sm:$0xff]
      %v3288 = vld [vmem:[%s7 + $0xf90] sm:$0xff]
      %v3289 = vld [vmem:[%s7 + $0xf98] sm:$0xff]
      %v3290 = vld [vmem:[%s7 + $0xfa0] sm:$0xff]
      %v3291 = vld [vmem:[%s7 + $0xfa8] sm:$0xff]
      %v3292 = vld [vmem:[%s7 + $0xfb0] sm:$0xff]
      %v3293 = vld [vmem:[%s7 + $0xfb8] sm:$0xff]
      %v3294 = vld [vmem:[%s7 + $0xfc0] sm:$0xff]
      %v3295 = vld [vmem:[%s7 + $0xfc8] sm:$0xff]
      %v3296 = vld [vmem:[%s7 + $0xfd0] sm:$0xff]
      %v3297 = vld [vmem:[%s7 + $0xfd8] sm:$0xff]
      %v3298 = vld [vmem:[%s7 + $0xfe0] sm:$0xff]
      %v3299 = vld [vmem:[%s7 + $0xfe8] sm:$0xff]
      %v3300 = vld [vmem:[%s7 + $0xff0] sm:$0xff]
      %v3301 = vld [vmem:[%s7 + $0xff8] sm:$0xff]
      %v3302 = vld [vmem:[%s7 + $0x1000] sm:$0xff]
      %v3303 = vld [vmem:[%s7 + $0x1008] sm:$0xff]
      %v3304 = vld [vmem:[%s7 + $0x1010] sm:$0xff]
      %v3305 = vld [vmem:[%s7 + $0x1018] sm:$0xff]
      %v3306 = vld [vmem:[%s7 + $0x1020] sm:$0xff]
      %v3307 = vld [vmem:[%s7 + $0x1028] sm:$0xff]
      %v3308 = vld [vmem:[%s7 + $0x1030] sm:$0xff]
      %v3309 = vld [vmem:[%s7 + $0x1038] sm:$0xff]
      %v3310 = vld [vmem:[%s7 + $0x1040] sm:$0xff]
      %v3311 = vld [vmem:[%s7 + $0x1048] sm:$0xff]
      %v3312 = vld [vmem:[%s7 + $0x1050] sm:$0xff]
      %v3313 = vld [vmem:[%s7 + $0x1058] sm:$0xff]
      %v3314 = vld [vmem:[%s7 + $0x1060] sm:$0xff]
      %v3315 = vld [vmem:[%s7 + $0x1068] sm:$0xff]
      %v3316 = vld [vmem:[%s7 + $0x1070] sm:$0xff]
      %v3317 = vld [vmem:[%s7 + $0x1078] sm:$0xff]
      %v3318 = vld [vmem:[%s7 + $0x1080] sm:$0xff]
      %v3319 = vld [vmem:[%s7 + $0x1088] sm:$0xff]
      %v3320 = vld [vmem:[%s7 + $0x1090] sm:$0xff]
      %v3321 = vld [vmem:[%s7 + $0x1098] sm:$0xff]
      %v3322 = vld [vmem:[%s7 + $0x10a0] sm:$0xff]
      %v3323 = vld [vmem:[%s7 + $0x10a8] sm:$0xff]
      %v3324 = vld [vmem:[%s7 + $0x10b0] sm:$0xff]
      %v3325 = vld [vmem:[%s7 + $0x10b8] sm:$0xff]
      %v3326 = vld [vmem:[%s7 + $0x10c0] sm:$0xff]
      %v3327 = vld [vmem:[%s7 + $0x10c8] sm:$0xff]
      %v3328 = vld [vmem:[%s7 + $0x10d0] sm:$0xff]
      %v3329 = vld [vmem:[%s7 + $0x10d8] sm:$0xff]
      %v3330 = vld [vmem:[%s7 + $0x10e0] sm:$0xff]
      %v3331 = vld [vmem:[%s7 + $0x10e8] sm:$0xff]
      %v3332 = vld [vmem:[%s7 + $0x10f0] sm:$0xff]
      %v3333 = vld [vmem:[%s7 + $0x10f8] sm:$0xff]
      %v3334 = vld [vmem:[%s7 + $0x1100] sm:$0xff]
      %v3335 = vld [vmem:[%s7 + $0x1108] sm:$0xff]
      %v3336 = vld [vmem:[%s7 + $0x1110] sm:$0xff]
      %v3337 = vld [vmem:[%s7 + $0x1118] sm:$0xff]
      %v3338 = vld [vmem:[%s7 + $0x1120] sm:$0xff]
      %v3339 = vld [vmem:[%s7 + $0x1128] sm:$0xff]
      %v3340 = vld [vmem:[%s7 + $0x1130] sm:$0xff]
      %v3341 = vld [vmem:[%s7 + $0x1138] sm:$0xff]
      %v3342 = vld [vmem:[%s7 + $0x1140] sm:$0xff]
      %v3343 = vld [vmem:[%s7 + $0x1148] sm:$0xff]
      %v3344 = vld [vmem:[%s7 + $0x1150] sm:$0xff]
      %v3345 = vld [vmem:[%s7 + $0x1158] sm:$0xff]
      %v3346 = vld [vmem:[%s7 + $0x1160] sm:$0xff]
      %v3347 = vld [vmem:[%s7 + $0x1168] sm:$0xff]
      %v3348 = vld [vmem:[%s7 + $0x1170] sm:$0xff]
      %v3349 = vld [vmem:[%s7 + $0x1178] sm:$0xff]
      %v3350 = vld [vmem:[%s7 + $0x1180] sm:$0xff]
      %v3351 = vld [vmem:[%s7 + $0x1188] sm:$0xff]
      %v3352 = vld [vmem:[%s7 + $0x1190] sm:$0xff]
      %v3353 = vld [vmem:[%s7 + $0x1198] sm:$0xff]
      %v3354 = vld [vmem:[%s7 + $0x11a0] sm:$0xff]
      %v3355 = vld [vmem:[%s7 + $0x11a8] sm:$0xff]
      %v3356 = vld [vmem:[%s7 + $0x11b0] sm:$0xff]
      %v3357 = vld [vmem:[%s7 + $0x11b8] sm:$0xff]
      %v3358 = vld [vmem:[%s7 + $0x11c0] sm:$0xff]
      %v3359 = vld [vmem:[%s7 + $0x11c8] sm:$0xff]
      %v3360 = vld [vmem:[%s7 + $0x11d0] sm:$0xff]
      %v3361 = vld [vmem:[%s7 + $0x11d8] sm:$0xff]
      %v3362 = vld [vmem:[%s7 + $0x11e0] sm:$0xff]
      %v3363 = vld [vmem:[%s7 + $0x11e8] sm:$0xff]
      %v3364 = vld [vmem:[%s7 + $0x11f0] sm:$0xff]
      %v3365 = vld [vmem:[%s7 + $0x11f8] sm:$0xff]
      %v3366 = vld [vmem:[%s7 + $0x1200] sm:$0xff]
      %v3367 = vld [vmem:[%s7 + $0x1208] sm:$0xff]
      %v3368 = vld [vmem:[%s7 + $0x1210] sm:$0xff]
      %v3369 = vld [vmem:[%s7 + $0x1218] sm:$0xff]
      %v3370 = vld [vmem:[%s7 + $0x1220] sm:$0xff]
      %v3371 = vld [vmem:[%s7 + $0x1228] sm:$0xff]
      %v3372 = vld [vmem:[%s7 + $0x1230] sm:$0xff]
      %v3373 = vld [vmem:[%s7 + $0x1238] sm:$0xff]
      %v3374 = vld [vmem:[%s7 + $0x1240] sm:$0xff]
      %v3375 = vld [vmem:[%s7 + $0x1248] sm:$0xff]
      %v3376 = vld [vmem:[%s7 + $0x1250] sm:$0xff]
      %v3377 = vld [vmem:[%s7 + $0x1258] sm:$0xff]
      %v3378 = vld [vmem:[%s7 + $0x1260] sm:$0xff]
      %v3379 = vld [vmem:[%s7 + $0x1268] sm:$0xff]
      %v3380 = vld [vmem:[%s7 + $0x1270] sm:$0xff]
      %v3381 = vld [vmem:[%s7 + $0x1278] sm:$0xff]
      %v3382 = vld [vmem:[%s7 + $0x1280] sm:$0xff]
      %v3383 = vld [vmem:[%s7 + $0x1288] sm:$0xff]
      %v3384 = vld [vmem:[%s7 + $0x1290] sm:$0xff]
      %v3385 = vld [vmem:[%s7 + $0x1298] sm:$0xff]
      %v3386 = vld [vmem:[%s7 + $0x12a0] sm:$0xff]
      %v3387 = vld [vmem:[%s7 + $0x12a8] sm:$0xff]
      %v3388 = vld [vmem:[%s7 + $0x12b0] sm:$0xff]
      %v3389 = vld [vmem:[%s7 + $0x12b8] sm:$0xff]
      %v3390 = vld [vmem:[%s7 + $0x12c0] sm:$0xff]
      %v3391 = vld [vmem:[%s7 + $0x12c8] sm:$0xff]
      %v3392 = vld [vmem:[%s7 + $0x12d0] sm:$0xff]
      %v3393 = vld [vmem:[%s7 + $0x12d8] sm:$0xff]
      %v3394 = vld [vmem:[%s7 + $0x12e0] sm:$0xff]
      %v3395 = vld [vmem:[%s7 + $0x12e8] sm:$0xff]
      %v3396 = vld [vmem:[%s7 + $0x12f0] sm:$0xff]
      %v3397 = vld [vmem:[%s7 + $0x12f8] sm:$0xff]
      %v3398 = vld [vmem:[%s7 + $0x1300] sm:$0xff]
      %v3399 = vld [vmem:[%s7 + $0x1308] sm:$0xff]
      %v3400 = vld [vmem:[%s7 + $0x1310] sm:$0xff]
      %v3401 = vld [vmem:[%s7 + $0x1318] sm:$0xff]
      %v3402 = vld [vmem:[%s7 + $0x1320] sm:$0xff]
      %v3403 = vld [vmem:[%s7 + $0x1328] sm:$0xff]
      %v3404 = vld [vmem:[%s7 + $0x1330] sm:$0xff]
      %v3405 = vld [vmem:[%s7 + $0x1338] sm:$0xff]
      %v3406 = vld [vmem:[%s7 + $0x1340] sm:$0xff]
      %v3407 = vld [vmem:[%s7 + $0x1348] sm:$0xff]
      %v3408 = vld [vmem:[%s7 + $0x1350] sm:$0xff]
      %v3409 = vld [vmem:[%s7 + $0x1358] sm:$0xff]
      %v3410 = vld [vmem:[%s7 + $0x1360] sm:$0xff]
      %v3411 = vld [vmem:[%s7 + $0x1368] sm:$0xff]
      %v3412 = vld [vmem:[%s7 + $0x1370] sm:$0xff]
      %v3413 = vld [vmem:[%s7 + $0x1378] sm:$0xff]
      %v3414 = vld [vmem:[%s7 + $0x1380] sm:$0xff]
      %v3415 = vld [vmem:[%s7 + $0x1388] sm:$0xff]
      %v3416 = vld [vmem:[%s7 + $0x1390] sm:$0xff]
      %v3417 = vld [vmem:[%s7 + $0x1398] sm:$0xff]
      %v3418 = vld [vmem:[%s7 + $0x13a0] sm:$0xff]
      %v3419 = vld [vmem:[%s7 + $0x13a8] sm:$0xff]
      %v3420 = vld [vmem:[%s7 + $0x13b0] sm:$0xff]
      %v3421 = vld [vmem:[%s7 + $0x13b8] sm:$0xff]
      %v3422 = vld [vmem:[%s7 + $0x13c0] sm:$0xff]
      %v3423 = vld [vmem:[%s7 + $0x13c8] sm:$0xff]
      %v3424 = vld [vmem:[%s7 + $0x13d0] sm:$0xff]
      %v3425 = vld [vmem:[%s7 + $0x13d8] sm:$0xff]
      %v3426 = vld [vmem:[%s7 + $0x13e0] sm:$0xff]
      %v3427 = vld [vmem:[%s7 + $0x13e8] sm:$0xff]
      %v3428 = vld [vmem:[%s7 + $0x13f0] sm:$0xff]
      %v3429 = vld [vmem:[%s7 + $0x13f8] sm:$0xff]
      %v3430 = vld [vmem:[%s7 + $0x1400] sm:$0xff]
      %v3431 = vld [vmem:[%s7 + $0x1408] sm:$0xff]
      %v3432 = vld [vmem:[%s7 + $0x1410] sm:$0xff]
      %v3433 = vld [vmem:[%s7 + $0x1418] sm:$0xff]
      %v3434 = vld [vmem:[%s7 + $0x1420] sm:$0xff]
      %v3435 = vld [vmem:[%s7 + $0x1428] sm:$0xff]
      %v3436 = vld [vmem:[%s7 + $0x1430] sm:$0xff]
      %v3437 = vld [vmem:[%s7 + $0x1438] sm:$0xff]
      %v3438 = vld [vmem:[%s7 + $0x1440] sm:$0xff]
      %v3439 = vld [vmem:[%s7 + $0x1448] sm:$0xff]
      %v3440 = vld [vmem:[%s7 + $0x1450] sm:$0xff]
      %v3441 = vld [vmem:[%s7 + $0x1458] sm:$0xff]
      %v3442 = vld [vmem:[%s7 + $0x1460] sm:$0xff]
      %v3443 = vld [vmem:[%s7 + $0x1468] sm:$0xff]
      %v3444 = vld [vmem:[%s7 + $0x1470] sm:$0xff]
      %v3445 = vld [vmem:[%s7 + $0x1478] sm:$0xff]
      %v3446 = vld [vmem:[%s7 + $0x1480] sm:$0xff]
      %v3447 = vld [vmem:[%s7 + $0x1488] sm:$0xff]
      %v3448 = vld [vmem:[%s7 + $0x1490] sm:$0xff]
      %v3449 = vld [vmem:[%s7 + $0x1498] sm:$0xff]
      %v3450 = vld [vmem:[%s7 + $0x14a0] sm:$0xff]
      %v3451 = vld [vmem:[%s7 + $0x14a8] sm:$0xff]
      %v3452 = vld [vmem:[%s7 + $0x14b0] sm:$0xff]
      %v3453 = vld [vmem:[%s7 + $0x14b8] sm:$0xff]
      %v3454 = vld [vmem:[%s7 + $0x14c0] sm:$0xff]
      %v3455 = vld [vmem:[%s7 + $0x14c8] sm:$0xff]
      %v3456 = vld [vmem:[%s7 + $0x14d0] sm:$0xff]
      %v3457 = vld [vmem:[%s7 + $0x14d8] sm:$0xff]
      %v3458 = vld [vmem:[%s7 + $0x14e0] sm:$0xff]
      %v3459 = vld [vmem:[%s7 + $0x14e8] sm:$0xff]
      %v3460 = vld [vmem:[%s7 + $0x14f0] sm:$0xff]
      %v3461 = vld [vmem:[%s7 + $0x14f8] sm:$0xff]
      %v3462 = vld [vmem:[%s7 + $0x1500] sm:$0xff]
      %v3463 = vld [vmem:[%s7 + $0x1508] sm:$0xff]
      %v3464 = vld [vmem:[%s7 + $0x1510] sm:$0xff]
      %v3465 = vld [vmem:[%s7 + $0x1518] sm:$0xff]
      %v3466 = vld [vmem:[%s7 + $0x1520] sm:$0xff]
      %v3467 = vld [vmem:[%s7 + $0x1528] sm:$0xff]
      %v3468 = vld [vmem:[%s7 + $0x1530] sm:$0xff]
      %v3469 = vld [vmem:[%s7 + $0x1538] sm:$0xff]
      %v3470 = vld [vmem:[%s7 + $0x1540] sm:$0xff]
      %v3471 = vld [vmem:[%s7 + $0x1548] sm:$0xff]
      %v3472 = vld [vmem:[%s7 + $0x1550] sm:$0xff]
      %v3473 = vld [vmem:[%s7 + $0x1558] sm:$0xff]
      %v3474 = vld [vmem:[%s7 + $0x1560] sm:$0xff]
      %v3475 = vld [vmem:[%s7 + $0x1568] sm:$0xff]
      %v3476 = vld [vmem:[%s7 + $0x1570] sm:$0xff]
      %v3477 = vld [vmem:[%s7 + $0x1578] sm:$0xff]
      %v3478 = vld [vmem:[%s7 + $0x1580] sm:$0xff]
      %v3479 = vld [vmem:[%s7 + $0x1588] sm:$0xff]
      %v3480 = vld [vmem:[%s7 + $0x1590] sm:$0xff]
      %v3481 = vld [vmem:[%s7 + $0x1598] sm:$0xff]
      %v3482 = vld [vmem:[%s7 + $0x15a0] sm:$0xff]
      %v3483 = vld [vmem:[%s7 + $0x15a8] sm:$0xff]
      %v3484 = vld [vmem:[%s7 + $0x15b0] sm:$0xff]
      %v3485 = vld [vmem:[%s7 + $0x15b8] sm:$0xff]
      %v3486 = vld [vmem:[%s7 + $0x15c0] sm:$0xff]
      %v3487 = vld [vmem:[%s7 + $0x15c8] sm:$0xff]
      %v3488 = vld [vmem:[%s7 + $0x15d0] sm:$0xff]
      %v3489 = vld [vmem:[%s7 + $0x15d8] sm:$0xff]
      %v3490 = vld [vmem:[%s7 + $0x15e0] sm:$0xff]
      %v3491 = vld [vmem:[%s7 + $0x15e8] sm:$0xff]
      %v3492 = vld [vmem:[%s7 + $0x15f0] sm:$0xff]
      %v3493 = vld [vmem:[%s7 + $0x15f8] sm:$0xff]
      %v3494 = vld [vmem:[%s7 + $0x1600] sm:$0xff]
      %v3495 = vld [vmem:[%s7 + $0x1608] sm:$0xff]
      %v3496 = vld [vmem:[%s7 + $0x1610] sm:$0xff]
      %v3497 = vld [vmem:[%s7 + $0x1618] sm:$0xff]
      %v3498 = vld [vmem:[%s7 + $0x1620] sm:$0xff]
      %v3499 = vld [vmem:[%s7 + $0x1628] sm:$0xff]
      %v3500 = vld [vmem:[%s7 + $0x1630] sm:$0xff]
      %v3501 = vld [vmem:[%s7 + $0x1638] sm:$0xff]
      %v3502 = vld [vmem:[%s7 + $0x1640] sm:$0xff]
      %v3503 = vld [vmem:[%s7 + $0x1648] sm:$0xff]
      %v3504 = vld [vmem:[%s7 + $0x1650] sm:$0xff]
      %v3505 = vld [vmem:[%s7 + $0x1658] sm:$0xff]
      %v3506 = vld [vmem:[%s7 + $0x1660] sm:$0xff]
      %v3507 = vld [vmem:[%s7 + $0x1668] sm:$0xff]
      %v3508 = vld [vmem:[%s7 + $0x1670] sm:$0xff]
      %v3509 = vld [vmem:[%s7 + $0x1678] sm:$0xff]
      %v3510 = vld [vmem:[%s7 + $0x1680] sm:$0xff]
      %v3511 = vld [vmem:[%s7 + $0x1688] sm:$0xff]
      %v3512 = vld [vmem:[%s7 + $0x1690] sm:$0xff]
      %v3513 = vld [vmem:[%s7 + $0x1698] sm:$0xff]
      %v3514 = vld [vmem:[%s7 + $0x16a0] sm:$0xff]
      %v3515 = vld [vmem:[%s7 + $0x16a8] sm:$0xff]
      %v3516 = vld [vmem:[%s7 + $0x16b0] sm:$0xff]
      %v3517 = vld [vmem:[%s7 + $0x16b8] sm:$0xff]
      %v3518 = vld [vmem:[%s7 + $0x16c0] sm:$0xff]
      %v3519 = vld [vmem:[%s7 + $0x16c8] sm:$0xff]
      %v3520 = vld [vmem:[%s7 + $0x16d0] sm:$0xff]
      %v3521 = vld [vmem:[%s7 + $0x16d8] sm:$0xff]
      %v3522 = vld [vmem:[%s7 + $0x16e0] sm:$0xff]
      %v3523 = vld [vmem:[%s7 + $0x16e8] sm:$0xff]
      %v3524 = vld [vmem:[%s7 + $0x16f0] sm:$0xff]
      %v3525 = vld [vmem:[%s7 + $0x16f8] sm:$0xff]
      %v3526 = vld [vmem:[%s7 + $0x1700] sm:$0xff]
      %v3527 = vld [vmem:[%s7 + $0x1708] sm:$0xff]
      %v3528 = vld [vmem:[%s7 + $0x1710] sm:$0xff]
      %v3529 = vld [vmem:[%s7 + $0x1718] sm:$0xff]
      %v3530 = vld [vmem:[%s7 + $0x1720] sm:$0xff]
      %v3531 = vld [vmem:[%s7 + $0x1728] sm:$0xff]
      %v3532 = vld [vmem:[%s7 + $0x1730] sm:$0xff]
      %v3533 = vld [vmem:[%s7 + $0x1738] sm:$0xff]
      %v3534 = vld [vmem:[%s7 + $0x1740] sm:$0xff]
      %v3535 = vld [vmem:[%s7 + $0x1748] sm:$0xff]
      %v3536 = vld [vmem:[%s7 + $0x1750] sm:$0xff]
      %v3537 = vld [vmem:[%s7 + $0x1758] sm:$0xff]
      %v3538 = vld [vmem:[%s7 + $0x1760] sm:$0xff]
      %v3539 = vld [vmem:[%s7 + $0x1768] sm:$0xff]
      %v3540 = vld [vmem:[%s7 + $0x1770] sm:$0xff]
      %v3541 = vld [vmem:[%s7 + $0x1778] sm:$0xff]
      %v3542 = vld [vmem:[%s7 + $0x1780] sm:$0xff]
      %v3543 = vld [vmem:[%s7 + $0x1788] sm:$0xff]
      %v3544 = vld [vmem:[%s7 + $0x1790] sm:$0xff]
      %v3545 = vld [vmem:[%s7 + $0x1798] sm:$0xff]
      %v3546 = vld [vmem:[%s7 + $0x17a0] sm:$0xff]
      %v3547 = vld [vmem:[%s7 + $0x17a8] sm:$0xff]
      %v3548 = vld [vmem:[%s7 + $0x17b0] sm:$0xff]
      %v3549 = vld [vmem:[%s7 + $0x17b8] sm:$0xff]
      %v3550 = vld [vmem:[%s7 + $0x17c0] sm:$0xff]
      %v3551 = vld [vmem:[%s7 + $0x17c8] sm:$0xff]
      %v3552 = vld [vmem:[%s7 + $0x17d0] sm:$0xff]
      %v3553 = vld [vmem:[%s7 + $0x17d8] sm:$0xff]
      %v3554 = vld [vmem:[%s7 + $0x17e0] sm:$0xff]
      %v3555 = vld [vmem:[%s7 + $0x17e8] sm:$0xff]
      %v3556 = vld [vmem:[%s7 + $0x17f0] sm:$0xff]
      %v3557 = vld [vmem:[%s7 + $0x17f8] sm:$0xff]
      %v3558 = vld [vmem:[%s7 + $0x1800] sm:$0xff]
      %v3559 = vld [vmem:[%s7 + $0x1808] sm:$0xff]
      %v3560 = vld [vmem:[%s7 + $0x1810] sm:$0xff]
      %v3561 = vld [vmem:[%s7 + $0x1818] sm:$0xff]
      %v3562 = vld [vmem:[%s7 + $0x1820] sm:$0xff]
      %v3563 = vld [vmem:[%s7 + $0x1828] sm:$0xff]
      %v3564 = vld [vmem:[%s7 + $0x1830] sm:$0xff]
      %v3565 = vld [vmem:[%s7 + $0x1838] sm:$0xff]
      %v3566 = vld [vmem:[%s7 + $0x1840] sm:$0xff]
      %v3567 = vld [vmem:[%s7 + $0x1848] sm:$0xff]
      %v3568 = vld [vmem:[%s7 + $0x1850] sm:$0xff]
      %v3569 = vld [vmem:[%s7 + $0x1858] sm:$0xff]
      %v3570 = vld [vmem:[%s7 + $0x1860] sm:$0xff]
      %v3571 = vld [vmem:[%s7 + $0x1868] sm:$0xff]
      %v3572 = vld [vmem:[%s7 + $0x1870] sm:$0xff]
      %v3573 = vld [vmem:[%s7 + $0x1878] sm:$0xff]
      %v3574 = vld [vmem:[%s7 + $0x1880] sm:$0xff]
      %v3575 = vld [vmem:[%s7 + $0x1888] sm:$0xff]
      %v3576 = vld [vmem:[%s7 + $0x1890] sm:$0xff]
      %v3577 = vld [vmem:[%s7 + $0x1898] sm:$0xff]
      %v3578 = vld [vmem:[%s7 + $0x18a0] sm:$0xff]
      %v3579 = vld [vmem:[%s7 + $0x18a8] sm:$0xff]
      %v3580 = vld [vmem:[%s7 + $0x18b0] sm:$0xff]
      %v3581 = vld [vmem:[%s7 + $0x18b8] sm:$0xff]
      %v3582 = vld [vmem:[%s7 + $0x18c0] sm:$0xff]
      %v3583 = vld [vmem:[%s7 + $0x18c8] sm:$0xff]
      %v3584 = vld [vmem:[%s7 + $0x18d0] sm:$0xff]
      %v3585 = vld [vmem:[%s7 + $0x18d8] sm:$0xff]
      %v3586 = vld [vmem:[%s7 + $0x18e0] sm:$0xff]
      %v3587 = vld [vmem:[%s7 + $0x18e8] sm:$0xff]
      %v3588 = vld [vmem:[%s7 + $0x18f0] sm:$0xff]
      %v3589 = vld [vmem:[%s7 + $0x18f8] sm:$0xff]
      %v3590 = vld [vmem:[%s7 + $0x1900] sm:$0xff]
      %v3591 = vld [vmem:[%s7 + $0x1908] sm:$0xff]
      %v3592 = vld [vmem:[%s7 + $0x1910] sm:$0xff]
      %v3593 = vld [vmem:[%s7 + $0x1918] sm:$0xff]
      %v3594 = vld [vmem:[%s7 + $0x1920] sm:$0xff]
      %v3595 = vld [vmem:[%s7 + $0x1928] sm:$0xff]
      %v3596 = vld [vmem:[%s7 + $0x1930] sm:$0xff]
      %v3597 = vld [vmem:[%s7 + $0x1938] sm:$0xff]
      %v3598 = vld [vmem:[%s7 + $0x1940] sm:$0xff]
      %v3599 = vld [vmem:[%s7 + $0x1948] sm:$0xff]
      %v3600 = vld [vmem:[%s7 + $0x1950] sm:$0xff]
      %v3601 = vld [vmem:[%s7 + $0x1958] sm:$0xff]
      %v3602 = vld [vmem:[%s7 + $0x1960] sm:$0xff]
      %v3603 = vld [vmem:[%s7 + $0x1968] sm:$0xff]
      %v3604 = vld [vmem:[%s7 + $0x1970] sm:$0xff]
      %v3605 = vld [vmem:[%s7 + $0x1978] sm:$0xff]
      %v3606 = vld [vmem:[%s7 + $0x1980] sm:$0xff]
      %v3607 = vld [vmem:[%s7 + $0x1988] sm:$0xff]
      %v3608 = vld [vmem:[%s7 + $0x1990] sm:$0xff]
      %v3609 = vld [vmem:[%s7 + $0x1998] sm:$0xff]
      %v3610 = vld [vmem:[%s7 + $0x19a0] sm:$0xff]
      %v3611 = vld [vmem:[%s7 + $0x19a8] sm:$0xff]
      %v3612 = vld [vmem:[%s7 + $0x19b0] sm:$0xff]
      %v3613 = vld [vmem:[%s7 + $0x19b8] sm:$0xff]
      %v3614 = vld [vmem:[%s7 + $0x19c0] sm:$0xff]
      %v3615 = vld [vmem:[%s7 + $0x19c8] sm:$0xff]
      %v3616 = vld [vmem:[%s7 + $0x19d0] sm:$0xff]
      %v3617 = vld [vmem:[%s7 + $0x19d8] sm:$0xff]
      %v3618 = vld [vmem:[%s7 + $0x19e0] sm:$0xff]
      %v3619 = vld [vmem:[%s7 + $0x19e8] sm:$0xff]
      %v3620 = vld [vmem:[%s7 + $0x19f0] sm:$0xff]
      %v3621 = vld [vmem:[%s7 + $0x19f8] sm:$0xff]
      %v3622 = vld [vmem:[%s7 + $0x1a00] sm:$0xff]
      %v3623 = vld [vmem:[%s7 + $0x1a08] sm:$0xff]
      %v3624 = vld [vmem:[%s7 + $0x1a10] sm:$0xff]
      %v3625 = vld [vmem:[%s7 + $0x1a18] sm:$0xff]
      %v3626 = vld [vmem:[%s7 + $0x1a20] sm:$0xff]
      %v3627 = vld [vmem:[%s7 + $0x1a28] sm:$0xff]
      %v3628 = vld [vmem:[%s7 + $0x1a30] sm:$0xff]
      %v3629 = vld [vmem:[%s7 + $0x1a38] sm:$0xff]
      %v3630 = vld [vmem:[%s7 + $0x1a40] sm:$0xff]
      %v3631 = vld [vmem:[%s7 + $0x1a48] sm:$0xff]
      %v3632 = vld [vmem:[%s7 + $0x1a50] sm:$0xff]
      %v3633 = vld [vmem:[%s7 + $0x1a58] sm:$0xff]
      %v3634 = vld [vmem:[%s7 + $0x1a60] sm:$0xff]
      %v3635 = vld [vmem:[%s7 + $0x1a68] sm:$0xff]
      %v3636 = vld [vmem:[%s7 + $0x1a70] sm:$0xff]
      %v3637 = vld [vmem:[%s7 + $0x1a78] sm:$0xff]
      %v3638 = vld [vmem:[%s7 + $0x1a80] sm:$0xff]
      %v3639 = vld [vmem:[%s7 + $0x1a88] sm:$0xff]
      %v3640 = vld [vmem:[%s7 + $0x1a90] sm:$0xff]
      %v3641 = vld [vmem:[%s7 + $0x1a98] sm:$0xff]
      %v3642 = vld [vmem:[%s7 + $0x1aa0] sm:$0xff]
      %v3643 = vld [vmem:[%s7 + $0x1aa8] sm:$0xff]
      %v3644 = vld [vmem:[%s7 + $0x1ab0] sm:$0xff]
      %v3645 = vld [vmem:[%s7 + $0x1ab8] sm:$0xff]
      %v3646 = vld [vmem:[%s7 + $0x1ac0] sm:$0xff]
      %v3647 = vld [vmem:[%s7 + $0x1ac8] sm:$0xff]
      %v3648 = vld [vmem:[%s7 + $0x1ad0] sm:$0xff]
      %v3649 = vld [vmem:[%s7 + $0x1ad8] sm:$0xff]
      %v3650 = vld [vmem:[%s7 + $0x1ae0] sm:$0xff]
      %v3651 = vld [vmem:[%s7 + $0x1ae8] sm:$0xff]
      %v3652 = vld [vmem:[%s7 + $0x1af0] sm:$0xff]
      %v3653 = vld [vmem:[%s7 + $0x1af8] sm:$0xff]
      %v3654 = vld [vmem:[%s7 + $0x1b00] sm:$0xff]
      %v3655 = vld [vmem:[%s7 + $0x1b08] sm:$0xff]
      %v3656 = vld [vmem:[%s7 + $0x1b10] sm:$0xff]
      %v3657 = vld [vmem:[%s7 + $0x1b18] sm:$0xff]
      %v3658 = vld [vmem:[%s7 + $0x1b20] sm:$0xff]
      %v3659 = vld [vmem:[%s7 + $0x1b28] sm:$0xff]
      %v3660 = vld [vmem:[%s7 + $0x1b30] sm:$0xff]
      %v3661 = vld [vmem:[%s7 + $0x1b38] sm:$0xff]
      %v3662 = vld [vmem:[%s7 + $0x1b40] sm:$0xff]
      %v3663 = vld [vmem:[%s7 + $0x1b48] sm:$0xff]
      %v3664 = vld [vmem:[%s7 + $0x1b50] sm:$0xff]
      %v3665 = vld [vmem:[%s7 + $0x1b58] sm:$0xff]
      %v3666 = vld [vmem:[%s7 + $0x1b60] sm:$0xff]
      %v3667 = vld [vmem:[%s7 + $0x1b68] sm:$0xff]
      %v3668 = vld [vmem:[%s7 + $0x1b70] sm:$0xff]
      %v3669 = vld [vmem:[%s7 + $0x1b78] sm:$0xff]
      %v3670 = vld [vmem:[%s7 + $0x1b80] sm:$0xff]
      %v3671 = vld [vmem:[%s7 + $0x1b88] sm:$0xff]
      %v3672 = vld [vmem:[%s7 + $0x1b90] sm:$0xff]
      %v3673 = vld [vmem:[%s7 + $0x1b98] sm:$0xff]
      %v3674 = vld [vmem:[%s7 + $0x1ba0] sm:$0xff]
      %v3675 = vld [vmem:[%s7 + $0x1ba8] sm:$0xff]
      %v3676 = vld [vmem:[%s7 + $0x1bb0] sm:$0xff]
      %v3677 = vld [vmem:[%s7 + $0x1bb8] sm:$0xff]
      %v3678 = vld [vmem:[%s7 + $0x1bc0] sm:$0xff]
      %v3679 = vld [vmem:[%s7 + $0x1bc8] sm:$0xff]
      %v3680 = vld [vmem:[%s7 + $0x1bd0] sm:$0xff]
      %v3681 = vld [vmem:[%s7 + $0x1bd8] sm:$0xff]
      %v3682 = vld [vmem:[%s7 + $0x1be0] sm:$0xff]
      %v3683 = vld [vmem:[%s7 + $0x1be8] sm:$0xff]
      %v3684 = vld [vmem:[%s7 + $0x1bf0] sm:$0xff]
      %v3685 = vld [vmem:[%s7 + $0x1bf8] sm:$0xff]
      %v3686 = vld [vmem:[%s7 + $0x1c00] sm:$0xff]
      %v3687 = vld [vmem:[%s7 + $0x1c08] sm:$0xff]
      %v3688 = vld [vmem:[%s7 + $0x1c10] sm:$0xff]
      %v3689 = vld [vmem:[%s7 + $0x1c18] sm:$0xff]
      %v3690 = vld [vmem:[%s7 + $0x1c20] sm:$0xff]
      %v3691 = vld [vmem:[%s7 + $0x1c28] sm:$0xff]
      %v3692 = vld [vmem:[%s7 + $0x1c30] sm:$0xff]
      %v3693 = vld [vmem:[%s7 + $0x1c38] sm:$0xff]
      %v3694 = vld [vmem:[%s7 + $0x1c40] sm:$0xff]
      %v3695 = vld [vmem:[%s7 + $0x1c48] sm:$0xff]
      %v3696 = vld [vmem:[%s7 + $0x1c50] sm:$0xff]
      %v3697 = vld [vmem:[%s7 + $0x1c58] sm:$0xff]
      %v3698 = vld [vmem:[%s7 + $0x1c60] sm:$0xff]
      %v3699 = vld [vmem:[%s7 + $0x1c68] sm:$0xff]
      %v3700 = vld [vmem:[%s7 + $0x1c70] sm:$0xff]
      %v3701 = vld [vmem:[%s7 + $0x1c78] sm:$0xff]
      %v3702 = vld [vmem:[%s7 + $0x1c80] sm:$0xff]
      %v3703 = vld [vmem:[%s7 + $0x1c88] sm:$0xff]
      %v3704 = vld [vmem:[%s7 + $0x1c90] sm:$0xff]
      %v3705 = vld [vmem:[%s7 + $0x1c98] sm:$0xff]
      %v3706 = vld [vmem:[%s7 + $0x1ca0] sm:$0xff]
      %v3707 = vld [vmem:[%s7 + $0x1ca8] sm:$0xff]
      %v3708 = vld [vmem:[%s7 + $0x1cb0] sm:$0xff]
      %v3709 = vld [vmem:[%s7 + $0x1cb8] sm:$0xff]
      %v3710 = vld [vmem:[%s7 + $0x1cc0] sm:$0xff]
      %v3711 = vld [vmem:[%s7 + $0x1cc8] sm:$0xff]
      %v3712 = vld [vmem:[%s7 + $0x1cd0] sm:$0xff]
      %v3713 = vld [vmem:[%s7 + $0x1cd8] sm:$0xff]
      %v3714 = vld [vmem:[%s7 + $0x1ce0] sm:$0xff]
      %v3715 = vld [vmem:[%s7 + $0x1ce8] sm:$0xff]
      %v3716 = vld [vmem:[%s7 + $0x1cf0] sm:$0xff]
      %v3717 = vld [vmem:[%s7 + $0x1cf8] sm:$0xff]
      %v3718 = vld [vmem:[%s7 + $0x1d00] sm:$0xff]
      %v3719 = vld [vmem:[%s7 + $0x1d08] sm:$0xff]
      %v3720 = vld [vmem:[%s7 + $0x1d10] sm:$0xff]
      %v3721 = vld [vmem:[%s7 + $0x1d18] sm:$0xff]
      %v3722 = vld [vmem:[%s7 + $0x1d20] sm:$0xff]
      %v3723 = vld [vmem:[%s7 + $0x1d28] sm:$0xff]
      %v3724 = vld [vmem:[%s7 + $0x1d30] sm:$0xff]
      %v3725 = vld [vmem:[%s7 + $0x1d38] sm:$0xff]
      %v3726 = vld [vmem:[%s7 + $0x1d40] sm:$0xff]
      %v3727 = vld [vmem:[%s7 + $0x1d48] sm:$0xff]
      %v3728 = vld [vmem:[%s7 + $0x1d50] sm:$0xff]
      %v3729 = vld [vmem:[%s7 + $0x1d58] sm:$0xff]
      %v3730 = vld [vmem:[%s7 + $0x1d60] sm:$0xff]
      %v3731 = vld [vmem:[%s7 + $0x1d68] sm:$0xff]
      %v3732 = vld [vmem:[%s7 + $0x1d70] sm:$0xff]
      %v3733 = vld [vmem:[%s7 + $0x1d78] sm:$0xff]
      %v3734 = vld [vmem:[%s7 + $0x1d80] sm:$0xff]
      %v3735 = vld [vmem:[%s7 + $0x1d88] sm:$0xff]
      %v3736 = vld [vmem:[%s7 + $0x1d90] sm:$0xff]
      %v3737 = vld [vmem:[%s7 + $0x1d98] sm:$0xff]
      %v3738 = vld [vmem:[%s7 + $0x1da0] sm:$0xff]
      %v3739 = vld [vmem:[%s7 + $0x1da8] sm:$0xff]
      %v3740 = vld [vmem:[%s7 + $0x1db0] sm:$0xff]
      %v3741 = vld [vmem:[%s7 + $0x1db8] sm:$0xff]
      %v3742 = vld [vmem:[%s7 + $0x1dc0] sm:$0xff]
      %v3743 = vld [vmem:[%s7 + $0x1dc8] sm:$0xff]
      %v3744 = vld [vmem:[%s7 + $0x1dd0] sm:$0xff]
      %v3745 = vld [vmem:[%s7 + $0x1dd8] sm:$0xff]
      %v3746 = vld [vmem:[%s7 + $0x1de0] sm:$0xff]
      %v3747 = vld [vmem:[%s7 + $0x1de8] sm:$0xff]
      %v3748 = vld [vmem:[%s7 + $0x1df0] sm:$0xff]
      %v3749 = vld [vmem:[%s7 + $0x1df8] sm:$0xff]
      %v3750 = vld [vmem:[%s7 + $0x1e00] sm:$0xff]
      %v3751 = vld [vmem:[%s7 + $0x1e08] sm:$0xff]
      %v3752 = vld [vmem:[%s7 + $0x1e10] sm:$0xff]
      %v3753 = vld [vmem:[%s7 + $0x1e18] sm:$0xff]
      %v3754 = vld [vmem:[%s7 + $0x1e20] sm:$0xff]
      %v3755 = vld [vmem:[%s7 + $0x1e28] sm:$0xff]
      %v3756 = vld [vmem:[%s7 + $0x1e30] sm:$0xff]
      %v3757 = vld [vmem:[%s7 + $0x1e38] sm:$0xff]
      %v3758 = vld [vmem:[%s7 + $0x1e40] sm:$0xff]
      %v3759 = vld [vmem:[%s7 + $0x1e48] sm:$0xff]
      %v3760 = vld [vmem:[%s7 + $0x1e50] sm:$0xff]
      %v3761 = vld [vmem:[%s7 + $0x1e58] sm:$0xff]
      %v3762 = vld [vmem:[%s7 + $0x1e60] sm:$0xff]
      %v3763 = vld [vmem:[%s7 + $0x1e68] sm:$0xff]
      %v3764 = vld [vmem:[%s7 + $0x1e70] sm:$0xff]
      %v3765 = vld [vmem:[%s7 + $0x1e78] sm:$0xff]
      %v3766 = vld [vmem:[%s7 + $0x1e80] sm:$0xff]
      %v3767 = vld [vmem:[%s7 + $0x1e88] sm:$0xff]
      %v3768 = vld [vmem:[%s7 + $0x1e90] sm:$0xff]
      %v3769 = vld [vmem:[%s7 + $0x1e98] sm:$0xff]
      %v3770 = vld [vmem:[%s7 + $0x1ea0] sm:$0xff]
      %v3771 = vld [vmem:[%s7 + $0x1ea8] sm:$0xff]
      %v3772 = vld [vmem:[%s7 + $0x1eb0] sm:$0xff]
      %v3773 = vld [vmem:[%s7 + $0x1eb8] sm:$0xff]
      %v3774 = vld [vmem:[%s7 + $0x1ec0] sm:$0xff]
      %v3775 = vld [vmem:[%s7 + $0x1ec8] sm:$0xff]
      %v3776 = vld [vmem:[%s7 + $0x1ed0] sm:$0xff]
      %v3777 = vld [vmem:[%s7 + $0x1ed8] sm:$0xff]
      %v3778 = vld [vmem:[%s7 + $0x1ee0] sm:$0xff]
      %v3779 = vld [vmem:[%s7 + $0x1ee8] sm:$0xff]
      %v3780 = vld [vmem:[%s7 + $0x1ef0] sm:$0xff]
      %v3781 = vld [vmem:[%s7 + $0x1ef8] sm:$0xff]
      %v3782 = vld [vmem:[%s7 + $0x1f00] sm:$0xff]
      %v3783 = vld [vmem:[%s7 + $0x1f08] sm:$0xff]
      %v3784 = vld [vmem:[%s7 + $0x1f10] sm:$0xff]
      %v3785 = vld [vmem:[%s7 + $0x1f18] sm:$0xff]
      %v3786 = vld [vmem:[%s7 + $0x1f20] sm:$0xff]
      %v3787 = vld [vmem:[%s7 + $0x1f28] sm:$0xff]
      %v3788 = vld [vmem:[%s7 + $0x1f30] sm:$0xff]
      %v3789 = vld [vmem:[%s7 + $0x1f38] sm:$0xff]
      %v3790 = vld [vmem:[%s7 + $0x1f40] sm:$0xff]
      %v3791 = vld [vmem:[%s7 + $0x1f48] sm:$0xff]
      %v3792 = vld [vmem:[%s7 + $0x1f50] sm:$0xff]
      %v3793 = vld [vmem:[%s7 + $0x1f58] sm:$0xff]
      %v3794 = vld [vmem:[%s7 + $0x1f60] sm:$0xff]
      %v3795 = vld [vmem:[%s7 + $0x1f68] sm:$0xff]
      %v3796 = vld [vmem:[%s7 + $0x1f70] sm:$0xff]
      %v3797 = vld [vmem:[%s7 + $0x1f78] sm:$0xff]
      %v3798 = vld [vmem:[%s7 + $0x1f80] sm:$0xff]
      %v3799 = vld [vmem:[%s7 + $0x1f88] sm:$0xff]
      %v3800 = vld [vmem:[%s7 + $0x1f90] sm:$0xff]
      %v3801 = vld [vmem:[%s7 + $0x1f98] sm:$0xff]
      %v3802 = vld [vmem:[%s7 + $0x1fa0] sm:$0xff]
      %v3803 = vld [vmem:[%s7 + $0x1fa8] sm:$0xff]
      %v3804 = vld [vmem:[%s7 + $0x1fb0] sm:$0xff]
      %v3805 = vld [vmem:[%s7 + $0x1fb8] sm:$0xff]
      %v3806 = vld [vmem:[%s7 + $0x1fc0] sm:$0xff]
      %v3807 = vld [vmem:[%s7 + $0x1fc8] sm:$0xff]
      %v3808 = vld [vmem:[%s7 + $0x1fd0] sm:$0xff]
      %v3809 = vld [vmem:[%s7 + $0x1fd8] sm:$0xff]
      %v3810 = vld [vmem:[%s7 + $0x1fe0] sm:$0xff]
      %v3811 = vld [vmem:[%s7 + $0x1fe8] sm:$0xff]
      %v3812 = vld [vmem:[%s7 + $0x1ff0] sm:$0xff]
      %v3813 = vld [vmem:[%s7 + $0x1ff8] sm:$0xff]
      %v3814 = vld [vmem:[%s7 + $0x2000] sm:$0xff]
      %v3815 = vld [vmem:[%s7 + $0x2008] sm:$0xff]
      %v3816 = vld [vmem:[%s7 + $0x2010] sm:$0xff]
      %v3817 = vld [vmem:[%s7 + $0x2018] sm:$0xff]
      %v3818 = vld [vmem:[%s7 + $0x2020] sm:$0xff]
      %v3819 = vld [vmem:[%s7 + $0x2028] sm:$0xff]
      %v3820 = vld [vmem:[%s7 + $0x2030] sm:$0xff]
      %v3821 = vld [vmem:[%s7 + $0x2038] sm:$0xff]
      %v3822 = vld [vmem:[%s7 + $0x2040] sm:$0xff]
      %v3823 = vld [vmem:[%s7 + $0x2048] sm:$0xff]
      %v3824 = vld [vmem:[%s7 + $0x2050] sm:$0xff]
      %v3825 = vld [vmem:[%s7 + $0x2058] sm:$0xff]
      %v3826 = vld [vmem:[%s7 + $0x2060] sm:$0xff]
      %v3827 = vld [vmem:[%s7 + $0x2068] sm:$0xff]
      %v3828 = vld [vmem:[%s7 + $0x2070] sm:$0xff]
      %v3829 = vld [vmem:[%s7 + $0x2078] sm:$0xff]
      %v3830 = vld [vmem:[%s7 + $0x2080] sm:$0xff]
      %v3831 = vld [vmem:[%s7 + $0x2088] sm:$0xff]
      %v3832 = vld [vmem:[%s7 + $0x2090] sm:$0xff]
      %v3833 = vld [vmem:[%s7 + $0x2098] sm:$0xff]
      %v3834 = vld [vmem:[%s7 + $0x20a0] sm:$0xff]
      %v3835 = vld [vmem:[%s7 + $0x20a8] sm:$0xff]
      %v3836 = vld [vmem:[%s7 + $0x20b0] sm:$0xff]
      %v3837 = vld [vmem:[%s7 + $0x20b8] sm:$0xff]
      %v3838 = vld [vmem:[%s7 + $0x20c0] sm:$0xff]
      %v3839 = vld [vmem:[%s7 + $0x20c8] sm:$0xff]
      %v3840 = vld [vmem:[%s7 + $0x20d0] sm:$0xff]
      %v3841 = vld [vmem:[%s7 + $0x20d8] sm:$0xff]
      %v3842 = vld [vmem:[%s7 + $0x20e0] sm:$0xff]
      %v3843 = vld [vmem:[%s7 + $0x20e8] sm:$0xff]
      %v3844 = vld [vmem:[%s7 + $0x20f0] sm:$0xff]
      %v3845 = vld [vmem:[%s7 + $0x20f8] sm:$0xff]
      %v3846 = vld [vmem:[%s7 + $0x2100] sm:$0xff]
      %v3847 = vld [vmem:[%s7 + $0x2108] sm:$0xff]
      %v3848 = vld [vmem:[%s7 + $0x2110] sm:$0xff]
      %v3849 = vld [vmem:[%s7 + $0x2118] sm:$0xff]
      %v3850 = vld [vmem:[%s7 + $0x2120] sm:$0xff]
      %v3851 = vld [vmem:[%s7 + $0x2128] sm:$0xff]
      %v3852 = vld [vmem:[%s7 + $0x2130] sm:$0xff]
      %v3853 = vld [vmem:[%s7 + $0x2138] sm:$0xff]
      %v3854 = vld [vmem:[%s7 + $0x2140] sm:$0xff]
      %v3855 = vld [vmem:[%s7 + $0x2148] sm:$0xff]
      %v3856 = vld [vmem:[%s7 + $0x2150] sm:$0xff]
      %v3857 = vld [vmem:[%s7 + $0x2158] sm:$0xff]
      %v3858 = vld [vmem:[%s7 + $0x2160] sm:$0xff]
      %v3859 = vld [vmem:[%s7 + $0x2168] sm:$0xff]
      %v3860 = vld [vmem:[%s7 + $0x2170] sm:$0xff]
      %v3861 = vld [vmem:[%s7 + $0x2178] sm:$0xff]
      %v3862 = vld [vmem:[%s7 + $0x2180] sm:$0xff]
      %v3863 = vld [vmem:[%s7 + $0x2188] sm:$0xff]
      %v3864 = vld [vmem:[%s7 + $0x2190] sm:$0xff]
      %v3865 = vld [vmem:[%s7 + $0x2198] sm:$0xff]
      %v3866 = vld [vmem:[%s7 + $0x21a0] sm:$0xff]
      %v3867 = vld [vmem:[%s7 + $0x21a8] sm:$0xff]
      %v3868 = vld [vmem:[%s7 + $0x21b0] sm:$0xff]
      %v3869 = vld [vmem:[%s7 + $0x21b8] sm:$0xff]
      %v3870 = vld [vmem:[%s7 + $0x21c0] sm:$0xff]
      %v3871 = vld [vmem:[%s7 + $0x21c8] sm:$0xff]
      %v3872 = vld [vmem:[%s7 + $0x21d0] sm:$0xff]
      %v3873 = vld [vmem:[%s7 + $0x21d8] sm:$0xff]
      %v3874 = vld [vmem:[%s7 + $0x21e0] sm:$0xff]
      %v3875 = vld [vmem:[%s7 + $0x21e8] sm:$0xff]
      %v3876 = vld [vmem:[%s7 + $0x21f0] sm:$0xff]
      %v3877 = vld [vmem:[%s7 + $0x21f8] sm:$0xff]
      %v3878 = vld [vmem:[%s7 + $0x2200] sm:$0xff]
      %v3879 = vld [vmem:[%s7 + $0x2208] sm:$0xff]
      %v3880 = vld [vmem:[%s7 + $0x2210] sm:$0xff]
      %v3881 = vld [vmem:[%s7 + $0x2218] sm:$0xff]
      %v3882 = vld [vmem:[%s7 + $0x2220] sm:$0xff]
      %v3883 = vld [vmem:[%s7 + $0x2228] sm:$0xff]
      %v3884 = vld [vmem:[%s7 + $0x2230] sm:$0xff]
      %v3885 = vld [vmem:[%s7 + $0x2238] sm:$0xff]
      %v3886 = vld [vmem:[%s7 + $0x2240] sm:$0xff]
      %v3887 = vld [vmem:[%s7 + $0x2248] sm:$0xff]
      %v3888 = vld [vmem:[%s7 + $0x2250] sm:$0xff]
      %v3889 = vld [vmem:[%s7 + $0x2258] sm:$0xff]
      %v3890 = vld [vmem:[%s7 + $0x2260] sm:$0xff]
      %v3891 = vld [vmem:[%s7 + $0x2268] sm:$0xff]
      %v3892 = vld [vmem:[%s7 + $0x2270] sm:$0xff]
      %v3893 = vld [vmem:[%s7 + $0x2278] sm:$0xff]
      %v3894 = vld [vmem:[%s7 + $0x2280] sm:$0xff]
      %v3895 = vld [vmem:[%s7 + $0x2288] sm:$0xff]
      %v3896 = vld [vmem:[%s7 + $0x2290] sm:$0xff]
      %v3897 = vld [vmem:[%s7 + $0x2298] sm:$0xff]
      %v3898 = vld [vmem:[%s7 + $0x22a0] sm:$0xff]
      %v3899 = vld [vmem:[%s7 + $0x22a8] sm:$0xff]
      %v3900 = vld [vmem:[%s7 + $0x22b0] sm:$0xff]
      %v3901 = vld [vmem:[%s7 + $0x22b8] sm:$0xff]
      %v3902 = vld [vmem:[%s7 + $0x22c0] sm:$0xff]
      %v3903 = vld [vmem:[%s7 + $0x22c8] sm:$0xff]
      %v3904 = vld [vmem:[%s7 + $0x22d0] sm:$0xff]
      %v3905 = vld [vmem:[%s7 + $0x22d8] sm:$0xff]
      %v3906 = vld [vmem:[%s7 + $0x22e0] sm:$0xff]
      %v3907 = vld [vmem:[%s7 + $0x22e8] sm:$0xff]
      %v3908 = vld [vmem:[%s7 + $0x22f0] sm:$0xff]
      %v3909 = vld [vmem:[%s7 + $0x22f8] sm:$0xff]
      %v3910 = vld [vmem:[%s7 + $0x2300] sm:$0xff]
      %v3911 = vld [vmem:[%s7 + $0x2308] sm:$0xff]
      %v3912 = vld [vmem:[%s7 + $0x2310] sm:$0xff]
      %v3913 = vld [vmem:[%s7 + $0x2318] sm:$0xff]
      %v3914 = vld [vmem:[%s7 + $0x2320] sm:$0xff]
      %v3915 = vld [vmem:[%s7 + $0x2328] sm:$0xff]
      %v3916 = vld [vmem:[%s7 + $0x2330] sm:$0xff]
      %v3917 = vld [vmem:[%s7 + $0x2338] sm:$0xff]
      %v3918 = vld [vmem:[%s7 + $0x2340] sm:$0xff]
      %v3919 = vld [vmem:[%s7 + $0x2348] sm:$0xff]
      %v3920 = vld [vmem:[%s7 + $0x2350] sm:$0xff]
      %v3921 = vld [vmem:[%s7 + $0x2358] sm:$0xff]
      %v3922 = vld [vmem:[%s7 + $0x2360] sm:$0xff]
      %v3923 = vld [vmem:[%s7 + $0x2368] sm:$0xff]
      %v3924 = vld [vmem:[%s7 + $0x2370] sm:$0xff]
      %v3925 = vld [vmem:[%s7 + $0x2378] sm:$0xff]
      %v3926 = vld [vmem:[%s7 + $0x2380] sm:$0xff]
      %v3927 = vld [vmem:[%s7 + $0x2388] sm:$0xff]
      %v3928 = vld [vmem:[%s7 + $0x2390] sm:$0xff]
      %v3929 = vld [vmem:[%s7 + $0x2398] sm:$0xff]
      %v3930 = vld [vmem:[%s7 + $0x23a0] sm:$0xff]
      %v3931 = vld [vmem:[%s7 + $0x23a8] sm:$0xff]
      %v3932 = vld [vmem:[%s7 + $0x23b0] sm:$0xff]
      %v3933 = vld [vmem:[%s7 + $0x23b8] sm:$0xff]
      %v3934 = vld [vmem:[%s7 + $0x23c0] sm:$0xff]
      %v3935 = vld [vmem:[%s7 + $0x23c8] sm:$0xff]
      %v3936 = vld [vmem:[%s7 + $0x23d0] sm:$0xff]
      %v3937 = vld [vmem:[%s7 + $0x23d8] sm:$0xff]
      %v3938 = vld [vmem:[%s7 + $0x23e0] sm:$0xff]
      %v3939 = vld [vmem:[%s7 + $0x23e8] sm:$0xff]
      %v3940 = vld [vmem:[%s7 + $0x23f0] sm:$0xff]
      %v3941 = vld [vmem:[%s7 + $0x23f8] sm:$0xff]
      %3942 = vmatprep.subr.mxu0 %v2791
      %3943 = vmatpush1.msra.mxu0 %v2790
      %3944 = vmatprep.subr.mxu0 %v2800
      %3945 = vmatpush1.msra.mxu0 %v2799
      %3946 = vmatprep.subr.mxu0 %v2809
      %3947 = vmatpush1.msra.mxu0 %v2808
      %3948 = vmatprep.subr.mxu0 %v2818
      %3949 = vmatpush1.msra.mxu0 %v2817
      %3950 = vmatprep.subr.mxu0 %v2827
      %3951 = vmatpush1.msra.mxu0 %v2826
      %3952 = vmatprep.subr.mxu0 %v2836
      %3953 = vmatpush1.msra.mxu0 %v2835
      %3954 = vmatprep.subr.mxu0 %v2845
      %3955 = vmatpush1.msra.mxu0 %v2844
      %3956 = vmatprep.subr.mxu0 %v2854
      %3957 = vmatpush1.msra.mxu0 %v2853
      %3958 = vmatprep.subr.mxu0 %v2863
      %3959 = vmatpush1.msra.mxu0 %v2862
      %3960 = vmatprep.subr.mxu0 %v2872
      %3961 = vmatpush1.msra.mxu0 %v2871
      %3962 = vmatprep.subr.mxu0 %v2881
      %3963 = vmatpush1.msra.mxu0 %v2880
      %3964 = vmatprep.subr.mxu0 %v2890
      %3965 = vmatpush1.msra.mxu0 %v2889
      %3966 = vmatprep.subr.mxu0 %v2899
      %3967 = vmatpush1.msra.mxu0 %v2898
      %3968 = vmatprep.subr.mxu0 %v2908
      %3969 = vmatpush1.msra.mxu0 %v2907
      %3970 = vmatprep.subr.mxu0 %v2917
      %3971 = vmatpush1.msra.mxu0 %v2916
      %3972 = vmatprep.subr.mxu0 %v2926
      %3973 = vmatpush1.msra.mxu0 %v2925
      %3974 = vmatprep.subr.mxu0 %v2935
      %3975 = vmatpush1.msra.mxu0 %v2934
      %3976 = vmatprep.subr.mxu0 %v2944
      %3977 = vmatpush1.msra.mxu0 %v2943
      %3978 = vmatprep.subr.mxu0 %v2953
      %3979 = vmatpush1.msra.mxu0 %v2952
      %3980 = vmatprep.subr.mxu0 %v2962
      %3981 = vmatpush1.msra.mxu0 %v2961
      %3982 = vmatprep.subr.mxu0 %v2971
      %3983 = vmatpush1.msra.mxu0 %v2970
      %3984 = vmatprep.subr.mxu0 %v2980
      %3985 = vmatpush1.msra.mxu0 %v2979
      %3986 = vmatprep.subr.mxu0 %v2989
      %3987 = vmatpush1.msra.mxu0 %v2988
      %3988 = vmatprep.subr.mxu0 %v2998
      %3989 = vmatpush1.msra.mxu0 %v2997
      %3990 = vmatprep.subr.mxu0 %v3007
      %3991 = vmatpush1.msra.mxu0 %v3006
      %3992 = vmatprep.subr.mxu0 %v3016
      %3993 = vmatpush1.msra.mxu0 %v3015
      %3994 = vmatprep.subr.mxu0 %v3025
      %3995 = vmatpush1.msra.mxu0 %v3024
      %3996 = vmatprep.subr.mxu0 %v3034
      %3997 = vmatpush1.msra.mxu0 %v3033
      %3998 = vmatprep.subr.mxu0 %v3043
      %3999 = vmatpush1.msra.mxu0 %v3042
      %4000 = vmatprep.subr.mxu0 %v3052
      %4001 = vmatpush1.msra.mxu0 %v3051
      %4002 = vmatprep.subr.mxu0 %v3061
      %4003 = vmatpush1.msra.mxu0 %v3060
      %4004 = vmatprep.subr.mxu0 %v3070
      %4005 = vmatpush1.msra.mxu0 %v3069
      %4006 = vmatprep.mubr.f32.mxu0 %v2783
      %4007 = vmatmul.mubr.f32.gmra.mrb[0].mxu0 %v2782
      %v4008 = vpop.f32.mrb[0].mxu0
      %v4009 = vadd.f32 0.0, %v4008
      %v4010 = vpop.f32.mrb[0].mxu0
      %v4011 = vadd.f32 0.0, %v4010
      %4012 = vdwg.mxu0
      %4013 = vmatprep.subr.mxu0 %v3079
      %4014 = vmatpush1.msra.mxu0 %v3078
      %4015 = vmatprep.subr.mxu0 %v3088
      %4016 = vmatpush1.msra.mxu0 %v3087
      %4017 = vmatprep.subr.mxu0 %v3097
      %4018 = vmatpush1.msra.mxu0 %v3096
      %4019 = vmatprep.subr.mxu0 %v3106
      %4020 = vmatpush1.msra.mxu0 %v3105
      %4021 = vmatprep.subr.mxu0 %v3115
      %4022 = vmatpush1.msra.mxu0 %v3114
      %4023 = vmatprep.subr.mxu0 %v3124
      %4024 = vmatpush1.msra.mxu0 %v3123
      %4025 = vmatprep.subr.mxu0 %v3133
      %4026 = vmatpush1.msra.mxu0 %v3132
      %4027 = vmatprep.subr.mxu0 %v3142
      %4028 = vmatpush1.msra.mxu0 %v3141
      %4029 = vmatprep.subr.mxu0 %v3151
      %4030 = vmatpush1.msra.mxu0 %v3150
      %4031 = vmatprep.subr.mxu0 %v3160
      %4032 = vmatpush1.msra.mxu0 %v3159
      %4033 = vmatprep.subr.mxu0 %v3169
      %4034 = vmatpush1.msra.mxu0 %v3168
      %4035 = vmatprep.subr.mxu0 %v3178
      %4036 = vmatpush1.msra.mxu0 %v3177
      %4037 = vmatprep.subr.mxu0 %v3187
      %4038 = vmatpush1.msra.mxu0 %v3186
      %4039 = vmatprep.subr.mxu0 %v3196
      %4040 = vmatpush1.msra.mxu0 %v3195
      %4041 = vmatprep.subr.mxu0 %v3205
      %4042 = vmatpush1.msra.mxu0 %v3204
      %4043 = vmatprep.subr.mxu0 %v3214
      %4044 = vmatpush1.msra.mxu0 %v3213
      %4045 = vmatprep.subr.mxu0 %v3223
      %4046 = vmatpush1.msra.mxu0 %v3222
      %4047 = vmatprep.subr.mxu0 %v3232
      %4048 = vmatpush1.msra.mxu0 %v3231
      %4049 = vmatprep.subr.mxu0 %v3241
      %4050 = vmatpush1.msra.mxu0 %v3240
      %4051 = vmatprep.subr.mxu0 %v3250
      %4052 = vmatpush1.msra.mxu0 %v3249
      %4053 = vmatprep.subr.mxu0 %v3259
      %4054 = vmatpush1.msra.mxu0 %v3258
      %4055 = vmatprep.subr.mxu0 %v3268
      %4056 = vmatpush1.msra.mxu0 %v3267
      %4057 = vmatprep.subr.mxu0 %v3277
      %4058 = vmatpush1.msra.mxu0 %v3276
      %4059 = vmatprep.subr.mxu0 %v3286
      %4060 = vmatpush1.msra.mxu0 %v3285
      %4061 = vmatprep.subr.mxu0 %v3295
      %4062 = vmatpush1.msra.mxu0 %v3294
      %4063 = vmatprep.subr.mxu0 %v3304
      %4064 = vmatpush1.msra.mxu0 %v3303
      %4065 = vmatprep.subr.mxu0 %v3313
      %4066 = vmatpush1.msra.mxu0 %v3312
      %4067 = vmatprep.subr.mxu0 %v3322
      %4068 = vmatpush1.msra.mxu0 %v3321
      %4069 = vmatprep.subr.mxu0 %v3331
      %4070 = vmatpush1.msra.mxu0 %v3330
      %4071 = vmatprep.subr.mxu0 %v3340
      %4072 = vmatpush1.msra.mxu0 %v3339
      %4073 = vmatprep.subr.mxu0 %v3349
      %4074 = vmatpush1.msra.mxu0 %v3348
      %4075 = vmatprep.subr.mxu0 %v3358
      %4076 = vmatpush1.msra.mxu0 %v3357
      %4077 = vmatprep.mubr.f32.mxu0 %v2785
      %4078 = vmatmul.mubr.f32.gmra.mrb[0].mxu0 %v2784
      %v4079 = vpop.f32.mrb[0].mxu0
      %v4080 = vadd.f32 %v4009, %v4079
      %v4081 = vpop.f32.mrb[0].mxu0
      %v4082 = vadd.f32 %v4011, %v4081
      %4083 = vdwg.mxu0
      %4084 = vmatprep.subr.mxu0 %v3367
      %4085 = vmatpush1.msra.mxu0 %v3366
      %4086 = vmatprep.subr.mxu0 %v3376
      %4087 = vmatpush1.msra.mxu0 %v3375
      %4088 = vmatprep.subr.mxu0 %v3385
      %4089 = vmatpush1.msra.mxu0 %v3384
      %4090 = vmatprep.subr.mxu0 %v3394
      %4091 = vmatpush1.msra.mxu0 %v3393
      %4092 = vmatprep.subr.mxu0 %v3403
      %4093 = vmatpush1.msra.mxu0 %v3402
      %4094 = vmatprep.subr.mxu0 %v3412
      %4095 = vmatpush1.msra.mxu0 %v3411
      %4096 = vmatprep.subr.mxu0 %v3421
      %4097 = vmatpush1.msra.mxu0 %v3420
      %4098 = vmatprep.subr.mxu0 %v3430
      %4099 = vmatpush1.msra.mxu0 %v3429
      %4100 = vmatprep.subr.mxu0 %v3439
      %4101 = vmatpush1.msra.mxu0 %v3438
      %4102 = vmatprep.subr.mxu0 %v3448
      %4103 = vmatpush1.msra.mxu0 %v3447
      %4104 = vmatprep.subr.mxu0 %v3457
      %4105 = vmatpush1.msra.mxu0 %v3456
      %4106 = vmatprep.subr.mxu0 %v3466
      %4107 = vmatpush1.msra.mxu0 %v3465
      %4108 = vmatprep.subr.mxu0 %v3475
      %4109 = vmatpush1.msra.mxu0 %v3474
      %4110 = vmatprep.subr.mxu0 %v3484
      %4111 = vmatpush1.msra.mxu0 %v3483
      %4112 = vmatprep.subr.mxu0 %v3493
      %4113 = vmatpush1.msra.mxu0 %v3492
      %4114 = vmatprep.subr.mxu0 %v3502
      %4115 = vmatpush1.msra.mxu0 %v3501
      %4116 = vmatprep.subr.mxu0 %v3511
      %4117 = vmatpush1.msra.mxu0 %v3510
      %4118 = vmatprep.subr.mxu0 %v3520
      %4119 = vmatpush1.msra.mxu0 %v3519
      %4120 = vmatprep.subr.mxu0 %v3529
      %4121 = vmatpush1.msra.mxu0 %v3528
      %4122 = vmatprep.subr.mxu0 %v3538
      %4123 = vmatpush1.msra.mxu0 %v3537
      %4124 = vmatprep.subr.mxu0 %v3547
      %4125 = vmatpush1.msra.mxu0 %v3546
      %4126 = vmatprep.subr.mxu0 %v3556
      %4127 = vmatpush1.msra.mxu0 %v3555
      %4128 = vmatprep.subr.mxu0 %v3565
      %4129 = vmatpush1.msra.mxu0 %v3564
      %4130 = vmatprep.subr.mxu0 %v3574
      %4131 = vmatpush1.msra.mxu0 %v3573
      %4132 = vmatprep.subr.mxu0 %v3583
      %4133 = vmatpush1.msra.mxu0 %v3582
      %4134 = vmatprep.subr.mxu0 %v3592
      %4135 = vmatpush1.msra.mxu0 %v3591
      %4136 = vmatprep.subr.mxu0 %v3601
      %4137 = vmatpush1.msra.mxu0 %v3600
      %4138 = vmatprep.subr.mxu0 %v3610
      %4139 = vmatpush1.msra.mxu0 %v3609
      %4140 = vmatprep.subr.mxu0 %v3619
      %4141 = vmatpush1.msra.mxu0 %v3618
      %4142 = vmatprep.subr.mxu0 %v3628
      %4143 = vmatpush1.msra.mxu0 %v3627
      %4144 = vmatprep.subr.mxu0 %v3637
      %4145 = vmatpush1.msra.mxu0 %v3636
      %4146 = vmatprep.subr.mxu0 %v3646
      %4147 = vmatpush1.msra.mxu0 %v3645
      %4148 = vmatprep.mubr.f32.mxu0 %v2787
      %4149 = vmatmul.mubr.f32.gmra.mrb[0].mxu0 %v2786
      %v4150 = vpop.f32.mrb[0].mxu0
      %v4151 = vadd.f32 %v4080, %v4150
      %v4152 = vpop.f32.mrb[0].mxu0
      %v4153 = vadd.f32 %v4082, %v4152
      %4154 = vdwg.mxu0
      %4155 = vmatprep.subr.mxu0 %v3655
      %4156 = vmatpush1.msra.mxu0 %v3654
      %4157 = vmatprep.subr.mxu0 %v3664
      %4158 = vmatpush1.msra.mxu0 %v3663
      %4159 = vmatprep.subr.mxu0 %v3673
      %4160 = vmatpush1.msra.mxu0 %v3672
      %4161 = vmatprep.subr.mxu0 %v3682
      %4162 = vmatpush1.msra.mxu0 %v3681
      %4163 = vmatprep.subr.mxu0 %v3691
      %4164 = vmatpush1.msra.mxu0 %v3690
      %4165 = vmatprep.subr.mxu0 %v3700
      %4166 = vmatpush1.msra.mxu0 %v3699
      %4167 = vmatprep.subr.mxu0 %v3709
      %4168 = vmatpush1.msra.mxu0 %v3708
      %4169 = vmatprep.subr.mxu0 %v3718
      %4170 = vmatpush1.msra.mxu0 %v3717
      %4171 = vmatprep.subr.mxu0 %v3727
      %4172 = vmatpush1.msra.mxu0 %v3726
      %4173 = vmatprep.subr.mxu0 %v3736
      %4174 = vmatpush1.msra.mxu0 %v3735
      %4175 = vmatprep.subr.mxu0 %v3745
      %4176 = vmatpush1.msra.mxu0 %v3744
      %4177 = vmatprep.subr.mxu0 %v3754
      %4178 = vmatpush1.msra.mxu0 %v3753
      %4179 = vmatprep.subr.mxu0 %v3763
      %4180 = vmatpush1.msra.mxu0 %v3762
      %4181 = vmatprep.subr.mxu0 %v3772
      %4182 = vmatpush1.msra.mxu0 %v3771
      %4183 = vmatprep.subr.mxu0 %v3781
      %4184 = vmatpush1.msra.mxu0 %v3780
      %4185 = vmatprep.subr.mxu0 %v3790
      %4186 = vmatpush1.msra.mxu0 %v3789
      %4187 = vmatprep.subr.mxu0 %v3799
      %4188 = vmatpush1.msra.mxu0 %v3798
      %4189 = vmatprep.subr.mxu0 %v3808
      %4190 = vmatpush1.msra.mxu0 %v3807
      %4191 = vmatprep.subr.mxu0 %v3817
      %4192 = vmatpush1.msra.mxu0 %v3816
      %4193 = vmatprep.subr.mxu0 %v3826
      %4194 = vmatpush1.msra.mxu0 %v3825
      %4195 = vmatprep.subr.mxu0 %v3835
      %4196 = vmatpush1.msra.mxu0 %v3834
      %4197 = vmatprep.subr.mxu0 %v3844
      %4198 = vmatpush1.msra.mxu0 %v3843
      %4199 = vmatprep.subr.mxu0 %v3853
      %4200 = vmatpush1.msra.mxu0 %v3852
      %4201 = vmatprep.subr.mxu0 %v3862
      %4202 = vmatpush1.msra.mxu0 %v3861
      %4203 = vmatprep.subr.mxu0 %v3871
      %4204 = vmatpush1.msra.mxu0 %v3870
      %4205 = vmatprep.subr.mxu0 %v3880
      %4206 = vmatpush1.msra.mxu0 %v3879
      %4207 = vmatprep.subr.mxu0 %v3889
      %4208 = vmatpush1.msra.mxu0 %v3888
      %4209 = vmatprep.subr.mxu0 %v3898
      %4210 = vmatpush1.msra.mxu0 %v3897
      %4211 = vmatprep.subr.mxu0 %v3907
      %4212 = vmatpush1.msra.mxu0 %v3906
      %4213 = vmatprep.subr.mxu0 %v3916
      %4214 = vmatpush1.msra.mxu0 %v3915
      %4215 = vmatprep.subr.mxu0 %v3925
      %4216 = vmatpush1.msra.mxu0 %v3924
      %4217 = vmatprep.subr.mxu0 %v3934
      %4218 = vmatpush1.msra.mxu0 %v3933
      %4219 = vmatprep.mubr.f32.mxu0 %v2789
      %4220 = vmatmul.mubr.f32.gmra.mrb[0].mxu0 %v2788
      %v4221 = vpop.f32.mrb[0].mxu0
      %v4222 = vadd.f32 %v4151, %v4221
      %v4223 = vpop.f32.mrb[0].mxu0
      %v4224 = vadd.f32 %v4153, %v4223
      %4225 = vdwg.mxu0
      %4226 = vmatprep.subr.mxu0 %v2793
      %4227 = vmatpush1.msra.mxu0 %v2792
      %4228 = vmatprep.subr.mxu0 %v2802
      %4229 = vmatpush1.msra.mxu0 %v2801
      %4230 = vmatprep.subr.mxu0 %v2811
      %4231 = vmatpush1.msra.mxu0 %v2810
      %4232 = vmatprep.subr.mxu0 %v2820
      %4233 = vmatpush1.msra.mxu0 %v2819
      %4234 = vmatprep.subr.mxu0 %v2829
      %4235 = vmatpush1.msra.mxu0 %v2828
      %4236 = vmatprep.subr.mxu0 %v2838
      %4237 = vmatpush1.msra.mxu0 %v2837
      %4238 = vmatprep.subr.mxu0 %v2847
      %4239 = vmatpush1.msra.mxu0 %v2846
      %4240 = vmatprep.subr.mxu0 %v2856
      %4241 = vmatpush1.msra.mxu0 %v2855
      %4242 = vmatprep.subr.mxu0 %v2865
      %4243 = vmatpush1.msra.mxu0 %v2864
      %4244 = vmatprep.subr.mxu0 %v2874
      %4245 = vmatpush1.msra.mxu0 %v2873
      %4246 = vmatprep.subr.mxu0 %v2883
      %4247 = vmatpush1.msra.mxu0 %v2882
      %4248 = vmatprep.subr.mxu0 %v2892
      %4249 = vmatpush1.msra.mxu0 %v2891
      %4250 = vmatprep.subr.mxu0 %v2901
      %4251 = vmatpush1.msra.mxu0 %v2900
      %4252 = vmatprep.subr.mxu0 %v2910
      %4253 = vmatpush1.msra.mxu0 %v2909
      %4254 = vmatprep.subr.mxu0 %v2919
      %4255 = vmatpush1.msra.mxu0 %v2918
      %4256 = vmatprep.subr.mxu0 %v2928
      %4257 = vmatpush1.msra.mxu0 %v2927
      %4258 = vmatprep.subr.mxu0 %v2937
      %4259 = vmatpush1.msra.mxu0 %v2936
      %4260 = vmatprep.subr.mxu0 %v2946
      %4261 = vmatpush1.msra.mxu0 %v2945
      %4262 = vmatprep.subr.mxu0 %v2955
      %4263 = vmatpush1.msra.mxu0 %v2954
      %4264 = vmatprep.subr.mxu0 %v2964
      %4265 = vmatpush1.msra.mxu0 %v2963
      %4266 = vmatprep.subr.mxu0 %v2973
      %4267 = vmatpush1.msra.mxu0 %v2972
      %4268 = vmatprep.subr.mxu0 %v2982
      %4269 = vmatpush1.msra.mxu0 %v2981
      %4270 = vmatprep.subr.mxu0 %v2991
      %4271 = vmatpush1.msra.mxu0 %v2990
      %4272 = vmatprep.subr.mxu0 %v3000
      %4273 = vmatpush1.msra.mxu0 %v2999
      %4274 = vmatprep.subr.mxu0 %v3009
      %4275 = vmatpush1.msra.mxu0 %v3008
      %4276 = vmatprep.subr.mxu0 %v3018
      %4277 = vmatpush1.msra.mxu0 %v3017
      %4278 = vmatprep.subr.mxu0 %v3027
      %4279 = vmatpush1.msra.mxu0 %v3026
      %4280 = vmatprep.subr.mxu0 %v3036
      %4281 = vmatpush1.msra.mxu0 %v3035
      %4282 = vmatprep.subr.mxu0 %v3045
      %4283 = vmatpush1.msra.mxu0 %v3044
      %4284 = vmatprep.subr.mxu0 %v3054
      %4285 = vmatpush1.msra.mxu0 %v3053
      %4286 = vmatprep.subr.mxu0 %v3063
      %4287 = vmatpush1.msra.mxu0 %v3062
      %4288 = vmatprep.subr.mxu0 %v3072
      %4289 = vmatpush1.msra.mxu0 %v3071
      %4290 = vmatprep.mubr.f32.mxu0 %v2783
      %4291 = vmatmul.mubr.f32.gmra.mrb[0].mxu0 %v2782
      %v4292 = vpop.f32.mrb[0].mxu0
      %v4293 = vadd.f32 0.0, %v4292
      %v4294 = vpop.f32.mrb[0].mxu0
      %v4295 = vadd.f32 0.0, %v4294
      %4296 = vdwg.mxu0
      %4297 = vmatprep.subr.mxu0 %v3081
      %4298 = vmatpush1.msra.mxu0 %v3080
      %4299 = vmatprep.subr.mxu0 %v3090
      %4300 = vmatpush1.msra.mxu0 %v3089
      %4301 = vmatprep.subr.mxu0 %v3099
      %4302 = vmatpush1.msra.mxu0 %v3098
      %4303 = vmatprep.subr.mxu0 %v3108
      %4304 = vmatpush1.msra.mxu0 %v3107
      %4305 = vmatprep.subr.mxu0 %v3117
      %4306 = vmatpush1.msra.mxu0 %v3116
      %4307 = vmatprep.subr.mxu0 %v3126
      %4308 = vmatpush1.msra.mxu0 %v3125
      %4309 = vmatprep.subr.mxu0 %v3135
      %4310 = vmatpush1.msra.mxu0 %v3134
      %4311 = vmatprep.subr.mxu0 %v3144
      %4312 = vmatpush1.msra.mxu0 %v3143
      %4313 = vmatprep.subr.mxu0 %v3153
      %4314 = vmatpush1.msra.mxu0 %v3152
      %4315 = vmatprep.subr.mxu0 %v3162
      %4316 = vmatpush1.msra.mxu0 %v3161
      %4317 = vmatprep.subr.mxu0 %v3171
      %4318 = vmatpush1.msra.mxu0 %v3170
      %4319 = vmatprep.subr.mxu0 %v3180
      %4320 = vmatpush1.msra.mxu0 %v3179
      %4321 = vmatprep.subr.mxu0 %v3189
      %4322 = vmatpush1.msra.mxu0 %v3188
      %4323 = vmatprep.subr.mxu0 %v3198
      %4324 = vmatpush1.msra.mxu0 %v3197
      %4325 = vmatprep.subr.mxu0 %v3207
      %4326 = vmatpush1.msra.mxu0 %v3206
      %4327 = vmatprep.subr.mxu0 %v3216
      %4328 = vmatpush1.msra.mxu0 %v3215
      %4329 = vmatprep.subr.mxu0 %v3225
      %4330 = vmatpush1.msra.mxu0 %v3224
      %4331 = vmatprep.subr.mxu0 %v3234
      %4332 = vmatpush1.msra.mxu0 %v3233
      %4333 = vmatprep.subr.mxu0 %v3243
      %4334 = vmatpush1.msra.mxu0 %v3242
      %4335 = vmatprep.subr.mxu0 %v3252
      %4336 = vmatpush1.msra.mxu0 %v3251
      %4337 = vmatprep.subr.mxu0 %v3261
      %4338 = vmatpush1.msra.mxu0 %v3260
      %4339 = vmatprep.subr.mxu0 %v3270
      %4340 = vmatpush1.msra.mxu0 %v3269
      %4341 = vmatprep.subr.mxu0 %v3279
      %4342 = vmatpush1.msra.mxu0 %v3278
      %4343 = vmatprep.subr.mxu0 %v3288
      %4344 = vmatpush1.msra.mxu0 %v3287
      %4345 = vmatprep.subr.mxu0 %v3297
      %4346 = vmatpush1.msra.mxu0 %v3296
      %4347 = vmatprep.subr.mxu0 %v3306
      %4348 = vmatpush1.msra.mxu0 %v3305
      %4349 = vmatprep.subr.mxu0 %v3315
      %4350 = vmatpush1.msra.mxu0 %v3314
      %4351 = vmatprep.subr.mxu0 %v3324
      %4352 = vmatpush1.msra.mxu0 %v3323
      %4353 = vmatprep.subr.mxu0 %v3333
      %4354 = vmatpush1.msra.mxu0 %v3332
      %4355 = vmatprep.subr.mxu0 %v3342
      %4356 = vmatpush1.msra.mxu0 %v3341
      %4357 = vmatprep.subr.mxu0 %v3351
      %4358 = vmatpush1.msra.mxu0 %v3350
      %4359 = vmatprep.subr.mxu0 %v3360
      %4360 = vmatpush1.msra.mxu0 %v3359
      %4361 = vmatprep.mubr.f32.mxu0 %v2785
      %4362 = vmatmul.mubr.f32.gmra.mrb[0].mxu0 %v2784
      %v4363 = vpop.f32.mrb[0].mxu0
      %v4364 = vadd.f32 %v4293, %v4363
      %v4365 = vpop.f32.mrb[0].mxu0
      %v4366 = vadd.f32 %v4295, %v4365
      %4367 = vdwg.mxu0
      %4368 = vmatprep.subr.mxu0 %v3369
      %4369 = vmatpush1.msra.mxu0 %v3368
      %4370 = vmatprep.subr.mxu0 %v3378
      %4371 = vmatpush1.msra.mxu0 %v3377
      %4372 = vmatprep.subr.mxu0 %v3387
      %4373 = vmatpush1.msra.mxu0 %v3386
      %4374 = vmatprep.subr.mxu0 %v3396
      %4375 = vmatpush1.msra.mxu0 %v3395
      %4376 = vmatprep.subr.mxu0 %v3405
      %4377 = vmatpush1.msra.mxu0 %v3404
      %4378 = vmatprep.subr.mxu0 %v3414
      %4379 = vmatpush1.msra.mxu0 %v3413
      %4380 = vmatprep.subr.mxu0 %v3423
      %4381 = vmatpush1.msra.mxu0 %v3422
      %4382 = vmatprep.subr.mxu0 %v3432
      %4383 = vmatpush1.msra.mxu0 %v3431
      %4384 = vmatprep.subr.mxu0 %v3441
      %4385 = vmatpush1.msra.mxu0 %v3440
      %4386 = vmatprep.subr.mxu0 %v3450
      %4387 = vmatpush1.msra.mxu0 %v3449
      %4388 = vmatprep.subr.mxu0 %v3459
      %4389 = vmatpush1.msra.mxu0 %v3458
      %4390 = vmatprep.subr.mxu0 %v3468
      %4391 = vmatpush1.msra.mxu0 %v3467
      %4392 = vmatprep.subr.mxu0 %v3477
      %4393 = vmatpush1.msra.mxu0 %v3476
      %4394 = vmatprep.subr.mxu0 %v3486
      %4395 = vmatpush1.msra.mxu0 %v3485
      %4396 = vmatprep.subr.mxu0 %v3495
      %4397 = vmatpush1.msra.mxu0 %v3494
      %4398 = vmatprep.subr.mxu0 %v3504
      %4399 = vmatpush1.msra.mxu0 %v3503
      %4400 = vmatprep.subr.mxu0 %v3513
      %4401 = vmatpush1.msra.mxu0 %v3512
      %4402 = vmatprep.subr.mxu0 %v3522
      %4403 = vmatpush1.msra.mxu0 %v3521
      %4404 = vmatprep.subr.mxu0 %v3531
      %4405 = vmatpush1.msra.mxu0 %v3530
      %4406 = vmatprep.subr.mxu0 %v3540
      %4407 = vmatpush1.msra.mxu0 %v3539
      %4408 = vmatprep.subr.mxu0 %v3549
      %4409 = vmatpush1.msra.mxu0 %v3548
      %4410 = vmatprep.subr.mxu0 %v3558
      %4411 = vmatpush1.msra.mxu0 %v3557
      %4412 = vmatprep.subr.mxu0 %v3567
      %4413 = vmatpush1.msra.mxu0 %v3566
      %4414 = vmatprep.subr.mxu0 %v3576
      %4415 = vmatpush1.msra.mxu0 %v3575
      %4416 = vmatprep.subr.mxu0 %v3585
      %4417 = vmatpush1.msra.mxu0 %v3584
      %4418 = vmatprep.subr.mxu0 %v3594
      %4419 = vmatpush1.msra.mxu0 %v3593
      %4420 = vmatprep.subr.mxu0 %v3603
      %4421 = vmatpush1.msra.mxu0 %v3602
      %4422 = vmatprep.subr.mxu0 %v3612
      %4423 = vmatpush1.msra.mxu0 %v3611
      %4424 = vmatprep.subr.mxu0 %v3621
      %4425 = vmatpush1.msra.mxu0 %v3620
      %4426 = vmatprep.subr.mxu0 %v3630
      %4427 = vmatpush1.msra.mxu0 %v3629
      %4428 = vmatprep.subr.mxu0 %v3639
      %4429 = vmatpush1.msra.mxu0 %v3638
      %4430 = vmatprep.subr.mxu0 %v3648
      %4431 = vmatpush1.msra.mxu0 %v3647
      %4432 = vmatprep.mubr.f32.mxu0 %v2787
      %4433 = vmatmul.mubr.f32.gmra.mrb[0].mxu0 %v2786
      %v4434 = vpop.f32.mrb[0].mxu0
      %v4435 = vadd.f32 %v4364, %v4434
      %v4436 = vpop.f32.mrb[0].mxu0
      %v4437 = vadd.f32 %v4366, %v4436
      %4438 = vdwg.mxu0
      %4439 = vmatprep.subr.mxu0 %v3657
      %4440 = vmatpush1.msra.mxu0 %v3656
      %4441 = vmatprep.subr.mxu0 %v3666
      %4442 = vmatpush1.msra.mxu0 %v3665
      %4443 = vmatprep.subr.mxu0 %v3675
      %4444 = vmatpush1.msra.mxu0 %v3674
      %4445 = vmatprep.subr.mxu0 %v3684
      %4446 = vmatpush1.msra.mxu0 %v3683
      %4447 = vmatprep.subr.mxu0 %v3693
      %4448 = vmatpush1.msra.mxu0 %v3692
      %4449 = vmatprep.subr.mxu0 %v3702
      %4450 = vmatpush1.msra.mxu0 %v3701
      %4451 = vmatprep.subr.mxu0 %v3711
      %4452 = vmatpush1.msra.mxu0 %v3710
      %4453 = vmatprep.subr.mxu0 %v3720
      %4454 = vmatpush1.msra.mxu0 %v3719
      %4455 = vmatprep.subr.mxu0 %v3729
      %4456 = vmatpush1.msra.mxu0 %v3728
      %4457 = vmatprep.subr.mxu0 %v3738
      %4458 = vmatpush1.msra.mxu0 %v3737
      %4459 = vmatprep.subr.mxu0 %v3747
      %4460 = vmatpush1.msra.mxu0 %v3746
      %4461 = vmatprep.subr.mxu0 %v3756
      %4462 = vmatpush1.msra.mxu0 %v3755
      %4463 = vmatprep.subr.mxu0 %v3765
      %4464 = vmatpush1.msra.mxu0 %v3764
      %4465 = vmatprep.subr.mxu0 %v3774
      %4466 = vmatpush1.msra.mxu0 %v3773
      %4467 = vmatprep.subr.mxu0 %v3783
      %4468 = vmatpush1.msra.mxu0 %v3782
      %4469 = vmatprep.subr.mxu0 %v3792
      %4470 = vmatpush1.msra.mxu0 %v3791
      %4471 = vmatprep.subr.mxu0 %v3801
      %4472 = vmatpush1.msra.mxu0 %v3800
      %4473 = vmatprep.subr.mxu0 %v3810
      %4474 = vmatpush1.msra.mxu0 %v3809
      %4475 = vmatprep.subr.mxu0 %v3819
      %4476 = vmatpush1.msra.mxu0 %v3818
      %4477 = vmatprep.subr.mxu0 %v3828
      %4478 = vmatpush1.msra.mxu0 %v3827
      %4479 = vmatprep.subr.mxu0 %v3837
      %4480 = vmatpush1.msra.mxu0 %v3836
      %4481 = vmatprep.subr.mxu0 %v3846
      %4482 = vmatpush1.msra.mxu0 %v3845
      %4483 = vmatprep.subr.mxu0 %v3855
      %4484 = vmatpush1.msra.mxu0 %v3854
      %4485 = vmatprep.subr.mxu0 %v3864
      %4486 = vmatpush1.msra.mxu0 %v3863
      %4487 = vmatprep.subr.mxu0 %v3873
      %4488 = vmatpush1.msra.mxu0 %v3872
      %4489 = vmatprep.subr.mxu0 %v3882
      %4490 = vmatpush1.msra.mxu0 %v3881
      %4491 = vmatprep.subr.mxu0 %v3891
      %4492 = vmatpush1.msra.mxu0 %v3890
      %4493 = vmatprep.subr.mxu0 %v3900
      %4494 = vmatpush1.msra.mxu0 %v3899
      %4495 = vmatprep.subr.mxu0 %v3909
      %4496 = vmatpush1.msra.mxu0 %v3908
      %4497 = vmatprep.subr.mxu0 %v3918
      %4498 = vmatpush1.msra.mxu0 %v3917
      %4499 = vmatprep.subr.mxu0 %v3927
      %4500 = vmatpush1.msra.mxu0 %v3926
      %4501 = vmatprep.subr.mxu0 %v3936
      %4502 = vmatpush1.msra.mxu0 %v3935
      %4503 = vmatprep.mubr.f32.mxu0 %v2789
      %4504 = vmatmul.mubr.f32.gmra.mrb[0].mxu0 %v2788
      %v4505 = vpop.f32.mrb[0].mxu0
      %v4506 = vadd.f32 %v4435, %v4505
      %v4507 = vpop.f32.mrb[0].mxu0
      %v4508 = vadd.f32 %v4437, %v4507
      %4509 = vdwg.mxu0
      %4510 = vmatprep.subr.mxu0 %v2795
      %4511 = vmatpush1.msra.mxu0 %v2794
      %4512 = vmatprep.subr.mxu0 %v2804
      %4513 = vmatpush1.msra.mxu0 %v2803
      %4514 = vmatprep.subr.mxu0 %v2813
      %4515 = vmatpush1.msra.mxu0 %v2812
      %4516 = vmatprep.subr.mxu0 %v2822
      %4517 = vmatpush1.msra.mxu0 %v2821
      %4518 = vmatprep.subr.mxu0 %v2831
      %4519 = vmatpush1.msra.mxu0 %v2830
      %4520 = vmatprep.subr.mxu0 %v2840
      %4521 = vmatpush1.msra.mxu0 %v2839
      %4522 = vmatprep.subr.mxu0 %v2849
      %4523 = vmatpush1.msra.mxu0 %v2848
      %4524 = vmatprep.subr.mxu0 %v2858
      %4525 = vmatpush1.msra.mxu0 %v2857
      %4526 = vmatprep.subr.mxu0 %v2867
      %4527 = vmatpush1.msra.mxu0 %v2866
      %4528 = vmatprep.subr.mxu0 %v2876
      %4529 = vmatpush1.msra.mxu0 %v2875
      %4530 = vmatprep.subr.mxu0 %v2885
      %4531 = vmatpush1.msra.mxu0 %v2884
      %4532 = vmatprep.subr.mxu0 %v2894
      %4533 = vmatpush1.msra.mxu0 %v2893
      %4534 = vmatprep.subr.mxu0 %v2903
      %4535 = vmatpush1.msra.mxu0 %v2902
      %4536 = vmatprep.subr.mxu0 %v2912
      %4537 = vmatpush1.msra.mxu0 %v2911
      %4538 = vmatprep.subr.mxu0 %v2921
      %4539 = vmatpush1.msra.mxu0 %v2920
      %4540 = vmatprep.subr.mxu0 %v2930
      %4541 = vmatpush1.msra.mxu0 %v2929
      %4542 = vmatprep.subr.mxu0 %v2939
      %4543 = vmatpush1.msra.mxu0 %v2938
      %4544 = vmatprep.subr.mxu0 %v2948
      %4545 = vmatpush1.msra.mxu0 %v2947
      %4546 = vmatprep.subr.mxu0 %v2957
      %4547 = vmatpush1.msra.mxu0 %v2956
      %4548 = vmatprep.subr.mxu0 %v2966
      %4549 = vmatpush1.msra.mxu0 %v2965
      %4550 = vmatprep.subr.mxu0 %v2975
      %4551 = vmatpush1.msra.mxu0 %v2974
      %4552 = vmatprep.subr.mxu0 %v2984
      %4553 = vmatpush1.msra.mxu0 %v2983
      %4554 = vmatprep.subr.mxu0 %v2993
      %4555 = vmatpush1.msra.mxu0 %v2992
      %4556 = vmatprep.subr.mxu0 %v3002
      %4557 = vmatpush1.msra.mxu0 %v3001
      %4558 = vmatprep.subr.mxu0 %v3011
      %4559 = vmatpush1.msra.mxu0 %v3010
      %4560 = vmatprep.subr.mxu0 %v3020
      %4561 = vmatpush1.msra.mxu0 %v3019
      %4562 = vmatprep.subr.mxu0 %v3029
      %4563 = vmatpush1.msra.mxu0 %v3028
      %4564 = vmatprep.subr.mxu0 %v3038
      %4565 = vmatpush1.msra.mxu0 %v3037
      %4566 = vmatprep.subr.mxu0 %v3047
      %4567 = vmatpush1.msra.mxu0 %v3046
      %4568 = vmatprep.subr.mxu0 %v3056
      %4569 = vmatpush1.msra.mxu0 %v3055
      %4570 = vmatprep.subr.mxu0 %v3065
      %4571 = vmatpush1.msra.mxu0 %v3064
      %4572 = vmatprep.subr.mxu0 %v3074
      %4573 = vmatpush1.msra.mxu0 %v3073
      %4574 = vmatprep.mubr.f32.mxu0 %v2783
      %4575 = vmatmul.mubr.f32.gmra.mrb[0].mxu0 %v2782
      %v4576 = vpop.f32.mrb[0].mxu0
      %v4577 = vadd.f32 0.0, %v4576
      %v4578 = vpop.f32.mrb[0].mxu0
      %v4579 = vadd.f32 0.0, %v4578
      %4580 = vdwg.mxu0
      %4581 = vmatprep.subr.mxu0 %v3083
      %4582 = vmatpush1.msra.mxu0 %v3082
      %4583 = vmatprep.subr.mxu0 %v3092
      %4584 = vmatpush1.msra.mxu0 %v3091
      %4585 = vmatprep.subr.mxu0 %v3101
      %4586 = vmatpush1.msra.mxu0 %v3100
      %4587 = vmatprep.subr.mxu0 %v3110
      %4588 = vmatpush1.msra.mxu0 %v3109
      %4589 = vmatprep.subr.mxu0 %v3119
      %4590 = vmatpush1.msra.mxu0 %v3118
      %4591 = vmatprep.subr.mxu0 %v3128
      %4592 = vmatpush1.msra.mxu0 %v3127
      %4593 = vmatprep.subr.mxu0 %v3137
      %4594 = vmatpush1.msra.mxu0 %v3136
      %4595 = vmatprep.subr.mxu0 %v3146
      %4596 = vmatpush1.msra.mxu0 %v3145
      %4597 = vmatprep.subr.mxu0 %v3155
      %4598 = vmatpush1.msra.mxu0 %v3154
      %4599 = vmatprep.subr.mxu0 %v3164
      %4600 = vmatpush1.msra.mxu0 %v3163
      %4601 = vmatprep.subr.mxu0 %v3173
      %4602 = vmatpush1.msra.mxu0 %v3172
      %4603 = vmatprep.subr.mxu0 %v3182
      %4604 = vmatpush1.msra.mxu0 %v3181
      %4605 = vmatprep.subr.mxu0 %v3191
      %4606 = vmatpush1.msra.mxu0 %v3190
      %4607 = vmatprep.subr.mxu0 %v3200
      %4608 = vmatpush1.msra.mxu0 %v3199
      %4609 = vmatprep.subr.mxu0 %v3209
      %4610 = vmatpush1.msra.mxu0 %v3208
      %4611 = vmatprep.subr.mxu0 %v3218
      %4612 = vmatpush1.msra.mxu0 %v3217
      %4613 = vmatprep.subr.mxu0 %v3227
      %4614 = vmatpush1.msra.mxu0 %v3226
      %4615 = vmatprep.subr.mxu0 %v3236
      %4616 = vmatpush1.msra.mxu0 %v3235
      %4617 = vmatprep.subr.mxu0 %v3245
      %4618 = vmatpush1.msra.mxu0 %v3244
      %4619 = vmatprep.subr.mxu0 %v3254
      %4620 = vmatpush1.msra.mxu0 %v3253
      %4621 = vmatprep.subr.mxu0 %v3263
      %4622 = vmatpush1.msra.mxu0 %v3262
      %4623 = vmatprep.subr.mxu0 %v3272
      %4624 = vmatpush1.msra.mxu0 %v3271
      %4625 = vmatprep.subr.mxu0 %v3281
      %4626 = vmatpush1.msra.mxu0 %v3280
      %4627 = vmatprep.subr.mxu0 %v3290
      %4628 = vmatpush1.msra.mxu0 %v3289
      %4629 = vmatprep.subr.mxu0 %v3299
      %4630 = vmatpush1.msra.mxu0 %v3298
      %4631 = vmatprep.subr.mxu0 %v3308
      %4632 = vmatpush1.msra.mxu0 %v3307
      %4633 = vmatprep.subr.mxu0 %v3317
      %4634 = vmatpush1.msra.mxu0 %v3316
      %4635 = vmatprep.subr.mxu0 %v3326
      %4636 = vmatpush1.msra.mxu0 %v3325
      %4637 = vmatprep.subr.mxu0 %v3335
      %4638 = vmatpush1.msra.mxu0 %v3334
      %4639 = vmatprep.subr.mxu0 %v3344
      %4640 = vmatpush1.msra.mxu0 %v3343
      %4641 = vmatprep.subr.mxu0 %v3353
      %4642 = vmatpush1.msra.mxu0 %v3352
      %4643 = vmatprep.subr.mxu0 %v3362
      %4644 = vmatpush1.msra.mxu0 %v3361
      %4645 = vmatprep.mubr.f32.mxu0 %v2785
      %4646 = vmatmul.mubr.f32.gmra.mrb[0].mxu0 %v2784
      %v4647 = vpop.f32.mrb[0].mxu0
      %v4648 = vadd.f32 %v4577, %v4647
      %v4649 = vpop.f32.mrb[0].mxu0
      %v4650 = vadd.f32 %v4579, %v4649
      %4651 = vdwg.mxu0
      %4652 = vmatprep.subr.mxu0 %v3371
      %4653 = vmatpush1.msra.mxu0 %v3370
      %4654 = vmatprep.subr.mxu0 %v3380
      %4655 = vmatpush1.msra.mxu0 %v3379
      %4656 = vmatprep.subr.mxu0 %v3389
      %4657 = vmatpush1.msra.mxu0 %v3388
      %4658 = vmatprep.subr.mxu0 %v3398
      %4659 = vmatpush1.msra.mxu0 %v3397
      %4660 = vmatprep.subr.mxu0 %v3407
      %4661 = vmatpush1.msra.mxu0 %v3406
      %4662 = vmatprep.subr.mxu0 %v3416
      %4663 = vmatpush1.msra.mxu0 %v3415
      %4664 = vmatprep.subr.mxu0 %v3425
      %4665 = vmatpush1.msra.mxu0 %v3424
      %4666 = vmatprep.subr.mxu0 %v3434
      %4667 = vmatpush1.msra.mxu0 %v3433
      %4668 = vmatprep.subr.mxu0 %v3443
      %4669 = vmatpush1.msra.mxu0 %v3442
      %4670 = vmatprep.subr.mxu0 %v3452
      %4671 = vmatpush1.msra.mxu0 %v3451
      %4672 = vmatprep.subr.mxu0 %v3461
      %4673 = vmatpush1.msra.mxu0 %v3460
      %4674 = vmatprep.subr.mxu0 %v3470
      %4675 = vmatpush1.msra.mxu0 %v3469
      %4676 = vmatprep.subr.mxu0 %v3479
      %4677 = vmatpush1.msra.mxu0 %v3478
      %4678 = vmatprep.subr.mxu0 %v3488
      %4679 = vmatpush1.msra.mxu0 %v3487
      %4680 = vmatprep.subr.mxu0 %v3497
      %4681 = vmatpush1.msra.mxu0 %v3496
      %4682 = vmatprep.subr.mxu0 %v3506
      %4683 = vmatpush1.msra.mxu0 %v3505
      %4684 = vmatprep.subr.mxu0 %v3515
      %4685 = vmatpush1.msra.mxu0 %v3514
      %4686 = vmatprep.subr.mxu0 %v3524
      %4687 = vmatpush1.msra.mxu0 %v3523
      %4688 = vmatprep.subr.mxu0 %v3533
      %4689 = vmatpush1.msra.mxu0 %v3532
      %4690 = vmatprep.subr.mxu0 %v3542
      %4691 = vmatpush1.msra.mxu0 %v3541
      %4692 = vmatprep.subr.mxu0 %v3551
      %4693 = vmatpush1.msra.mxu0 %v3550
      %4694 = vmatprep.subr.mxu0 %v3560
      %4695 = vmatpush1.msra.mxu0 %v3559
      %4696 = vmatprep.subr.mxu0 %v3569
      %4697 = vmatpush1.msra.mxu0 %v3568
      %4698 = vmatprep.subr.mxu0 %v3578
      %4699 = vmatpush1.msra.mxu0 %v3577
      %4700 = vmatprep.subr.mxu0 %v3587
      %4701 = vmatpush1.msra.mxu0 %v3586
      %4702 = vmatprep.subr.mxu0 %v3596
      %4703 = vmatpush1.msra.mxu0 %v3595
      %4704 = vmatprep.subr.mxu0 %v3605
      %4705 = vmatpush1.msra.mxu0 %v3604
      %4706 = vmatprep.subr.mxu0 %v3614
      %4707 = vmatpush1.msra.mxu0 %v3613
      %4708 = vmatprep.subr.mxu0 %v3623
      %4709 = vmatpush1.msra.mxu0 %v3622
      %4710 = vmatprep.subr.mxu0 %v3632
      %4711 = vmatpush1.msra.mxu0 %v3631
      %4712 = vmatprep.subr.mxu0 %v3641
      %4713 = vmatpush1.msra.mxu0 %v3640
      %4714 = vmatprep.subr.mxu0 %v3650
      %4715 = vmatpush1.msra.mxu0 %v3649
      %4716 = vmatprep.mubr.f32.mxu0 %v2787
      %4717 = vmatmul.mubr.f32.gmra.mrb[0].mxu0 %v2786
      %v4718 = vpop.f32.mrb[0].mxu0
      %v4719 = vadd.f32 %v4648, %v4718
      %v4720 = vpop.f32.mrb[0].mxu0
      %v4721 = vadd.f32 %v4650, %v4720
      %4722 = vdwg.mxu0
      %4723 = vmatprep.subr.mxu0 %v3659
      %4724 = vmatpush1.msra.mxu0 %v3658
      %4725 = vmatprep.subr.mxu0 %v3668
      %4726 = vmatpush1.msra.mxu0 %v3667
      %4727 = vmatprep.subr.mxu0 %v3677
      %4728 = vmatpush1.msra.mxu0 %v3676
      %4729 = vmatprep.subr.mxu0 %v3686
      %4730 = vmatpush1.msra.mxu0 %v3685
      %4731 = vmatprep.subr.mxu0 %v3695
      %4732 = vmatpush1.msra.mxu0 %v3694
      %4733 = vmatprep.subr.mxu0 %v3704
      %4734 = vmatpush1.msra.mxu0 %v3703
      %4735 = vmatprep.subr.mxu0 %v3713
      %4736 = vmatpush1.msra.mxu0 %v3712
      %4737 = vmatprep.subr.mxu0 %v3722
      %4738 = vmatpush1.msra.mxu0 %v3721
      %4739 = vmatprep.subr.mxu0 %v3731
      %4740 = vmatpush1.msra.mxu0 %v3730
      %4741 = vmatprep.subr.mxu0 %v3740
      %4742 = vmatpush1.msra.mxu0 %v3739
      %4743 = vmatprep.subr.mxu0 %v3749
      %4744 = vmatpush1.msra.mxu0 %v3748
      %4745 = vmatprep.subr.mxu0 %v3758
      %4746 = vmatpush1.msra.mxu0 %v3757
      %4747 = vmatprep.subr.mxu0 %v3767
      %4748 = vmatpush1.msra.mxu0 %v3766
      %4749 = vmatprep.subr.mxu0 %v3776
      %4750 = vmatpush1.msra.mxu0 %v3775
      %4751 = vmatprep.subr.mxu0 %v3785
      %4752 = vmatpush1.msra.mxu0 %v3784
      %4753 = vmatprep.subr.mxu0 %v3794
      %4754 = vmatpush1.msra.mxu0 %v3793
      %4755 = vmatprep.subr.mxu0 %v3803
      %4756 = vmatpush1.msra.mxu0 %v3802
      %4757 = vmatprep.subr.mxu0 %v3812
      %4758 = vmatpush1.msra.mxu0 %v3811
      %4759 = vmatprep.subr.mxu0 %v3821
      %4760 = vmatpush1.msra.mxu0 %v3820
      %4761 = vmatprep.subr.mxu0 %v3830
      %4762 = vmatpush1.msra.mxu0 %v3829
      %4763 = vmatprep.subr.mxu0 %v3839
      %4764 = vmatpush1.msra.mxu0 %v3838
      %4765 = vmatprep.subr.mxu0 %v3848
      %4766 = vmatpush1.msra.mxu0 %v3847
      %4767 = vmatprep.subr.mxu0 %v3857
      %4768 = vmatpush1.msra.mxu0 %v3856
      %4769 = vmatprep.subr.mxu0 %v3866
      %4770 = vmatpush1.msra.mxu0 %v3865
      %4771 = vmatprep.subr.mxu0 %v3875
      %4772 = vmatpush1.msra.mxu0 %v3874
      %4773 = vmatprep.subr.mxu0 %v3884
      %4774 = vmatpush1.msra.mxu0 %v3883
      %4775 = vmatprep.subr.mxu0 %v3893
      %4776 = vmatpush1.msra.mxu0 %v3892
      %4777 = vmatprep.subr.mxu0 %v3902
      %4778 = vmatpush1.msra.mxu0 %v3901
      %4779 = vmatprep.subr.mxu0 %v3911
      %4780 = vmatpush1.msra.mxu0 %v3910
      %4781 = vmatprep.subr.mxu0 %v3920
      %4782 = vmatpush1.msra.mxu0 %v3919
      %4783 = vmatprep.subr.mxu0 %v3929
      %4784 = vmatpush1.msra.mxu0 %v3928
      %4785 = vmatprep.subr.mxu0 %v3938
      %4786 = vmatpush1.msra.mxu0 %v3937
      %4787 = vmatprep.mubr.f32.mxu0 %v2789
      %4788 = vmatmul.mubr.f32.gmra.mrb[0].mxu0 %v2788
      %v4789 = vpop.f32.mrb[0].mxu0
      %v4790 = vadd.f32 %v4719, %v4789
      %v4791 = vpop.f32.mrb[0].mxu0
      %v4792 = vadd.f32 %v4721, %v4791
      %4793 = vdwg.mxu0
      %4794 = vmatprep.subr.mxu0 %v2797
      %4795 = vmatpush1.msra.mxu0 %v2796
      %4796 = vmatprep.subr.mxu0 %v2806
      %4797 = vmatpush1.msra.mxu0 %v2805
      %4798 = vmatprep.subr.mxu0 %v2815
      %4799 = vmatpush1.msra.mxu0 %v2814
      %4800 = vmatprep.subr.mxu0 %v2824
      %4801 = vmatpush1.msra.mxu0 %v2823
      %4802 = vmatprep.subr.mxu0 %v2833
      %4803 = vmatpush1.msra.mxu0 %v2832
      %4804 = vmatprep.subr.mxu0 %v2842
      %4805 = vmatpush1.msra.mxu0 %v2841
      %4806 = vmatprep.subr.mxu0 %v2851
      %4807 = vmatpush1.msra.mxu0 %v2850
      %4808 = vmatprep.subr.mxu0 %v2860
      %4809 = vmatpush1.msra.mxu0 %v2859
      %4810 = vmatprep.subr.mxu0 %v2869
      %4811 = vmatpush1.msra.mxu0 %v2868
      %4812 = vmatprep.subr.mxu0 %v2878
      %4813 = vmatpush1.msra.mxu0 %v2877
      %4814 = vmatprep.subr.mxu0 %v2887
      %4815 = vmatpush1.msra.mxu0 %v2886
      %4816 = vmatprep.subr.mxu0 %v2896
      %4817 = vmatpush1.msra.mxu0 %v2895
      %4818 = vmatprep.subr.mxu0 %v2905
      %4819 = vmatpush1.msra.mxu0 %v2904
      %4820 = vmatprep.subr.mxu0 %v2914
      %4821 = vmatpush1.msra.mxu0 %v2913
      %4822 = vmatprep.subr.mxu0 %v2923
      %4823 = vmatpush1.msra.mxu0 %v2922
      %4824 = vmatprep.subr.mxu0 %v2932
      %4825 = vmatpush1.msra.mxu0 %v2931
      %4826 = vmatprep.subr.mxu0 %v2941
      %4827 = vmatpush1.msra.mxu0 %v2940
      %4828 = vmatprep.subr.mxu0 %v2950
      %4829 = vmatpush1.msra.mxu0 %v2949
      %4830 = vmatprep.subr.mxu0 %v2959
      %4831 = vmatpush1.msra.mxu0 %v2958
      %4832 = vmatprep.subr.mxu0 %v2968
      %4833 = vmatpush1.msra.mxu0 %v2967
      %4834 = vmatprep.subr.mxu0 %v2977
      %4835 = vmatpush1.msra.mxu0 %v2976
      %4836 = vmatprep.subr.mxu0 %v2986
      %4837 = vmatpush1.msra.mxu0 %v2985
      %4838 = vmatprep.subr.mxu0 %v2995
      %4839 = vmatpush1.msra.mxu0 %v2994
      %4840 = vmatprep.subr.mxu0 %v3004
      %4841 = vmatpush1.msra.mxu0 %v3003
      %4842 = vmatprep.subr.mxu0 %v3013
      %4843 = vmatpush1.msra.mxu0 %v3012
      %4844 = vmatprep.subr.mxu0 %v3022
      %4845 = vmatpush1.msra.mxu0 %v3021
      %4846 = vmatprep.subr.mxu0 %v3031
      %4847 = vmatpush1.msra.mxu0 %v3030
      %4848 = vmatprep.subr.mxu0 %v3040
      %4849 = vmatpush1.msra.mxu0 %v3039
      %4850 = vmatprep.subr.mxu0 %v3049
      %4851 = vmatpush1.msra.mxu0 %v3048
      %4852 = vmatprep.subr.mxu0 %v3058
      %4853 = vmatpush1.msra.mxu0 %v3057
      %4854 = vmatprep.subr.mxu0 %v3067
      %4855 = vmatpush1.msra.mxu0 %v3066
      %4856 = vmatprep.subr.mxu0 %v3076
      %4857 = vmatpush1.msra.mxu0 %v3075
      %4858 = vmatprep.mubr.f32.mxu0 %v2783
      %4859 = vmatmul.mubr.f32.gmra.mrb[0].mxu0 %v2782
      %v4860 = vpop.f32.mrb[0].mxu0
      %v4861 = vadd.f32 0.0, %v4860
      %v4862 = vpop.f32.mrb[0].mxu0
      %v4863 = vadd.f32 0.0, %v4862
      %4864 = vdwg.mxu0
      %4865 = vmatprep.subr.mxu0 %v3085
      %4866 = vmatpush1.msra.mxu0 %v3084
      %4867 = vmatprep.subr.mxu0 %v3094
      %4868 = vmatpush1.msra.mxu0 %v3093
      %4869 = vmatprep.subr.mxu0 %v3103
      %4870 = vmatpush1.msra.mxu0 %v3102
      %4871 = vmatprep.subr.mxu0 %v3112
      %4872 = vmatpush1.msra.mxu0 %v3111
      %4873 = vmatprep.subr.mxu0 %v3121
      %4874 = vmatpush1.msra.mxu0 %v3120
      %4875 = vmatprep.subr.mxu0 %v3130
      %4876 = vmatpush1.msra.mxu0 %v3129
      %4877 = vmatprep.subr.mxu0 %v3139
      %4878 = vmatpush1.msra.mxu0 %v3138
      %4879 = vmatprep.subr.mxu0 %v3148
      %4880 = vmatpush1.msra.mxu0 %v3147
      %4881 = vmatprep.subr.mxu0 %v3157
      %4882 = vmatpush1.msra.mxu0 %v3156
      %4883 = vmatprep.subr.mxu0 %v3166
      %4884 = vmatpush1.msra.mxu0 %v3165
      %4885 = vmatprep.subr.mxu0 %v3175
      %4886 = vmatpush1.msra.mxu0 %v3174
      %4887 = vmatprep.subr.mxu0 %v3184
      %4888 = vmatpush1.msra.mxu0 %v3183
      %4889 = vmatprep.subr.mxu0 %v3193
      %4890 = vmatpush1.msra.mxu0 %v3192
      %4891 = vmatprep.subr.mxu0 %v3202
      %4892 = vmatpush1.msra.mxu0 %v3201
      %4893 = vmatprep.subr.mxu0 %v3211
      %4894 = vmatpush1.msra.mxu0 %v3210
      %4895 = vmatprep.subr.mxu0 %v3220
      %4896 = vmatpush1.msra.mxu0 %v3219
      %4897 = vmatprep.subr.mxu0 %v3229
      %4898 = vmatpush1.msra.mxu0 %v3228
      %4899 = vmatprep.subr.mxu0 %v3238
      %4900 = vmatpush1.msra.mxu0 %v3237
      %4901 = vmatprep.subr.mxu0 %v3247
      %4902 = vmatpush1.msra.mxu0 %v3246
      %4903 = vmatprep.subr.mxu0 %v3256
      %4904 = vmatpush1.msra.mxu0 %v3255
      %4905 = vmatprep.subr.mxu0 %v3265
      %4906 = vmatpush1.msra.mxu0 %v3264
      %4907 = vmatprep.subr.mxu0 %v3274
      %4908 = vmatpush1.msra.mxu0 %v3273
      %4909 = vmatprep.subr.mxu0 %v3283
      %4910 = vmatpush1.msra.mxu0 %v3282
      %4911 = vmatprep.subr.mxu0 %v3292
      %4912 = vmatpush1.msra.mxu0 %v3291
      %4913 = vmatprep.subr.mxu0 %v3301
      %4914 = vmatpush1.msra.mxu0 %v3300
      %4915 = vmatprep.subr.mxu0 %v3310
      %4916 = vmatpush1.msra.mxu0 %v3309
      %4917 = vmatprep.subr.mxu0 %v3319
      %4918 = vmatpush1.msra.mxu0 %v3318
      %4919 = vmatprep.subr.mxu0 %v3328
      %4920 = vmatpush1.msra.mxu0 %v3327
      %4921 = vmatprep.subr.mxu0 %v3337
      %4922 = vmatpush1.msra.mxu0 %v3336
      %4923 = vmatprep.subr.mxu0 %v3346
      %4924 = vmatpush1.msra.mxu0 %v3345
      %4925 = vmatprep.subr.mxu0 %v3355
      %4926 = vmatpush1.msra.mxu0 %v3354
      %4927 = vmatprep.subr.mxu0 %v3364
      %4928 = vmatpush1.msra.mxu0 %v3363
      %4929 = vmatprep.mubr.f32.mxu0 %v2785
      %4930 = vmatmul.mubr.f32.gmra.mrb[0].mxu0 %v2784
      %v4931 = vpop.f32.mrb[0].mxu0
      %v4932 = vadd.f32 %v4861, %v4931
      %v4933 = vpop.f32.mrb[0].mxu0
      %v4934 = vadd.f32 %v4863, %v4933
      %4935 = vdwg.mxu0
      %4936 = vmatprep.subr.mxu0 %v3373
      %4937 = vmatpush1.msra.mxu0 %v3372
      %4938 = vmatprep.subr.mxu0 %v3382
      %4939 = vmatpush1.msra.mxu0 %v3381
      %4940 = vmatprep.subr.mxu0 %v3391
      %4941 = vmatpush1.msra.mxu0 %v3390
      %4942 = vmatprep.subr.mxu0 %v3400
      %4943 = vmatpush1.msra.mxu0 %v3399
      %4944 = vmatprep.subr.mxu0 %v3409
      %4945 = vmatpush1.msra.mxu0 %v3408
      %4946 = vmatprep.subr.mxu0 %v3418
      %4947 = vmatpush1.msra.mxu0 %v3417
      %4948 = vmatprep.subr.mxu0 %v3427
      %4949 = vmatpush1.msra.mxu0 %v3426
      %4950 = vmatprep.subr.mxu0 %v3436
      %4951 = vmatpush1.msra.mxu0 %v3435
      %4952 = vmatprep.subr.mxu0 %v3445
      %4953 = vmatpush1.msra.mxu0 %v3444
      %4954 = vmatprep.subr.mxu0 %v3454
      %4955 = vmatpush1.msra.mxu0 %v3453
      %4956 = vmatprep.subr.mxu0 %v3463
      %4957 = vmatpush1.msra.mxu0 %v3462
      %4958 = vmatprep.subr.mxu0 %v3472
      %4959 = vmatpush1.msra.mxu0 %v3471
      %4960 = vmatprep.subr.mxu0 %v3481
      %4961 = vmatpush1.msra.mxu0 %v3480
      %4962 = vmatprep.subr.mxu0 %v3490
      %4963 = vmatpush1.msra.mxu0 %v3489
      %4964 = vmatprep.subr.mxu0 %v3499
      %4965 = vmatpush1.msra.mxu0 %v3498
      %4966 = vmatprep.subr.mxu0 %v3508
      %4967 = vmatpush1.msra.mxu0 %v3507
      %4968 = vmatprep.subr.mxu0 %v3517
      %4969 = vmatpush1.msra.mxu0 %v3516
      %4970 = vmatprep.subr.mxu0 %v3526
      %4971 = vmatpush1.msra.mxu0 %v3525
      %4972 = vmatprep.subr.mxu0 %v3535
      %4973 = vmatpush1.msra.mxu0 %v3534
      %4974 = vmatprep.subr.mxu0 %v3544
      %4975 = vmatpush1.msra.mxu0 %v3543
      %4976 = vmatprep.subr.mxu0 %v3553
      %4977 = vmatpush1.msra.mxu0 %v3552
      %4978 = vmatprep.subr.mxu0 %v3562
      %4979 = vmatpush1.msra.mxu0 %v3561
      %4980 = vmatprep.subr.mxu0 %v3571
      %4981 = vmatpush1.msra.mxu0 %v3570
      %4982 = vmatprep.subr.mxu0 %v3580
      %4983 = vmatpush1.msra.mxu0 %v3579
      %4984 = vmatprep.subr.mxu0 %v3589
      %4985 = vmatpush1.msra.mxu0 %v3588
      %4986 = vmatprep.subr.mxu0 %v3598
      %4987 = vmatpush1.msra.mxu0 %v3597
      %4988 = vmatprep.subr.mxu0 %v3607
      %4989 = vmatpush1.msra.mxu0 %v3606
      %4990 = vmatprep.subr.mxu0 %v3616
      %4991 = vmatpush1.msra.mxu0 %v3615
      %4992 = vmatprep.subr.mxu0 %v3625
      %4993 = vmatpush1.msra.mxu0 %v3624
      %4994 = vmatprep.subr.mxu0 %v3634
      %4995 = vmatpush1.msra.mxu0 %v3633
      %4996 = vmatprep.subr.mxu0 %v3643
      %4997 = vmatpush1.msra.mxu0 %v3642
      %4998 = vmatprep.subr.mxu0 %v3652
      %4999 = vmatpush1.msra.mxu0 %v3651
      %5000 = vmatprep.mubr.f32.mxu0 %v2787
      %5001 = vmatmul.mubr.f32.gmra.mrb[0].mxu0 %v2786
      %v5002 = vpop.f32.mrb[0].mxu0
      %v5003 = vadd.f32 %v4932, %v5002
      %v5004 = vpop.f32.mrb[0].mxu0
      %v5005 = vadd.f32 %v4934, %v5004
      %5006 = vdwg.mxu0
      %5007 = vmatprep.subr.mxu0 %v3661
      %5008 = vmatpush1.msra.mxu0 %v3660
      %5009 = vmatprep.subr.mxu0 %v3670
      %5010 = vmatpush1.msra.mxu0 %v3669
      %5011 = vmatprep.subr.mxu0 %v3679
      %5012 = vmatpush1.msra.mxu0 %v3678
      %5013 = vmatprep.subr.mxu0 %v3688
      %5014 = vmatpush1.msra.mxu0 %v3687
      %5015 = vmatprep.subr.mxu0 %v3697
      %5016 = vmatpush1.msra.mxu0 %v3696
      %5017 = vmatprep.subr.mxu0 %v3706
      %5018 = vmatpush1.msra.mxu0 %v3705
      %5019 = vmatprep.subr.mxu0 %v3715
      %5020 = vmatpush1.msra.mxu0 %v3714
      %5021 = vmatprep.subr.mxu0 %v3724
      %5022 = vmatpush1.msra.mxu0 %v3723
      %5023 = vmatprep.subr.mxu0 %v3733
      %5024 = vmatpush1.msra.mxu0 %v3732
      %5025 = vmatprep.subr.mxu0 %v3742
      %5026 = vmatpush1.msra.mxu0 %v3741
      %5027 = vmatprep.subr.mxu0 %v3751
      %5028 = vmatpush1.msra.mxu0 %v3750
      %5029 = vmatprep.subr.mxu0 %v3760
      %5030 = vmatpush1.msra.mxu0 %v3759
      %5031 = vmatprep.subr.mxu0 %v3769
      %5032 = vmatpush1.msra.mxu0 %v3768
      %5033 = vmatprep.subr.mxu0 %v3778
      %5034 = vmatpush1.msra.mxu0 %v3777
      %5035 = vmatprep.subr.mxu0 %v3787
      %5036 = vmatpush1.msra.mxu0 %v3786
      %5037 = vmatprep.subr.mxu0 %v3796
      %5038 = vmatpush1.msra.mxu0 %v3795
      %5039 = vmatprep.subr.mxu0 %v3805
      %5040 = vmatpush1.msra.mxu0 %v3804
      %5041 = vmatprep.subr.mxu0 %v3814
      %5042 = vmatpush1.msra.mxu0 %v3813
      %5043 = vmatprep.subr.mxu0 %v3823
      %5044 = vmatpush1.msra.mxu0 %v3822
      %5045 = vmatprep.subr.mxu0 %v3832
      %5046 = vmatpush1.msra.mxu0 %v3831
      %5047 = vmatprep.subr.mxu0 %v3841
      %5048 = vmatpush1.msra.mxu0 %v3840
      %5049 = vmatprep.subr.mxu0 %v3850
      %5050 = vmatpush1.msra.mxu0 %v3849
      %5051 = vmatprep.subr.mxu0 %v3859
      %5052 = vmatpush1.msra.mxu0 %v3858
      %5053 = vmatprep.subr.mxu0 %v3868
      %5054 = vmatpush1.msra.mxu0 %v3867
      %5055 = vmatprep.subr.mxu0 %v3877
      %5056 = vmatpush1.msra.mxu0 %v3876
      %5057 = vmatprep.subr.mxu0 %v3886
      %5058 = vmatpush1.msra.mxu0 %v3885
      %5059 = vmatprep.subr.mxu0 %v3895
      %5060 = vmatpush1.msra.mxu0 %v3894
      %5061 = vmatprep.subr.mxu0 %v3904
      %5062 = vmatpush1.msra.mxu0 %v3903
      %5063 = vmatprep.subr.mxu0 %v3913
      %5064 = vmatpush1.msra.mxu0 %v3912
      %5065 = vmatprep.subr.mxu0 %v3922
      %5066 = vmatpush1.msra.mxu0 %v3921
      %5067 = vmatprep.subr.mxu0 %v3931
      %5068 = vmatpush1.msra.mxu0 %v3930
      %5069 = vmatprep.subr.mxu0 %v3940
      %5070 = vmatpush1.msra.mxu0 %v3939
      %5071 = vmatprep.mubr.f32.mxu0 %v2789
      %5072 = vmatmul.mubr.f32.gmra.mrb[0].mxu0 %v2788
      %v5073 = vpop.f32.mrb[0].mxu0
      %v5074 = vadd.f32 %v5003, %v5073
      %v5075 = vpop.f32.mrb[0].mxu0
      %v5076 = vadd.f32 %v5005, %v5075
      %5077 = vdwg.mxu0
      %5078 = vmatprep.subr.mxu0 0.0
      %5079 = vmatpush1.msra.mxu0 %v2798
      %5080 = vmatprep.subr.mxu0 0.0
      %5081 = vmatpush1.msra.mxu0 %v2807
      %5082 = vmatprep.subr.mxu0 0.0
      %5083 = vmatpush1.msra.mxu0 %v2816
      %5084 = vmatprep.subr.mxu0 0.0
      %5085 = vmatpush1.msra.mxu0 %v2825
      %5086 = vmatprep.subr.mxu0 0.0
      %5087 = vmatpush1.msra.mxu0 %v2834
      %5088 = vmatprep.subr.mxu0 0.0
      %5089 = vmatpush1.msra.mxu0 %v2843
      %5090 = vmatprep.subr.mxu0 0.0
      %5091 = vmatpush1.msra.mxu0 %v2852
      %5092 = vmatprep.subr.mxu0 0.0
      %5093 = vmatpush1.msra.mxu0 %v2861
      %5094 = vmatprep.subr.mxu0 0.0
      %5095 = vmatpush1.msra.mxu0 %v2870
      %5096 = vmatprep.subr.mxu0 0.0
      %5097 = vmatpush1.msra.mxu0 %v2879
      %5098 = vmatprep.subr.mxu0 0.0
      %5099 = vmatpush1.msra.mxu0 %v2888
      %5100 = vmatprep.subr.mxu0 0.0
      %5101 = vmatpush1.msra.mxu0 %v2897
      %5102 = vmatprep.subr.mxu0 0.0
      %5103 = vmatpush1.msra.mxu0 %v2906
      %5104 = vmatprep.subr.mxu0 0.0
      %5105 = vmatpush1.msra.mxu0 %v2915
      %5106 = vmatprep.subr.mxu0 0.0
      %5107 = vmatpush1.msra.mxu0 %v2924
      %5108 = vmatprep.subr.mxu0 0.0
      %5109 = vmatpush1.msra.mxu0 %v2933
      %5110 = vmatprep.subr.mxu0 0.0
      %5111 = vmatpush1.msra.mxu0 %v2942
      %5112 = vmatprep.subr.mxu0 0.0
      %5113 = vmatpush1.msra.mxu0 %v2951
      %5114 = vmatprep.subr.mxu0 0.0
      %5115 = vmatpush1.msra.mxu0 %v2960
      %5116 = vmatprep.subr.mxu0 0.0
      %5117 = vmatpush1.msra.mxu0 %v2969
      %5118 = vmatprep.subr.mxu0 0.0
      %5119 = vmatpush1.msra.mxu0 %v2978
      %5120 = vmatprep.subr.mxu0 0.0
      %5121 = vmatpush1.msra.mxu0 %v2987
      %5122 = vmatprep.subr.mxu0 0.0
      %5123 = vmatpush1.msra.mxu0 %v2996
      %5124 = vmatprep.subr.mxu0 0.0
      %5125 = vmatpush1.msra.mxu0 %v3005
      %5126 = vmatprep.subr.mxu0 0.0
      %5127 = vmatpush1.msra.mxu0 %v3014
      %5128 = vmatprep.subr.mxu0 0.0
      %5129 = vmatpush1.msra.mxu0 %v3023
      %5130 = vmatprep.subr.mxu0 0.0
      %5131 = vmatpush1.msra.mxu0 %v3032
      %5132 = vmatprep.subr.mxu0 0.0
      %5133 = vmatpush1.msra.mxu0 %v3041
      %5134 = vmatprep.subr.mxu0 0.0
      %5135 = vmatpush1.msra.mxu0 %v3050
      %5136 = vmatprep.subr.mxu0 0.0
      %5137 = vmatpush1.msra.mxu0 %v3059
      %5138 = vmatprep.subr.mxu0 0.0
      %5139 = vmatpush1.msra.mxu0 %v3068
      %5140 = vmatprep.subr.mxu0 0.0
      %5141 = vmatpush1.msra.mxu0 %v3077
      %5142 = vmatprep.mubr.f32.mxu0 %v2783
      %5143 = vmatmul.mubr.f32.gmra.mrb[0].mxu0 %v2782
      %v5144 = vpop.f32.mrb[0].mxu0
      %v5145 = vadd.f32 0.0, %v5144
      %v5146 = vpop.f32.mrb[0].mxu0
      %5147 = vdwg.mxu0
      %5148 = vmatprep.subr.mxu0 0.0
      %5149 = vmatpush1.msra.mxu0 %v3086
      %5150 = vmatprep.subr.mxu0 0.0
      %5151 = vmatpush1.msra.mxu0 %v3095
      %5152 = vmatprep.subr.mxu0 0.0
      %5153 = vmatpush1.msra.mxu0 %v3104
      %5154 = vmatprep.subr.mxu0 0.0
      %5155 = vmatpush1.msra.mxu0 %v3113
      %5156 = vmatprep.subr.mxu0 0.0
      %5157 = vmatpush1.msra.mxu0 %v3122
      %5158 = vmatprep.subr.mxu0 0.0
      %5159 = vmatpush1.msra.mxu0 %v3131
      %5160 = vmatprep.subr.mxu0 0.0
      %5161 = vmatpush1.msra.mxu0 %v3140
      %5162 = vmatprep.subr.mxu0 0.0
      %5163 = vmatpush1.msra.mxu0 %v3149
      %5164 = vmatprep.subr.mxu0 0.0
      %5165 = vmatpush1.msra.mxu0 %v3158
      %5166 = vmatprep.subr.mxu0 0.0
      %5167 = vmatpush1.msra.mxu0 %v3167
      %5168 = vmatprep.subr.mxu0 0.0
      %5169 = vmatpush1.msra.mxu0 %v3176
      %5170 = vmatprep.subr.mxu0 0.0
      %5171 = vmatpush1.msra.mxu0 %v3185
      %5172 = vmatprep.subr.mxu0 0.0
      %5173 = vmatpush1.msra.mxu0 %v3194
      %5174 = vmatprep.subr.mxu0 0.0
      %5175 = vmatpush1.msra.mxu0 %v3203
      %5176 = vmatprep.subr.mxu0 0.0
      %5177 = vmatpush1.msra.mxu0 %v3212
      %5178 = vmatprep.subr.mxu0 0.0
      %5179 = vmatpush1.msra.mxu0 %v3221
      %5180 = vmatprep.subr.mxu0 0.0
      %5181 = vmatpush1.msra.mxu0 %v3230
      %5182 = vmatprep.subr.mxu0 0.0
      %5183 = vmatpush1.msra.mxu0 %v3239
      %5184 = vmatprep.subr.mxu0 0.0
      %5185 = vmatpush1.msra.mxu0 %v3248
      %5186 = vmatprep.subr.mxu0 0.0
      %5187 = vmatpush1.msra.mxu0 %v3257
      %5188 = vmatprep.subr.mxu0 0.0
      %5189 = vmatpush1.msra.mxu0 %v3266
      %5190 = vmatprep.subr.mxu0 0.0
      %5191 = vmatpush1.msra.mxu0 %v3275
      %5192 = vmatprep.subr.mxu0 0.0
      %5193 = vmatpush1.msra.mxu0 %v3284
      %5194 = vmatprep.subr.mxu0 0.0
      %5195 = vmatpush1.msra.mxu0 %v3293
      %5196 = vmatprep.subr.mxu0 0.0
      %5197 = vmatpush1.msra.mxu0 %v3302
      %5198 = vmatprep.subr.mxu0 0.0
      %5199 = vmatpush1.msra.mxu0 %v3311
      %5200 = vmatprep.subr.mxu0 0.0
      %5201 = vmatpush1.msra.mxu0 %v3320
      %5202 = vmatprep.subr.mxu0 0.0
      %5203 = vmatpush1.msra.mxu0 %v3329
      %5204 = vmatprep.subr.mxu0 0.0
      %5205 = vmatpush1.msra.mxu0 %v3338
      %5206 = vmatprep.subr.mxu0 0.0
      %5207 = vmatpush1.msra.mxu0 %v3347
      %5208 = vmatprep.subr.mxu0 0.0
      %5209 = vmatpush1.msra.mxu0 %v3356
      %5210 = vmatprep.subr.mxu0 0.0
      %5211 = vmatpush1.msra.mxu0 %v3365
      %5212 = vmatprep.mubr.f32.mxu0 %v2785
      %5213 = vmatmul.mubr.f32.gmra.mrb[0].mxu0 %v2784
      %v5214 = vpop.f32.mrb[0].mxu0
      %v5215 = vadd.f32 %v5145, %v5214
      %v5216 = vpop.f32.mrb[0].mxu0
      %5217 = vdwg.mxu0
      %5218 = vmatprep.subr.mxu0 0.0
      %5219 = vmatpush1.msra.mxu0 %v3374
      %5220 = vmatprep.subr.mxu0 0.0
      %5221 = vmatpush1.msra.mxu0 %v3383
      %5222 = vmatprep.subr.mxu0 0.0
      %5223 = vmatpush1.msra.mxu0 %v3392
      %5224 = vmatprep.subr.mxu0 0.0
      %5225 = vmatpush1.msra.mxu0 %v3401
      %5226 = vmatprep.subr.mxu0 0.0
      %5227 = vmatpush1.msra.mxu0 %v3410
      %5228 = vmatprep.subr.mxu0 0.0
      %5229 = vmatpush1.msra.mxu0 %v3419
      %5230 = vmatprep.subr.mxu0 0.0
      %5231 = vmatpush1.msra.mxu0 %v3428
      %5232 = vmatprep.subr.mxu0 0.0
      %5233 = vmatpush1.msra.mxu0 %v3437
      %5234 = vmatprep.subr.mxu0 0.0
      %5235 = vmatpush1.msra.mxu0 %v3446
      %5236 = vmatprep.subr.mxu0 0.0
      %5237 = vmatpush1.msra.mxu0 %v3455
      %5238 = vmatprep.subr.mxu0 0.0
      %5239 = vmatpush1.msra.mxu0 %v3464
      %5240 = vmatprep.subr.mxu0 0.0
      %5241 = vmatpush1.msra.mxu0 %v3473
      %5242 = vmatprep.subr.mxu0 0.0
      %5243 = vmatpush1.msra.mxu0 %v3482
      %5244 = vmatprep.subr.mxu0 0.0
      %5245 = vmatpush1.msra.mxu0 %v3491
      %5246 = vmatprep.subr.mxu0 0.0
      %5247 = vmatpush1.msra.mxu0 %v3500
      %5248 = vmatprep.subr.mxu0 0.0
      %5249 = vmatpush1.msra.mxu0 %v3509
      %5250 = vmatprep.subr.mxu0 0.0
      %5251 = vmatpush1.msra.mxu0 %v3518
      %5252 = vmatprep.subr.mxu0 0.0
      %5253 = vmatpush1.msra.mxu0 %v3527
      %5254 = vmatprep.subr.mxu0 0.0
      %5255 = vmatpush1.msra.mxu0 %v3536
      %5256 = vmatprep.subr.mxu0 0.0
      %5257 = vmatpush1.msra.mxu0 %v3545
      %5258 = vmatprep.subr.mxu0 0.0
      %5259 = vmatpush1.msra.mxu0 %v3554
      %5260 = vmatprep.subr.mxu0 0.0
      %5261 = vmatpush1.msra.mxu0 %v3563
      %5262 = vmatprep.subr.mxu0 0.0
      %5263 = vmatpush1.msra.mxu0 %v3572
      %5264 = vmatprep.subr.mxu0 0.0
      %5265 = vmatpush1.msra.mxu0 %v3581
      %5266 = vmatprep.subr.mxu0 0.0
      %5267 = vmatpush1.msra.mxu0 %v3590
      %5268 = vmatprep.subr.mxu0 0.0
      %5269 = vmatpush1.msra.mxu0 %v3599
      %5270 = vmatprep.subr.mxu0 0.0
      %5271 = vmatpush1.msra.mxu0 %v3608
      %5272 = vmatprep.subr.mxu0 0.0
      %5273 = vmatpush1.msra.mxu0 %v3617
      %5274 = vmatprep.subr.mxu0 0.0
      %5275 = vmatpush1.msra.mxu0 %v3626
      %5276 = vmatprep.subr.mxu0 0.0
      %5277 = vmatpush1.msra.mxu0 %v3635
      %5278 = vmatprep.subr.mxu0 0.0
      %5279 = vmatpush1.msra.mxu0 %v3644
      %5280 = vmatprep.subr.mxu0 0.0
      %5281 = vmatpush1.msra.mxu0 %v3653
      %5282 = vmatprep.mubr.f32.mxu0 %v2787
      %5283 = vmatmul.mubr.f32.gmra.mrb[0].mxu0 %v2786
      %v5284 = vpop.f32.mrb[0].mxu0
      %v5285 = vadd.f32 %v5215, %v5284
      %v5286 = vpop.f32.mrb[0].mxu0
      %5287 = vdwg.mxu0
      %5288 = vmatprep.subr.mxu0 0.0
      %5289 = vmatpush1.msra.mxu0 %v3662
      %5290 = vmatprep.subr.mxu0 0.0
      %5291 = vmatpush1.msra.mxu0 %v3671
      %5292 = vmatprep.subr.mxu0 0.0
      %5293 = vmatpush1.msra.mxu0 %v3680
      %5294 = vmatprep.subr.mxu0 0.0
      %5295 = vmatpush1.msra.mxu0 %v3689
      %5296 = vmatprep.subr.mxu0 0.0
      %5297 = vmatpush1.msra.mxu0 %v3698
      %5298 = vmatprep.subr.mxu0 0.0
      %5299 = vmatpush1.msra.mxu0 %v3707
      %5300 = vmatprep.subr.mxu0 0.0
      %5301 = vmatpush1.msra.mxu0 %v3716
      %5302 = vmatprep.subr.mxu0 0.0
      %5303 = vmatpush1.msra.mxu0 %v3725
      %5304 = vmatprep.subr.mxu0 0.0
      %5305 = vmatpush1.msra.mxu0 %v3734
      %5306 = vmatprep.subr.mxu0 0.0
      %5307 = vmatpush1.msra.mxu0 %v3743
      %5308 = vmatprep.subr.mxu0 0.0
      %5309 = vmatpush1.msra.mxu0 %v3752
      %5310 = vmatprep.subr.mxu0 0.0
      %5311 = vmatpush1.msra.mxu0 %v3761
      %5312 = vmatprep.subr.mxu0 0.0
      %5313 = vmatpush1.msra.mxu0 %v3770
      %5314 = vmatprep.subr.mxu0 0.0
      %5315 = vmatpush1.msra.mxu0 %v3779
      %5316 = vmatprep.subr.mxu0 0.0
      %5317 = vmatpush1.msra.mxu0 %v3788
      %5318 = vmatprep.subr.mxu0 0.0
      %5319 = vmatpush1.msra.mxu0 %v3797
      %5320 = vmatprep.subr.mxu0 0.0
      %5321 = vmatpush1.msra.mxu0 %v3806
      %5322 = vmatprep.subr.mxu0 0.0
      %5323 = vmatpush1.msra.mxu0 %v3815
      %5324 = vmatprep.subr.mxu0 0.0
      %5325 = vmatpush1.msra.mxu0 %v3824
      %5326 = vmatprep.subr.mxu0 0.0
      %5327 = vmatpush1.msra.mxu0 %v3833
      %5328 = vmatprep.subr.mxu0 0.0
      %5329 = vmatpush1.msra.mxu0 %v3842
      %5330 = vmatprep.subr.mxu0 0.0
      %5331 = vmatpush1.msra.mxu0 %v3851
      %5332 = vmatprep.subr.mxu0 0.0
      %5333 = vmatpush1.msra.mxu0 %v3860
      %5334 = vmatprep.subr.mxu0 0.0
      %5335 = vmatpush1.msra.mxu0 %v3869
      %5336 = vmatprep.subr.mxu0 0.0
      %5337 = vmatpush1.msra.mxu0 %v3878
      %5338 = vmatprep.subr.mxu0 0.0
      %5339 = vmatpush1.msra.mxu0 %v3887
      %5340 = vmatprep.subr.mxu0 0.0
      %5341 = vmatpush1.msra.mxu0 %v3896
      %5342 = vmatprep.subr.mxu0 0.0
      %5343 = vmatpush1.msra.mxu0 %v3905
      %5344 = vmatprep.subr.mxu0 0.0
      %5345 = vmatpush1.msra.mxu0 %v3914
      %5346 = vmatprep.subr.mxu0 0.0
      %5347 = vmatpush1.msra.mxu0 %v3923
      %5348 = vmatprep.subr.mxu0 0.0
      %5349 = vmatpush1.msra.mxu0 %v3932
      %5350 = vmatprep.subr.mxu0 0.0
      %5351 = vmatpush1.msra.mxu0 %v3941
      %5352 = vmatprep.mubr.f32.mxu0 %v2789
      %5353 = vmatmul.mubr.f32.gmra.mrb[0].mxu0 %v2788
      %v5354 = vpop.f32.mrb[0].mxu0
      %v5355 = vadd.f32 %v5285, %v5354
      %v5356 = vpop.f32.mrb[0].mxu0
      %5357 = vdwg.mxu0
      %vm5358 = vcmask 0
      %5359 = vst.msk [vmem:[#allocation7] sm:$0x1] %vm5358, 0.0
      %vm5360 = vcmask 6144
      %5361 = vst.msk [vmem:[#allocation7 + $0x1] sm:$0x7f] %vm5360, %v5355
      %v5362 = vlaneseq
      %v5363 = vand.u32 %v5362, 127
      %v5364 = vadd.s32 %v5363, 128
      %v5365 = vadd.s32 %v5363, 256
      %v5366 = vadd.s32 %v5363, 384
      %v5367 = vadd.s32 %v5363, 512
      %v5368 = vadd.s32 %v5363, 640
      %v5369 = vadd.s32 %v5363, 768
      %v5370 = vadd.s32 %v5363, 896
      %vm5371 = vcmp.eq.s32.totalorder %v5363, 0
      %vm5372 = vcmp.eq.s32.totalorder %v5364, 0
      %vm5373 = vcmp.eq.s32.totalorder %v5365, 0
      %vm5374 = vcmp.eq.s32.totalorder %v5366, 0
      %vm5375 = vcmp.eq.s32.totalorder %v5367, 0
      %vm5376 = vcmp.eq.s32.totalorder %v5368, 0
      %vm5377 = vcmp.eq.s32.totalorder %v5369, 0
      %vm5378 = vcmp.eq.s32.totalorder %v5370, 0
      %v5379 = vld [vmem:[#allocation7] sm:$0xff]
      %5381 = vset.pattern.permute.xlu0 0
      %5382 = vperm.xlu0 %5381, %v5379
      %v5383 = vpop.permute.xlu0 %5382
      %v5385 = vsel %vm5371, %v5383, 0.0
      %v5386 = vsel %vm5372, %v5383, 0.0
      %v5387 = vsel %vm5373, %v5383, 0.0
      %v5388 = vsel %vm5374, %v5383, 0.0
      %v5389 = vsel %vm5375, %v5383, 0.0
      %v5390 = vsel %vm5376, %v5383, 0.0
      %v5391 = vsel %vm5377, %v5383, 0.0
      %v5392 = vsel %vm5378, %v5383, 0.0
      %v5393 = vadd.f32 %v4222, %v5385
      %v5394 = vadd.f32 %v4224, %v5386
      %v5395 = vadd.f32 %v4506, %v5387
      %v5396 = vadd.f32 %v4508, %v5388
      %v5397 = vadd.f32 %v4790, %v5389
      %v5398 = vadd.f32 %v4792, %v5390
      %v5399 = vadd.f32 %v5074, %v5391
      %v5400 = vadd.f32 %v5076, %v5392
      %v5401 = vld [vmem:[%s12] sm:$0xff]
      %v5403 = vlaneseq
      %v5404 = vshrl.u32 %v5403, 7
      %v5405 = vsub.s32 0, %v5404
      %v5406 = vrot.slane %v5401, %v5405
      %v5407 = vlaneseq
      %v5408 = vshrl.u32 %v5407, 7
      %v5409 = vsub.s32 1, %v5408
      %v5410 = vrot.slane %v5401, %v5409
      %v5411 = vlaneseq
      %v5412 = vshrl.u32 %v5411, 7
      %v5413 = vsub.s32 2, %v5412
      %v5414 = vrot.slane %v5401, %v5413
      %v5415 = vlaneseq
      %v5416 = vshrl.u32 %v5415, 7
      %v5417 = vsub.s32 3, %v5416
      %v5418 = vrot.slane %v5401, %v5417
      %v5419 = vlaneseq
      %v5420 = vshrl.u32 %v5419, 7
      %v5421 = vsub.s32 4, %v5420
      %v5422 = vrot.slane %v5401, %v5421
      %v5423 = vlaneseq
      %v5424 = vshrl.u32 %v5423, 7
      %v5425 = vsub.s32 5, %v5424
      %v5426 = vrot.slane %v5401, %v5425
      %v5427 = vlaneseq
      %v5428 = vshrl.u32 %v5427, 7
      %v5429 = vsub.s32 6, %v5428
      %v5430 = vrot.slane %v5401, %v5429
      %v5431 = vlaneseq
      %v5432 = vshrl.u32 %v5431, 7
      %v5433 = vsub.s32 7, %v5432
      %v5434 = vrot.slane %v5401, %v5433
      %v5443 = vadd.f32 %v5393, %v5406
      %v5444 = vadd.f32 %v5394, %v5410
      %v5445 = vadd.f32 %v5395, %v5414
      %v5446 = vadd.f32 %v5396, %v5418
      %v5447 = vadd.f32 %v5397, %v5422
      %v5448 = vadd.f32 %v5398, %v5426
      %v5449 = vadd.f32 %v5399, %v5430
      %v5450 = vadd.f32 %v5400, %v5434
      %v5451 = vtanh.pop %v5443
      %v5452 = vtanh.pop %v5444
      %v5453 = vtanh.pop %v5445
      %v5454 = vtanh.pop %v5446
      %v5455 = vtanh.pop %v5447
      %v5456 = vtanh.pop %v5448
      %v5457 = vtanh.pop %v5449
      %v5458 = vtanh.pop %v5450
      %5459 = vst [vmem:[%s545] sm:$0xff] %v5451
      %5460 = vst [vmem:[%s545 + $0x8] sm:$0xff] %v5452
      %5461 = vst [vmem:[%s545 + $0x10] sm:$0xff] %v5453
      %5462 = vst [vmem:[%s545 + $0x18] sm:$0xff] %v5454
      %5463 = vst [vmem:[%s545 + $0x20] sm:$0xff] %v5455
      %5464 = vst [vmem:[%s545 + $0x28] sm:$0xff] %v5456
      %5465 = vst [vmem:[%s545 + $0x30] sm:$0xff] %v5457
      %5466 = vst [vmem:[%s545 + $0x38] sm:$0xff] %v5458
      %p5467 = scmp.lt.s32.totalorder %s28, 1
      %s5468 = scalar_select %p5467, %s28, 1
      %s5469 = smul.addr %s5468, 8
      %s5470 = smul.addr %s5469, 8
      %s5471 = scalar_lea.vmem %s17, %s5470
      // Predicated region
      $region89: #{generator_forward.1} parent=87 // pred_check
        %p5472 = pneg %p408
      $region90: #{generator_forward.1} parent=87 // pred_check_branch
        %5474 = sbr.rel (%p5472) target = $region92
      $region91: #{generator_forward.1} parent=87 // pred_region
        _
      $region92: #{generator_forward.1} parent=87 // pred_fallthru
        _
    $region88: #{generator_forward.1} parent=5 // pred_fallthru
      _
    %p5475 = scmp.le.s32.totalorder 2, %s23
    // Predicated region
    $region93: #{generator_forward.1} parent=5 // pred_check
      %p5476 = pneg %p5475
    $region94: #{generator_forward.1} parent=5 // pred_check_branch
      %5478 = sbr.rel (%p5476) target = $region96
    $region95: #{generator_forward.1} parent=5 // pred_region
      %s5479 = ssub.s32 %s23, 2
      // Predicated region
      $region97: #{generator_forward.1} parent=95 // pred_check
        %p5480 = pneg %p414
      $region98: #{generator_forward.1} parent=95 // pred_check_branch
        %5482 = sbr.rel (%p5480) target = $region100
      $region99: #{generator_forward.1} parent=95 // pred_region
        %p5483 = scmp.lt.s32.totalorder %s29, 1
        %s5484 = scalar_select %p5483, %s29, 1
        %s5485 = smul.addr %s5484, 8
        %s5486 = smul.addr %s5485, 8
        %s5487 = scalar_lea.vmem %s17, %s5486
      $region100: #{generator_forward.1} parent=95 // pred_fallthru
        _
    $region96: #{generator_forward.1} parent=5 // pred_fallthru
      _
  $region6: #{generator_forward.1} parent=0 // loop_footer
    %s27 = sadd.s32 1, %s23
  $region7: #{generator_forward.1} parent=0 // loop_footer_branch
    %22 = sbr.rel target = $region3
  $region8: #{generator_forward.1} parent=0 // loop_exit
    _

</llo_original>
